<compile_context>
chip_gen: v7x
topology: tpu7x:2x2x1
jax: 0.10.0
libtpu: 0.0.40
codegen_flags: <defaults>
</compile_context>

<pallas_src>
import functools

import jax
import jax.numpy as jnp
from jax import lax
from jax.experimental import pallas as pl
from jax.experimental.pallas import tpu as pltpu

LN_EPS = 1e-5
_GELU_C = 0.7978845608028654  # sqrt(2/pi)


def _gelu(x):
    # TODO(synk): nn.GELU() default is exact erf GELU; tanh approximation is used because it
    # lowers cleanly to the TPU EUP (~1e-3 relative divergence, fine for inference).
    return 0.5 * x * (1.0 + jnp.tanh(_GELU_C * (x + 0.044715 * x * x * x)))


def _layernorm(x, g, b):
    mu = jnp.mean(x, axis=-1, keepdims=True)
    var = jnp.mean((x - mu) ** 2, axis=-1, keepdims=True)
    return (x - mu) * lax.rsqrt(var + LN_EPS) * g + b


def _bf16(x):
    return x.astype(jnp.bfloat16)


# --------------------------------------------------------------------------- fused kernel

def fused_forward_kernel(
        # per-micro-batch inputs
        xp_ref, te_ref,
        # upsampling weights (constant index_map -> fetched once)
        conv_w, conv_b, up_w, up_b, uf_w1, uf_b1, uf_w2, uf_b2,
        # per-block weights (stacked on a leading n_blocks axis, streamed along grid axis 1)
        ln1g, ln1b, wqkv, bqkv, wo, bo, ln2g, ln2b, fw1, fb1, fw2, fb2,
        # head weights (constant index_map -> fetched once)
        hd_lng, hd_lnb, hd_w, hd_b,
        # output + VMEM-resident activation
        out_ref, act_ref, *, n_heads, lags):
    j = pl.program_id(1)
    n_blk = pl.num_programs(1)
    BT = xp_ref.shape[0]                             # micro-batch of series per grid step
    L = lags
    D = act_ref.shape[-1]
    dh = D // n_heads
    scale = 1.0 / (dh ** 0.5)

    # ---- stage 1: PUpsampling (once per micro-batch, before block 0) --------------------
    @pl.when(j == 0)
    def _upsample():
        for b in range(BT):
            # Conv1d(1, D, k=P, s=P): non-overlapping patches (W, P) @ (P, D) -> (W, D).
            hb = jnp.dot(_bf16(xp_ref[b]), conv_w[...],
                         preferred_element_type=jnp.float32) + conv_b[...]
            # conv_activation=None -> identity.
            # Width-upsample Linear(W -> L) over the time axis: (L, W) @ (W, D) -> (L, D).
            ub = jnp.dot(up_w[...], _bf16(hb),
                         preferred_element_type=jnp.float32) + up_b[...]
            act_ref[b * L:(b + 1) * L, :] = ub + te_ref[b]   # + per-series embedding
        # GELU FFN (expansion 4) + residual on the stacked (BT*L, D) activation.
        u = act_ref[...]
        f = jnp.dot(_bf16(_gelu(jnp.dot(_bf16(u), uf_w1[...],
                                        preferred_element_type=jnp.float32) + uf_b1[...])),
                    uf_w2[...], preferred_element_type=jnp.float32) + uf_b2[...]
        act_ref[...] = u + f                         # dropouts are eval no-ops

    # ---- stage 2: attention block j (pre-norm MHSA + GELU FFN, both residual) -----------
    x = act_ref[...]                                 # (BT*L, D) fp32, VMEM-resident
    h = _layernorm(x, ln1g[...], ln1b[...])
    qkv = jnp.dot(_bf16(h), wqkv[...],               # fused QKV on the stacked operand
                  preferred_element_type=jnp.float32) + bqkv[...]
    wo_v = wo[...]                                   # (D, D) bf16, loaded once per block

    # Per-series (L, L) attention.  Heads accumulate straight into the output projection
    # (acc += (p @ vh) @ Wo[lo:lo+dh, :]) — no concatenate, no extra (L,D)@(D,D) matmul.
    # NOTE: per-head slices are relayout-free only when dh % 128 == 0 (production shapes).
    # TODO(synk): for lags >~ 1-2k on v7x, tile the key axis with an online softmax instead
    # of materializing the full (L, L) fp32 score tensor.
    for b in range(BT):
        r = b * L
        acc = None
        for hh in range(n_heads):
            lo = hh * dh
            qh = _bf16(qkv[r:r + L, lo:lo + dh] * scale)          # fold 1/sqrt(dh) into q
            kh = _bf16(qkv[r:r + L, D + lo:D + lo + dh])
            vh = _bf16(qkv[r:r + L, 2 * D + lo:2 * D + lo + dh])
            s = lax.dot_general(qh, kh, (((1,), (1,)), ((), ())),
                                preferred_element_type=jnp.float32)       # (L, L)
            s = s - jnp.max(s, axis=-1, keepdims=True)
            e = jnp.exp(s)
            p = e * pl.reciprocal(jnp.sum(e, axis=-1, keepdims=True), approx=True)
            pv = jnp.dot(_bf16(p), vh, preferred_element_type=jnp.float32)  # (L, dh)
            part = jnp.dot(_bf16(pv), wo_v[lo:lo + dh, :],
                           preferred_element_type=jnp.float32)              # (L, D)
            acc = part if acc is None else acc + part
        act_ref[r:r + L, :] = x[r:r + L, :] + acc + bo[...]       # attention residual

    x2 = act_ref[...]
    h2 = _layernorm(x2, ln2g[...], ln2b[...])
    f = jnp.dot(_bf16(_gelu(jnp.dot(_bf16(h2), fw1[...],
                                    preferred_element_type=jnp.float32) + fb1[...])),
                fw2[...], preferred_element_type=jnp.float32) + fb2[...]
    x_out = x2 + f
    act_ref[...] = x_out

    # ---- stage 3: LayerNorm + Linear(D -> 1) head (after the last block) ----------------
    @pl.when(j == n_blk - 1)
    def _head():
        hn = _layernorm(x_out, hd_lng[...], hd_lnb[...])
        w = _bf16(hd_w[...])                                      # (1, D) bf16 MXU path
        for b in range(BT):
            # Linear(D -> 1) emitted lane-dense as a (1, L) row (contract the D axis).
            y = lax.dot_general(w, _bf16(hn[b * L:(b + 1) * L, :]),
                                (((1,), (1,)), ((), ())),
                                preferred_element_type=jnp.float32) + hd_b[...]
            out_ref[b] = y.astype(out_ref.dtype)                  # (1, L)


# --------------------------------------------------------------------------- wrapper

def model_forward(x_series, ts_ids, params, *, lags, pool_size, n_heads, b_tile=2):
    B = x_series.shape[0]
    P = pool_size
    W = lags // P
    D = params['conv_w'].shape[1]
    E = params['up_ffn_w1'].shape[1]
    nb = params['blk_wqkv'].shape[0]
    assert B % b_tile == 0, "batch must be divisible by the micro-batch tile"
    # v7x: keep the 'parallel' batch-grid length (B // b_tile) even so both TCs stay busy.

    xp = x_series.reshape(B, W, P)                   # Conv1d stride == kernel -> patches
    te = params['ts_emb'][ts_ids][:, None, :]        # embedding gather (JAX glue), (B,1,D)

    kern = functools.partial(fused_forward_kernel, n_heads=n_heads, lags=lags)

    def build_and_run(single_buffer_constants):
        def _rep(shape):
            """Full-array block, constant index -> DMA'd once across all grid steps."""
            n = len(shape)
            idx = lambda i, j, _n=n: (0,) * _n
            if single_buffer_constants:
                # Constant block index never changes -> double-buffering is pure VMEM waste.
                return pl.BlockSpec(shape, idx, pipeline_mode=pl.Buffered(1))
            return pl.BlockSpec(shape, idx)

        def _blk(shape):
            """Per-attention-block slice of a (n_blocks, ...) weight, streamed along j."""
            # TODO(synk): on v5e, raise to pl.Buffered(3) if the per-step weight DMA is
            # still exposed after micro-batching (do NOT copy to v7x's 64 MiB VMEM).
            n = len(shape)
            return pl.BlockSpec((None,) + shape, lambda i, j, _n=n: (j,) + (0,) * _n)

        in_specs = [
            pl.BlockSpec((b_tile, W, P), lambda i, j: (i, 0, 0)),    # xp patches
            pl.BlockSpec((b_tile, 1, D), lambda i, j: (i, 0, 0)),    # ts embedding rows
            _rep((P, D)), _rep((1, D)),                              # conv
            _rep((lags, W)), _rep((lags, 1)),                        # width-upsample linear
            _rep((D, E)), _rep((1, E)), _rep((E, D)), _rep((1, D)),  # upsampling FFN
            _blk((1, D)), _blk((1, D)),                              # ln1
            _blk((D, 3 * D)), _blk((1, 3 * D)),                      # fused QKV
            _blk((D, D)), _blk((1, D)),                              # attention out proj
            _blk((1, D)), _blk((1, D)),                              # ln2
            _blk((D, E)), _blk((1, E)), _blk((E, D)), _blk((1, D)),  # block FFN
            _rep((1, D)), _rep((1, D)), _rep((1, D)), _rep((1, 1)),  # head LN + Linear(D,1)
        ]

        out = pl.pallas_call(
            kern,
            out_shape=jax.ShapeDtypeStruct((B, 1, lags), jnp.float32),
            grid=(B // b_tile, nb),
            in_specs=in_specs,
            out_specs=pl.BlockSpec((b_tile, 1, lags), lambda i, j: (i, 0, 0)),
            scratch_shapes=[pltpu.VMEM((b_tile * lags, D), jnp.float32)],  # resident act
            compiler_params=pltpu.CompilerParams(
                dimension_semantics=("parallel", "arbitrary"),
                # TODO(synk): re-derive for production D (>=768 needs K-tiled FFN weights on
                # v7x's 64 MiB VMEM); 64 MiB is safe on v5e/v6e and within v7x physical.
                vmem_limit_bytes=64 * 1024 * 1024),
        )(xp, te,
          params['conv_w'], params['conv_b'], params['up_w'], params['up_b'],
          params['up_ffn_w1'], params['up_ffn_b1'], params['up_ffn_w2'], params['up_ffn_b2'],
          params['blk_ln1_g'], params['blk_ln1_b'], params['blk_wqkv'], params['blk_bqkv'],
          params['blk_wo'], params['blk_bo'], params['blk_ln2_g'], params['blk_ln2_b'],
          params['blk_w1'], params['blk_b1'], params['blk_w2'], params['blk_b2'],
          params['head_ln_g'], params['head_ln_b'], params['head_w'], params['head_b'])
        return jax.block_until_ready(out)

    try:
        out = build_and_run(True)
    except Exception:
        # TODO(synk): pl.Buffered(1) (single-buffered constant weights) not supported by this
        # jax/Mosaic build; fall back to default double-buffering (correctness-identical).
        out = build_and_run(False)
    return out[:, 0, :]                              # == PyTorch .squeeze(-2): (B, L)


# --------------------------------------------------------------------------- params

def init_params(key, *, lags, D, P, n_blocks, num_ts, expansion=4):
    W = lags // P
    E = expansion * D
    keys = iter(jax.random.split(key, 64))
    f32, bf16 = jnp.float32, jnp.bfloat16

    def nrm(shape, dtype=bf16, scale=0.02):
        return (scale * jax.random.normal(next(keys), shape, f32)).astype(dtype)

    return dict(
        # PUpsampling
        conv_w=nrm((P, D)),                         # Conv1d(1,D,k=P,s=P) weight (D,1,P) -> (P,D)
        conv_b=nrm((1, D), f32),
        up_w=nrm((lags, W)),                        # Linear(W -> lags) along the time axis
        up_b=nrm((lags, 1), f32),
        ts_emb=nrm((num_ts, D), f32),               # nn.Embedding(number_ts, D)
        up_ffn_w1=nrm((D, E)), up_ffn_b1=nrm((1, E), f32),
        up_ffn_w2=nrm((E, D)), up_ffn_b2=nrm((1, D), f32),
        # attention blocks, stacked along a leading n_blocks axis (streamed per grid step)
        blk_ln1_g=jnp.ones((n_blocks, 1, D), f32), blk_ln1_b=jnp.zeros((n_blocks, 1, D), f32),
        blk_wqkv=nrm((n_blocks, D, 3 * D)),         # fused Wq | Wk | Wv
        blk_bqkv=nrm((n_blocks, 1, 3 * D), f32),
        blk_wo=nrm((n_blocks, D, D)), blk_bo=nrm((n_blocks, 1, D), f32),
        blk_ln2_g=jnp.ones((n_blocks, 1, D), f32), blk_ln2_b=jnp.zeros((n_blocks, 1, D), f32),
        blk_w1=nrm((n_blocks, D, E)), blk_b1=nrm((n_blocks, 1, E), f32),
        blk_w2=nrm((n_blocks, E, D)), blk_b2=nrm((n_blocks, 1, D), f32),
        # head
        head_ln_g=jnp.ones((1, D), f32), head_ln_b=jnp.zeros((1, D), f32),
        head_w=nrm((1, D), f32), head_b=nrm((1, 1), f32),
    )


# --------------------------------------------------------------------------- main

if __name__ == "__main__":
    # Small shapes consistent with the module (lags divisible by pool_size, D by heads,
    # batch divisible by the micro-batch tile).
    LAGS, D, POOL, N_BLOCKS, N_HEADS, N_TS, B, B_TILE = 16, 32, 4, 2, 4, 8, 4, 2

    key = jax.random.PRNGKey(0)
    kx, kp = jax.random.split(key)
    x_series = jax.random.normal(kx, (B, LAGS), jnp.float32)     # x[0]: the series
    ts_ids = (jnp.arange(B) % N_TS).astype(jnp.int32)            # x[1]: time-series ids

    params = init_params(kp, lags=LAGS, D=D, P=POOL, n_blocks=N_BLOCKS, num_ts=N_TS)

    out = model_forward(x_series, ts_ids, params,
                        lags=LAGS, pool_size=POOL, n_heads=N_HEADS, b_tile=B_TILE)
    out = jax.block_until_ready(out)
    assert out.shape == (B, LAGS) and out.dtype == jnp.float32
    print("KERNEL_OK")
</pallas_src>

<mosaic_0001>
module attributes {stable_mosaic.version = 11 : i64} {
  func.func @fused_forward_kernel(%arg0: i32, %arg1: i32, %arg2: memref<2x4x4xf32, #tpu.memory_space<vmem>>, %arg3: memref<2x1x32xf32, #tpu.memory_space<vmem>>, %arg4: memref<4x32xbf16, #tpu.memory_space<vmem>>, %arg5: memref<1x32xf32, #tpu.memory_space<vmem>>, %arg6: memref<16x4xbf16, #tpu.memory_space<vmem>>, %arg7: memref<16x1xf32, #tpu.memory_space<vmem>>, %arg8: memref<32x128xbf16, #tpu.memory_space<vmem>>, %arg9: memref<1x128xf32, #tpu.memory_space<vmem>>, %arg10: memref<128x32xbf16, #tpu.memory_space<vmem>>, %arg11: memref<1x32xf32, #tpu.memory_space<vmem>>, %arg12: memref<1x1x32xf32, #tpu.memory_space<vmem>>, %arg13: memref<1x1x32xf32, #tpu.memory_space<vmem>>, %arg14: memref<1x32x96xbf16, #tpu.memory_space<vmem>>, %arg15: memref<1x1x96xf32, #tpu.memory_space<vmem>>, %arg16: memref<1x32x32xbf16, #tpu.memory_space<vmem>>, %arg17: memref<1x1x32xf32, #tpu.memory_space<vmem>>, %arg18: memref<1x1x32xf32, #tpu.memory_space<vmem>>, %arg19: memref<1x1x32xf32, #tpu.memory_space<vmem>>, %arg20: memref<1x32x128xbf16, #tpu.memory_space<vmem>>, %arg21: memref<1x1x128xf32, #tpu.memory_space<vmem>>, %arg22: memref<1x128x32xbf16, #tpu.memory_space<vmem>>, %arg23: memref<1x1x32xf32, #tpu.memory_space<vmem>>, %arg24: memref<1x32xf32, #tpu.memory_space<vmem>>, %arg25: memref<1x32xf32, #tpu.memory_space<vmem>>, %arg26: memref<1x32xf32, #tpu.memory_space<vmem>>, %arg27: memref<1x1xf32, #tpu.memory_space<vmem>>, %arg28: memref<2x1x16xf32, #tpu.memory_space<vmem>>, %arg29: memref<32x32xf32, #tpu.memory_space<vmem>>) attributes {dimension_semantics = [#tpu.dimension_semantics<parallel>, #tpu.dimension_semantics<arbitrary>], iteration_bounds = array<i64: 2, 2>, scalar_prefetch = 0 : i64, scratch_operands = 1 : i64, tpu.core_type = #tpu.core_type<tc>, window_params = [{transform_indices = @transform_0, window_bounds = array<i64: 2, 4, 4>}, {transform_indices = @transform_1, window_bounds = array<i64: 2, 1, 32>}, {pipeline_mode = #tpu.pipeline_mode<synchronous>, transform_indices = @transform_2, window_bounds = array<i64: 4, 32>}, {pipeline_mode = #tpu.pipeline_mode<synchronous>, transform_indices = @transform_3, window_bounds = array<i64: 1, 32>}, {pipeline_mode = #tpu.pipeline_mode<synchronous>, transform_indices = @transform_4, window_bounds = array<i64: 16, 4>}, {pipeline_mode = #tpu.pipeline_mode<synchronous>, transform_indices = @transform_5, window_bounds = array<i64: 16, 1>}, {pipeline_mode = #tpu.pipeline_mode<synchronous>, transform_indices = @transform_6, window_bounds = array<i64: 32, 128>}, {pipeline_mode = #tpu.pipeline_mode<synchronous>, transform_indices = @transform_7, window_bounds = array<i64: 1, 128>}, {pipeline_mode = #tpu.pipeline_mode<synchronous>, transform_indices = @transform_8, window_bounds = array<i64: 128, 32>}, {pipeline_mode = #tpu.pipeline_mode<synchronous>, transform_indices = @transform_9, window_bounds = array<i64: 1, 32>}, {transform_indices = @transform_10, window_bounds = array<i64: 1, 1, 32>}, {transform_indices = @transform_11, window_bounds = array<i64: 1, 1, 32>}, {transform_indices = @transform_12, window_bounds = array<i64: 1, 32, 96>}, {transform_indices = @transform_13, window_bounds = array<i64: 1, 1, 96>}, {transform_indices = @transform_14, window_bounds = array<i64: 1, 32, 32>}, {transform_indices = @transform_15, window_bounds = array<i64: 1, 1, 32>}, {transform_indices = @transform_16, window_bounds = array<i64: 1, 1, 32>}, {transform_indices = @transform_17, window_bounds = array<i64: 1, 1, 32>}, {transform_indices = @transform_18, window_bounds = array<i64: 1, 32, 128>}, {transform_indices = @transform_19, window_bounds = array<i64: 1, 1, 128>}, {transform_indices = @transform_20, window_bounds = array<i64: 1, 128, 32>}, {transform_indices = @transform_21, window_bounds = array<i64: 1, 1, 32>}, {pipeline_mode = #tpu.pipeline_mode<synchronous>, transform_indices = @transform_22, window_bounds = array<i64: 1, 32>}, {pipeline_mode = #tpu.pipeline_mode<synchronous>, transform_indices = @transform_23, window_bounds = array<i64: 1, 32>}, {pipeline_mode = #tpu.pipeline_mode<synchronous>, transform_indices = @transform_24, window_bounds = array<i64: 1, 32>}, {pipeline_mode = #tpu.pipeline_mode<synchronous>, transform_indices = @transform_25, window_bounds = array<i64: 1, 1>}, {transform_indices = @transform_26, window_bounds = array<i64: 2, 1, 16>}]} {
    %c0_i32 = arith.constant 0 : i32
    %0 = arith.cmpi eq, %arg1, %c0_i32 : i32
    %1 = arith.extui %0 : i1 to i32
    %c0_i32_0 = arith.constant 0 : i32
    %2 = arith.cmpi ne, %1, %c0_i32_0 : i32
    scf.if %2 {
      %c0_113 = arith.constant 0 : index
      %c0_114 = arith.constant 0 : index
      %c0_115 = arith.constant 0 : index
      %313 = vector.load %arg2[%c0_113, %c0_114, %c0_115] : memref<2x4x4xf32, #tpu.memory_space<vmem>>, vector<1x4x4xf32>
      %314 = vector.shape_cast %313 : vector<1x4x4xf32> to vector<4x4xf32>
      %315 = arith.truncf %314 : vector<4x4xf32> to vector<4x4xbf16>
      %c0_116 = arith.constant 0 : index
      %c0_117 = arith.constant 0 : index
      %316 = vector.load %arg4[%c0_116, %c0_117] : memref<4x32xbf16, #tpu.memory_space<vmem>>, vector<4x32xbf16>
      %cst_118 = arith.constant dense<0.000000e+00> : vector<4x32xf32>
      %317 = tpu.matmul %315, %316, %cst_118 {dimension_numbers = #tpu.dot_dimension_numbers<[1], [0], [0], [1], [0, 0, 1, 1], [], []>} : vector<4x4xbf16>, vector<4x32xbf16>, vector<4x32xf32> -> vector<4x32xf32>
      %c0_119 = arith.constant 0 : index
      %c0_120 = arith.constant 0 : index
      %318 = vector.load %arg5[%c0_119, %c0_120] : memref<1x32xf32, #tpu.memory_space<vmem>>, vector<1x32xf32>
      %319 = vector.broadcast %318 : vector<1x32xf32> to vector<4x32xf32>
      %320 = arith.addf %317, %319 : vector<4x32xf32>
      %c0_121 = arith.constant 0 : index
      %c0_122 = arith.constant 0 : index
      %321 = vector.load %arg6[%c0_121, %c0_122] : memref<16x4xbf16, #tpu.memory_space<vmem>>, vector<16x4xbf16>
      %322 = arith.truncf %320 : vector<4x32xf32> to vector<4x32xbf16>
      %cst_123 = arith.constant dense<0.000000e+00> : vector<16x32xf32>
      %323 = tpu.matmul %321, %322, %cst_123 {dimension_numbers = #tpu.dot_dimension_numbers<[1], [0], [0], [1], [0, 0, 1, 1], [], []>} : vector<16x4xbf16>, vector<4x32xbf16>, vector<16x32xf32> -> vector<16x32xf32>
      %c0_124 = arith.constant 0 : index
      %c0_125 = arith.constant 0 : index
      %324 = vector.load %arg7[%c0_124, %c0_125] : memref<16x1xf32, #tpu.memory_space<vmem>>, vector<16x1xf32>
      %325 = vector.broadcast %324 : vector<16x1xf32> to vector<16x32xf32>
      %326 = arith.addf %323, %325 : vector<16x32xf32>
      %c0_126 = arith.constant 0 : index
      %c0_127 = arith.constant 0 : index
      %c0_128 = arith.constant 0 : index
      %327 = vector.load %arg3[%c0_126, %c0_127, %c0_128] : memref<2x1x32xf32, #tpu.memory_space<vmem>>, vector<1x1x32xf32>
      %328 = vector.shape_cast %327 : vector<1x1x32xf32> to vector<1x32xf32>
      %329 = vector.broadcast %328 : vector<1x32xf32> to vector<16x32xf32>
      %330 = arith.addf %326, %329 : vector<16x32xf32>
      %c0_129 = arith.constant 0 : index
      %c0_130 = arith.constant 0 : index
      %331 = vector.load %arg29[%c0_129, %c0_130] : memref<32x32xf32, #tpu.memory_space<vmem>>, vector<16x32xf32>
      tpu.vector_store %arg29[%c0_129, %c0_130], %330 {strides = array<i32>} : memref<32x32xf32, #tpu.memory_space<vmem>>, vector<16x32xf32>,
      %c1 = arith.constant 1 : index
      %c0_131 = arith.constant 0 : index
      %c0_132 = arith.constant 0 : index
      %332 = vector.load %arg2[%c1, %c0_131, %c0_132] : memref<2x4x4xf32, #tpu.memory_space<vmem>>, vector<1x4x4xf32>
      %333 = vector.shape_cast %332 : vector<1x4x4xf32> to vector<4x4xf32>
      %334 = arith.truncf %333 : vector<4x4xf32> to vector<4x4xbf16>
      %c0_133 = arith.constant 0 : index
      %c0_134 = arith.constant 0 : index
      %335 = vector.load %arg4[%c0_133, %c0_134] : memref<4x32xbf16, #tpu.memory_space<vmem>>, vector<4x32xbf16>
      %cst_135 = arith.constant dense<0.000000e+00> : vector<4x32xf32>
      %336 = tpu.matmul %334, %335, %cst_135 {dimension_numbers = #tpu.dot_dimension_numbers<[1], [0], [0], [1], [0, 0, 1, 1], [], []>} : vector<4x4xbf16>, vector<4x32xbf16>, vector<4x32xf32> -> vector<4x32xf32>
      %c0_136 = arith.constant 0 : index
      %c0_137 = arith.constant 0 : index
      %337 = vector.load %arg5[%c0_136, %c0_137] : memref<1x32xf32, #tpu.memory_space<vmem>>, vector<1x32xf32>
      %338 = vector.broadcast %337 : vector<1x32xf32> to vector<4x32xf32>
      %339 = arith.addf %336, %338 : vector<4x32xf32>
      %c0_138 = arith.constant 0 : index
      %c0_139 = arith.constant 0 : index
      %340 = vector.load %arg6[%c0_138, %c0_139] : memref<16x4xbf16, #tpu.memory_space<vmem>>, vector<16x4xbf16>
      %341 = arith.truncf %339 : vector<4x32xf32> to vector<4x32xbf16>
      %cst_140 = arith.constant dense<0.000000e+00> : vector<16x32xf32>
      %342 = tpu.matmul %340, %341, %cst_140 {dimension_numbers = #tpu.dot_dimension_numbers<[1], [0], [0], [1], [0, 0, 1, 1], [], []>} : vector<16x4xbf16>, vector<4x32xbf16>, vector<16x32xf32> -> vector<16x32xf32>
      %c0_141 = arith.constant 0 : index
      %c0_142 = arith.constant 0 : index
      %343 = vector.load %arg7[%c0_141, %c0_142] : memref<16x1xf32, #tpu.memory_space<vmem>>, vector<16x1xf32>
      %344 = vector.broadcast %343 : vector<16x1xf32> to vector<16x32xf32>
      %345 = arith.addf %342, %344 : vector<16x32xf32>
      %c1_143 = arith.constant 1 : index
      %c0_144 = arith.constant 0 : index
      %c0_145 = arith.constant 0 : index
      %346 = vector.load %arg3[%c1_143, %c0_144, %c0_145] : memref<2x1x32xf32, #tpu.memory_space<vmem>>, vector<1x1x32xf32>
      %347 = vector.shape_cast %346 : vector<1x1x32xf32> to vector<1x32xf32>
      %348 = vector.broadcast %347 : vector<1x32xf32> to vector<16x32xf32>
      %349 = arith.addf %345, %348 : vector<16x32xf32>
      %c16_146 = arith.constant 16 : index
      %c0_147 = arith.constant 0 : index
      %350 = vector.load %arg29[%c16_146, %c0_147] : memref<32x32xf32, #tpu.memory_space<vmem>>, vector<16x32xf32>
      tpu.vector_store %arg29[%c16_146, %c0_147], %349 {strides = array<i32>} : memref<32x32xf32, #tpu.memory_space<vmem>>, vector<16x32xf32>,
      %c0_148 = arith.constant 0 : index
      %c0_149 = arith.constant 0 : index
      %351 = vector.load %arg29[%c0_148, %c0_149] : memref<32x32xf32, #tpu.memory_space<vmem>>, vector<32x32xf32>
      %352 = arith.truncf %351 : vector<32x32xf32> to vector<32x32xbf16>
      %c0_150 = arith.constant 0 : index
      %c0_151 = arith.constant 0 : index
      %353 = vector.load %arg8[%c0_150, %c0_151] : memref<32x128xbf16, #tpu.memory_space<vmem>>, vector<32x128xbf16>
      %cst_152 = arith.constant dense<0.000000e+00> : vector<32x128xf32>
      %354 = tpu.matmul %352, %353, %cst_152 {dimension_numbers = #tpu.dot_dimension_numbers<[1], [0], [0], [1], [0, 0, 1, 1], [], []>} : vector<32x32xbf16>, vector<32x128xbf16>, vector<32x128xf32> -> vector<32x128xf32>
      %c0_153 = arith.constant 0 : index
      %c0_154 = arith.constant 0 : index
      %355 = vector.load %arg9[%c0_153, %c0_154] : memref<1x128xf32, #tpu.memory_space<vmem>>, vector<1x128xf32>
      %356 = vector.broadcast %355 : vector<1x128xf32> to vector<32x128xf32>
      %357 = arith.addf %354, %356 : vector<32x128xf32>
      %cst_155 = arith.constant 5.000000e-01 : f32
      %358 = vector.broadcast %cst_155 : f32 to vector<32x128xf32>
      %359 = arith.mulf %358, %357 : vector<32x128xf32>
      %cst_156 = arith.constant 4.471500e-02 : f32
      %360 = vector.broadcast %cst_156 : f32 to vector<32x128xf32>
      %361 = arith.mulf %360, %357 : vector<32x128xf32>
      %362 = arith.mulf %361, %357 : vector<32x128xf32>
      %363 = arith.mulf %362, %357 : vector<32x128xf32>
      %364 = arith.addf %357, %363 : vector<32x128xf32>
      %cst_157 = arith.constant 0.797884583 : f32
      %365 = vector.broadcast %cst_157 : f32 to vector<32x128xf32>
      %366 = arith.mulf %365, %364 : vector<32x128xf32>
      %367 = math.tanh %366 : vector<32x128xf32>
      %cst_158 = arith.constant 1.000000e+00 : f32
      %368 = vector.broadcast %cst_158 : f32 to vector<32x128xf32>
      %369 = arith.addf %368, %367 : vector<32x128xf32>
      %370 = arith.mulf %359, %369 : vector<32x128xf32>
      %371 = arith.truncf %370 : vector<32x128xf32> to vector<32x128xbf16>
      %c0_159 = arith.constant 0 : index
      %c0_160 = arith.constant 0 : index
      %372 = vector.load %arg10[%c0_159, %c0_160] : memref<128x32xbf16, #tpu.memory_space<vmem>>, vector<128x32xbf16>
      %cst_161 = arith.constant dense<0.000000e+00> : vector<32x32xf32>
      %373 = tpu.matmul %371, %372, %cst_161 {dimension_numbers = #tpu.dot_dimension_numbers<[1], [0], [0], [1], [0, 0, 1, 1], [], []>} : vector<32x128xbf16>, vector<128x32xbf16>, vector<32x32xf32> -> vector<32x32xf32>
      %c0_162 = arith.constant 0 : index
      %c0_163 = arith.constant 0 : index
      %374 = vector.load %arg11[%c0_162, %c0_163] : memref<1x32xf32, #tpu.memory_space<vmem>>, vector<1x32xf32>
      %375 = vector.broadcast %374 : vector<1x32xf32> to vector<32x32xf32>
      %376 = arith.addf %373, %375 : vector<32x32xf32>
      %377 = arith.addf %351, %376 : vector<32x32xf32>
      %c0_164 = arith.constant 0 : index
      %c0_165 = arith.constant 0 : index
      %378 = vector.load %arg29[%c0_164, %c0_165] : memref<32x32xf32, #tpu.memory_space<vmem>>, vector<32x32xf32>
      tpu.vector_store %arg29[%c0_164, %c0_165], %377 {strides = array<i32>} : memref<32x32xf32, #tpu.memory_space<vmem>>, vector<32x32xf32>,
    } else {
    }
    %c0 = arith.constant 0 : index
    %c0_1 = arith.constant 0 : index
    %3 = vector.load %arg29[%c0, %c0_1] : memref<32x32xf32, #tpu.memory_space<vmem>>, vector<32x32xf32>
    %c0_2 = arith.constant 0 : index
    %c0_3 = arith.constant 0 : index
    %c0_4 = arith.constant 0 : index
    %4 = vector.load %arg12[%c0_2, %c0_3, %c0_4] : memref<1x1x32xf32, #tpu.memory_space<vmem>>, vector<1x1x32xf32>
    %5 = vector.shape_cast %4 : vector<1x1x32xf32> to vector<1x32xf32>
    %c0_5 = arith.constant 0 : index
    %c0_6 = arith.constant 0 : index
    %c0_7 = arith.constant 0 : index
    %6 = vector.load %arg13[%c0_5, %c0_6, %c0_7] : memref<1x1x32xf32, #tpu.memory_space<vmem>>, vector<1x1x32xf32>
    %7 = vector.shape_cast %6 : vector<1x1x32xf32> to vector<1x32xf32>
    %cst = arith.constant dense<0.000000e+00> : vector<32xf32>
    %8 = vector.multi_reduction <add>, %3, %cst [1] : vector<32x32xf32> to vector<32xf32>
    %9 = vector.shape_cast %8 : vector<32xf32> to vector<32x1xf32>
    %cst_8 = arith.constant 3.200000e+01 : f32
    %10 = vector.broadcast %cst_8 : f32 to vector<32x1xf32>
    %11 = arith.divf %9, %10 : vector<32x1xf32>
    %12 = vector.broadcast %11 : vector<32x1xf32> to vector<32x32xf32>
    %13 = arith.subf %3, %12 : vector<32x32xf32>
    %14 = arith.mulf %13, %13 : vector<32x32xf32>
    %cst_9 = arith.constant dense<0.000000e+00> : vector<32xf32>
    %15 = vector.multi_reduction <add>, %14, %cst_9 [1] : vector<32x32xf32> to vector<32xf32>
    %16 = vector.shape_cast %15 : vector<32xf32> to vector<32x1xf32>
    %cst_10 = arith.constant 3.200000e+01 : f32
    %17 = vector.broadcast %cst_10 : f32 to vector<32x1xf32>
    %18 = arith.divf %16, %17 : vector<32x1xf32>
    %19 = vector.broadcast %11 : vector<32x1xf32> to vector<32x32xf32>
    %20 = arith.subf %3, %19 : vector<32x32xf32>
    %cst_11 = arith.constant 9.99999974E-6 : f32
    %21 = vector.broadcast %cst_11 : f32 to vector<32x1xf32>
    %22 = arith.addf %18, %21 : vector<32x1xf32>
    %23 = math.rsqrt %22 : vector<32x1xf32>
    %24 = vector.broadcast %23 : vector<32x1xf32> to vector<32x32xf32>
    %25 = arith.mulf %20, %24 : vector<32x32xf32>
    %26 = vector.broadcast %5 : vector<1x32xf32> to vector<32x32xf32>
    %27 = arith.mulf %25, %26 : vector<32x32xf32>
    %28 = vector.broadcast %7 : vector<1x32xf32> to vector<32x32xf32>
    %29 = arith.addf %27, %28 : vector<32x32xf32>
    %30 = arith.truncf %29 : vector<32x32xf32> to vector<32x32xbf16>
    %c0_12 = arith.constant 0 : index
    %c0_13 = arith.constant 0 : index
    %c0_14 = arith.constant 0 : index
    %31 = vector.load %arg14[%c0_12, %c0_13, %c0_14] : memref<1x32x96xbf16, #tpu.memory_space<vmem>>, vector<1x32x96xbf16>
    %32 = vector.shape_cast %31 : vector<1x32x96xbf16> to vector<32x96xbf16>
    %cst_15 = arith.constant dense<0.000000e+00> : vector<32x96xf32>
    %33 = tpu.matmul %30, %32, %cst_15 {dimension_numbers = #tpu.dot_dimension_numbers<[1], [0], [0], [1], [0, 0, 1, 1], [], []>} : vector<32x32xbf16>, vector<32x96xbf16>, vector<32x96xf32> -> vector<32x96xf32>
    %c0_16 = arith.constant 0 : index
    %c0_17 = arith.constant 0 : index
    %c0_18 = arith.constant 0 : index
    %34 = vector.load %arg15[%c0_16, %c0_17, %c0_18] : memref<1x1x96xf32, #tpu.memory_space<vmem>>, vector<1x1x96xf32>
    %35 = vector.shape_cast %34 : vector<1x1x96xf32> to vector<1x96xf32>
    %36 = vector.broadcast %35 : vector<1x96xf32> to vector<32x96xf32>
    %37 = arith.addf %33, %36 : vector<32x96xf32>
    %c0_19 = arith.constant 0 : index
    %c0_20 = arith.constant 0 : index
    %c0_21 = arith.constant 0 : index
    %38 = vector.load %arg16[%c0_19, %c0_20, %c0_21] : memref<1x32x32xbf16, #tpu.memory_space<vmem>>, vector<1x32x32xbf16>
    %39 = vector.shape_cast %38 : vector<1x32x32xbf16> to vector<32x32xbf16>
    %40 = vector.extract_strided_slice %37 {offsets = [0, 0], sizes = [16, 8], strides = [1, 1]} : vector<32x96xf32> to vector<16x8xf32>
    %cst_22 = arith.constant 0.353553385 : f32
    %41 = vector.broadcast %cst_22 : f32 to vector<16x8xf32>
    %42 = arith.mulf %40, %41 : vector<16x8xf32>
    %43 = arith.truncf %42 : vector<16x8xf32> to vector<16x8xbf16>
    %44 = vector.extract_strided_slice %37 {offsets = [0, 32], sizes = [16, 8], strides = [1, 1]} : vector<32x96xf32> to vector<16x8xf32>
    %45 = arith.truncf %44 : vector<16x8xf32> to vector<16x8xbf16>
    %46 = vector.extract_strided_slice %37 {offsets = [0, 64], sizes = [16, 8], strides = [1, 1]} : vector<32x96xf32> to vector<16x8xf32>
    %47 = arith.truncf %46 : vector<16x8xf32> to vector<16x8xbf16>
    %cst_23 = arith.constant dense<0.000000e+00> : vector<16x16xf32>
    %48 = tpu.matmul %43, %45, %cst_23 {dimension_numbers = #tpu.dot_dimension_numbers<[1], [1], [0], [0], [0, 0, 1, 0], [], []>} : vector<16x8xbf16>, vector<16x8xbf16>, vector<16x16xf32> -> vector<16x16xf32>
    %cst_24 = arith.constant dense<0xFF800000> : vector<16xf32>
    %49 = vector.multi_reduction <maximumf>, %48, %cst_24 [1] : vector<16x16xf32> to vector<16xf32>
    %50 = vector.shape_cast %49 : vector<16xf32> to vector<16x1xf32>
    %51 = vector.broadcast %50 : vector<16x1xf32> to vector<16x16xf32>
    %52 = arith.subf %48, %51 : vector<16x16xf32>
    %53 = math.exp %52 : vector<16x16xf32>
    %cst_25 = arith.constant dense<0.000000e+00> : vector<16xf32>
    %54 = vector.multi_reduction <add>, %53, %cst_25 [1] : vector<16x16xf32> to vector<16xf32>
    %55 = vector.shape_cast %54 : vector<16xf32> to vector<16x1xf32>
    %56 = tpu.reciprocal %55 {approx = true} : vector<16x1xf32> -> vector<16x1xf32>
    %57 = vector.broadcast %56 : vector<16x1xf32> to vector<16x16xf32>
    %58 = arith.mulf %53, %57 : vector<16x16xf32>
    %59 = arith.truncf %58 : vector<16x16xf32> to vector<16x16xbf16>
    %cst_26 = arith.constant dense<0.000000e+00> : vector<16x8xf32>
    %60 = tpu.matmul %59, %47, %cst_26 {dimension_numbers = #tpu.dot_dimension_numbers<[1], [0], [0], [1], [0, 0, 1, 1], [], []>} : vector<16x16xbf16>, vector<16x8xbf16>, vector<16x8xf32> -> vector<16x8xf32>
    %61 = arith.truncf %60 : vector<16x8xf32> to vector<16x8xbf16>
    %62 = vector.extract_strided_slice %39 {offsets = [0, 0], sizes = [8, 32], strides = [1, 1]} : vector<32x32xbf16> to vector<8x32xbf16>
    %cst_27 = arith.constant dense<0.000000e+00> : vector<16x32xf32>
    %63 = tpu.matmul %61, %62, %cst_27 {dimension_numbers = #tpu.dot_dimension_numbers<[1], [0], [0], [1], [0, 0, 1, 1], [], []>} : vector<16x8xbf16>, vector<8x32xbf16>, vector<16x32xf32> -> vector<16x32xf32>
    %64 = vector.extract_strided_slice %37 {offsets = [0, 8], sizes = [16, 8], strides = [1, 1]} : vector<32x96xf32> to vector<16x8xf32>
    %cst_28 = arith.constant 0.353553385 : f32
    %65 = vector.broadcast %cst_28 : f32 to vector<16x8xf32>
    %66 = arith.mulf %64, %65 : vector<16x8xf32>
    %67 = arith.truncf %66 : vector<16x8xf32> to vector<16x8xbf16>
    %68 = vector.extract_strided_slice %37 {offsets = [0, 40], sizes = [16, 8], strides = [1, 1]} : vector<32x96xf32> to vector<16x8xf32>
    %69 = arith.truncf %68 : vector<16x8xf32> to vector<16x8xbf16>
    %70 = vector.extract_strided_slice %37 {offsets = [0, 72], sizes = [16, 8], strides = [1, 1]} : vector<32x96xf32> to vector<16x8xf32>
    %71 = arith.truncf %70 : vector<16x8xf32> to vector<16x8xbf16>
    %cst_29 = arith.constant dense<0.000000e+00> : vector<16x16xf32>
    %72 = tpu.matmul %67, %69, %cst_29 {dimension_numbers = #tpu.dot_dimension_numbers<[1], [1], [0], [0], [0, 0, 1, 0], [], []>} : vector<16x8xbf16>, vector<16x8xbf16>, vector<16x16xf32> -> vector<16x16xf32>
    %cst_30 = arith.constant dense<0xFF800000> : vector<16xf32>
    %73 = vector.multi_reduction <maximumf>, %72, %cst_30 [1] : vector<16x16xf32> to vector<16xf32>
    %74 = vector.shape_cast %73 : vector<16xf32> to vector<16x1xf32>
    %75 = vector.broadcast %74 : vector<16x1xf32> to vector<16x16xf32>
    %76 = arith.subf %72, %75 : vector<16x16xf32>
    %77 = math.exp %76 : vector<16x16xf32>
    %cst_31 = arith.constant dense<0.000000e+00> : vector<16xf32>
    %78 = vector.multi_reduction <add>, %77, %cst_31 [1] : vector<16x16xf32> to vector<16xf32>
    %79 = vector.shape_cast %78 : vector<16xf32> to vector<16x1xf32>
    %80 = tpu.reciprocal %79 {approx = true} : vector<16x1xf32> -> vector<16x1xf32>
    %81 = vector.broadcast %80 : vector<16x1xf32> to vector<16x16xf32>
    %82 = arith.mulf %77, %81 : vector<16x16xf32>
    %83 = arith.truncf %82 : vector<16x16xf32> to vector<16x16xbf16>
    %cst_32 = arith.constant dense<0.000000e+00> : vector<16x8xf32>
    %84 = tpu.matmul %83, %71, %cst_32 {dimension_numbers = #tpu.dot_dimension_numbers<[1], [0], [0], [1], [0, 0, 1, 1], [], []>} : vector<16x16xbf16>, vector<16x8xbf16>, vector<16x8xf32> -> vector<16x8xf32>
    %85 = arith.truncf %84 : vector<16x8xf32> to vector<16x8xbf16>
    %86 = vector.extract_strided_slice %39 {offsets = [8, 0], sizes = [8, 32], strides = [1, 1]} : vector<32x32xbf16> to vector<8x32xbf16>
    %cst_33 = arith.constant dense<0.000000e+00> : vector<16x32xf32>
    %87 = tpu.matmul %85, %86, %cst_33 {dimension_numbers = #tpu.dot_dimension_numbers<[1], [0], [0], [1], [0, 0, 1, 1], [], []>} : vector<16x8xbf16>, vector<8x32xbf16>, vector<16x32xf32> -> vector<16x32xf32>
    %88 = arith.addf %63, %87 : vector<16x32xf32>
    %89 = vector.extract_strided_slice %37 {offsets = [0, 16], sizes = [16, 8], strides = [1, 1]} : vector<32x96xf32> to vector<16x8xf32>
    %cst_34 = arith.constant 0.353553385 : f32
    %90 = vector.broadcast %cst_34 : f32 to vector<16x8xf32>
    %91 = arith.mulf %89, %90 : vector<16x8xf32>
    %92 = arith.truncf %91 : vector<16x8xf32> to vector<16x8xbf16>
    %93 = vector.extract_strided_slice %37 {offsets = [0, 48], sizes = [16, 8], strides = [1, 1]} : vector<32x96xf32> to vector<16x8xf32>
    %94 = arith.truncf %93 : vector<16x8xf32> to vector<16x8xbf16>
    %95 = vector.extract_strided_slice %37 {offsets = [0, 80], sizes = [16, 8], strides = [1, 1]} : vector<32x96xf32> to vector<16x8xf32>
    %96 = arith.truncf %95 : vector<16x8xf32> to vector<16x8xbf16>
    %cst_35 = arith.constant dense<0.000000e+00> : vector<16x16xf32>
    %97 = tpu.matmul %92, %94, %cst_35 {dimension_numbers = #tpu.dot_dimension_numbers<[1], [1], [0], [0], [0, 0, 1, 0], [], []>} : vector<16x8xbf16>, vector<16x8xbf16>, vector<16x16xf32> -> vector<16x16xf32>
    %cst_36 = arith.constant dense<0xFF800000> : vector<16xf32>
    %98 = vector.multi_reduction <maximumf>, %97, %cst_36 [1] : vector<16x16xf32> to vector<16xf32>
    %99 = vector.shape_cast %98 : vector<16xf32> to vector<16x1xf32>
    %100 = vector.broadcast %99 : vector<16x1xf32> to vector<16x16xf32>
    %101 = arith.subf %97, %100 : vector<16x16xf32>
    %102 = math.exp %101 : vector<16x16xf32>
    %cst_37 = arith.constant dense<0.000000e+00> : vector<16xf32>
    %103 = vector.multi_reduction <add>, %102, %cst_37 [1] : vector<16x16xf32> to vector<16xf32>
    %104 = vector.shape_cast %103 : vector<16xf32> to vector<16x1xf32>
    %105 = tpu.reciprocal %104 {approx = true} : vector<16x1xf32> -> vector<16x1xf32>
    %106 = vector.broadcast %105 : vector<16x1xf32> to vector<16x16xf32>
    %107 = arith.mulf %102, %106 : vector<16x16xf32>
    %108 = arith.truncf %107 : vector<16x16xf32> to vector<16x16xbf16>
    %cst_38 = arith.constant dense<0.000000e+00> : vector<16x8xf32>
    %109 = tpu.matmul %108, %96, %cst_38 {dimension_numbers = #tpu.dot_dimension_numbers<[1], [0], [0], [1], [0, 0, 1, 1], [], []>} : vector<16x16xbf16>, vector<16x8xbf16>, vector<16x8xf32> -> vector<16x8xf32>
    %110 = arith.truncf %109 : vector<16x8xf32> to vector<16x8xbf16>
    %111 = vector.extract_strided_slice %39 {offsets = [16, 0], sizes = [8, 32], strides = [1, 1]} : vector<32x32xbf16> to vector<8x32xbf16>
    %cst_39 = arith.constant dense<0.000000e+00> : vector<16x32xf32>
    %112 = tpu.matmul %110, %111, %cst_39 {dimension_numbers = #tpu.dot_dimension_numbers<[1], [0], [0], [1], [0, 0, 1, 1], [], []>} : vector<16x8xbf16>, vector<8x32xbf16>, vector<16x32xf32> -> vector<16x32xf32>
    %113 = arith.addf %88, %112 : vector<16x32xf32>
    %114 = vector.extract_strided_slice %37 {offsets = [0, 24], sizes = [16, 8], strides = [1, 1]} : vector<32x96xf32> to vector<16x8xf32>
    %cst_40 = arith.constant 0.353553385 : f32
    %115 = vector.broadcast %cst_40 : f32 to vector<16x8xf32>
    %116 = arith.mulf %114, %115 : vector<16x8xf32>
    %117 = arith.truncf %116 : vector<16x8xf32> to vector<16x8xbf16>
    %118 = vector.extract_strided_slice %37 {offsets = [0, 56], sizes = [16, 8], strides = [1, 1]} : vector<32x96xf32> to vector<16x8xf32>
    %119 = arith.truncf %118 : vector<16x8xf32> to vector<16x8xbf16>
    %120 = vector.extract_strided_slice %37 {offsets = [0, 88], sizes = [16, 8], strides = [1, 1]} : vector<32x96xf32> to vector<16x8xf32>
    %121 = arith.truncf %120 : vector<16x8xf32> to vector<16x8xbf16>
    %cst_41 = arith.constant dense<0.000000e+00> : vector<16x16xf32>
    %122 = tpu.matmul %117, %119, %cst_41 {dimension_numbers = #tpu.dot_dimension_numbers<[1], [1], [0], [0], [0, 0, 1, 0], [], []>} : vector<16x8xbf16>, vector<16x8xbf16>, vector<16x16xf32> -> vector<16x16xf32>
    %cst_42 = arith.constant dense<0xFF800000> : vector<16xf32>
    %123 = vector.multi_reduction <maximumf>, %122, %cst_42 [1] : vector<16x16xf32> to vector<16xf32>
    %124 = vector.shape_cast %123 : vector<16xf32> to vector<16x1xf32>
    %125 = vector.broadcast %124 : vector<16x1xf32> to vector<16x16xf32>
    %126 = arith.subf %122, %125 : vector<16x16xf32>
    %127 = math.exp %126 : vector<16x16xf32>
    %cst_43 = arith.constant dense<0.000000e+00> : vector<16xf32>
    %128 = vector.multi_reduction <add>, %127, %cst_43 [1] : vector<16x16xf32> to vector<16xf32>
    %129 = vector.shape_cast %128 : vector<16xf32> to vector<16x1xf32>
    %130 = tpu.reciprocal %129 {approx = true} : vector<16x1xf32> -> vector<16x1xf32>
    %131 = vector.broadcast %130 : vector<16x1xf32> to vector<16x16xf32>
    %132 = arith.mulf %127, %131 : vector<16x16xf32>
    %133 = arith.truncf %132 : vector<16x16xf32> to vector<16x16xbf16>
    %cst_44 = arith.constant dense<0.000000e+00> : vector<16x8xf32>
    %134 = tpu.matmul %133, %121, %cst_44 {dimension_numbers = #tpu.dot_dimension_numbers<[1], [0], [0], [1], [0, 0, 1, 1], [], []>} : vector<16x16xbf16>, vector<16x8xbf16>, vector<16x8xf32> -> vector<16x8xf32>
    %135 = arith.truncf %134 : vector<16x8xf32> to vector<16x8xbf16>
    %136 = vector.extract_strided_slice %39 {offsets = [24, 0], sizes = [8, 32], strides = [1, 1]} : vector<32x32xbf16> to vector<8x32xbf16>
    %cst_45 = arith.constant dense<0.000000e+00> : vector<16x32xf32>
    %137 = tpu.matmul %135, %136, %cst_45 {dimension_numbers = #tpu.dot_dimension_numbers<[1], [0], [0], [1], [0, 0, 1, 1], [], []>} : vector<16x8xbf16>, vector<8x32xbf16>, vector<16x32xf32> -> vector<16x32xf32>
    %138 = arith.addf %113, %137 : vector<16x32xf32>
    %139 = vector.extract_strided_slice %3 {offsets = [0, 0], sizes = [16, 32], strides = [1, 1]} : vector<32x32xf32> to vector<16x32xf32>
    %140 = arith.addf %139, %138 : vector<16x32xf32>
    %c0_46 = arith.constant 0 : index
    %c0_47 = arith.constant 0 : index
    %c0_48 = arith.constant 0 : index
    %141 = vector.load %arg17[%c0_46, %c0_47, %c0_48] : memref<1x1x32xf32, #tpu.memory_space<vmem>>, vector<1x1x32xf32>
    %142 = vector.shape_cast %141 : vector<1x1x32xf32> to vector<1x32xf32>
    %143 = vector.broadcast %142 : vector<1x32xf32> to vector<16x32xf32>
    %144 = arith.addf %140, %143 : vector<16x32xf32>
    %c0_49 = arith.constant 0 : index
    %c0_50 = arith.constant 0 : index
    %145 = vector.load %arg29[%c0_49, %c0_50] : memref<32x32xf32, #tpu.memory_space<vmem>>, vector<16x32xf32>
    tpu.vector_store %arg29[%c0_49, %c0_50], %144 {strides = array<i32>} : memref<32x32xf32, #tpu.memory_space<vmem>>, vector<16x32xf32>,
    %146 = vector.extract_strided_slice %37 {offsets = [16, 0], sizes = [16, 8], strides = [1, 1]} : vector<32x96xf32> to vector<16x8xf32>
    %cst_51 = arith.constant 0.353553385 : f32
    %147 = vector.broadcast %cst_51 : f32 to vector<16x8xf32>
    %148 = arith.mulf %146, %147 : vector<16x8xf32>
    %149 = arith.truncf %148 : vector<16x8xf32> to vector<16x8xbf16>
    %150 = vector.extract_strided_slice %37 {offsets = [16, 32], sizes = [16, 8], strides = [1, 1]} : vector<32x96xf32> to vector<16x8xf32>
    %151 = arith.truncf %150 : vector<16x8xf32> to vector<16x8xbf16>
    %152 = vector.extract_strided_slice %37 {offsets = [16, 64], sizes = [16, 8], strides = [1, 1]} : vector<32x96xf32> to vector<16x8xf32>
    %153 = arith.truncf %152 : vector<16x8xf32> to vector<16x8xbf16>
    %cst_52 = arith.constant dense<0.000000e+00> : vector<16x16xf32>
    %154 = tpu.matmul %149, %151, %cst_52 {dimension_numbers = #tpu.dot_dimension_numbers<[1], [1], [0], [0], [0, 0, 1, 0], [], []>} : vector<16x8xbf16>, vector<16x8xbf16>, vector<16x16xf32> -> vector<16x16xf32>
    %cst_53 = arith.constant dense<0xFF800000> : vector<16xf32>
    %155 = vector.multi_reduction <maximumf>, %154, %cst_53 [1] : vector<16x16xf32> to vector<16xf32>
    %156 = vector.shape_cast %155 : vector<16xf32> to vector<16x1xf32>
    %157 = vector.broadcast %156 : vector<16x1xf32> to vector<16x16xf32>
    %158 = arith.subf %154, %157 : vector<16x16xf32>
    %159 = math.exp %158 : vector<16x16xf32>
    %cst_54 = arith.constant dense<0.000000e+00> : vector<16xf32>
    %160 = vector.multi_reduction <add>, %159, %cst_54 [1] : vector<16x16xf32> to vector<16xf32>
    %161 = vector.shape_cast %160 : vector<16xf32> to vector<16x1xf32>
    %162 = tpu.reciprocal %161 {approx = true} : vector<16x1xf32> -> vector<16x1xf32>
    %163 = vector.broadcast %162 : vector<16x1xf32> to vector<16x16xf32>
    %164 = arith.mulf %159, %163 : vector<16x16xf32>
    %165 = arith.truncf %164 : vector<16x16xf32> to vector<16x16xbf16>
    %cst_55 = arith.constant dense<0.000000e+00> : vector<16x8xf32>
    %166 = tpu.matmul %165, %153, %cst_55 {dimension_numbers = #tpu.dot_dimension_numbers<[1], [0], [0], [1], [0, 0, 1, 1], [], []>} : vector<16x16xbf16>, vector<16x8xbf16>, vector<16x8xf32> -> vector<16x8xf32>
    %167 = arith.truncf %166 : vector<16x8xf32> to vector<16x8xbf16>
    %168 = vector.extract_strided_slice %39 {offsets = [0, 0], sizes = [8, 32], strides = [1, 1]} : vector<32x32xbf16> to vector<8x32xbf16>
    %cst_56 = arith.constant dense<0.000000e+00> : vector<16x32xf32>
    %169 = tpu.matmul %167, %168, %cst_56 {dimension_numbers = #tpu.dot_dimension_numbers<[1], [0], [0], [1], [0, 0, 1, 1], [], []>} : vector<16x8xbf16>, vector<8x32xbf16>, vector<16x32xf32> -> vector<16x32xf32>
    %170 = vector.extract_strided_slice %37 {offsets = [16, 8], sizes = [16, 8], strides = [1, 1]} : vector<32x96xf32> to vector<16x8xf32>
    %cst_57 = arith.constant 0.353553385 : f32
    %171 = vector.broadcast %cst_57 : f32 to vector<16x8xf32>
    %172 = arith.mulf %170, %171 : vector<16x8xf32>
    %173 = arith.truncf %172 : vector<16x8xf32> to vector<16x8xbf16>
    %174 = vector.extract_strided_slice %37 {offsets = [16, 40], sizes = [16, 8], strides = [1, 1]} : vector<32x96xf32> to vector<16x8xf32>
    %175 = arith.truncf %174 : vector<16x8xf32> to vector<16x8xbf16>
    %176 = vector.extract_strided_slice %37 {offsets = [16, 72], sizes = [16, 8], strides = [1, 1]} : vector<32x96xf32> to vector<16x8xf32>
    %177 = arith.truncf %176 : vector<16x8xf32> to vector<16x8xbf16>
    %cst_58 = arith.constant dense<0.000000e+00> : vector<16x16xf32>
    %178 = tpu.matmul %173, %175, %cst_58 {dimension_numbers = #tpu.dot_dimension_numbers<[1], [1], [0], [0], [0, 0, 1, 0], [], []>} : vector<16x8xbf16>, vector<16x8xbf16>, vector<16x16xf32> -> vector<16x16xf32>
    %cst_59 = arith.constant dense<0xFF800000> : vector<16xf32>
    %179 = vector.multi_reduction <maximumf>, %178, %cst_59 [1] : vector<16x16xf32> to vector<16xf32>
    %180 = vector.shape_cast %179 : vector<16xf32> to vector<16x1xf32>
    %181 = vector.broadcast %180 : vector<16x1xf32> to vector<16x16xf32>
    %182 = arith.subf %178, %181 : vector<16x16xf32>
    %183 = math.exp %182 : vector<16x16xf32>
    %cst_60 = arith.constant dense<0.000000e+00> : vector<16xf32>
    %184 = vector.multi_reduction <add>, %183, %cst_60 [1] : vector<16x16xf32> to vector<16xf32>
    %185 = vector.shape_cast %184 : vector<16xf32> to vector<16x1xf32>
    %186 = tpu.reciprocal %185 {approx = true} : vector<16x1xf32> -> vector<16x1xf32>
    %187 = vector.broadcast %186 : vector<16x1xf32> to vector<16x16xf32>
    %188 = arith.mulf %183, %187 : vector<16x16xf32>
    %189 = arith.truncf %188 : vector<16x16xf32> to vector<16x16xbf16>
    %cst_61 = arith.constant dense<0.000000e+00> : vector<16x8xf32>
    %190 = tpu.matmul %189, %177, %cst_61 {dimension_numbers = #tpu.dot_dimension_numbers<[1], [0], [0], [1], [0, 0, 1, 1], [], []>} : vector<16x16xbf16>, vector<16x8xbf16>, vector<16x8xf32> -> vector<16x8xf32>
    %191 = arith.truncf %190 : vector<16x8xf32> to vector<16x8xbf16>
    %192 = vector.extract_strided_slice %39 {offsets = [8, 0], sizes = [8, 32], strides = [1, 1]} : vector<32x32xbf16> to vector<8x32xbf16>
    %cst_62 = arith.constant dense<0.000000e+00> : vector<16x32xf32>
    %193 = tpu.matmul %191, %192, %cst_62 {dimension_numbers = #tpu.dot_dimension_numbers<[1], [0], [0], [1], [0, 0, 1, 1], [], []>} : vector<16x8xbf16>, vector<8x32xbf16>, vector<16x32xf32> -> vector<16x32xf32>
    %194 = arith.addf %169, %193 : vector<16x32xf32>
    %195 = vector.extract_strided_slice %37 {offsets = [16, 16], sizes = [16, 8], strides = [1, 1]} : vector<32x96xf32> to vector<16x8xf32>
    %cst_63 = arith.constant 0.353553385 : f32
    %196 = vector.broadcast %cst_63 : f32 to vector<16x8xf32>
    %197 = arith.mulf %195, %196 : vector<16x8xf32>
    %198 = arith.truncf %197 : vector<16x8xf32> to vector<16x8xbf16>
    %199 = vector.extract_strided_slice %37 {offsets = [16, 48], sizes = [16, 8], strides = [1, 1]} : vector<32x96xf32> to vector<16x8xf32>
    %200 = arith.truncf %199 : vector<16x8xf32> to vector<16x8xbf16>
    %201 = vector.extract_strided_slice %37 {offsets = [16, 80], sizes = [16, 8], strides = [1, 1]} : vector<32x96xf32> to vector<16x8xf32>
    %202 = arith.truncf %201 : vector<16x8xf32> to vector<16x8xbf16>
    %cst_64 = arith.constant dense<0.000000e+00> : vector<16x16xf32>
    %203 = tpu.matmul %198, %200, %cst_64 {dimension_numbers = #tpu.dot_dimension_numbers<[1], [1], [0], [0], [0, 0, 1, 0], [], []>} : vector<16x8xbf16>, vector<16x8xbf16>, vector<16x16xf32> -> vector<16x16xf32>
    %cst_65 = arith.constant dense<0xFF800000> : vector<16xf32>
    %204 = vector.multi_reduction <maximumf>, %203, %cst_65 [1] : vector<16x16xf32> to vector<16xf32>
    %205 = vector.shape_cast %204 : vector<16xf32> to vector<16x1xf32>
    %206 = vector.broadcast %205 : vector<16x1xf32> to vector<16x16xf32>
    %207 = arith.subf %203, %206 : vector<16x16xf32>
    %208 = math.exp %207 : vector<16x16xf32>
    %cst_66 = arith.constant dense<0.000000e+00> : vector<16xf32>
    %209 = vector.multi_reduction <add>, %208, %cst_66 [1] : vector<16x16xf32> to vector<16xf32>
    %210 = vector.shape_cast %209 : vector<16xf32> to vector<16x1xf32>
    %211 = tpu.reciprocal %210 {approx = true} : vector<16x1xf32> -> vector<16x1xf32>
    %212 = vector.broadcast %211 : vector<16x1xf32> to vector<16x16xf32>
    %213 = arith.mulf %208, %212 : vector<16x16xf32>
    %214 = arith.truncf %213 : vector<16x16xf32> to vector<16x16xbf16>
    %cst_67 = arith.constant dense<0.000000e+00> : vector<16x8xf32>
    %215 = tpu.matmul %214, %202, %cst_67 {dimension_numbers = #tpu.dot_dimension_numbers<[1], [0], [0], [1], [0, 0, 1, 1], [], []>} : vector<16x16xbf16>, vector<16x8xbf16>, vector<16x8xf32> -> vector<16x8xf32>
    %216 = arith.truncf %215 : vector<16x8xf32> to vector<16x8xbf16>
    %217 = vector.extract_strided_slice %39 {offsets = [16, 0], sizes = [8, 32], strides = [1, 1]} : vector<32x32xbf16> to vector<8x32xbf16>
    %cst_68 = arith.constant dense<0.000000e+00> : vector<16x32xf32>
    %218 = tpu.matmul %216, %217, %cst_68 {dimension_numbers = #tpu.dot_dimension_numbers<[1], [0], [0], [1], [0, 0, 1, 1], [], []>} : vector<16x8xbf16>, vector<8x32xbf16>, vector<16x32xf32> -> vector<16x32xf32>
    %219 = arith.addf %194, %218 : vector<16x32xf32>
    %220 = vector.extract_strided_slice %37 {offsets = [16, 24], sizes = [16, 8], strides = [1, 1]} : vector<32x96xf32> to vector<16x8xf32>
    %cst_69 = arith.constant 0.353553385 : f32
    %221 = vector.broadcast %cst_69 : f32 to vector<16x8xf32>
    %222 = arith.mulf %220, %221 : vector<16x8xf32>
    %223 = arith.truncf %222 : vector<16x8xf32> to vector<16x8xbf16>
    %224 = vector.extract_strided_slice %37 {offsets = [16, 56], sizes = [16, 8], strides = [1, 1]} : vector<32x96xf32> to vector<16x8xf32>
    %225 = arith.truncf %224 : vector<16x8xf32> to vector<16x8xbf16>
    %226 = vector.extract_strided_slice %37 {offsets = [16, 88], sizes = [16, 8], strides = [1, 1]} : vector<32x96xf32> to vector<16x8xf32>
    %227 = arith.truncf %226 : vector<16x8xf32> to vector<16x8xbf16>
    %cst_70 = arith.constant dense<0.000000e+00> : vector<16x16xf32>
    %228 = tpu.matmul %223, %225, %cst_70 {dimension_numbers = #tpu.dot_dimension_numbers<[1], [1], [0], [0], [0, 0, 1, 0], [], []>} : vector<16x8xbf16>, vector<16x8xbf16>, vector<16x16xf32> -> vector<16x16xf32>
    %cst_71 = arith.constant dense<0xFF800000> : vector<16xf32>
    %229 = vector.multi_reduction <maximumf>, %228, %cst_71 [1] : vector<16x16xf32> to vector<16xf32>
    %230 = vector.shape_cast %229 : vector<16xf32> to vector<16x1xf32>
    %231 = vector.broadcast %230 : vector<16x1xf32> to vector<16x16xf32>
    %232 = arith.subf %228, %231 : vector<16x16xf32>
    %233 = math.exp %232 : vector<16x16xf32>
    %cst_72 = arith.constant dense<0.000000e+00> : vector<16xf32>
    %234 = vector.multi_reduction <add>, %233, %cst_72 [1] : vector<16x16xf32> to vector<16xf32>
    %235 = vector.shape_cast %234 : vector<16xf32> to vector<16x1xf32>
    %236 = tpu.reciprocal %235 {approx = true} : vector<16x1xf32> -> vector<16x1xf32>
    %237 = vector.broadcast %236 : vector<16x1xf32> to vector<16x16xf32>
    %238 = arith.mulf %233, %237 : vector<16x16xf32>
    %239 = arith.truncf %238 : vector<16x16xf32> to vector<16x16xbf16>
    %cst_73 = arith.constant dense<0.000000e+00> : vector<16x8xf32>
    %240 = tpu.matmul %239, %227, %cst_73 {dimension_numbers = #tpu.dot_dimension_numbers<[1], [0], [0], [1], [0, 0, 1, 1], [], []>} : vector<16x16xbf16>, vector<16x8xbf16>, vector<16x8xf32> -> vector<16x8xf32>
    %241 = arith.truncf %240 : vector<16x8xf32> to vector<16x8xbf16>
    %242 = vector.extract_strided_slice %39 {offsets = [24, 0], sizes = [8, 32], strides = [1, 1]} : vector<32x32xbf16> to vector<8x32xbf16>
    %cst_74 = arith.constant dense<0.000000e+00> : vector<16x32xf32>
    %243 = tpu.matmul %241, %242, %cst_74 {dimension_numbers = #tpu.dot_dimension_numbers<[1], [0], [0], [1], [0, 0, 1, 1], [], []>} : vector<16x8xbf16>, vector<8x32xbf16>, vector<16x32xf32> -> vector<16x32xf32>
    %244 = arith.addf %219, %243 : vector<16x32xf32>
    %245 = vector.extract_strided_slice %3 {offsets = [16, 0], sizes = [16, 32], strides = [1, 1]} : vector<32x32xf32> to vector<16x32xf32>
    %246 = arith.addf %245, %244 : vector<16x32xf32>
    %c0_75 = arith.constant 0 : index
    %c0_76 = arith.constant 0 : index
    %c0_77 = arith.constant 0 : index
    %247 = vector.load %arg17[%c0_75, %c0_76, %c0_77] : memref<1x1x32xf32, #tpu.memory_space<vmem>>, vector<1x1x32xf32>
    %248 = vector.shape_cast %247 : vector<1x1x32xf32> to vector<1x32xf32>
    %249 = vector.broadcast %248 : vector<1x32xf32> to vector<16x32xf32>
    %250 = arith.addf %246, %249 : vector<16x32xf32>
    %c16 = arith.constant 16 : index
    %c0_78 = arith.constant 0 : index
    %251 = vector.load %arg29[%c16, %c0_78] : memref<32x32xf32, #tpu.memory_space<vmem>>, vector<16x32xf32>
    tpu.vector_store %arg29[%c16, %c0_78], %250 {strides = array<i32>} : memref<32x32xf32, #tpu.memory_space<vmem>>, vector<16x32xf32>,
    %c0_79 = arith.constant 0 : index
    %c0_80 = arith.constant 0 : index
    %252 = vector.load %arg29[%c0_79, %c0_80] : memref<32x32xf32, #tpu.memory_space<vmem>>, vector<32x32xf32>
    %c0_81 = arith.constant 0 : index
    %c0_82 = arith.constant 0 : index
    %c0_83 = arith.constant 0 : index
    %253 = vector.load %arg18[%c0_81, %c0_82, %c0_83] : memref<1x1x32xf32, #tpu.memory_space<vmem>>, vector<1x1x32xf32>
    %254 = vector.shape_cast %253 : vector<1x1x32xf32> to vector<1x32xf32>
    %c0_84 = arith.constant 0 : index
    %c0_85 = arith.constant 0 : index
    %c0_86 = arith.constant 0 : index
    %255 = vector.load %arg19[%c0_84, %c0_85, %c0_86] : memref<1x1x32xf32, #tpu.memory_space<vmem>>, vector<1x1x32xf32>
    %256 = vector.shape_cast %255 : vector<1x1x32xf32> to vector<1x32xf32>
    %cst_87 = arith.constant dense<0.000000e+00> : vector<32xf32>
    %257 = vector.multi_reduction <add>, %252, %cst_87 [1] : vector<32x32xf32> to vector<32xf32>
    %258 = vector.shape_cast %257 : vector<32xf32> to vector<32x1xf32>
    %cst_88 = arith.constant 3.200000e+01 : f32
    %259 = vector.broadcast %cst_88 : f32 to vector<32x1xf32>
    %260 = arith.divf %258, %259 : vector<32x1xf32>
    %261 = vector.broadcast %260 : vector<32x1xf32> to vector<32x32xf32>
    %262 = arith.subf %252, %261 : vector<32x32xf32>
    %263 = arith.mulf %262, %262 : vector<32x32xf32>
    %cst_89 = arith.constant dense<0.000000e+00> : vector<32xf32>
    %264 = vector.multi_reduction <add>, %263, %cst_89 [1] : vector<32x32xf32> to vector<32xf32>
    %265 = vector.shape_cast %264 : vector<32xf32> to vector<32x1xf32>
    %cst_90 = arith.constant 3.200000e+01 : f32
    %266 = vector.broadcast %cst_90 : f32 to vector<32x1xf32>
    %267 = arith.divf %265, %266 : vector<32x1xf32>
    %268 = vector.broadcast %260 : vector<32x1xf32> to vector<32x32xf32>
    %269 = arith.subf %252, %268 : vector<32x32xf32>
    %cst_91 = arith.constant 9.99999974E-6 : f32
    %270 = vector.broadcast %cst_91 : f32 to vector<32x1xf32>
    %271 = arith.addf %267, %270 : vector<32x1xf32>
    %272 = math.rsqrt %271 : vector<32x1xf32>
    %273 = vector.broadcast %272 : vector<32x1xf32> to vector<32x32xf32>
    %274 = arith.mulf %269, %273 : vector<32x32xf32>
    %275 = vector.broadcast %254 : vector<1x32xf32> to vector<32x32xf32>
    %276 = arith.mulf %274, %275 : vector<32x32xf32>
    %277 = vector.broadcast %256 : vector<1x32xf32> to vector<32x32xf32>
    %278 = arith.addf %276, %277 : vector<32x32xf32>
    %279 = arith.truncf %278 : vector<32x32xf32> to vector<32x32xbf16>
    %c0_92 = arith.constant 0 : index
    %c0_93 = arith.constant 0 : index
    %c0_94 = arith.constant 0 : index
    %280 = vector.load %arg20[%c0_92, %c0_93, %c0_94] : memref<1x32x128xbf16, #tpu.memory_space<vmem>>, vector<1x32x128xbf16>
    %281 = vector.shape_cast %280 : vector<1x32x128xbf16> to vector<32x128xbf16>
    %cst_95 = arith.constant dense<0.000000e+00> : vector<32x128xf32>
    %282 = tpu.matmul %279, %281, %cst_95 {dimension_numbers = #tpu.dot_dimension_numbers<[1], [0], [0], [1], [0, 0, 1, 1], [], []>} : vector<32x32xbf16>, vector<32x128xbf16>, vector<32x128xf32> -> vector<32x128xf32>
    %c0_96 = arith.constant 0 : index
    %c0_97 = arith.constant 0 : index
    %c0_98 = arith.constant 0 : index
    %283 = vector.load %arg21[%c0_96, %c0_97, %c0_98] : memref<1x1x128xf32, #tpu.memory_space<vmem>>, vector<1x1x128xf32>
    %284 = vector.shape_cast %283 : vector<1x1x128xf32> to vector<1x128xf32>
    %285 = vector.broadcast %284 : vector<1x128xf32> to vector<32x128xf32>
    %286 = arith.addf %282, %285 : vector<32x128xf32>
    %cst_99 = arith.constant 5.000000e-01 : f32
    %287 = vector.broadcast %cst_99 : f32 to vector<32x128xf32>
    %288 = arith.mulf %287, %286 : vector<32x128xf32>
    %cst_100 = arith.constant 4.471500e-02 : f32
    %289 = vector.broadcast %cst_100 : f32 to vector<32x128xf32>
    %290 = arith.mulf %289, %286 : vector<32x128xf32>
    %291 = arith.mulf %290, %286 : vector<32x128xf32>
    %292 = arith.mulf %291, %286 : vector<32x128xf32>
    %293 = arith.addf %286, %292 : vector<32x128xf32>
    %cst_101 = arith.constant 0.797884583 : f32
    %294 = vector.broadcast %cst_101 : f32 to vector<32x128xf32>
    %295 = arith.mulf %294, %293 : vector<32x128xf32>
    %296 = math.tanh %295 : vector<32x128xf32>
    %cst_102 = arith.constant 1.000000e+00 : f32
    %297 = vector.broadcast %cst_102 : f32 to vector<32x128xf32>
    %298 = arith.addf %297, %296 : vector<32x128xf32>
    %299 = arith.mulf %288, %298 : vector<32x128xf32>
    %300 = arith.truncf %299 : vector<32x128xf32> to vector<32x128xbf16>
    %c0_103 = arith.constant 0 : index
    %c0_104 = arith.constant 0 : index
    %c0_105 = arith.constant 0 : index
    %301 = vector.load %arg22[%c0_103, %c0_104, %c0_105] : memref<1x128x32xbf16, #tpu.memory_space<vmem>>, vector<1x128x32xbf16>
    %302 = vector.shape_cast %301 : vector<1x128x32xbf16> to vector<128x32xbf16>
    %cst_106 = arith.constant dense<0.000000e+00> : vector<32x32xf32>
    %303 = tpu.matmul %300, %302, %cst_106 {dimension_numbers = #tpu.dot_dimension_numbers<[1], [0], [0], [1], [0, 0, 1, 1], [], []>} : vector<32x128xbf16>, vector<128x32xbf16>, vector<32x32xf32> -> vector<32x32xf32>
    %c0_107 = arith.constant 0 : index
    %c0_108 = arith.constant 0 : index
    %c0_109 = arith.constant 0 : index
    %304 = vector.load %arg23[%c0_107, %c0_108, %c0_109] : memref<1x1x32xf32, #tpu.memory_space<vmem>>, vector<1x1x32xf32>
    %305 = vector.shape_cast %304 : vector<1x1x32xf32> to vector<1x32xf32>
    %306 = vector.broadcast %305 : vector<1x32xf32> to vector<32x32xf32>
    %307 = arith.addf %303, %306 : vector<32x32xf32>
    %308 = arith.addf %252, %307 : vector<32x32xf32>
    %c0_110 = arith.constant 0 : index
    %c0_111 = arith.constant 0 : index
    %309 = vector.load %arg29[%c0_110, %c0_111] : memref<32x32xf32, #tpu.memory_space<vmem>>, vector<32x32xf32>
    tpu.vector_store %arg29[%c0_110, %c0_111], %308 {strides = array<i32>} : memref<32x32xf32, #tpu.memory_space<vmem>>, vector<32x32xf32>,
    %c1_i32 = arith.constant 1 : i32
    %310 = arith.cmpi eq, %arg1, %c1_i32 : i32
    %311 = arith.extui %310 : i1 to i32
    %c0_i32_112 = arith.constant 0 : i32
    %312 = arith.cmpi ne, %311, %c0_i32_112 : i32
    scf.if %312 {
      %c0_113 = arith.constant 0 : index
      %c0_114 = arith.constant 0 : index
      %313 = vector.load %arg24[%c0_113, %c0_114] : memref<1x32xf32, #tpu.memory_space<vmem>>, vector<1x32xf32>
      %c0_115 = arith.constant 0 : index
      %c0_116 = arith.constant 0 : index
      %314 = vector.load %arg25[%c0_115, %c0_116] : memref<1x32xf32, #tpu.memory_space<vmem>>, vector<1x32xf32>
      %cst_117 = arith.constant dense<0.000000e+00> : vector<32xf32>
      %315 = vector.multi_reduction <add>, %308, %cst_117 [1] : vector<32x32xf32> to vector<32xf32>
      %316 = vector.shape_cast %315 : vector<32xf32> to vector<32x1xf32>
      %cst_118 = arith.constant 3.200000e+01 : f32
      %317 = vector.broadcast %cst_118 : f32 to vector<32x1xf32>
      %318 = arith.divf %316, %317 : vector<32x1xf32>
      %319 = vector.broadcast %318 : vector<32x1xf32> to vector<32x32xf32>
      %320 = arith.subf %308, %319 : vector<32x32xf32>
      %321 = arith.mulf %320, %320 : vector<32x32xf32>
      %cst_119 = arith.constant dense<0.000000e+00> : vector<32xf32>
      %322 = vector.multi_reduction <add>, %321, %cst_119 [1] : vector<32x32xf32> to vector<32xf32>
      %323 = vector.shape_cast %322 : vector<32xf32> to vector<32x1xf32>
      %cst_120 = arith.constant 3.200000e+01 : f32
      %324 = vector.broadcast %cst_120 : f32 to vector<32x1xf32>
      %325 = arith.divf %323, %324 : vector<32x1xf32>
      %326 = vector.broadcast %318 : vector<32x1xf32> to vector<32x32xf32>
      %327 = arith.subf %308, %326 : vector<32x32xf32>
      %cst_121 = arith.constant 9.99999974E-6 : f32
      %328 = vector.broadcast %cst_121 : f32 to vector<32x1xf32>
      %329 = arith.addf %325, %328 : vector<32x1xf32>
      %330 = math.rsqrt %329 : vector<32x1xf32>
      %331 = vector.broadcast %330 : vector<32x1xf32> to vector<32x32xf32>
      %332 = arith.mulf %327, %331 : vector<32x32xf32>
      %333 = vector.broadcast %313 : vector<1x32xf32> to vector<32x32xf32>
      %334 = arith.mulf %332, %333 : vector<32x32xf32>
      %335 = vector.broadcast %314 : vector<1x32xf32> to vector<32x32xf32>
      %336 = arith.addf %334, %335 : vector<32x32xf32>
      %c0_122 = arith.constant 0 : index
      %c0_123 = arith.constant 0 : index
      %337 = vector.load %arg26[%c0_122, %c0_123] : memref<1x32xf32, #tpu.memory_space<vmem>>, vector<1x32xf32>
      %338 = arith.truncf %337 : vector<1x32xf32> to vector<1x32xbf16>
      %339 = vector.extract_strided_slice %336 {offsets = [0, 0], sizes = [16, 32], strides = [1, 1]} : vector<32x32xf32> to vector<16x32xf32>
      %340 = arith.truncf %339 : vector<16x32xf32> to vector<16x32xbf16>
      %cst_124 = arith.constant dense<0.000000e+00> : vector<1x16xf32>
      %341 = tpu.matmul %338, %340, %cst_124 {dimension_numbers = #tpu.dot_dimension_numbers<[1], [1], [0], [0], [0, 0, 1, 0], [], []>} : vector<1x32xbf16>, vector<16x32xbf16>, vector<1x16xf32> -> vector<1x16xf32>
      %c0_125 = arith.constant 0 : index
      %c0_126 = arith.constant 0 : index
      %342 = vector.load %arg27[%c0_125, %c0_126] : memref<1x1xf32, #tpu.memory_space<vmem>>, vector<1x1xf32>
      %343 = vector.broadcast %342 : vector<1x1xf32> to vector<1x16xf32>
      %344 = arith.addf %341, %343 : vector<1x16xf32>
      %c0_127 = arith.constant 0 : index
      %c0_128 = arith.constant 0 : index
      %c0_129 = arith.constant 0 : index
      %345 = vector.load %arg28[%c0_127, %c0_128, %c0_129] : memref<2x1x16xf32, #tpu.memory_space<vmem>>, vector<1x1x16xf32>
      %346 = vector.shape_cast %345 : vector<1x1x16xf32> to vector<1x16xf32>
      %347 = vector.shape_cast %344 : vector<1x16xf32> to vector<1x1x16xf32>
      tpu.vector_store %arg28[%c0_127, %c0_128, %c0_129], %347 {strides = array<i32>} : memref<2x1x16xf32, #tpu.memory_space<vmem>>, vector<1x1x16xf32>,
      %348 = vector.extract_strided_slice %336 {offsets = [16, 0], sizes = [16, 32], strides = [1, 1]} : vector<32x32xf32> to vector<16x32xf32>
      %349 = arith.truncf %348 : vector<16x32xf32> to vector<16x32xbf16>
      %cst_130 = arith.constant dense<0.000000e+00> : vector<1x16xf32>
      %350 = tpu.matmul %338, %349, %cst_130 {dimension_numbers = #tpu.dot_dimension_numbers<[1], [1], [0], [0], [0, 0, 1, 0], [], []>} : vector<1x32xbf16>, vector<16x32xbf16>, vector<1x16xf32> -> vector<1x16xf32>
      %c0_131 = arith.constant 0 : index
      %c0_132 = arith.constant 0 : index
      %351 = vector.load %arg27[%c0_131, %c0_132] : memref<1x1xf32, #tpu.memory_space<vmem>>, vector<1x1xf32>
      %352 = vector.broadcast %351 : vector<1x1xf32> to vector<1x16xf32>
      %353 = arith.addf %350, %352 : vector<1x16xf32>
      %c1 = arith.constant 1 : index
      %c0_133 = arith.constant 0 : index
      %c0_134 = arith.constant 0 : index
      %354 = vector.load %arg28[%c1, %c0_133, %c0_134] : memref<2x1x16xf32, #tpu.memory_space<vmem>>, vector<1x1x16xf32>
      %355 = vector.shape_cast %354 : vector<1x1x16xf32> to vector<1x16xf32>
      %356 = vector.shape_cast %353 : vector<1x16xf32> to vector<1x1x16xf32>
      tpu.vector_store %arg28[%c1, %c0_133, %c0_134], %356 {strides = array<i32>} : memref<2x1x16xf32, #tpu.memory_space<vmem>>, vector<1x1x16xf32>,
    } else {
    }
    return
  }
  func.func @transform_0(%arg0: i32, %arg1: i32) -> (i32, i32, i32) {
    %c0_i32 = arith.constant 0 : i32
    %c0_i32_0 = arith.constant 0 : i32
    %c0_i32_1 = arith.constant 0 : i32
    return %arg0, %c0_i32, %c0_i32_0 : i32, i32, i32
  }
  func.func @transform_1(%arg0: i32, %arg1: i32) -> (i32, i32, i32) {
    %c0_i32 = arith.constant 0 : i32
    %c0_i32_0 = arith.constant 0 : i32
    %c0_i32_1 = arith.constant 0 : i32
    return %arg0, %c0_i32, %c0_i32_0 : i32, i32, i32
  }
  func.func @transform_2(%arg0: i32, %arg1: i32) -> (i32, i32) {
    %c0_i32 = arith.constant 0 : i32
    %c0_i32_0 = arith.constant 0 : i32
    %c0_i32_1 = arith.constant 0 : i32
    return %c0_i32, %c0_i32_0 : i32, i32
  }
  func.func @transform_3(%arg0: i32, %arg1: i32) -> (i32, i32) {
    %c0_i32 = arith.constant 0 : i32
    %c0_i32_0 = arith.constant 0 : i32
    %c0_i32_1 = arith.constant 0 : i32
    return %c0_i32, %c0_i32_0 : i32, i32
  }
  func.func @transform_4(%arg0: i32, %arg1: i32) -> (i32, i32) {
    %c0_i32 = arith.constant 0 : i32
    %c0_i32_0 = arith.constant 0 : i32
    %c0_i32_1 = arith.constant 0 : i32
    return %c0_i32, %c0_i32_0 : i32, i32
  }
  func.func @transform_5(%arg0: i32, %arg1: i32) -> (i32, i32) {
    %c0_i32 = arith.constant 0 : i32
    %c0_i32_0 = arith.constant 0 : i32
    %c0_i32_1 = arith.constant 0 : i32
    return %c0_i32, %c0_i32_0 : i32, i32
  }
  func.func @transform_6(%arg0: i32, %arg1: i32) -> (i32, i32) {
    %c0_i32 = arith.constant 0 : i32
    %c0_i32_0 = arith.constant 0 : i32
    %c0_i32_1 = arith.constant 0 : i32
    return %c0_i32, %c0_i32_0 : i32, i32
  }
  func.func @transform_7(%arg0: i32, %arg1: i32) -> (i32, i32) {
    %c0_i32 = arith.constant 0 : i32
    %c0_i32_0 = arith.constant 0 : i32
    %c0_i32_1 = arith.constant 0 : i32
    return %c0_i32, %c0_i32_0 : i32, i32
  }
  func.func @transform_8(%arg0: i32, %arg1: i32) -> (i32, i32) {
    %c0_i32 = arith.constant 0 : i32
    %c0_i32_0 = arith.constant 0 : i32
    %c0_i32_1 = arith.constant 0 : i32
    return %c0_i32, %c0_i32_0 : i32, i32
  }
  func.func @transform_9(%arg0: i32, %arg1: i32) -> (i32, i32) {
    %c0_i32 = arith.constant 0 : i32
    %c0_i32_0 = arith.constant 0 : i32
    %c0_i32_1 = arith.constant 0 : i32
    return %c0_i32, %c0_i32_0 : i32, i32
  }
  func.func @transform_10(%arg0: i32, %arg1: i32) -> (i32, i32, i32) {
    %c0_i32 = arith.constant 0 : i32
    %c0_i32_0 = arith.constant 0 : i32
    %c0_i32_1 = arith.constant 0 : i32
    return %arg1, %c0_i32, %c0_i32_0 : i32, i32, i32
  }
  func.func @transform_11(%arg0: i32, %arg1: i32) -> (i32, i32, i32) {
    %c0_i32 = arith.constant 0 : i32
    %c0_i32_0 = arith.constant 0 : i32
    %c0_i32_1 = arith.constant 0 : i32
    return %arg1, %c0_i32, %c0_i32_0 : i32, i32, i32
  }
  func.func @transform_12(%arg0: i32, %arg1: i32) -> (i32, i32, i32) {
    %c0_i32 = arith.constant 0 : i32
    %c0_i32_0 = arith.constant 0 : i32
    %c0_i32_1 = arith.constant 0 : i32
    return %arg1, %c0_i32, %c0_i32_0 : i32, i32, i32
  }
  func.func @transform_13(%arg0: i32, %arg1: i32) -> (i32, i32, i32) {
    %c0_i32 = arith.constant 0 : i32
    %c0_i32_0 = arith.constant 0 : i32
    %c0_i32_1 = arith.constant 0 : i32
    return %arg1, %c0_i32, %c0_i32_0 : i32, i32, i32
  }
  func.func @transform_14(%arg0: i32, %arg1: i32) -> (i32, i32, i32) {
    %c0_i32 = arith.constant 0 : i32
    %c0_i32_0 = arith.constant 0 : i32
    %c0_i32_1 = arith.constant 0 : i32
    return %arg1, %c0_i32, %c0_i32_0 : i32, i32, i32
  }
  func.func @transform_15(%arg0: i32, %arg1: i32) -> (i32, i32, i32) {
    %c0_i32 = arith.constant 0 : i32
    %c0_i32_0 = arith.constant 0 : i32
    %c0_i32_1 = arith.constant 0 : i32
    return %arg1, %c0_i32, %c0_i32_0 : i32, i32, i32
  }
  func.func @transform_16(%arg0: i32, %arg1: i32) -> (i32, i32, i32) {
    %c0_i32 = arith.constant 0 : i32
    %c0_i32_0 = arith.constant 0 : i32
    %c0_i32_1 = arith.constant 0 : i32
    return %arg1, %c0_i32, %c0_i32_0 : i32, i32, i32
  }
  func.func @transform_17(%arg0: i32, %arg1: i32) -> (i32, i32, i32) {
    %c0_i32 = arith.constant 0 : i32
    %c0_i32_0 = arith.constant 0 : i32
    %c0_i32_1 = arith.constant 0 : i32
    return %arg1, %c0_i32, %c0_i32_0 : i32, i32, i32
  }
  func.func @transform_18(%arg0: i32, %arg1: i32) -> (i32, i32, i32) {
    %c0_i32 = arith.constant 0 : i32
    %c0_i32_0 = arith.constant 0 : i32
    %c0_i32_1 = arith.constant 0 : i32
    return %arg1, %c0_i32, %c0_i32_0 : i32, i32, i32
  }
  func.func @transform_19(%arg0: i32, %arg1: i32) -> (i32, i32, i32) {
    %c0_i32 = arith.constant 0 : i32
    %c0_i32_0 = arith.constant 0 : i32
    %c0_i32_1 = arith.constant 0 : i32
    return %arg1, %c0_i32, %c0_i32_0 : i32, i32, i32
  }
  func.func @transform_20(%arg0: i32, %arg1: i32) -> (i32, i32, i32) {
    %c0_i32 = arith.constant 0 : i32
    %c0_i32_0 = arith.constant 0 : i32
    %c0_i32_1 = arith.constant 0 : i32
    return %arg1, %c0_i32, %c0_i32_0 : i32, i32, i32
  }
  func.func @transform_21(%arg0: i32, %arg1: i32) -> (i32, i32, i32) {
    %c0_i32 = arith.constant 0 : i32
    %c0_i32_0 = arith.constant 0 : i32
    %c0_i32_1 = arith.constant 0 : i32
    return %arg1, %c0_i32, %c0_i32_0 : i32, i32, i32
  }
  func.func @transform_22(%arg0: i32, %arg1: i32) -> (i32, i32) {
    %c0_i32 = arith.constant 0 : i32
    %c0_i32_0 = arith.constant 0 : i32
    %c0_i32_1 = arith.constant 0 : i32
    return %c0_i32, %c0_i32_0 : i32, i32
  }
  func.func @transform_23(%arg0: i32, %arg1: i32) -> (i32, i32) {
    %c0_i32 = arith.constant 0 : i32
    %c0_i32_0 = arith.constant 0 : i32
    %c0_i32_1 = arith.constant 0 : i32
    return %c0_i32, %c0_i32_0 : i32, i32
  }
  func.func @transform_24(%arg0: i32, %arg1: i32) -> (i32, i32) {
    %c0_i32 = arith.constant 0 : i32
    %c0_i32_0 = arith.constant 0 : i32
    %c0_i32_1 = arith.constant 0 : i32
    return %c0_i32, %c0_i32_0 : i32, i32
  }
  func.func @transform_25(%arg0: i32, %arg1: i32) -> (i32, i32) {
    %c0_i32 = arith.constant 0 : i32
    %c0_i32_0 = arith.constant 0 : i32
    %c0_i32_1 = arith.constant 0 : i32
    return %c0_i32, %c0_i32_0 : i32, i32
  }
  func.func @transform_26(%arg0: i32, %arg1: i32) -> (i32, i32, i32) {
    %c0_i32 = arith.constant 0 : i32
    %c0_i32_0 = arith.constant 0 : i32
    %c0_i32_1 = arith.constant 0 : i32
    return %arg0, %c0_i32, %c0_i32_0 : i32, i32, i32
  }
}

module attributes {stable_mosaic.version = 11 : i64} {
  func.func @fused_forward_kernel(%arg0: i32, %arg1: i32, %arg2: memref<2x4x4xf32, #tpu.memory_space<vmem>>, %arg3: memref<2x1x32xf32, #tpu.memory_space<vmem>>, %arg4: memref<4x32xbf16, #tpu.memory_space<vmem>>, %arg5: memref<1x32xf32, #tpu.memory_space<vmem>>, %arg6: memref<16x4xbf16, #tpu.memory_space<vmem>>, %arg7: memref<16x1xf32, #tpu.memory_space<vmem>>, %arg8: memref<32x128xbf16, #tpu.memory_space<vmem>>, %arg9: memref<1x128xf32, #tpu.memory_space<vmem>>, %arg10: memref<128x32xbf16, #tpu.memory_space<vmem>>, %arg11: memref<1x32xf32, #tpu.memory_space<vmem>>, %arg12: memref<1x1x32xf32, #tpu.memory_space<vmem>>, %arg13: memref<1x1x32xf32, #tpu.memory_space<vmem>>, %arg14: memref<1x32x96xbf16, #tpu.memory_space<vmem>>, %arg15: memref<1x1x96xf32, #tpu.memory_space<vmem>>, %arg16: memref<1x32x32xbf16, #tpu.memory_space<vmem>>, %arg17: memref<1x1x32xf32, #tpu.memory_space<vmem>>, %arg18: memref<1x1x32xf32, #tpu.memory_space<vmem>>, %arg19: memref<1x1x32xf32, #tpu.memory_space<vmem>>, %arg20: memref<1x32x128xbf16, #tpu.memory_space<vmem>>, %arg21: memref<1x1x128xf32, #tpu.memory_space<vmem>>, %arg22: memref<1x128x32xbf16, #tpu.memory_space<vmem>>, %arg23: memref<1x1x32xf32, #tpu.memory_space<vmem>>, %arg24: memref<1x32xf32, #tpu.memory_space<vmem>>, %arg25: memref<1x32xf32, #tpu.memory_space<vmem>>, %arg26: memref<1x32xf32, #tpu.memory_space<vmem>>, %arg27: memref<1x1xf32, #tpu.memory_space<vmem>>, %arg28: memref<2x1x16xf32, #tpu.memory_space<vmem>>, %arg29: memref<32x32xf32, #tpu.memory_space<vmem>>) attributes {dimension_semantics = [#tpu.dimension_semantics<parallel>, #tpu.dimension_semantics<arbitrary>], iteration_bounds = array<i64: 2, 2>, scalar_prefetch = 0 : i64, scratch_operands = 1 : i64, tpu.core_type = #tpu.core_type<tc>, window_params = [{transform_indices = @transform_0, window_bounds = array<i64: 2, 4, 4>}, {transform_indices = @transform_1, window_bounds = array<i64: 2, 1, 32>}, {pipeline_mode = #tpu.pipeline_mode<synchronous>, transform_indices = @transform_2, window_bounds = array<i64: 4, 32>}, {pipeline_mode = #tpu.pipeline_mode<synchronous>, transform_indices = @transform_3, window_bounds = array<i64: 1, 32>}, {pipeline_mode = #tpu.pipeline_mode<synchronous>, transform_indices = @transform_4, window_bounds = array<i64: 16, 4>}, {pipeline_mode = #tpu.pipeline_mode<synchronous>, transform_indices = @transform_5, window_bounds = array<i64: 16, 1>}, {pipeline_mode = #tpu.pipeline_mode<synchronous>, transform_indices = @transform_6, window_bounds = array<i64: 32, 128>}, {pipeline_mode = #tpu.pipeline_mode<synchronous>, transform_indices = @transform_7, window_bounds = array<i64: 1, 128>}, {pipeline_mode = #tpu.pipeline_mode<synchronous>, transform_indices = @transform_8, window_bounds = array<i64: 128, 32>}, {pipeline_mode = #tpu.pipeline_mode<synchronous>, transform_indices = @transform_9, window_bounds = array<i64: 1, 32>}, {transform_indices = @transform_10, window_bounds = array<i64: 1, 1, 32>}, {transform_indices = @transform_11, window_bounds = array<i64: 1, 1, 32>}, {transform_indices = @transform_12, window_bounds = array<i64: 1, 32, 96>}, {transform_indices = @transform_13, window_bounds = array<i64: 1, 1, 96>}, {transform_indices = @transform_14, window_bounds = array<i64: 1, 32, 32>}, {transform_indices = @transform_15, window_bounds = array<i64: 1, 1, 32>}, {transform_indices = @transform_16, window_bounds = array<i64: 1, 1, 32>}, {transform_indices = @transform_17, window_bounds = array<i64: 1, 1, 32>}, {transform_indices = @transform_18, window_bounds = array<i64: 1, 32, 128>}, {transform_indices = @transform_19, window_bounds = array<i64: 1, 1, 128>}, {transform_indices = @transform_20, window_bounds = array<i64: 1, 128, 32>}, {transform_indices = @transform_21, window_bounds = array<i64: 1, 1, 32>}, {pipeline_mode = #tpu.pipeline_mode<synchronous>, transform_indices = @transform_22, window_bounds = array<i64: 1, 32>}, {pipeline_mode = #tpu.pipeline_mode<synchronous>, transform_indices = @transform_23, window_bounds = array<i64: 1, 32>}, {pipeline_mode = #tpu.pipeline_mode<synchronous>, transform_indices = @transform_24, window_bounds = array<i64: 1, 32>}, {pipeline_mode = #tpu.pipeline_mode<synchronous>, transform_indices = @transform_25, window_bounds = array<i64: 1, 1>}, {transform_indices = @transform_26, window_bounds = array<i64: 2, 1, 16>}]} {
    %c0_i32 = arith.constant 0 : i32
    %0 = arith.cmpi eq, %arg1, %c0_i32 : i32
    %1 = arith.extui %0 : i1 to i32
    %c0_i32_0 = arith.constant 0 : i32
    %2 = arith.cmpi ne, %1, %c0_i32_0 : i32
    scf.if %2 {
      %c0_113 = arith.constant 0 : index
      %c0_114 = arith.constant 0 : index
      %c0_115 = arith.constant 0 : index
      %313 = vector.load %arg2[%c0_113, %c0_114, %c0_115] : memref<2x4x4xf32, #tpu.memory_space<vmem>>, vector<1x4x4xf32>
      %314 = vector.shape_cast %313 : vector<1x4x4xf32> to vector<4x4xf32>
      %315 = arith.truncf %314 : vector<4x4xf32> to vector<4x4xbf16>
      %c0_116 = arith.constant 0 : index
      %c0_117 = arith.constant 0 : index
      %316 = vector.load %arg4[%c0_116, %c0_117] : memref<4x32xbf16, #tpu.memory_space<vmem>>, vector<4x32xbf16>
      %cst_118 = arith.constant dense<0.000000e+00> : vector<4x32xf32>
      %317 = tpu.matmul %315, %316, %cst_118 {dimension_numbers = #tpu.dot_dimension_numbers<[1], [0], [0], [1], [0, 0, 1, 1], [], []>} : vector<4x4xbf16>, vector<4x32xbf16>, vector<4x32xf32> -> vector<4x32xf32>
      %c0_119 = arith.constant 0 : index
      %c0_120 = arith.constant 0 : index
      %318 = vector.load %arg5[%c0_119, %c0_120] : memref<1x32xf32, #tpu.memory_space<vmem>>, vector<1x32xf32>
      %319 = vector.broadcast %318 : vector<1x32xf32> to vector<4x32xf32>
      %320 = arith.addf %317, %319 : vector<4x32xf32>
      %c0_121 = arith.constant 0 : index
      %c0_122 = arith.constant 0 : index
      %321 = vector.load %arg6[%c0_121, %c0_122] : memref<16x4xbf16, #tpu.memory_space<vmem>>, vector<16x4xbf16>
      %322 = arith.truncf %320 : vector<4x32xf32> to vector<4x32xbf16>
      %cst_123 = arith.constant dense<0.000000e+00> : vector<16x32xf32>
      %323 = tpu.matmul %321, %322, %cst_123 {dimension_numbers = #tpu.dot_dimension_numbers<[1], [0], [0], [1], [0, 0, 1, 1], [], []>} : vector<16x4xbf16>, vector<4x32xbf16>, vector<16x32xf32> -> vector<16x32xf32>
      %c0_124 = arith.constant 0 : index
      %c0_125 = arith.constant 0 : index
      %324 = vector.load %arg7[%c0_124, %c0_125] : memref<16x1xf32, #tpu.memory_space<vmem>>, vector<16x1xf32>
      %325 = vector.broadcast %324 : vector<16x1xf32> to vector<16x32xf32>
      %326 = arith.addf %323, %325 : vector<16x32xf32>
      %c0_126 = arith.constant 0 : index
      %c0_127 = arith.constant 0 : index
      %c0_128 = arith.constant 0 : index
      %327 = vector.load %arg3[%c0_126, %c0_127, %c0_128] : memref<2x1x32xf32, #tpu.memory_space<vmem>>, vector<1x1x32xf32>
      %328 = vector.shape_cast %327 : vector<1x1x32xf32> to vector<1x32xf32>
      %329 = vector.broadcast %328 : vector<1x32xf32> to vector<16x32xf32>
      %330 = arith.addf %326, %329 : vector<16x32xf32>
      %c0_129 = arith.constant 0 : index
      %c0_130 = arith.constant 0 : index
      %331 = vector.load %arg29[%c0_129, %c0_130] : memref<32x32xf32, #tpu.memory_space<vmem>>, vector<16x32xf32>
      tpu.vector_store %arg29[%c0_129, %c0_130], %330 {strides = array<i32>} : memref<32x32xf32, #tpu.memory_space<vmem>>, vector<16x32xf32>,
      %c1 = arith.constant 1 : index
      %c0_131 = arith.constant 0 : index
      %c0_132 = arith.constant 0 : index
      %332 = vector.load %arg2[%c1, %c0_131, %c0_132] : memref<2x4x4xf32, #tpu.memory_space<vmem>>, vector<1x4x4xf32>
      %333 = vector.shape_cast %332 : vector<1x4x4xf32> to vector<4x4xf32>
      %334 = arith.truncf %333 : vector<4x4xf32> to vector<4x4xbf16>
      %c0_133 = arith.constant 0 : index
      %c0_134 = arith.constant 0 : index
      %335 = vector.load %arg4[%c0_133, %c0_134] : memref<4x32xbf16, #tpu.memory_space<vmem>>, vector<4x32xbf16>
      %cst_135 = arith.constant dense<0.000000e+00> : vector<4x32xf32>
      %336 = tpu.matmul %334, %335, %cst_135 {dimension_numbers = #tpu.dot_dimension_numbers<[1], [0], [0], [1], [0, 0, 1, 1], [], []>} : vector<4x4xbf16>, vector<4x32xbf16>, vector<4x32xf32> -> vector<4x32xf32>
      %c0_136 = arith.constant 0 : index
      %c0_137 = arith.constant 0 : index
      %337 = vector.load %arg5[%c0_136, %c0_137] : memref<1x32xf32, #tpu.memory_space<vmem>>, vector<1x32xf32>
      %338 = vector.broadcast %337 : vector<1x32xf32> to vector<4x32xf32>
      %339 = arith.addf %336, %338 : vector<4x32xf32>
      %c0_138 = arith.constant 0 : index
      %c0_139 = arith.constant 0 : index
      %340 = vector.load %arg6[%c0_138, %c0_139] : memref<16x4xbf16, #tpu.memory_space<vmem>>, vector<16x4xbf16>
      %341 = arith.truncf %339 : vector<4x32xf32> to vector<4x32xbf16>
      %cst_140 = arith.constant dense<0.000000e+00> : vector<16x32xf32>
      %342 = tpu.matmul %340, %341, %cst_140 {dimension_numbers = #tpu.dot_dimension_numbers<[1], [0], [0], [1], [0, 0, 1, 1], [], []>} : vector<16x4xbf16>, vector<4x32xbf16>, vector<16x32xf32> -> vector<16x32xf32>
      %c0_141 = arith.constant 0 : index
      %c0_142 = arith.constant 0 : index
      %343 = vector.load %arg7[%c0_141, %c0_142] : memref<16x1xf32, #tpu.memory_space<vmem>>, vector<16x1xf32>
      %344 = vector.broadcast %343 : vector<16x1xf32> to vector<16x32xf32>
      %345 = arith.addf %342, %344 : vector<16x32xf32>
      %c1_143 = arith.constant 1 : index
      %c0_144 = arith.constant 0 : index
      %c0_145 = arith.constant 0 : index
      %346 = vector.load %arg3[%c1_143, %c0_144, %c0_145] : memref<2x1x32xf32, #tpu.memory_space<vmem>>, vector<1x1x32xf32>
      %347 = vector.shape_cast %346 : vector<1x1x32xf32> to vector<1x32xf32>
      %348 = vector.broadcast %347 : vector<1x32xf32> to vector<16x32xf32>
      %349 = arith.addf %345, %348 : vector<16x32xf32>
      %c16_146 = arith.constant 16 : index
      %c0_147 = arith.constant 0 : index
      %350 = vector.load %arg29[%c16_146, %c0_147] : memref<32x32xf32, #tpu.memory_space<vmem>>, vector<16x32xf32>
      tpu.vector_store %arg29[%c16_146, %c0_147], %349 {strides = array<i32>} : memref<32x32xf32, #tpu.memory_space<vmem>>, vector<16x32xf32>,
      %c0_148 = arith.constant 0 : index
      %c0_149 = arith.constant 0 : index
      %351 = vector.load %arg29[%c0_148, %c0_149] : memref<32x32xf32, #tpu.memory_space<vmem>>, vector<32x32xf32>
      %352 = arith.truncf %351 : vector<32x32xf32> to vector<32x32xbf16>
      %c0_150 = arith.constant 0 : index
      %c0_151 = arith.constant 0 : index
      %353 = vector.load %arg8[%c0_150, %c0_151] : memref<32x128xbf16, #tpu.memory_space<vmem>>, vector<32x128xbf16>
      %cst_152 = arith.constant dense<0.000000e+00> : vector<32x128xf32>
      %354 = tpu.matmul %352, %353, %cst_152 {dimension_numbers = #tpu.dot_dimension_numbers<[1], [0], [0], [1], [0, 0, 1, 1], [], []>} : vector<32x32xbf16>, vector<32x128xbf16>, vector<32x128xf32> -> vector<32x128xf32>
      %c0_153 = arith.constant 0 : index
      %c0_154 = arith.constant 0 : index
      %355 = vector.load %arg9[%c0_153, %c0_154] : memref<1x128xf32, #tpu.memory_space<vmem>>, vector<1x128xf32>
      %356 = vector.broadcast %355 : vector<1x128xf32> to vector<32x128xf32>
      %357 = arith.addf %354, %356 : vector<32x128xf32>
      %cst_155 = arith.constant 5.000000e-01 : f32
      %358 = vector.broadcast %cst_155 : f32 to vector<32x128xf32>
      %359 = arith.mulf %358, %357 : vector<32x128xf32>
      %cst_156 = arith.constant 4.471500e-02 : f32
      %360 = vector.broadcast %cst_156 : f32 to vector<32x128xf32>
      %361 = arith.mulf %360, %357 : vector<32x128xf32>
      %362 = arith.mulf %361, %357 : vector<32x128xf32>
      %363 = arith.mulf %362, %357 : vector<32x128xf32>
      %364 = arith.addf %357, %363 : vector<32x128xf32>
      %cst_157 = arith.constant 0.797884583 : f32
      %365 = vector.broadcast %cst_157 : f32 to vector<32x128xf32>
      %366 = arith.mulf %365, %364 : vector<32x128xf32>
      %367 = math.tanh %366 : vector<32x128xf32>
      %cst_158 = arith.constant 1.000000e+00 : f32
      %368 = vector.broadcast %cst_158 : f32 to vector<32x128xf32>
      %369 = arith.addf %368, %367 : vector<32x128xf32>
      %370 = arith.mulf %359, %369 : vector<32x128xf32>
      %371 = arith.truncf %370 : vector<32x128xf32> to vector<32x128xbf16>
      %c0_159 = arith.constant 0 : index
      %c0_160 = arith.constant 0 : index
      %372 = vector.load %arg10[%c0_159, %c0_160] : memref<128x32xbf16, #tpu.memory_space<vmem>>, vector<128x32xbf16>
      %cst_161 = arith.constant dense<0.000000e+00> : vector<32x32xf32>
      %373 = tpu.matmul %371, %372, %cst_161 {dimension_numbers = #tpu.dot_dimension_numbers<[1], [0], [0], [1], [0, 0, 1, 1], [], []>} : vector<32x128xbf16>, vector<128x32xbf16>, vector<32x32xf32> -> vector<32x32xf32>
      %c0_162 = arith.constant 0 : index
      %c0_163 = arith.constant 0 : index
      %374 = vector.load %arg11[%c0_162, %c0_163] : memref<1x32xf32, #tpu.memory_space<vmem>>, vector<1x32xf32>
      %375 = vector.broadcast %374 : vector<1x32xf32> to vector<32x32xf32>
      %376 = arith.addf %373, %375 : vector<32x32xf32>
      %377 = arith.addf %351, %376 : vector<32x32xf32>
      %c0_164 = arith.constant 0 : index
      %c0_165 = arith.constant 0 : index
      %378 = vector.load %arg29[%c0_164, %c0_165] : memref<32x32xf32, #tpu.memory_space<vmem>>, vector<32x32xf32>
      tpu.vector_store %arg29[%c0_164, %c0_165], %377 {strides = array<i32>} : memref<32x32xf32, #tpu.memory_space<vmem>>, vector<32x32xf32>,
    } else {
    }
    %c0 = arith.constant 0 : index
    %c0_1 = arith.constant 0 : index
    %3 = vector.load %arg29[%c0, %c0_1] : memref<32x32xf32, #tpu.memory_space<vmem>>, vector<32x32xf32>
    %c0_2 = arith.constant 0 : index
    %c0_3 = arith.constant 0 : index
    %c0_4 = arith.constant 0 : index
    %4 = vector.load %arg12[%c0_2, %c0_3, %c0_4] : memref<1x1x32xf32, #tpu.memory_space<vmem>>, vector<1x1x32xf32>
    %5 = vector.shape_cast %4 : vector<1x1x32xf32> to vector<1x32xf32>
    %c0_5 = arith.constant 0 : index
    %c0_6 = arith.constant 0 : index
    %c0_7 = arith.constant 0 : index
    %6 = vector.load %arg13[%c0_5, %c0_6, %c0_7] : memref<1x1x32xf32, #tpu.memory_space<vmem>>, vector<1x1x32xf32>
    %7 = vector.shape_cast %6 : vector<1x1x32xf32> to vector<1x32xf32>
    %cst = arith.constant dense<0.000000e+00> : vector<32xf32>
    %8 = vector.multi_reduction <add>, %3, %cst [1] : vector<32x32xf32> to vector<32xf32>
    %9 = vector.shape_cast %8 : vector<32xf32> to vector<32x1xf32>
    %cst_8 = arith.constant 3.200000e+01 : f32
    %10 = vector.broadcast %cst_8 : f32 to vector<32x1xf32>
    %11 = arith.divf %9, %10 : vector<32x1xf32>
    %12 = vector.broadcast %11 : vector<32x1xf32> to vector<32x32xf32>
    %13 = arith.subf %3, %12 : vector<32x32xf32>
    %14 = arith.mulf %13, %13 : vector<32x32xf32>
    %cst_9 = arith.constant dense<0.000000e+00> : vector<32xf32>
    %15 = vector.multi_reduction <add>, %14, %cst_9 [1] : vector<32x32xf32> to vector<32xf32>
    %16 = vector.shape_cast %15 : vector<32xf32> to vector<32x1xf32>
    %cst_10 = arith.constant 3.200000e+01 : f32
    %17 = vector.broadcast %cst_10 : f32 to vector<32x1xf32>
    %18 = arith.divf %16, %17 : vector<32x1xf32>
    %19 = vector.broadcast %11 : vector<32x1xf32> to vector<32x32xf32>
    %20 = arith.subf %3, %19 : vector<32x32xf32>
    %cst_11 = arith.constant 9.99999974E-6 : f32
    %21 = vector.broadcast %cst_11 : f32 to vector<32x1xf32>
    %22 = arith.addf %18, %21 : vector<32x1xf32>
    %23 = math.rsqrt %22 : vector<32x1xf32>
    %24 = vector.broadcast %23 : vector<32x1xf32> to vector<32x32xf32>
    %25 = arith.mulf %20, %24 : vector<32x32xf32>
    %26 = vector.broadcast %5 : vector<1x32xf32> to vector<32x32xf32>
    %27 = arith.mulf %25, %26 : vector<32x32xf32>
    %28 = vector.broadcast %7 : vector<1x32xf32> to vector<32x32xf32>
    %29 = arith.addf %27, %28 : vector<32x32xf32>
    %30 = arith.truncf %29 : vector<32x32xf32> to vector<32x32xbf16>
    %c0_12 = arith.constant 0 : index
    %c0_13 = arith.constant 0 : index
    %c0_14 = arith.constant 0 : index
    %31 = vector.load %arg14[%c0_12, %c0_13, %c0_14] : memref<1x32x96xbf16, #tpu.memory_space<vmem>>, vector<1x32x96xbf16>
    %32 = vector.shape_cast %31 : vector<1x32x96xbf16> to vector<32x96xbf16>
    %cst_15 = arith.constant dense<0.000000e+00> : vector<32x96xf32>
    %33 = tpu.matmul %30, %32, %cst_15 {dimension_numbers = #tpu.dot_dimension_numbers<[1], [0], [0], [1], [0, 0, 1, 1], [], []>} : vector<32x32xbf16>, vector<32x96xbf16>, vector<32x96xf32> -> vector<32x96xf32>
    %c0_16 = arith.constant 0 : index
    %c0_17 = arith.constant 0 : index
    %c0_18 = arith.constant 0 : index
    %34 = vector.load %arg15[%c0_16, %c0_17, %c0_18] : memref<1x1x96xf32, #tpu.memory_space<vmem>>, vector<1x1x96xf32>
    %35 = vector.shape_cast %34 : vector<1x1x96xf32> to vector<1x96xf32>
    %36 = vector.broadcast %35 : vector<1x96xf32> to vector<32x96xf32>
    %37 = arith.addf %33, %36 : vector<32x96xf32>
    %c0_19 = arith.constant 0 : index
    %c0_20 = arith.constant 0 : index
    %c0_21 = arith.constant 0 : index
    %38 = vector.load %arg16[%c0_19, %c0_20, %c0_21] : memref<1x32x32xbf16, #tpu.memory_space<vmem>>, vector<1x32x32xbf16>
    %39 = vector.shape_cast %38 : vector<1x32x32xbf16> to vector<32x32xbf16>
    %40 = vector.extract_strided_slice %37 {offsets = [0, 0], sizes = [16, 8], strides = [1, 1]} : vector<32x96xf32> to vector<16x8xf32>
    %cst_22 = arith.constant 0.353553385 : f32
    %41 = vector.broadcast %cst_22 : f32 to vector<16x8xf32>
    %42 = arith.mulf %40, %41 : vector<16x8xf32>
    %43 = arith.truncf %42 : vector<16x8xf32> to vector<16x8xbf16>
    %44 = vector.extract_strided_slice %37 {offsets = [0, 32], sizes = [16, 8], strides = [1, 1]} : vector<32x96xf32> to vector<16x8xf32>
    %45 = arith.truncf %44 : vector<16x8xf32> to vector<16x8xbf16>
    %46 = vector.extract_strided_slice %37 {offsets = [0, 64], sizes = [16, 8], strides = [1, 1]} : vector<32x96xf32> to vector<16x8xf32>
    %47 = arith.truncf %46 : vector<16x8xf32> to vector<16x8xbf16>
    %cst_23 = arith.constant dense<0.000000e+00> : vector<16x16xf32>
    %48 = tpu.matmul %43, %45, %cst_23 {dimension_numbers = #tpu.dot_dimension_numbers<[1], [1], [0], [0], [0, 0, 1, 0], [], []>} : vector<16x8xbf16>, vector<16x8xbf16>, vector<16x16xf32> -> vector<16x16xf32>
    %cst_24 = arith.constant dense<0xFF800000> : vector<16xf32>
    %49 = vector.multi_reduction <maximumf>, %48, %cst_24 [1] : vector<16x16xf32> to vector<16xf32>
    %50 = vector.shape_cast %49 : vector<16xf32> to vector<16x1xf32>
    %51 = vector.broadcast %50 : vector<16x1xf32> to vector<16x16xf32>
    %52 = arith.subf %48, %51 : vector<16x16xf32>
    %53 = math.exp %52 : vector<16x16xf32>
    %cst_25 = arith.constant dense<0.000000e+00> : vector<16xf32>
    %54 = vector.multi_reduction <add>, %53, %cst_25 [1] : vector<16x16xf32> to vector<16xf32>
    %55 = vector.shape_cast %54 : vector<16xf32> to vector<16x1xf32>
    %56 = tpu.reciprocal %55 {approx = true} : vector<16x1xf32> -> vector<16x1xf32>
    %57 = vector.broadcast %56 : vector<16x1xf32> to vector<16x16xf32>
    %58 = arith.mulf %53, %57 : vector<16x16xf32>
    %59 = arith.truncf %58 : vector<16x16xf32> to vector<16x16xbf16>
    %cst_26 = arith.constant dense<0.000000e+00> : vector<16x8xf32>
    %60 = tpu.matmul %59, %47, %cst_26 {dimension_numbers = #tpu.dot_dimension_numbers<[1], [0], [0], [1], [0, 0, 1, 1], [], []>} : vector<16x16xbf16>, vector<16x8xbf16>, vector<16x8xf32> -> vector<16x8xf32>
    %61 = arith.truncf %60 : vector<16x8xf32> to vector<16x8xbf16>
    %62 = vector.extract_strided_slice %39 {offsets = [0, 0], sizes = [8, 32], strides = [1, 1]} : vector<32x32xbf16> to vector<8x32xbf16>
    %cst_27 = arith.constant dense<0.000000e+00> : vector<16x32xf32>
    %63 = tpu.matmul %61, %62, %cst_27 {dimension_numbers = #tpu.dot_dimension_numbers<[1], [0], [0], [1], [0, 0, 1, 1], [], []>} : vector<16x8xbf16>, vector<8x32xbf16>, vector<16x32xf32> -> vector<16x32xf32>
    %64 = vector.extract_strided_slice %37 {offsets = [0, 8], sizes = [16, 8], strides = [1, 1]} : vector<32x96xf32> to vector<16x8xf32>
    %cst_28 = arith.constant 0.353553385 : f32
    %65 = vector.broadcast %cst_28 : f32 to vector<16x8xf32>
    %66 = arith.mulf %64, %65 : vector<16x8xf32>
    %67 = arith.truncf %66 : vector<16x8xf32> to vector<16x8xbf16>
    %68 = vector.extract_strided_slice %37 {offsets = [0, 40], sizes = [16, 8], strides = [1, 1]} : vector<32x96xf32> to vector<16x8xf32>
    %69 = arith.truncf %68 : vector<16x8xf32> to vector<16x8xbf16>
    %70 = vector.extract_strided_slice %37 {offsets = [0, 72], sizes = [16, 8], strides = [1, 1]} : vector<32x96xf32> to vector<16x8xf32>
    %71 = arith.truncf %70 : vector<16x8xf32> to vector<16x8xbf16>
    %cst_29 = arith.constant dense<0.000000e+00> : vector<16x16xf32>
    %72 = tpu.matmul %67, %69, %cst_29 {dimension_numbers = #tpu.dot_dimension_numbers<[1], [1], [0], [0], [0, 0, 1, 0], [], []>} : vector<16x8xbf16>, vector<16x8xbf16>, vector<16x16xf32> -> vector<16x16xf32>
    %cst_30 = arith.constant dense<0xFF800000> : vector<16xf32>
    %73 = vector.multi_reduction <maximumf>, %72, %cst_30 [1] : vector<16x16xf32> to vector<16xf32>
    %74 = vector.shape_cast %73 : vector<16xf32> to vector<16x1xf32>
    %75 = vector.broadcast %74 : vector<16x1xf32> to vector<16x16xf32>
    %76 = arith.subf %72, %75 : vector<16x16xf32>
    %77 = math.exp %76 : vector<16x16xf32>
    %cst_31 = arith.constant dense<0.000000e+00> : vector<16xf32>
    %78 = vector.multi_reduction <add>, %77, %cst_31 [1] : vector<16x16xf32> to vector<16xf32>
    %79 = vector.shape_cast %78 : vector<16xf32> to vector<16x1xf32>
    %80 = tpu.reciprocal %79 {approx = true} : vector<16x1xf32> -> vector<16x1xf32>
    %81 = vector.broadcast %80 : vector<16x1xf32> to vector<16x16xf32>
    %82 = arith.mulf %77, %81 : vector<16x16xf32>
    %83 = arith.truncf %82 : vector<16x16xf32> to vector<16x16xbf16>
    %cst_32 = arith.constant dense<0.000000e+00> : vector<16x8xf32>
    %84 = tpu.matmul %83, %71, %cst_32 {dimension_numbers = #tpu.dot_dimension_numbers<[1], [0], [0], [1], [0, 0, 1, 1], [], []>} : vector<16x16xbf16>, vector<16x8xbf16>, vector<16x8xf32> -> vector<16x8xf32>
    %85 = arith.truncf %84 : vector<16x8xf32> to vector<16x8xbf16>
    %86 = vector.extract_strided_slice %39 {offsets = [8, 0], sizes = [8, 32], strides = [1, 1]} : vector<32x32xbf16> to vector<8x32xbf16>
    %cst_33 = arith.constant dense<0.000000e+00> : vector<16x32xf32>
    %87 = tpu.matmul %85, %86, %cst_33 {dimension_numbers = #tpu.dot_dimension_numbers<[1], [0], [0], [1], [0, 0, 1, 1], [], []>} : vector<16x8xbf16>, vector<8x32xbf16>, vector<16x32xf32> -> vector<16x32xf32>
    %88 = arith.addf %63, %87 : vector<16x32xf32>
    %89 = vector.extract_strided_slice %37 {offsets = [0, 16], sizes = [16, 8], strides = [1, 1]} : vector<32x96xf32> to vector<16x8xf32>
    %cst_34 = arith.constant 0.353553385 : f32
    %90 = vector.broadcast %cst_34 : f32 to vector<16x8xf32>
    %91 = arith.mulf %89, %90 : vector<16x8xf32>
    %92 = arith.truncf %91 : vector<16x8xf32> to vector<16x8xbf16>
    %93 = vector.extract_strided_slice %37 {offsets = [0, 48], sizes = [16, 8], strides = [1, 1]} : vector<32x96xf32> to vector<16x8xf32>
    %94 = arith.truncf %93 : vector<16x8xf32> to vector<16x8xbf16>
    %95 = vector.extract_strided_slice %37 {offsets = [0, 80], sizes = [16, 8], strides = [1, 1]} : vector<32x96xf32> to vector<16x8xf32>
    %96 = arith.truncf %95 : vector<16x8xf32> to vector<16x8xbf16>
    %cst_35 = arith.constant dense<0.000000e+00> : vector<16x16xf32>
    %97 = tpu.matmul %92, %94, %cst_35 {dimension_numbers = #tpu.dot_dimension_numbers<[1], [1], [0], [0], [0, 0, 1, 0], [], []>} : vector<16x8xbf16>, vector<16x8xbf16>, vector<16x16xf32> -> vector<16x16xf32>
    %cst_36 = arith.constant dense<0xFF800000> : vector<16xf32>
    %98 = vector.multi_reduction <maximumf>, %97, %cst_36 [1] : vector<16x16xf32> to vector<16xf32>
    %99 = vector.shape_cast %98 : vector<16xf32> to vector<16x1xf32>
    %100 = vector.broadcast %99 : vector<16x1xf32> to vector<16x16xf32>
    %101 = arith.subf %97, %100 : vector<16x16xf32>
    %102 = math.exp %101 : vector<16x16xf32>
    %cst_37 = arith.constant dense<0.000000e+00> : vector<16xf32>
    %103 = vector.multi_reduction <add>, %102, %cst_37 [1] : vector<16x16xf32> to vector<16xf32>
    %104 = vector.shape_cast %103 : vector<16xf32> to vector<16x1xf32>
    %105 = tpu.reciprocal %104 {approx = true} : vector<16x1xf32> -> vector<16x1xf32>
    %106 = vector.broadcast %105 : vector<16x1xf32> to vector<16x16xf32>
    %107 = arith.mulf %102, %106 : vector<16x16xf32>
    %108 = arith.truncf %107 : vector<16x16xf32> to vector<16x16xbf16>
    %cst_38 = arith.constant dense<0.000000e+00> : vector<16x8xf32>
    %109 = tpu.matmul %108, %96, %cst_38 {dimension_numbers = #tpu.dot_dimension_numbers<[1], [0], [0], [1], [0, 0, 1, 1], [], []>} : vector<16x16xbf16>, vector<16x8xbf16>, vector<16x8xf32> -> vector<16x8xf32>
    %110 = arith.truncf %109 : vector<16x8xf32> to vector<16x8xbf16>
    %111 = vector.extract_strided_slice %39 {offsets = [16, 0], sizes = [8, 32], strides = [1, 1]} : vector<32x32xbf16> to vector<8x32xbf16>
    %cst_39 = arith.constant dense<0.000000e+00> : vector<16x32xf32>
    %112 = tpu.matmul %110, %111, %cst_39 {dimension_numbers = #tpu.dot_dimension_numbers<[1], [0], [0], [1], [0, 0, 1, 1], [], []>} : vector<16x8xbf16>, vector<8x32xbf16>, vector<16x32xf32> -> vector<16x32xf32>
    %113 = arith.addf %88, %112 : vector<16x32xf32>
    %114 = vector.extract_strided_slice %37 {offsets = [0, 24], sizes = [16, 8], strides = [1, 1]} : vector<32x96xf32> to vector<16x8xf32>
    %cst_40 = arith.constant 0.353553385 : f32
    %115 = vector.broadcast %cst_40 : f32 to vector<16x8xf32>
    %116 = arith.mulf %114, %115 : vector<16x8xf32>
    %117 = arith.truncf %116 : vector<16x8xf32> to vector<16x8xbf16>
    %118 = vector.extract_strided_slice %37 {offsets = [0, 56], sizes = [16, 8], strides = [1, 1]} : vector<32x96xf32> to vector<16x8xf32>
    %119 = arith.truncf %118 : vector<16x8xf32> to vector<16x8xbf16>
    %120 = vector.extract_strided_slice %37 {offsets = [0, 88], sizes = [16, 8], strides = [1, 1]} : vector<32x96xf32> to vector<16x8xf32>
    %121 = arith.truncf %120 : vector<16x8xf32> to vector<16x8xbf16>
    %cst_41 = arith.constant dense<0.000000e+00> : vector<16x16xf32>
    %122 = tpu.matmul %117, %119, %cst_41 {dimension_numbers = #tpu.dot_dimension_numbers<[1], [1], [0], [0], [0, 0, 1, 0], [], []>} : vector<16x8xbf16>, vector<16x8xbf16>, vector<16x16xf32> -> vector<16x16xf32>
    %cst_42 = arith.constant dense<0xFF800000> : vector<16xf32>
    %123 = vector.multi_reduction <maximumf>, %122, %cst_42 [1] : vector<16x16xf32> to vector<16xf32>
    %124 = vector.shape_cast %123 : vector<16xf32> to vector<16x1xf32>
    %125 = vector.broadcast %124 : vector<16x1xf32> to vector<16x16xf32>
    %126 = arith.subf %122, %125 : vector<16x16xf32>
    %127 = math.exp %126 : vector<16x16xf32>
    %cst_43 = arith.constant dense<0.000000e+00> : vector<16xf32>
    %128 = vector.multi_reduction <add>, %127, %cst_43 [1] : vector<16x16xf32> to vector<16xf32>
    %129 = vector.shape_cast %128 : vector<16xf32> to vector<16x1xf32>
    %130 = tpu.reciprocal %129 {approx = true} : vector<16x1xf32> -> vector<16x1xf32>
    %131 = vector.broadcast %130 : vector<16x1xf32> to vector<16x16xf32>
    %132 = arith.mulf %127, %131 : vector<16x16xf32>
    %133 = arith.truncf %132 : vector<16x16xf32> to vector<16x16xbf16>
    %cst_44 = arith.constant dense<0.000000e+00> : vector<16x8xf32>
    %134 = tpu.matmul %133, %121, %cst_44 {dimension_numbers = #tpu.dot_dimension_numbers<[1], [0], [0], [1], [0, 0, 1, 1], [], []>} : vector<16x16xbf16>, vector<16x8xbf16>, vector<16x8xf32> -> vector<16x8xf32>
    %135 = arith.truncf %134 : vector<16x8xf32> to vector<16x8xbf16>
    %136 = vector.extract_strided_slice %39 {offsets = [24, 0], sizes = [8, 32], strides = [1, 1]} : vector<32x32xbf16> to vector<8x32xbf16>
    %cst_45 = arith.constant dense<0.000000e+00> : vector<16x32xf32>
    %137 = tpu.matmul %135, %136, %cst_45 {dimension_numbers = #tpu.dot_dimension_numbers<[1], [0], [0], [1], [0, 0, 1, 1], [], []>} : vector<16x8xbf16>, vector<8x32xbf16>, vector<16x32xf32> -> vector<16x32xf32>
    %138 = arith.addf %113, %137 : vector<16x32xf32>
    %139 = vector.extract_strided_slice %3 {offsets = [0, 0], sizes = [16, 32], strides = [1, 1]} : vector<32x32xf32> to vector<16x32xf32>
    %140 = arith.addf %139, %138 : vector<16x32xf32>
    %c0_46 = arith.constant 0 : index
    %c0_47 = arith.constant 0 : index
    %c0_48 = arith.constant 0 : index
    %141 = vector.load %arg17[%c0_46, %c0_47, %c0_48] : memref<1x1x32xf32, #tpu.memory_space<vmem>>, vector<1x1x32xf32>
    %142 = vector.shape_cast %141 : vector<1x1x32xf32> to vector<1x32xf32>
    %143 = vector.broadcast %142 : vector<1x32xf32> to vector<16x32xf32>
    %144 = arith.addf %140, %143 : vector<16x32xf32>
    %c0_49 = arith.constant 0 : index
    %c0_50 = arith.constant 0 : index
    %145 = vector.load %arg29[%c0_49, %c0_50] : memref<32x32xf32, #tpu.memory_space<vmem>>, vector<16x32xf32>
    tpu.vector_store %arg29[%c0_49, %c0_50], %144 {strides = array<i32>} : memref<32x32xf32, #tpu.memory_space<vmem>>, vector<16x32xf32>,
    %146 = vector.extract_strided_slice %37 {offsets = [16, 0], sizes = [16, 8], strides = [1, 1]} : vector<32x96xf32> to vector<16x8xf32>
    %cst_51 = arith.constant 0.353553385 : f32
    %147 = vector.broadcast %cst_51 : f32 to vector<16x8xf32>
    %148 = arith.mulf %146, %147 : vector<16x8xf32>
    %149 = arith.truncf %148 : vector<16x8xf32> to vector<16x8xbf16>
    %150 = vector.extract_strided_slice %37 {offsets = [16, 32], sizes = [16, 8], strides = [1, 1]} : vector<32x96xf32> to vector<16x8xf32>
    %151 = arith.truncf %150 : vector<16x8xf32> to vector<16x8xbf16>
    %152 = vector.extract_strided_slice %37 {offsets = [16, 64], sizes = [16, 8], strides = [1, 1]} : vector<32x96xf32> to vector<16x8xf32>
    %153 = arith.truncf %152 : vector<16x8xf32> to vector<16x8xbf16>
    %cst_52 = arith.constant dense<0.000000e+00> : vector<16x16xf32>
    %154 = tpu.matmul %149, %151, %cst_52 {dimension_numbers = #tpu.dot_dimension_numbers<[1], [1], [0], [0], [0, 0, 1, 0], [], []>} : vector<16x8xbf16>, vector<16x8xbf16>, vector<16x16xf32> -> vector<16x16xf32>
    %cst_53 = arith.constant dense<0xFF800000> : vector<16xf32>
    %155 = vector.multi_reduction <maximumf>, %154, %cst_53 [1] : vector<16x16xf32> to vector<16xf32>
    %156 = vector.shape_cast %155 : vector<16xf32> to vector<16x1xf32>
    %157 = vector.broadcast %156 : vector<16x1xf32> to vector<16x16xf32>
    %158 = arith.subf %154, %157 : vector<16x16xf32>
    %159 = math.exp %158 : vector<16x16xf32>
    %cst_54 = arith.constant dense<0.000000e+00> : vector<16xf32>
    %160 = vector.multi_reduction <add>, %159, %cst_54 [1] : vector<16x16xf32> to vector<16xf32>
    %161 = vector.shape_cast %160 : vector<16xf32> to vector<16x1xf32>
    %162 = tpu.reciprocal %161 {approx = true} : vector<16x1xf32> -> vector<16x1xf32>
    %163 = vector.broadcast %162 : vector<16x1xf32> to vector<16x16xf32>
    %164 = arith.mulf %159, %163 : vector<16x16xf32>
    %165 = arith.truncf %164 : vector<16x16xf32> to vector<16x16xbf16>
    %cst_55 = arith.constant dense<0.000000e+00> : vector<16x8xf32>
    %166 = tpu.matmul %165, %153, %cst_55 {dimension_numbers = #tpu.dot_dimension_numbers<[1], [0], [0], [1], [0, 0, 1, 1], [], []>} : vector<16x16xbf16>, vector<16x8xbf16>, vector<16x8xf32> -> vector<16x8xf32>
    %167 = arith.truncf %166 : vector<16x8xf32> to vector<16x8xbf16>
    %168 = vector.extract_strided_slice %39 {offsets = [0, 0], sizes = [8, 32], strides = [1, 1]} : vector<32x32xbf16> to vector<8x32xbf16>
    %cst_56 = arith.constant dense<0.000000e+00> : vector<16x32xf32>
    %169 = tpu.matmul %167, %168, %cst_56 {dimension_numbers = #tpu.dot_dimension_numbers<[1], [0], [0], [1], [0, 0, 1, 1], [], []>} : vector<16x8xbf16>, vector<8x32xbf16>, vector<16x32xf32> -> vector<16x32xf32>
    %170 = vector.extract_strided_slice %37 {offsets = [16, 8], sizes = [16, 8], strides = [1, 1]} : vector<32x96xf32> to vector<16x8xf32>
    %cst_57 = arith.constant 0.353553385 : f32
    %171 = vector.broadcast %cst_57 : f32 to vector<16x8xf32>
    %172 = arith.mulf %170, %171 : vector<16x8xf32>
    %173 = arith.truncf %172 : vector<16x8xf32> to vector<16x8xbf16>
    %174 = vector.extract_strided_slice %37 {offsets = [16, 40], sizes = [16, 8], strides = [1, 1]} : vector<32x96xf32> to vector<16x8xf32>
    %175 = arith.truncf %174 : vector<16x8xf32> to vector<16x8xbf16>
    %176 = vector.extract_strided_slice %37 {offsets = [16, 72], sizes = [16, 8], strides = [1, 1]} : vector<32x96xf32> to vector<16x8xf32>
    %177 = arith.truncf %176 : vector<16x8xf32> to vector<16x8xbf16>
    %cst_58 = arith.constant dense<0.000000e+00> : vector<16x16xf32>
    %178 = tpu.matmul %173, %175, %cst_58 {dimension_numbers = #tpu.dot_dimension_numbers<[1], [1], [0], [0], [0, 0, 1, 0], [], []>} : vector<16x8xbf16>, vector<16x8xbf16>, vector<16x16xf32> -> vector<16x16xf32>
    %cst_59 = arith.constant dense<0xFF800000> : vector<16xf32>
    %179 = vector.multi_reduction <maximumf>, %178, %cst_59 [1] : vector<16x16xf32> to vector<16xf32>
    %180 = vector.shape_cast %179 : vector<16xf32> to vector<16x1xf32>
    %181 = vector.broadcast %180 : vector<16x1xf32> to vector<16x16xf32>
    %182 = arith.subf %178, %181 : vector<16x16xf32>
    %183 = math.exp %182 : vector<16x16xf32>
    %cst_60 = arith.constant dense<0.000000e+00> : vector<16xf32>
    %184 = vector.multi_reduction <add>, %183, %cst_60 [1] : vector<16x16xf32> to vector<16xf32>
    %185 = vector.shape_cast %184 : vector<16xf32> to vector<16x1xf32>
    %186 = tpu.reciprocal %185 {approx = true} : vector<16x1xf32> -> vector<16x1xf32>
    %187 = vector.broadcast %186 : vector<16x1xf32> to vector<16x16xf32>
    %188 = arith.mulf %183, %187 : vector<16x16xf32>
    %189 = arith.truncf %188 : vector<16x16xf32> to vector<16x16xbf16>
    %cst_61 = arith.constant dense<0.000000e+00> : vector<16x8xf32>
    %190 = tpu.matmul %189, %177, %cst_61 {dimension_numbers = #tpu.dot_dimension_numbers<[1], [0], [0], [1], [0, 0, 1, 1], [], []>} : vector<16x16xbf16>, vector<16x8xbf16>, vector<16x8xf32> -> vector<16x8xf32>
    %191 = arith.truncf %190 : vector<16x8xf32> to vector<16x8xbf16>
    %192 = vector.extract_strided_slice %39 {offsets = [8, 0], sizes = [8, 32], strides = [1, 1]} : vector<32x32xbf16> to vector<8x32xbf16>
    %cst_62 = arith.constant dense<0.000000e+00> : vector<16x32xf32>
    %193 = tpu.matmul %191, %192, %cst_62 {dimension_numbers = #tpu.dot_dimension_numbers<[1], [0], [0], [1], [0, 0, 1, 1], [], []>} : vector<16x8xbf16>, vector<8x32xbf16>, vector<16x32xf32> -> vector<16x32xf32>
    %194 = arith.addf %169, %193 : vector<16x32xf32>
    %195 = vector.extract_strided_slice %37 {offsets = [16, 16], sizes = [16, 8], strides = [1, 1]} : vector<32x96xf32> to vector<16x8xf32>
    %cst_63 = arith.constant 0.353553385 : f32
    %196 = vector.broadcast %cst_63 : f32 to vector<16x8xf32>
    %197 = arith.mulf %195, %196 : vector<16x8xf32>
    %198 = arith.truncf %197 : vector<16x8xf32> to vector<16x8xbf16>
    %199 = vector.extract_strided_slice %37 {offsets = [16, 48], sizes = [16, 8], strides = [1, 1]} : vector<32x96xf32> to vector<16x8xf32>
    %200 = arith.truncf %199 : vector<16x8xf32> to vector<16x8xbf16>
    %201 = vector.extract_strided_slice %37 {offsets = [16, 80], sizes = [16, 8], strides = [1, 1]} : vector<32x96xf32> to vector<16x8xf32>
    %202 = arith.truncf %201 : vector<16x8xf32> to vector<16x8xbf16>
    %cst_64 = arith.constant dense<0.000000e+00> : vector<16x16xf32>
    %203 = tpu.matmul %198, %200, %cst_64 {dimension_numbers = #tpu.dot_dimension_numbers<[1], [1], [0], [0], [0, 0, 1, 0], [], []>} : vector<16x8xbf16>, vector<16x8xbf16>, vector<16x16xf32> -> vector<16x16xf32>
    %cst_65 = arith.constant dense<0xFF800000> : vector<16xf32>
    %204 = vector.multi_reduction <maximumf>, %203, %cst_65 [1] : vector<16x16xf32> to vector<16xf32>
    %205 = vector.shape_cast %204 : vector<16xf32> to vector<16x1xf32>
    %206 = vector.broadcast %205 : vector<16x1xf32> to vector<16x16xf32>
    %207 = arith.subf %203, %206 : vector<16x16xf32>
    %208 = math.exp %207 : vector<16x16xf32>
    %cst_66 = arith.constant dense<0.000000e+00> : vector<16xf32>
    %209 = vector.multi_reduction <add>, %208, %cst_66 [1] : vector<16x16xf32> to vector<16xf32>
    %210 = vector.shape_cast %209 : vector<16xf32> to vector<16x1xf32>
    %211 = tpu.reciprocal %210 {approx = true} : vector<16x1xf32> -> vector<16x1xf32>
    %212 = vector.broadcast %211 : vector<16x1xf32> to vector<16x16xf32>
    %213 = arith.mulf %208, %212 : vector<16x16xf32>
    %214 = arith.truncf %213 : vector<16x16xf32> to vector<16x16xbf16>
    %cst_67 = arith.constant dense<0.000000e+00> : vector<16x8xf32>
    %215 = tpu.matmul %214, %202, %cst_67 {dimension_numbers = #tpu.dot_dimension_numbers<[1], [0], [0], [1], [0, 0, 1, 1], [], []>} : vector<16x16xbf16>, vector<16x8xbf16>, vector<16x8xf32> -> vector<16x8xf32>
    %216 = arith.truncf %215 : vector<16x8xf32> to vector<16x8xbf16>
    %217 = vector.extract_strided_slice %39 {offsets = [16, 0], sizes = [8, 32], strides = [1, 1]} : vector<32x32xbf16> to vector<8x32xbf16>
    %cst_68 = arith.constant dense<0.000000e+00> : vector<16x32xf32>
    %218 = tpu.matmul %216, %217, %cst_68 {dimension_numbers = #tpu.dot_dimension_numbers<[1], [0], [0], [1], [0, 0, 1, 1], [], []>} : vector<16x8xbf16>, vector<8x32xbf16>, vector<16x32xf32> -> vector<16x32xf32>
    %219 = arith.addf %194, %218 : vector<16x32xf32>
    %220 = vector.extract_strided_slice %37 {offsets = [16, 24], sizes = [16, 8], strides = [1, 1]} : vector<32x96xf32> to vector<16x8xf32>
    %cst_69 = arith.constant 0.353553385 : f32
    %221 = vector.broadcast %cst_69 : f32 to vector<16x8xf32>
    %222 = arith.mulf %220, %221 : vector<16x8xf32>
    %223 = arith.truncf %222 : vector<16x8xf32> to vector<16x8xbf16>
    %224 = vector.extract_strided_slice %37 {offsets = [16, 56], sizes = [16, 8], strides = [1, 1]} : vector<32x96xf32> to vector<16x8xf32>
    %225 = arith.truncf %224 : vector<16x8xf32> to vector<16x8xbf16>
    %226 = vector.extract_strided_slice %37 {offsets = [16, 88], sizes = [16, 8], strides = [1, 1]} : vector<32x96xf32> to vector<16x8xf32>
    %227 = arith.truncf %226 : vector<16x8xf32> to vector<16x8xbf16>
    %cst_70 = arith.constant dense<0.000000e+00> : vector<16x16xf32>
    %228 = tpu.matmul %223, %225, %cst_70 {dimension_numbers = #tpu.dot_dimension_numbers<[1], [1], [0], [0], [0, 0, 1, 0], [], []>} : vector<16x8xbf16>, vector<16x8xbf16>, vector<16x16xf32> -> vector<16x16xf32>
    %cst_71 = arith.constant dense<0xFF800000> : vector<16xf32>
    %229 = vector.multi_reduction <maximumf>, %228, %cst_71 [1] : vector<16x16xf32> to vector<16xf32>
    %230 = vector.shape_cast %229 : vector<16xf32> to vector<16x1xf32>
    %231 = vector.broadcast %230 : vector<16x1xf32> to vector<16x16xf32>
    %232 = arith.subf %228, %231 : vector<16x16xf32>
    %233 = math.exp %232 : vector<16x16xf32>
    %cst_72 = arith.constant dense<0.000000e+00> : vector<16xf32>
    %234 = vector.multi_reduction <add>, %233, %cst_72 [1] : vector<16x16xf32> to vector<16xf32>
    %235 = vector.shape_cast %234 : vector<16xf32> to vector<16x1xf32>
    %236 = tpu.reciprocal %235 {approx = true} : vector<16x1xf32> -> vector<16x1xf32>
    %237 = vector.broadcast %236 : vector<16x1xf32> to vector<16x16xf32>
    %238 = arith.mulf %233, %237 : vector<16x16xf32>
    %239 = arith.truncf %238 : vector<16x16xf32> to vector<16x16xbf16>
    %cst_73 = arith.constant dense<0.000000e+00> : vector<16x8xf32>
    %240 = tpu.matmul %239, %227, %cst_73 {dimension_numbers = #tpu.dot_dimension_numbers<[1], [0], [0], [1], [0, 0, 1, 1], [], []>} : vector<16x16xbf16>, vector<16x8xbf16>, vector<16x8xf32> -> vector<16x8xf32>
    %241 = arith.truncf %240 : vector<16x8xf32> to vector<16x8xbf16>
    %242 = vector.extract_strided_slice %39 {offsets = [24, 0], sizes = [8, 32], strides = [1, 1]} : vector<32x32xbf16> to vector<8x32xbf16>
    %cst_74 = arith.constant dense<0.000000e+00> : vector<16x32xf32>
    %243 = tpu.matmul %241, %242, %cst_74 {dimension_numbers = #tpu.dot_dimension_numbers<[1], [0], [0], [1], [0, 0, 1, 1], [], []>} : vector<16x8xbf16>, vector<8x32xbf16>, vector<16x32xf32> -> vector<16x32xf32>
    %244 = arith.addf %219, %243 : vector<16x32xf32>
    %245 = vector.extract_strided_slice %3 {offsets = [16, 0], sizes = [16, 32], strides = [1, 1]} : vector<32x32xf32> to vector<16x32xf32>
    %246 = arith.addf %245, %244 : vector<16x32xf32>
    %c0_75 = arith.constant 0 : index
    %c0_76 = arith.constant 0 : index
    %c0_77 = arith.constant 0 : index
    %247 = vector.load %arg17[%c0_75, %c0_76, %c0_77] : memref<1x1x32xf32, #tpu.memory_space<vmem>>, vector<1x1x32xf32>
    %248 = vector.shape_cast %247 : vector<1x1x32xf32> to vector<1x32xf32>
    %249 = vector.broadcast %248 : vector<1x32xf32> to vector<16x32xf32>
    %250 = arith.addf %246, %249 : vector<16x32xf32>
    %c16 = arith.constant 16 : index
    %c0_78 = arith.constant 0 : index
    %251 = vector.load %arg29[%c16, %c0_78] : memref<32x32xf32, #tpu.memory_space<vmem>>, vector<16x32xf32>
    tpu.vector_store %arg29[%c16, %c0_78], %250 {strides = array<i32>} : memref<32x32xf32, #tpu.memory_space<vmem>>, vector<16x32xf32>,
    %c0_79 = arith.constant 0 : index
    %c0_80 = arith.constant 0 : index
    %252 = vector.load %arg29[%c0_79, %c0_80] : memref<32x32xf32, #tpu.memory_space<vmem>>, vector<32x32xf32>
    %c0_81 = arith.constant 0 : index
    %c0_82 = arith.constant 0 : index
    %c0_83 = arith.constant 0 : index
    %253 = vector.load %arg18[%c0_81, %c0_82, %c0_83] : memref<1x1x32xf32, #tpu.memory_space<vmem>>, vector<1x1x32xf32>
    %254 = vector.shape_cast %253 : vector<1x1x32xf32> to vector<1x32xf32>
    %c0_84 = arith.constant 0 : index
    %c0_85 = arith.constant 0 : index
    %c0_86 = arith.constant 0 : index
    %255 = vector.load %arg19[%c0_84, %c0_85, %c0_86] : memref<1x1x32xf32, #tpu.memory_space<vmem>>, vector<1x1x32xf32>
    %256 = vector.shape_cast %255 : vector<1x1x32xf32> to vector<1x32xf32>
    %cst_87 = arith.constant dense<0.000000e+00> : vector<32xf32>
    %257 = vector.multi_reduction <add>, %252, %cst_87 [1] : vector<32x32xf32> to vector<32xf32>
    %258 = vector.shape_cast %257 : vector<32xf32> to vector<32x1xf32>
    %cst_88 = arith.constant 3.200000e+01 : f32
    %259 = vector.broadcast %cst_88 : f32 to vector<32x1xf32>
    %260 = arith.divf %258, %259 : vector<32x1xf32>
    %261 = vector.broadcast %260 : vector<32x1xf32> to vector<32x32xf32>
    %262 = arith.subf %252, %261 : vector<32x32xf32>
    %263 = arith.mulf %262, %262 : vector<32x32xf32>
    %cst_89 = arith.constant dense<0.000000e+00> : vector<32xf32>
    %264 = vector.multi_reduction <add>, %263, %cst_89 [1] : vector<32x32xf32> to vector<32xf32>
    %265 = vector.shape_cast %264 : vector<32xf32> to vector<32x1xf32>
    %cst_90 = arith.constant 3.200000e+01 : f32
    %266 = vector.broadcast %cst_90 : f32 to vector<32x1xf32>
    %267 = arith.divf %265, %266 : vector<32x1xf32>
    %268 = vector.broadcast %260 : vector<32x1xf32> to vector<32x32xf32>
    %269 = arith.subf %252, %268 : vector<32x32xf32>
    %cst_91 = arith.constant 9.99999974E-6 : f32
    %270 = vector.broadcast %cst_91 : f32 to vector<32x1xf32>
    %271 = arith.addf %267, %270 : vector<32x1xf32>
    %272 = math.rsqrt %271 : vector<32x1xf32>
    %273 = vector.broadcast %272 : vector<32x1xf32> to vector<32x32xf32>
    %274 = arith.mulf %269, %273 : vector<32x32xf32>
    %275 = vector.broadcast %254 : vector<1x32xf32> to vector<32x32xf32>
    %276 = arith.mulf %274, %275 : vector<32x32xf32>
    %277 = vector.broadcast %256 : vector<1x32xf32> to vector<32x32xf32>
    %278 = arith.addf %276, %277 : vector<32x32xf32>
    %279 = arith.truncf %278 : vector<32x32xf32> to vector<32x32xbf16>
    %c0_92 = arith.constant 0 : index
    %c0_93 = arith.constant 0 : index
    %c0_94 = arith.constant 0 : index
    %280 = vector.load %arg20[%c0_92, %c0_93, %c0_94] : memref<1x32x128xbf16, #tpu.memory_space<vmem>>, vector<1x32x128xbf16>
    %281 = vector.shape_cast %280 : vector<1x32x128xbf16> to vector<32x128xbf16>
    %cst_95 = arith.constant dense<0.000000e+00> : vector<32x128xf32>
    %282 = tpu.matmul %279, %281, %cst_95 {dimension_numbers = #tpu.dot_dimension_numbers<[1], [0], [0], [1], [0, 0, 1, 1], [], []>} : vector<32x32xbf16>, vector<32x128xbf16>, vector<32x128xf32> -> vector<32x128xf32>
    %c0_96 = arith.constant 0 : index
    %c0_97 = arith.constant 0 : index
    %c0_98 = arith.constant 0 : index
    %283 = vector.load %arg21[%c0_96, %c0_97, %c0_98] : memref<1x1x128xf32, #tpu.memory_space<vmem>>, vector<1x1x128xf32>
    %284 = vector.shape_cast %283 : vector<1x1x128xf32> to vector<1x128xf32>
    %285 = vector.broadcast %284 : vector<1x128xf32> to vector<32x128xf32>
    %286 = arith.addf %282, %285 : vector<32x128xf32>
    %cst_99 = arith.constant 5.000000e-01 : f32
    %287 = vector.broadcast %cst_99 : f32 to vector<32x128xf32>
    %288 = arith.mulf %287, %286 : vector<32x128xf32>
    %cst_100 = arith.constant 4.471500e-02 : f32
    %289 = vector.broadcast %cst_100 : f32 to vector<32x128xf32>
    %290 = arith.mulf %289, %286 : vector<32x128xf32>
    %291 = arith.mulf %290, %286 : vector<32x128xf32>
    %292 = arith.mulf %291, %286 : vector<32x128xf32>
    %293 = arith.addf %286, %292 : vector<32x128xf32>
    %cst_101 = arith.constant 0.797884583 : f32
    %294 = vector.broadcast %cst_101 : f32 to vector<32x128xf32>
    %295 = arith.mulf %294, %293 : vector<32x128xf32>
    %296 = math.tanh %295 : vector<32x128xf32>
    %cst_102 = arith.constant 1.000000e+00 : f32
    %297 = vector.broadcast %cst_102 : f32 to vector<32x128xf32>
    %298 = arith.addf %297, %296 : vector<32x128xf32>
    %299 = arith.mulf %288, %298 : vector<32x128xf32>
    %300 = arith.truncf %299 : vector<32x128xf32> to vector<32x128xbf16>
    %c0_103 = arith.constant 0 : index
    %c0_104 = arith.constant 0 : index
    %c0_105 = arith.constant 0 : index
    %301 = vector.load %arg22[%c0_103, %c0_104, %c0_105] : memref<1x128x32xbf16, #tpu.memory_space<vmem>>, vector<1x128x32xbf16>
    %302 = vector.shape_cast %301 : vector<1x128x32xbf16> to vector<128x32xbf16>
    %cst_106 = arith.constant dense<0.000000e+00> : vector<32x32xf32>
    %303 = tpu.matmul %300, %302, %cst_106 {dimension_numbers = #tpu.dot_dimension_numbers<[1], [0], [0], [1], [0, 0, 1, 1], [], []>} : vector<32x128xbf16>, vector<128x32xbf16>, vector<32x32xf32> -> vector<32x32xf32>
    %c0_107 = arith.constant 0 : index
    %c0_108 = arith.constant 0 : index
    %c0_109 = arith.constant 0 : index
    %304 = vector.load %arg23[%c0_107, %c0_108, %c0_109] : memref<1x1x32xf32, #tpu.memory_space<vmem>>, vector<1x1x32xf32>
    %305 = vector.shape_cast %304 : vector<1x1x32xf32> to vector<1x32xf32>
    %306 = vector.broadcast %305 : vector<1x32xf32> to vector<32x32xf32>
    %307 = arith.addf %303, %306 : vector<32x32xf32>
    %308 = arith.addf %252, %307 : vector<32x32xf32>
    %c0_110 = arith.constant 0 : index
    %c0_111 = arith.constant 0 : index
    %309 = vector.load %arg29[%c0_110, %c0_111] : memref<32x32xf32, #tpu.memory_space<vmem>>, vector<32x32xf32>
    tpu.vector_store %arg29[%c0_110, %c0_111], %308 {strides = array<i32>} : memref<32x32xf32, #tpu.memory_space<vmem>>, vector<32x32xf32>,
    %c1_i32 = arith.constant 1 : i32
    %310 = arith.cmpi eq, %arg1, %c1_i32 : i32
    %311 = arith.extui %310 : i1 to i32
    %c0_i32_112 = arith.constant 0 : i32
    %312 = arith.cmpi ne, %311, %c0_i32_112 : i32
    scf.if %312 {
      %c0_113 = arith.constant 0 : index
      %c0_114 = arith.constant 0 : index
      %313 = vector.load %arg24[%c0_113, %c0_114] : memref<1x32xf32, #tpu.memory_space<vmem>>, vector<1x32xf32>
      %c0_115 = arith.constant 0 : index
      %c0_116 = arith.constant 0 : index
      %314 = vector.load %arg25[%c0_115, %c0_116] : memref<1x32xf32, #tpu.memory_space<vmem>>, vector<1x32xf32>
      %cst_117 = arith.constant dense<0.000000e+00> : vector<32xf32>
      %315 = vector.multi_reduction <add>, %308, %cst_117 [1] : vector<32x32xf32> to vector<32xf32>
      %316 = vector.shape_cast %315 : vector<32xf32> to vector<32x1xf32>
      %cst_118 = arith.constant 3.200000e+01 : f32
      %317 = vector.broadcast %cst_118 : f32 to vector<32x1xf32>
      %318 = arith.divf %316, %317 : vector<32x1xf32>
      %319 = vector.broadcast %318 : vector<32x1xf32> to vector<32x32xf32>
      %320 = arith.subf %308, %319 : vector<32x32xf32>
      %321 = arith.mulf %320, %320 : vector<32x32xf32>
      %cst_119 = arith.constant dense<0.000000e+00> : vector<32xf32>
      %322 = vector.multi_reduction <add>, %321, %cst_119 [1] : vector<32x32xf32> to vector<32xf32>
      %323 = vector.shape_cast %322 : vector<32xf32> to vector<32x1xf32>
      %cst_120 = arith.constant 3.200000e+01 : f32
      %324 = vector.broadcast %cst_120 : f32 to vector<32x1xf32>
      %325 = arith.divf %323, %324 : vector<32x1xf32>
      %326 = vector.broadcast %318 : vector<32x1xf32> to vector<32x32xf32>
      %327 = arith.subf %308, %326 : vector<32x32xf32>
      %cst_121 = arith.constant 9.99999974E-6 : f32
      %328 = vector.broadcast %cst_121 : f32 to vector<32x1xf32>
      %329 = arith.addf %325, %328 : vector<32x1xf32>
      %330 = math.rsqrt %329 : vector<32x1xf32>
      %331 = vector.broadcast %330 : vector<32x1xf32> to vector<32x32xf32>
      %332 = arith.mulf %327, %331 : vector<32x32xf32>
      %333 = vector.broadcast %313 : vector<1x32xf32> to vector<32x32xf32>
      %334 = arith.mulf %332, %333 : vector<32x32xf32>
      %335 = vector.broadcast %314 : vector<1x32xf32> to vector<32x32xf32>
      %336 = arith.addf %334, %335 : vector<32x32xf32>
      %c0_122 = arith.constant 0 : index
      %c0_123 = arith.constant 0 : index
      %337 = vector.load %arg26[%c0_122, %c0_123] : memref<1x32xf32, #tpu.memory_space<vmem>>, vector<1x32xf32>
      %338 = arith.truncf %337 : vector<1x32xf32> to vector<1x32xbf16>
      %339 = vector.extract_strided_slice %336 {offsets = [0, 0], sizes = [16, 32], strides = [1, 1]} : vector<32x32xf32> to vector<16x32xf32>
      %340 = arith.truncf %339 : vector<16x32xf32> to vector<16x32xbf16>
      %cst_124 = arith.constant dense<0.000000e+00> : vector<1x16xf32>
      %341 = tpu.matmul %338, %340, %cst_124 {dimension_numbers = #tpu.dot_dimension_numbers<[1], [1], [0], [0], [0, 0, 1, 0], [], []>} : vector<1x32xbf16>, vector<16x32xbf16>, vector<1x16xf32> -> vector<1x16xf32>
      %c0_125 = arith.constant 0 : index
      %c0_126 = arith.constant 0 : index
      %342 = vector.load %arg27[%c0_125, %c0_126] : memref<1x1xf32, #tpu.memory_space<vmem>>, vector<1x1xf32>
      %343 = vector.broadcast %342 : vector<1x1xf32> to vector<1x16xf32>
      %344 = arith.addf %341, %343 : vector<1x16xf32>
      %c0_127 = arith.constant 0 : index
      %c0_128 = arith.constant 0 : index
      %c0_129 = arith.constant 0 : index
      %345 = vector.load %arg28[%c0_127, %c0_128, %c0_129] : memref<2x1x16xf32, #tpu.memory_space<vmem>>, vector<1x1x16xf32>
      %346 = vector.shape_cast %345 : vector<1x1x16xf32> to vector<1x16xf32>
      %347 = vector.shape_cast %344 : vector<1x16xf32> to vector<1x1x16xf32>
      tpu.vector_store %arg28[%c0_127, %c0_128, %c0_129], %347 {strides = array<i32>} : memref<2x1x16xf32, #tpu.memory_space<vmem>>, vector<1x1x16xf32>,
      %348 = vector.extract_strided_slice %336 {offsets = [16, 0], sizes = [16, 32], strides = [1, 1]} : vector<32x32xf32> to vector<16x32xf32>
      %349 = arith.truncf %348 : vector<16x32xf32> to vector<16x32xbf16>
      %cst_130 = arith.constant dense<0.000000e+00> : vector<1x16xf32>
      %350 = tpu.matmul %338, %349, %cst_130 {dimension_numbers = #tpu.dot_dimension_numbers<[1], [1], [0], [0], [0, 0, 1, 0], [], []>} : vector<1x32xbf16>, vector<16x32xbf16>, vector<1x16xf32> -> vector<1x16xf32>
      %c0_131 = arith.constant 0 : index
      %c0_132 = arith.constant 0 : index
      %351 = vector.load %arg27[%c0_131, %c0_132] : memref<1x1xf32, #tpu.memory_space<vmem>>, vector<1x1xf32>
      %352 = vector.broadcast %351 : vector<1x1xf32> to vector<1x16xf32>
      %353 = arith.addf %350, %352 : vector<1x16xf32>
      %c1 = arith.constant 1 : index
      %c0_133 = arith.constant 0 : index
      %c0_134 = arith.constant 0 : index
      %354 = vector.load %arg28[%c1, %c0_133, %c0_134] : memref<2x1x16xf32, #tpu.memory_space<vmem>>, vector<1x1x16xf32>
      %355 = vector.shape_cast %354 : vector<1x1x16xf32> to vector<1x16xf32>
      %356 = vector.shape_cast %353 : vector<1x16xf32> to vector<1x1x16xf32>
      tpu.vector_store %arg28[%c1, %c0_133, %c0_134], %356 {strides = array<i32>} : memref<2x1x16xf32, #tpu.memory_space<vmem>>, vector<1x1x16xf32>,
    } else {
    }
    return
  }
  func.func @transform_0(%arg0: i32, %arg1: i32) -> (i32, i32, i32) {
    %c0_i32 = arith.constant 0 : i32
    %c0_i32_0 = arith.constant 0 : i32
    %c0_i32_1 = arith.constant 0 : i32
    return %arg0, %c0_i32, %c0_i32_0 : i32, i32, i32
  }
  func.func @transform_1(%arg0: i32, %arg1: i32) -> (i32, i32, i32) {
    %c0_i32 = arith.constant 0 : i32
    %c0_i32_0 = arith.constant 0 : i32
    %c0_i32_1 = arith.constant 0 : i32
    return %arg0, %c0_i32, %c0_i32_0 : i32, i32, i32
  }
  func.func @transform_2(%arg0: i32, %arg1: i32) -> (i32, i32) {
    %c0_i32 = arith.constant 0 : i32
    %c0_i32_0 = arith.constant 0 : i32
    %c0_i32_1 = arith.constant 0 : i32
    return %c0_i32, %c0_i32_0 : i32, i32
  }
  func.func @transform_3(%arg0: i32, %arg1: i32) -> (i32, i32) {
    %c0_i32 = arith.constant 0 : i32
    %c0_i32_0 = arith.constant 0 : i32
    %c0_i32_1 = arith.constant 0 : i32
    return %c0_i32, %c0_i32_0 : i32, i32
  }
  func.func @transform_4(%arg0: i32, %arg1: i32) -> (i32, i32) {
    %c0_i32 = arith.constant 0 : i32
    %c0_i32_0 = arith.constant 0 : i32
    %c0_i32_1 = arith.constant 0 : i32
    return %c0_i32, %c0_i32_0 : i32, i32
  }
  func.func @transform_5(%arg0: i32, %arg1: i32) -> (i32, i32) {
    %c0_i32 = arith.constant 0 : i32
    %c0_i32_0 = arith.constant 0 : i32
    %c0_i32_1 = arith.constant 0 : i32
    return %c0_i32, %c0_i32_0 : i32, i32
  }
  func.func @transform_6(%arg0: i32, %arg1: i32) -> (i32, i32) {
    %c0_i32 = arith.constant 0 : i32
    %c0_i32_0 = arith.constant 0 : i32
    %c0_i32_1 = arith.constant 0 : i32
    return %c0_i32, %c0_i32_0 : i32, i32
  }
  func.func @transform_7(%arg0: i32, %arg1: i32) -> (i32, i32) {
    %c0_i32 = arith.constant 0 : i32
    %c0_i32_0 = arith.constant 0 : i32
    %c0_i32_1 = arith.constant 0 : i32
    return %c0_i32, %c0_i32_0 : i32, i32
  }
  func.func @transform_8(%arg0: i32, %arg1: i32) -> (i32, i32) {
    %c0_i32 = arith.constant 0 : i32
    %c0_i32_0 = arith.constant 0 : i32
    %c0_i32_1 = arith.constant 0 : i32
    return %c0_i32, %c0_i32_0 : i32, i32
  }
  func.func @transform_9(%arg0: i32, %arg1: i32) -> (i32, i32) {
    %c0_i32 = arith.constant 0 : i32
    %c0_i32_0 = arith.constant 0 : i32
    %c0_i32_1 = arith.constant 0 : i32
    return %c0_i32, %c0_i32_0 : i32, i32
  }
  func.func @transform_10(%arg0: i32, %arg1: i32) -> (i32, i32, i32) {
    %c0_i32 = arith.constant 0 : i32
    %c0_i32_0 = arith.constant 0 : i32
    %c0_i32_1 = arith.constant 0 : i32
    return %arg1, %c0_i32, %c0_i32_0 : i32, i32, i32
  }
  func.func @transform_11(%arg0: i32, %arg1: i32) -> (i32, i32, i32) {
    %c0_i32 = arith.constant 0 : i32
    %c0_i32_0 = arith.constant 0 : i32
    %c0_i32_1 = arith.constant 0 : i32
    return %arg1, %c0_i32, %c0_i32_0 : i32, i32, i32
  }
  func.func @transform_12(%arg0: i32, %arg1: i32) -> (i32, i32, i32) {
    %c0_i32 = arith.constant 0 : i32
    %c0_i32_0 = arith.constant 0 : i32
    %c0_i32_1 = arith.constant 0 : i32
    return %arg1, %c0_i32, %c0_i32_0 : i32, i32, i32
  }
  func.func @transform_13(%arg0: i32, %arg1: i32) -> (i32, i32, i32) {
    %c0_i32 = arith.constant 0 : i32
    %c0_i32_0 = arith.constant 0 : i32
    %c0_i32_1 = arith.constant 0 : i32
    return %arg1, %c0_i32, %c0_i32_0 : i32, i32, i32
  }
  func.func @transform_14(%arg0: i32, %arg1: i32) -> (i32, i32, i32) {
    %c0_i32 = arith.constant 0 : i32
    %c0_i32_0 = arith.constant 0 : i32
    %c0_i32_1 = arith.constant 0 : i32
    return %arg1, %c0_i32, %c0_i32_0 : i32, i32, i32
  }
  func.func @transform_15(%arg0: i32, %arg1: i32) -> (i32, i32, i32) {
    %c0_i32 = arith.constant 0 : i32
    %c0_i32_0 = arith.constant 0 : i32
    %c0_i32_1 = arith.constant 0 : i32
    return %arg1, %c0_i32, %c0_i32_0 : i32, i32, i32
  }
  func.func @transform_16(%arg0: i32, %arg1: i32) -> (i32, i32, i32) {
    %c0_i32 = arith.constant 0 : i32
    %c0_i32_0 = arith.constant 0 : i32
    %c0_i32_1 = arith.constant 0 : i32
    return %arg1, %c0_i32, %c0_i32_0 : i32, i32, i32
  }
  func.func @transform_17(%arg0: i32, %arg1: i32) -> (i32, i32, i32) {
    %c0_i32 = arith.constant 0 : i32
    %c0_i32_0 = arith.constant 0 : i32
    %c0_i32_1 = arith.constant 0 : i32
    return %arg1, %c0_i32, %c0_i32_0 : i32, i32, i32
  }
  func.func @transform_18(%arg0: i32, %arg1: i32) -> (i32, i32, i32) {
    %c0_i32 = arith.constant 0 : i32
    %c0_i32_0 = arith.constant 0 : i32
    %c0_i32_1 = arith.constant 0 : i32
    return %arg1, %c0_i32, %c0_i32_0 : i32, i32, i32
  }
  func.func @transform_19(%arg0: i32, %arg1: i32) -> (i32, i32, i32) {
    %c0_i32 = arith.constant 0 : i32
    %c0_i32_0 = arith.constant 0 : i32
    %c0_i32_1 = arith.constant 0 : i32
    return %arg1, %c0_i32, %c0_i32_0 : i32, i32, i32
  }
  func.func @transform_20(%arg0: i32, %arg1: i32) -> (i32, i32, i32) {
    %c0_i32 = arith.constant 0 : i32
    %c0_i32_0 = arith.constant 0 : i32
    %c0_i32_1 = arith.constant 0 : i32
    return %arg1, %c0_i32, %c0_i32_0 : i32, i32, i32
  }
  func.func @transform_21(%arg0: i32, %arg1: i32) -> (i32, i32, i32) {
    %c0_i32 = arith.constant 0 : i32
    %c0_i32_0 = arith.constant 0 : i32
    %c0_i32_1 = arith.constant 0 : i32
    return %arg1, %c0_i32, %c0_i32_0 : i32, i32, i32
  }
  func.func @transform_22(%arg0: i32, %arg1: i32) -> (i32, i32) {
    %c0_i32 = arith.constant 0 : i32
    %c0_i32_0 = arith.constant 0 : i32
    %c0_i32_1 = arith.constant 0 : i32
    return %c0_i32, %c0_i32_0 : i32, i32
  }
  func.func @transform_23(%arg0: i32, %arg1: i32) -> (i32, i32) {
    %c0_i32 = arith.constant 0 : i32
    %c0_i32_0 = arith.constant 0 : i32
    %c0_i32_1 = arith.constant 0 : i32
    return %c0_i32, %c0_i32_0 : i32, i32
  }
  func.func @transform_24(%arg0: i32, %arg1: i32) -> (i32, i32) {
    %c0_i32 = arith.constant 0 : i32
    %c0_i32_0 = arith.constant 0 : i32
    %c0_i32_1 = arith.constant 0 : i32
    return %c0_i32, %c0_i32_0 : i32, i32
  }
  func.func @transform_25(%arg0: i32, %arg1: i32) -> (i32, i32) {
    %c0_i32 = arith.constant 0 : i32
    %c0_i32_0 = arith.constant 0 : i32
    %c0_i32_1 = arith.constant 0 : i32
    return %c0_i32, %c0_i32_0 : i32, i32
  }
  func.func @transform_26(%arg0: i32, %arg1: i32) -> (i32, i32, i32) {
    %c0_i32 = arith.constant 0 : i32
    %c0_i32_0 = arith.constant 0 : i32
    %c0_i32_1 = arith.constant 0 : i32
    return %arg0, %c0_i32, %c0_i32_0 : i32, i32, i32
  }
}

</mosaic_0001>

<llo_original>
// kernel: tpu_custom_call.1
$region0: #{tpu_custom_call.1}
  #allocation0 [shape = 'u32[]', space=smem, size = 0x4, offset = 0x4, fixed_abs, tag = 'smem constant byte address 0x4 - core index']
  #allocation1 [shape = 'u32[144,128]{1,0:T(1,128)}', space=vmem, size = 0x12000, scoped, tag = 'internal scratch']
  #allocation2 [shape = 'f32[32,32]{1,0:T(8,128)}', space=vmem, size = 0x4000, scoped, tag = 'scratch operand']
  #allocation3 [shape = 'f32[1,1]{1,0:T(1,128)S(1)}', space=vmem, size = 0x200, scoped, tag = 'scoped memory for tpu_custom_call.1']
  %s0 = inlined_call_operand.hbm [shape: f32[4,4,4], index: 0, kind: input, shape index: {}]
  %s1 = inlined_call_operand.hbm [shape: f32[4,1,32], index: 1, kind: input, shape index: {}]
  %s2 = inlined_call_operand.hbm [shape: bf16[4,32], index: 2, kind: input, shape index: {}]
  %s3 = inlined_call_operand.hbm [shape: f32[1,32], index: 3, kind: input, shape index: {}]
  %s4 = inlined_call_operand.hbm [shape: bf16[16,4], index: 4, kind: input, shape index: {}]
  %s5 = inlined_call_operand.hbm [shape: f32[16,1], index: 5, kind: input, shape index: {}]
  %s6 = inlined_call_operand.hbm [shape: bf16[32,128], index: 6, kind: input, shape index: {}]
  %s7 = inlined_call_operand.hbm [shape: f32[1,128], index: 7, kind: input, shape index: {}]
  %s8 = inlined_call_operand.hbm [shape: bf16[128,32], index: 8, kind: input, shape index: {}]
  %s9 = inlined_call_operand.hbm [shape: f32[1,32], index: 9, kind: input, shape index: {}]
  %s10 = inlined_call_operand.hbm [shape: f32[2,1,32], index: 10, kind: input, shape index: {}]
  %s11 = inlined_call_operand.hbm [shape: f32[2,1,32], index: 11, kind: input, shape index: {}]
  %s12 = inlined_call_operand.hbm [shape: bf16[2,32,96], index: 12, kind: input, shape index: {}]
  %s13 = inlined_call_operand.hbm [shape: f32[2,1,96], index: 13, kind: input, shape index: {}]
  %s14 = inlined_call_operand.hbm [shape: bf16[2,32,32], index: 14, kind: input, shape index: {}]
  %s15 = inlined_call_operand.hbm [shape: f32[2,1,32], index: 15, kind: input, shape index: {}]
  %s16 = inlined_call_operand.hbm [shape: f32[2,1,32], index: 16, kind: input, shape index: {}]
  %s17 = inlined_call_operand.hbm [shape: f32[2,1,32], index: 17, kind: input, shape index: {}]
  %s18 = inlined_call_operand.hbm [shape: bf16[2,32,128], index: 18, kind: input, shape index: {}]
  %s19 = inlined_call_operand.hbm [shape: f32[2,1,128], index: 19, kind: input, shape index: {}]
  %s20 = inlined_call_operand.hbm [shape: bf16[2,128,32], index: 20, kind: input, shape index: {}]
  %s21 = inlined_call_operand.hbm [shape: f32[2,1,32], index: 21, kind: input, shape index: {}]
  %s22 = inlined_call_operand.hbm [shape: f32[1,32], index: 22, kind: input, shape index: {}]
  %s23 = inlined_call_operand.hbm [shape: f32[1,32], index: 23, kind: input, shape index: {}]
  %s24 = inlined_call_operand.hbm [shape: f32[1,32], index: 24, kind: input, shape index: {}]
  %s25 = inlined_call_operand.<no memory space> [shape: f32[1,1], index: 25, kind: input, shape index: {}]
  %s26 = inlined_call_operand.hbm [shape: f32[4,1,16], index: 26, kind: output, shape index: {}]
  %s27 = sld [smem:[#allocation0]]
  $region245: #{tpu_custom_call.1} parent=0
    _
  %s29 = ssub.s32 1, %s27
  %s30 = scalar_select 0, %s29, %s27
  %v31 = vstv %s25
  %32 = vst [vmem:[#allocation3] sm:$0x1] %v31
  $region1: #{tpu_custom_call.1} parent=0
    #allocation4 [shape = 'u8[8192]{0}', space=vmem, size = 0x2000, scoped, tag = 'input window, operand 0']
    #allocation5 [shape = 's32[2]{0}', space=sflag, size = 0x8, scoped, tag = 'scoped memory for tpu_custom_call.1']
    #allocation6 [shape = 's32[2]{0}', space=sflag, size = 0x8, scoped, tag = 'scoped memory for tpu_custom_call.1']
    #allocation7 [shape = 'u8[2048]{0}', space=vmem, size = 0x800, scoped, tag = 'input window, operand 1']
    #allocation8 [shape = 's32[2]{0}', space=sflag, size = 0x8, scoped, tag = 'scoped memory for tpu_custom_call.1']
    #allocation9 [shape = 'u8[1024]{0}', space=vmem, size = 0x400, scoped, tag = 'input window, operand 2, single buffered']
    #allocation10 [shape = 'u8[512]{0}', space=vmem, size = 0x400, scoped, tag = 'input window, operand 3, single buffered']
    #allocation11 [shape = 's32[1]{0}', space=sflag, size = 0x4, scoped, tag = 'scoped memory for tpu_custom_call.1']
    #allocation12 [shape = 'u8[4096]{0}', space=vmem, size = 0x1000, scoped, tag = 'input window, operand 4, single buffered']
    #allocation13 [shape = 'u8[8192]{0}', space=vmem, size = 0x2000, scoped, tag = 'input window, operand 5, single buffered']
    #allocation14 [shape = 's32[1]{0}', space=sflag, size = 0x4, scoped, tag = 'scoped memory for tpu_custom_call.1']
    #allocation15 [shape = 'u8[8192]{0}', space=vmem, size = 0x2000, scoped, tag = 'input window, operand 6, single buffered']
    #allocation16 [shape = 'u8[512]{0}', space=vmem, size = 0x400, scoped, tag = 'input window, operand 7, single buffered']
    #allocation17 [shape = 's32[1]{0}', space=sflag, size = 0x4, scoped, tag = 'scoped memory for tpu_custom_call.1']
    #allocation18 [shape = 'u8[32768]{0}', space=vmem, size = 0x8000, scoped, tag = 'input window, operand 8, single buffered']
    #allocation19 [shape = 'u8[512]{0}', space=vmem, size = 0x400, scoped, tag = 'input window, operand 9, single buffered']
    #allocation20 [shape = 's32[1]{0}', space=sflag, size = 0x4, scoped, tag = 'scoped memory for tpu_custom_call.1']
    #allocation21 [shape = 'u8[1024]{0}', space=vmem, size = 0x400, scoped, tag = 'input window, operand 10']
    #allocation22 [shape = 'u8[1024]{0}', space=vmem, size = 0x400, scoped, tag = 'input window, operand 11']
    #allocation23 [shape = 'u8[16384]{0}', space=vmem, size = 0x4000, scoped, tag = 'input window, operand 12']
    #allocation24 [shape = 'u8[1024]{0}', space=vmem, size = 0x400, scoped, tag = 'input window, operand 13']
    #allocation25 [shape = 'u8[16384]{0}', space=vmem, size = 0x4000, scoped, tag = 'input window, operand 14']
    #allocation26 [shape = 'u8[1024]{0}', space=vmem, size = 0x400, scoped, tag = 'input window, operand 15']
    #allocation27 [shape = 'u8[1024]{0}', space=vmem, size = 0x400, scoped, tag = 'input window, operand 16']
    #allocation28 [shape = 'u8[1024]{0}', space=vmem, size = 0x400, scoped, tag = 'input window, operand 17']
    #allocation29 [shape = 'u8[16384]{0}', space=vmem, size = 0x4000, scoped, tag = 'input window, operand 18']
    #allocation30 [shape = 'u8[1024]{0}', space=vmem, size = 0x400, scoped, tag = 'input window, operand 19']
    #allocation31 [shape = 'u8[65536]{0}', space=vmem, size = 0x10000, scoped, tag = 'input window, operand 20']
    #allocation32 [shape = 'u8[1024]{0}', space=vmem, size = 0x400, scoped, tag = 'input window, operand 21']
    #allocation33 [shape = 'u8[512]{0}', space=vmem, size = 0x400, scoped, tag = 'input window, operand 22, single buffered']
    #allocation34 [shape = 'u8[512]{0}', space=vmem, size = 0x400, scoped, tag = 'input window, operand 23, single buffered']
    #allocation35 [shape = 'u8[512]{0}', space=vmem, size = 0x400, scoped, tag = 'input window, operand 24, single buffered']
    #allocation36 [shape = 'u8[2048]{0}', space=vmem, size = 0x800, scoped, tag = 'output window, operand 0']
    %33 = vsyncpa [#allocation5], 0
    %s34 = scalar_lea.sflag [#allocation5], 1
    %35 = vsyncpa %s34, 0
    %36 = vsyncpa [#allocation8], 0
    %s37 = scalar_lea.sflag [#allocation8], 1
    %38 = vsyncpa %s37, 0
    %39 = vsyncpa [#allocation11], 0
    %40 = vsyncpa [#allocation14], 0
    %41 = vsyncpa [#allocation17], 0
    %42 = vsyncpa [#allocation20], 0
    %43 = vsyncpa [#allocation6], 0
    %s44 = scalar_lea.sflag [#allocation6], 1
    %45 = vsyncpa %s44, 0
    loop: start=0, step=1, limit=6
    $region2: #{tpu_custom_call.1} parent=1 // loop_pre_header
      _
    $region3: #{tpu_custom_call.1} parent=1 // loop_header
      %s47 = sphi 0, %s51
      %p48 = scmp.ge.s32.totalorder %s47, 6
      %s54 = sphi 0, %s66
      %s55 = sphi 0, %s62
      %s56 = sphi 0, %s54
      %s57 = sphi 0, %s55
      %s58 = sphi 0, %s56
      %s59 = sphi 0, %s57
      %s69 = sphi 0, %s71
      %s72 = sphi 0, %s69
      %s73 = sphi 0, %s72
      %s89 = sphi 0, %s73
      %s95 = sphi 0, %s97
      %s98 = sphi 0, %s95
      %s99 = sphi 0, %s98
      %s115 = sphi 0, %s99
      %s119 = sphi 0, %s119
      %s121 = sphi 0, %s119
      %s122 = sphi 0, %s121
      %s136 = sphi 0, %s122
      %s140 = sphi 0, %s140
      %s142 = sphi 0, %s140
      %s143 = sphi 0, %s142
      %s157 = sphi 0, %s143
      %s161 = sphi 0, %s161
      %s163 = sphi 0, %s161
      %s164 = sphi 0, %s163
      %s178 = sphi 0, %s164
      %s182 = sphi 0, %s182
      %s184 = sphi 0, %s182
      %s185 = sphi 0, %s184
      %s199 = sphi 0, %s185
      %s203 = sphi 0, %s203
      %s205 = sphi 0, %s203
      %s206 = sphi 0, %s205
      %s220 = sphi 0, %s206
      %s224 = sphi 0, %s224
      %s226 = sphi 0, %s224
      %s227 = sphi 0, %s226
      %s241 = sphi 0, %s227
      %s245 = sphi 0, %s245
      %s247 = sphi 0, %s245
      %s248 = sphi 0, %s247
      %s262 = sphi 0, %s248
      %s266 = sphi 0, %s266
      %s268 = sphi 0, %s266
      %s269 = sphi 0, %s268
      %s283 = sphi 0, %s269
      %s289 = sphi 0, %s291
      %s292 = sphi 0, %s289
      %s293 = sphi 0, %s292
      %s309 = sphi 0, %s293
      %s315 = sphi 0, %s317
      %s318 = sphi 0, %s315
      %s319 = sphi 0, %s318
      %s335 = sphi 0, %s319
      %s341 = sphi 0, %s343
      %s344 = sphi 0, %s341
      %s345 = sphi 0, %s344
      %s361 = sphi 0, %s345
      %s367 = sphi 0, %s369
      %s370 = sphi 0, %s367
      %s371 = sphi 0, %s370
      %s387 = sphi 0, %s371
      %s393 = sphi 0, %s395
      %s396 = sphi 0, %s393
      %s397 = sphi 0, %s396
      %s413 = sphi 0, %s397
      %s419 = sphi 0, %s421
      %s422 = sphi 0, %s419
      %s423 = sphi 0, %s422
      %s439 = sphi 0, %s423
      %s445 = sphi 0, %s447
      %s448 = sphi 0, %s445
      %s449 = sphi 0, %s448
      %s465 = sphi 0, %s449
      %s471 = sphi 0, %s473
      %s474 = sphi 0, %s471
      %s475 = sphi 0, %s474
      %s491 = sphi 0, %s475
      %s497 = sphi 0, %s499
      %s500 = sphi 0, %s497
      %s501 = sphi 0, %s500
      %s517 = sphi 0, %s501
      %s523 = sphi 0, %s525
      %s526 = sphi 0, %s523
      %s527 = sphi 0, %s526
      %s543 = sphi 0, %s527
      %s549 = sphi 0, %s551
      %s552 = sphi 0, %s549
      %s553 = sphi 0, %s552
      %s569 = sphi 0, %s553
      %s575 = sphi 0, %s577
      %s578 = sphi 0, %s575
      %s579 = sphi 0, %s578
      %s595 = sphi 0, %s579
      %s599 = sphi 0, %s599
      %s601 = sphi 0, %s599
      %s602 = sphi 0, %s601
      %s616 = sphi 0, %s602
      %s620 = sphi 0, %s620
      %s622 = sphi 0, %s620
      %s623 = sphi 0, %s622
      %s637 = sphi 0, %s623
      %s641 = sphi 0, %s641
      %s643 = sphi 0, %s641
      %s644 = sphi 0, %s643
      %s658 = sphi 0, %s644
      %s662 = sphi 0, %s662
      %s664 = sphi 0, %s662
      %s665 = sphi 0, %s664
      %s679 = sphi 0, %s665
      %s685 = sphi 0, %s687
      %s688 = sphi 0, %s685
      %s689 = sphi 0, %s688
      %s705 = sphi 0, %s689
    $region4: #{tpu_custom_call.1} parent=1 // loop_header_branch
      %50 = sbr.rel (%p48) target = $region8
    $region5: #{tpu_custom_call.1} parent=1 // loop_body
      %s52 = ssub.s32 %s47, 1
      %s53 = ssub.s32 %s47, 2
      %s60 = sadd.s32 1, %s55
      %p61 = scmp.ge.s32.totalorder %s60, 2
      %s62 = scalar_select %p61, 0, %s60
      %s63 = sadd.s32 1, %s54
      %s64 = scalar_select %p61, %s63, %s54
      %p65 = scmp.ge.s32.totalorder %s64, 2
      %s66 = scalar_select %p65, 0, %s64
      %s67 = ssub.s32 %s54, %s66
      %p68 = scmp.eq.s32.totalorder %s67, 0
      %s70 = sadd.s32 %s69, 1
      %s71 = scalar_select %p68, %s69, %s70
      %p74 = pneg %p68
      %p75 = scmp.eq.s32.totalorder %s47, 3
      %p76 = por %p74, %p75
      %p77 = scmp.ne.s32.totalorder %s69, %s72
      %p78 = scmp.eq.s32.totalorder %s47, 0
      %p79 = por %p77, %p78
      %p80 = scmp.ne.s32.totalorder %s69, %s72
      %p81 = scmp.eq.s32.totalorder %s52, 3
      %p82 = por %p80, %p81
      %p83 = scmp.ne.s32.totalorder %s72, %s73
      %p84 = scmp.eq.s32.totalorder %s52, 0
      %p85 = por %p83, %p84
      %p86 = scmp.ne.s32.totalorder %s72, %s73
      %p87 = scmp.eq.s32.totalorder %s53, 3
      %p88 = por %p86, %p87
      %p90 = scmp.ne.s32.totalorder %s73, %s89
      %p91 = scmp.eq.s32.totalorder %s53, 0
      %p92 = por %p90, %p91
      %s93 = ssub.s32 %s54, %s66
      %p94 = scmp.eq.s32.totalorder %s93, 0
      %s96 = sadd.s32 %s95, 1
      %s97 = scalar_select %p94, %s95, %s96
      %p100 = pneg %p94
      %p101 = scmp.eq.s32.totalorder %s47, 3
      %p102 = por %p100, %p101
      %p103 = scmp.ne.s32.totalorder %s95, %s98
      %p104 = scmp.eq.s32.totalorder %s47, 0
      %p105 = por %p103, %p104
      %p106 = scmp.ne.s32.totalorder %s95, %s98
      %p107 = scmp.eq.s32.totalorder %s52, 3
      %p108 = por %p106, %p107
      %p109 = scmp.ne.s32.totalorder %s98, %s99
      %p110 = scmp.eq.s32.totalorder %s52, 0
      %p111 = por %p109, %p110
      %p112 = scmp.ne.s32.totalorder %s98, %s99
      %p113 = scmp.eq.s32.totalorder %s53, 3
      %p114 = por %p112, %p113
      %p116 = scmp.ne.s32.totalorder %s99, %s115
      %p117 = scmp.eq.s32.totalorder %s53, 0
      %p118 = por %p116, %p117
      %s120 = sadd.s32 %s119, 1
      %p123 = scmp.eq.s32.totalorder %s47, 3
      %p124 = scmp.ne.s32.totalorder %s119, %s121
      %p125 = scmp.eq.s32.totalorder %s47, 0
      %p126 = por %p124, %p125
      %p127 = scmp.ne.s32.totalorder %s119, %s121
      %p128 = scmp.eq.s32.totalorder %s52, 3
      %p129 = por %p127, %p128
      %p130 = scmp.ne.s32.totalorder %s121, %s122
      %p131 = scmp.eq.s32.totalorder %s52, 0
      %p132 = por %p130, %p131
      %p133 = scmp.ne.s32.totalorder %s121, %s122
      %p134 = scmp.eq.s32.totalorder %s53, 3
      %p135 = por %p133, %p134
      %p137 = scmp.ne.s32.totalorder %s122, %s136
      %p138 = scmp.eq.s32.totalorder %s53, 0
      %p139 = por %p137, %p138
      %s141 = sadd.s32 %s140, 1
      %p144 = scmp.eq.s32.totalorder %s47, 3
      %p145 = scmp.ne.s32.totalorder %s140, %s142
      %p146 = scmp.eq.s32.totalorder %s47, 0
      %p147 = por %p145, %p146
      %p148 = scmp.ne.s32.totalorder %s140, %s142
      %p149 = scmp.eq.s32.totalorder %s52, 3
      %p150 = por %p148, %p149
      %p151 = scmp.ne.s32.totalorder %s142, %s143
      %p152 = scmp.eq.s32.totalorder %s52, 0
      %p153 = por %p151, %p152
      %p154 = scmp.ne.s32.totalorder %s142, %s143
      %p155 = scmp.eq.s32.totalorder %s53, 3
      %p156 = por %p154, %p155
      %p158 = scmp.ne.s32.totalorder %s143, %s157
      %p159 = scmp.eq.s32.totalorder %s53, 0
      %p160 = por %p158, %p159
      %s162 = sadd.s32 %s161, 1
      %p165 = scmp.eq.s32.totalorder %s47, 3
      %p166 = scmp.ne.s32.totalorder %s161, %s163
      %p167 = scmp.eq.s32.totalorder %s47, 0
      %p168 = por %p166, %p167
      %p169 = scmp.ne.s32.totalorder %s161, %s163
      %p170 = scmp.eq.s32.totalorder %s52, 3
      %p171 = por %p169, %p170
      %p172 = scmp.ne.s32.totalorder %s163, %s164
      %p173 = scmp.eq.s32.totalorder %s52, 0
      %p174 = por %p172, %p173
      %p175 = scmp.ne.s32.totalorder %s163, %s164
      %p176 = scmp.eq.s32.totalorder %s53, 3
      %p177 = por %p175, %p176
      %p179 = scmp.ne.s32.totalorder %s164, %s178
      %p180 = scmp.eq.s32.totalorder %s53, 0
      %p181 = por %p179, %p180
      %s183 = sadd.s32 %s182, 1
      %p186 = scmp.eq.s32.totalorder %s47, 3
      %p187 = scmp.ne.s32.totalorder %s182, %s184
      %p188 = scmp.eq.s32.totalorder %s47, 0
      %p189 = por %p187, %p188
      %p190 = scmp.ne.s32.totalorder %s182, %s184
      %p191 = scmp.eq.s32.totalorder %s52, 3
      %p192 = por %p190, %p191
      %p193 = scmp.ne.s32.totalorder %s184, %s185
      %p194 = scmp.eq.s32.totalorder %s52, 0
      %p195 = por %p193, %p194
      %p196 = scmp.ne.s32.totalorder %s184, %s185
      %p197 = scmp.eq.s32.totalorder %s53, 3
      %p198 = por %p196, %p197
      %p200 = scmp.ne.s32.totalorder %s185, %s199
      %p201 = scmp.eq.s32.totalorder %s53, 0
      %p202 = por %p200, %p201
      %s204 = sadd.s32 %s203, 1
      %p207 = scmp.eq.s32.totalorder %s47, 3
      %p208 = scmp.ne.s32.totalorder %s203, %s205
      %p209 = scmp.eq.s32.totalorder %s47, 0
      %p210 = por %p208, %p209
      %p211 = scmp.ne.s32.totalorder %s203, %s205
      %p212 = scmp.eq.s32.totalorder %s52, 3
      %p213 = por %p211, %p212
      %p214 = scmp.ne.s32.totalorder %s205, %s206
      %p215 = scmp.eq.s32.totalorder %s52, 0
      %p216 = por %p214, %p215
      %p217 = scmp.ne.s32.totalorder %s205, %s206
      %p218 = scmp.eq.s32.totalorder %s53, 3
      %p219 = por %p217, %p218
      %p221 = scmp.ne.s32.totalorder %s206, %s220
      %p222 = scmp.eq.s32.totalorder %s53, 0
      %p223 = por %p221, %p222
      %s225 = sadd.s32 %s224, 1
      %p228 = scmp.eq.s32.totalorder %s47, 3
      %p229 = scmp.ne.s32.totalorder %s224, %s226
      %p230 = scmp.eq.s32.totalorder %s47, 0
      %p231 = por %p229, %p230
      %p232 = scmp.ne.s32.totalorder %s224, %s226
      %p233 = scmp.eq.s32.totalorder %s52, 3
      %p234 = por %p232, %p233
      %p235 = scmp.ne.s32.totalorder %s226, %s227
      %p236 = scmp.eq.s32.totalorder %s52, 0
      %p237 = por %p235, %p236
      %p238 = scmp.ne.s32.totalorder %s226, %s227
      %p239 = scmp.eq.s32.totalorder %s53, 3
      %p240 = por %p238, %p239
      %p242 = scmp.ne.s32.totalorder %s227, %s241
      %p243 = scmp.eq.s32.totalorder %s53, 0
      %p244 = por %p242, %p243
      %s246 = sadd.s32 %s245, 1
      %p249 = scmp.eq.s32.totalorder %s47, 3
      %p250 = scmp.ne.s32.totalorder %s245, %s247
      %p251 = scmp.eq.s32.totalorder %s47, 0
      %p252 = por %p250, %p251
      %p253 = scmp.ne.s32.totalorder %s245, %s247
      %p254 = scmp.eq.s32.totalorder %s52, 3
      %p255 = por %p253, %p254
      %p256 = scmp.ne.s32.totalorder %s247, %s248
      %p257 = scmp.eq.s32.totalorder %s52, 0
      %p258 = por %p256, %p257
      %p259 = scmp.ne.s32.totalorder %s247, %s248
      %p260 = scmp.eq.s32.totalorder %s53, 3
      %p261 = por %p259, %p260
      %p263 = scmp.ne.s32.totalorder %s248, %s262
      %p264 = scmp.eq.s32.totalorder %s53, 0
      %p265 = por %p263, %p264
      %s267 = sadd.s32 %s266, 1
      %p270 = scmp.eq.s32.totalorder %s47, 3
      %p271 = scmp.ne.s32.totalorder %s266, %s268
      %p272 = scmp.eq.s32.totalorder %s47, 0
      %p273 = por %p271, %p272
      %p274 = scmp.ne.s32.totalorder %s266, %s268
      %p275 = scmp.eq.s32.totalorder %s52, 3
      %p276 = por %p274, %p275
      %p277 = scmp.ne.s32.totalorder %s268, %s269
      %p278 = scmp.eq.s32.totalorder %s52, 0
      %p279 = por %p277, %p278
      %p280 = scmp.ne.s32.totalorder %s268, %s269
      %p281 = scmp.eq.s32.totalorder %s53, 3
      %p282 = por %p280, %p281
      %p284 = scmp.ne.s32.totalorder %s269, %s283
      %p285 = scmp.eq.s32.totalorder %s53, 0
      %p286 = por %p284, %p285
      %s287 = ssub.s32 %s55, %s62
      %p288 = scmp.eq.s32.totalorder %s287, 0
      %s290 = sadd.s32 %s289, 1
      %s291 = scalar_select %p288, %s289, %s290
      %p294 = pneg %p288
      %p295 = scmp.eq.s32.totalorder %s47, 3
      %p296 = por %p294, %p295
      %p297 = scmp.ne.s32.totalorder %s289, %s292
      %p298 = scmp.eq.s32.totalorder %s47, 0
      %p299 = por %p297, %p298
      %p300 = scmp.ne.s32.totalorder %s289, %s292
      %p301 = scmp.eq.s32.totalorder %s52, 3
      %p302 = por %p300, %p301
      %p303 = scmp.ne.s32.totalorder %s292, %s293
      %p304 = scmp.eq.s32.totalorder %s52, 0
      %p305 = por %p303, %p304
      %p306 = scmp.ne.s32.totalorder %s292, %s293
      %p307 = scmp.eq.s32.totalorder %s53, 3
      %p308 = por %p306, %p307
      %p310 = scmp.ne.s32.totalorder %s293, %s309
      %p311 = scmp.eq.s32.totalorder %s53, 0
      %p312 = por %p310, %p311
      %s313 = ssub.s32 %s55, %s62
      %p314 = scmp.eq.s32.totalorder %s313, 0
      %s316 = sadd.s32 %s315, 1
      %s317 = scalar_select %p314, %s315, %s316
      %p320 = pneg %p314
      %p321 = scmp.eq.s32.totalorder %s47, 3
      %p322 = por %p320, %p321
      %p323 = scmp.ne.s32.totalorder %s315, %s318
      %p324 = scmp.eq.s32.totalorder %s47, 0
      %p325 = por %p323, %p324
      %p326 = scmp.ne.s32.totalorder %s315, %s318
      %p327 = scmp.eq.s32.totalorder %s52, 3
      %p328 = por %p326, %p327
      %p329 = scmp.ne.s32.totalorder %s318, %s319
      %p330 = scmp.eq.s32.totalorder %s52, 0
      %p331 = por %p329, %p330
      %p332 = scmp.ne.s32.totalorder %s318, %s319
      %p333 = scmp.eq.s32.totalorder %s53, 3
      %p334 = por %p332, %p333
      %p336 = scmp.ne.s32.totalorder %s319, %s335
      %p337 = scmp.eq.s32.totalorder %s53, 0
      %p338 = por %p336, %p337
      %s339 = ssub.s32 %s55, %s62
      %p340 = scmp.eq.s32.totalorder %s339, 0
      %s342 = sadd.s32 %s341, 1
      %s343 = scalar_select %p340, %s341, %s342
      %p346 = pneg %p340
      %p347 = scmp.eq.s32.totalorder %s47, 3
      %p348 = por %p346, %p347
      %p349 = scmp.ne.s32.totalorder %s341, %s344
      %p350 = scmp.eq.s32.totalorder %s47, 0
      %p351 = por %p349, %p350
      %p352 = scmp.ne.s32.totalorder %s341, %s344
      %p353 = scmp.eq.s32.totalorder %s52, 3
      %p354 = por %p352, %p353
      %p355 = scmp.ne.s32.totalorder %s344, %s345
      %p356 = scmp.eq.s32.totalorder %s52, 0
      %p357 = por %p355, %p356
      %p358 = scmp.ne.s32.totalorder %s344, %s345
      %p359 = scmp.eq.s32.totalorder %s53, 3
      %p360 = por %p358, %p359
      %p362 = scmp.ne.s32.totalorder %s345, %s361
      %p363 = scmp.eq.s32.totalorder %s53, 0
      %p364 = por %p362, %p363
      %s365 = ssub.s32 %s55, %s62
      %p366 = scmp.eq.s32.totalorder %s365, 0
      %s368 = sadd.s32 %s367, 1
      %s369 = scalar_select %p366, %s367, %s368
      %p372 = pneg %p366
      %p373 = scmp.eq.s32.totalorder %s47, 3
      %p374 = por %p372, %p373
      %p375 = scmp.ne.s32.totalorder %s367, %s370
      %p376 = scmp.eq.s32.totalorder %s47, 0
      %p377 = por %p375, %p376
      %p378 = scmp.ne.s32.totalorder %s367, %s370
      %p379 = scmp.eq.s32.totalorder %s52, 3
      %p380 = por %p378, %p379
      %p381 = scmp.ne.s32.totalorder %s370, %s371
      %p382 = scmp.eq.s32.totalorder %s52, 0
      %p383 = por %p381, %p382
      %p384 = scmp.ne.s32.totalorder %s370, %s371
      %p385 = scmp.eq.s32.totalorder %s53, 3
      %p386 = por %p384, %p385
      %p388 = scmp.ne.s32.totalorder %s371, %s387
      %p389 = scmp.eq.s32.totalorder %s53, 0
      %p390 = por %p388, %p389
      %s391 = ssub.s32 %s55, %s62
      %p392 = scmp.eq.s32.totalorder %s391, 0
      %s394 = sadd.s32 %s393, 1
      %s395 = scalar_select %p392, %s393, %s394
      %p398 = pneg %p392
      %p399 = scmp.eq.s32.totalorder %s47, 3
      %p400 = por %p398, %p399
      %p401 = scmp.ne.s32.totalorder %s393, %s396
      %p402 = scmp.eq.s32.totalorder %s47, 0
      %p403 = por %p401, %p402
      %p404 = scmp.ne.s32.totalorder %s393, %s396
      %p405 = scmp.eq.s32.totalorder %s52, 3
      %p406 = por %p404, %p405
      %p407 = scmp.ne.s32.totalorder %s396, %s397
      %p408 = scmp.eq.s32.totalorder %s52, 0
      %p409 = por %p407, %p408
      %p410 = scmp.ne.s32.totalorder %s396, %s397
      %p411 = scmp.eq.s32.totalorder %s53, 3
      %p412 = por %p410, %p411
      %p414 = scmp.ne.s32.totalorder %s397, %s413
      %p415 = scmp.eq.s32.totalorder %s53, 0
      %p416 = por %p414, %p415
      %s417 = ssub.s32 %s55, %s62
      %p418 = scmp.eq.s32.totalorder %s417, 0
      %s420 = sadd.s32 %s419, 1
      %s421 = scalar_select %p418, %s419, %s420
      %p424 = pneg %p418
      %p425 = scmp.eq.s32.totalorder %s47, 3
      %p426 = por %p424, %p425
      %p427 = scmp.ne.s32.totalorder %s419, %s422
      %p428 = scmp.eq.s32.totalorder %s47, 0
      %p429 = por %p427, %p428
      %p430 = scmp.ne.s32.totalorder %s419, %s422
      %p431 = scmp.eq.s32.totalorder %s52, 3
      %p432 = por %p430, %p431
      %p433 = scmp.ne.s32.totalorder %s422, %s423
      %p434 = scmp.eq.s32.totalorder %s52, 0
      %p435 = por %p433, %p434
      %p436 = scmp.ne.s32.totalorder %s422, %s423
      %p437 = scmp.eq.s32.totalorder %s53, 3
      %p438 = por %p436, %p437
      %p440 = scmp.ne.s32.totalorder %s423, %s439
      %p441 = scmp.eq.s32.totalorder %s53, 0
      %p442 = por %p440, %p441
      %s443 = ssub.s32 %s55, %s62
      %p444 = scmp.eq.s32.totalorder %s443, 0
      %s446 = sadd.s32 %s445, 1
      %s447 = scalar_select %p444, %s445, %s446
      %p450 = pneg %p444
      %p451 = scmp.eq.s32.totalorder %s47, 3
      %p452 = por %p450, %p451
      %p453 = scmp.ne.s32.totalorder %s445, %s448
      %p454 = scmp.eq.s32.totalorder %s47, 0
      %p455 = por %p453, %p454
      %p456 = scmp.ne.s32.totalorder %s445, %s448
      %p457 = scmp.eq.s32.totalorder %s52, 3
      %p458 = por %p456, %p457
      %p459 = scmp.ne.s32.totalorder %s448, %s449
      %p460 = scmp.eq.s32.totalorder %s52, 0
      %p461 = por %p459, %p460
      %p462 = scmp.ne.s32.totalorder %s448, %s449
      %p463 = scmp.eq.s32.totalorder %s53, 3
      %p464 = por %p462, %p463
      %p466 = scmp.ne.s32.totalorder %s449, %s465
      %p467 = scmp.eq.s32.totalorder %s53, 0
      %p468 = por %p466, %p467
      %s469 = ssub.s32 %s55, %s62
      %p470 = scmp.eq.s32.totalorder %s469, 0
      %s472 = sadd.s32 %s471, 1
      %s473 = scalar_select %p470, %s471, %s472
      %p476 = pneg %p470
      %p477 = scmp.eq.s32.totalorder %s47, 3
      %p478 = por %p476, %p477
      %p479 = scmp.ne.s32.totalorder %s471, %s474
      %p480 = scmp.eq.s32.totalorder %s47, 0
      %p481 = por %p479, %p480
      %p482 = scmp.ne.s32.totalorder %s471, %s474
      %p483 = scmp.eq.s32.totalorder %s52, 3
      %p484 = por %p482, %p483
      %p485 = scmp.ne.s32.totalorder %s474, %s475
      %p486 = scmp.eq.s32.totalorder %s52, 0
      %p487 = por %p485, %p486
      %p488 = scmp.ne.s32.totalorder %s474, %s475
      %p489 = scmp.eq.s32.totalorder %s53, 3
      %p490 = por %p488, %p489
      %p492 = scmp.ne.s32.totalorder %s475, %s491
      %p493 = scmp.eq.s32.totalorder %s53, 0
      %p494 = por %p492, %p493
      %s495 = ssub.s32 %s55, %s62
      %p496 = scmp.eq.s32.totalorder %s495, 0
      %s498 = sadd.s32 %s497, 1
      %s499 = scalar_select %p496, %s497, %s498
      %p502 = pneg %p496
      %p503 = scmp.eq.s32.totalorder %s47, 3
      %p504 = por %p502, %p503
      %p505 = scmp.ne.s32.totalorder %s497, %s500
      %p506 = scmp.eq.s32.totalorder %s47, 0
      %p507 = por %p505, %p506
      %p508 = scmp.ne.s32.totalorder %s497, %s500
      %p509 = scmp.eq.s32.totalorder %s52, 3
      %p510 = por %p508, %p509
      %p511 = scmp.ne.s32.totalorder %s500, %s501
      %p512 = scmp.eq.s32.totalorder %s52, 0
      %p513 = por %p511, %p512
      %p514 = scmp.ne.s32.totalorder %s500, %s501
      %p515 = scmp.eq.s32.totalorder %s53, 3
      %p516 = por %p514, %p515
      %p518 = scmp.ne.s32.totalorder %s501, %s517
      %p519 = scmp.eq.s32.totalorder %s53, 0
      %p520 = por %p518, %p519
      %s521 = ssub.s32 %s55, %s62
      %p522 = scmp.eq.s32.totalorder %s521, 0
      %s524 = sadd.s32 %s523, 1
      %s525 = scalar_select %p522, %s523, %s524
      %p528 = pneg %p522
      %p529 = scmp.eq.s32.totalorder %s47, 3
      %p530 = por %p528, %p529
      %p531 = scmp.ne.s32.totalorder %s523, %s526
      %p532 = scmp.eq.s32.totalorder %s47, 0
      %p533 = por %p531, %p532
      %p534 = scmp.ne.s32.totalorder %s523, %s526
      %p535 = scmp.eq.s32.totalorder %s52, 3
      %p536 = por %p534, %p535
      %p537 = scmp.ne.s32.totalorder %s526, %s527
      %p538 = scmp.eq.s32.totalorder %s52, 0
      %p539 = por %p537, %p538
      %p540 = scmp.ne.s32.totalorder %s526, %s527
      %p541 = scmp.eq.s32.totalorder %s53, 3
      %p542 = por %p540, %p541
      %p544 = scmp.ne.s32.totalorder %s527, %s543
      %p545 = scmp.eq.s32.totalorder %s53, 0
      %p546 = por %p544, %p545
      %s547 = ssub.s32 %s55, %s62
      %p548 = scmp.eq.s32.totalorder %s547, 0
      %s550 = sadd.s32 %s549, 1
      %s551 = scalar_select %p548, %s549, %s550
      %p554 = pneg %p548
      %p555 = scmp.eq.s32.totalorder %s47, 3
      %p556 = por %p554, %p555
      %p557 = scmp.ne.s32.totalorder %s549, %s552
      %p558 = scmp.eq.s32.totalorder %s47, 0
      %p559 = por %p557, %p558
      %p560 = scmp.ne.s32.totalorder %s549, %s552
      %p561 = scmp.eq.s32.totalorder %s52, 3
      %p562 = por %p560, %p561
      %p563 = scmp.ne.s32.totalorder %s552, %s553
      %p564 = scmp.eq.s32.totalorder %s52, 0
      %p565 = por %p563, %p564
      %p566 = scmp.ne.s32.totalorder %s552, %s553
      %p567 = scmp.eq.s32.totalorder %s53, 3
      %p568 = por %p566, %p567
      %p570 = scmp.ne.s32.totalorder %s553, %s569
      %p571 = scmp.eq.s32.totalorder %s53, 0
      %p572 = por %p570, %p571
      %s573 = ssub.s32 %s55, %s62
      %p574 = scmp.eq.s32.totalorder %s573, 0
      %s576 = sadd.s32 %s575, 1
      %s577 = scalar_select %p574, %s575, %s576
      %p580 = pneg %p574
      %p581 = scmp.eq.s32.totalorder %s47, 3
      %p582 = por %p580, %p581
      %p583 = scmp.ne.s32.totalorder %s575, %s578
      %p584 = scmp.eq.s32.totalorder %s47, 0
      %p585 = por %p583, %p584
      %p586 = scmp.ne.s32.totalorder %s575, %s578
      %p587 = scmp.eq.s32.totalorder %s52, 3
      %p588 = por %p586, %p587
      %p589 = scmp.ne.s32.totalorder %s578, %s579
      %p590 = scmp.eq.s32.totalorder %s52, 0
      %p591 = por %p589, %p590
      %p592 = scmp.ne.s32.totalorder %s578, %s579
      %p593 = scmp.eq.s32.totalorder %s53, 3
      %p594 = por %p592, %p593
      %p596 = scmp.ne.s32.totalorder %s579, %s595
      %p597 = scmp.eq.s32.totalorder %s53, 0
      %p598 = por %p596, %p597
      %s600 = sadd.s32 %s599, 1
      %p603 = scmp.eq.s32.totalorder %s47, 3
      %p604 = scmp.ne.s32.totalorder %s599, %s601
      %p605 = scmp.eq.s32.totalorder %s47, 0
      %p606 = por %p604, %p605
      %p607 = scmp.ne.s32.totalorder %s599, %s601
      %p608 = scmp.eq.s32.totalorder %s52, 3
      %p609 = por %p607, %p608
      %p610 = scmp.ne.s32.totalorder %s601, %s602
      %p611 = scmp.eq.s32.totalorder %s52, 0
      %p612 = por %p610, %p611
      %p613 = scmp.ne.s32.totalorder %s601, %s602
      %p614 = scmp.eq.s32.totalorder %s53, 3
      %p615 = por %p613, %p614
      %p617 = scmp.ne.s32.totalorder %s602, %s616
      %p618 = scmp.eq.s32.totalorder %s53, 0
      %p619 = por %p617, %p618
      %s621 = sadd.s32 %s620, 1
      %p624 = scmp.eq.s32.totalorder %s47, 3
      %p625 = scmp.ne.s32.totalorder %s620, %s622
      %p626 = scmp.eq.s32.totalorder %s47, 0
      %p627 = por %p625, %p626
      %p628 = scmp.ne.s32.totalorder %s620, %s622
      %p629 = scmp.eq.s32.totalorder %s52, 3
      %p630 = por %p628, %p629
      %p631 = scmp.ne.s32.totalorder %s622, %s623
      %p632 = scmp.eq.s32.totalorder %s52, 0
      %p633 = por %p631, %p632
      %p634 = scmp.ne.s32.totalorder %s622, %s623
      %p635 = scmp.eq.s32.totalorder %s53, 3
      %p636 = por %p634, %p635
      %p638 = scmp.ne.s32.totalorder %s623, %s637
      %p639 = scmp.eq.s32.totalorder %s53, 0
      %p640 = por %p638, %p639
      %s642 = sadd.s32 %s641, 1
      %p645 = scmp.eq.s32.totalorder %s47, 3
      %p646 = scmp.ne.s32.totalorder %s641, %s643
      %p647 = scmp.eq.s32.totalorder %s47, 0
      %p648 = por %p646, %p647
      %p649 = scmp.ne.s32.totalorder %s641, %s643
      %p650 = scmp.eq.s32.totalorder %s52, 3
      %p651 = por %p649, %p650
      %p652 = scmp.ne.s32.totalorder %s643, %s644
      %p653 = scmp.eq.s32.totalorder %s52, 0
      %p654 = por %p652, %p653
      %p655 = scmp.ne.s32.totalorder %s643, %s644
      %p656 = scmp.eq.s32.totalorder %s53, 3
      %p657 = por %p655, %p656
      %p659 = scmp.ne.s32.totalorder %s644, %s658
      %p660 = scmp.eq.s32.totalorder %s53, 0
      %p661 = por %p659, %p660
      %s663 = sadd.s32 %s662, 1
      %p666 = scmp.eq.s32.totalorder %s47, 3
      %p667 = scmp.ne.s32.totalorder %s662, %s664
      %p668 = scmp.eq.s32.totalorder %s47, 0
      %p669 = por %p667, %p668
      %p670 = scmp.ne.s32.totalorder %s662, %s664
      %p671 = scmp.eq.s32.totalorder %s52, 3
      %p672 = por %p670, %p671
      %p673 = scmp.ne.s32.totalorder %s664, %s665
      %p674 = scmp.eq.s32.totalorder %s52, 0
      %p675 = por %p673, %p674
      %p676 = scmp.ne.s32.totalorder %s664, %s665
      %p677 = scmp.eq.s32.totalorder %s53, 3
      %p678 = por %p676, %p677
      %p680 = scmp.ne.s32.totalorder %s665, %s679
      %p681 = scmp.eq.s32.totalorder %s53, 0
      %p682 = por %p680, %p681
      %s683 = ssub.s32 %s54, %s66
      %p684 = scmp.eq.s32.totalorder %s683, 0
      %s686 = sadd.s32 %s685, 1
      %s687 = scalar_select %p684, %s685, %s686
      %p690 = pneg %p684
      %p691 = scmp.eq.s32.totalorder %s47, 3
      %p692 = por %p690, %p691
      %p693 = scmp.ne.s32.totalorder %s685, %s688
      %p694 = scmp.eq.s32.totalorder %s47, 0
      %p695 = por %p693, %p694
      %p696 = scmp.ne.s32.totalorder %s685, %s688
      %p697 = scmp.eq.s32.totalorder %s52, 3
      %p698 = por %p696, %p697
      %p699 = scmp.ne.s32.totalorder %s688, %s689
      %p700 = scmp.eq.s32.totalorder %s52, 0
      %p701 = por %p699, %p700
      %p702 = scmp.ne.s32.totalorder %s688, %s689
      %p703 = scmp.eq.s32.totalorder %s53, 3
      %p704 = por %p702, %p703
      %p706 = scmp.ne.s32.totalorder %s689, %s705
      %p707 = scmp.eq.s32.totalorder %s53, 0
      %p708 = por %p706, %p707
      %p709 = scmp.le.s32.totalorder 1, %s47
      %p710 = scmp.lt.s32.totalorder %s47, 5
      %p711 = pnand %p709, %p710
      %p712 = pneg %p711
      // Predicated region
      $region9: #{tpu_custom_call.1} parent=5 // pred_check
        _
      $region10: #{tpu_custom_call.1} parent=5 // pred_check_branch
        %714 = sbr.rel (%p711) target = $region12
      $region11: #{tpu_custom_call.1} parent=5 // pred_region
        %s715 = ssub.s32 %s47, 1
        // Predicated region
        $region13: #{tpu_custom_call.1} parent=11 // pred_check
          %p716 = pneg %p132
        $region14: #{tpu_custom_call.1} parent=11 // pred_check_branch
          %718 = sbr.rel (%p716) target = $region16
        $region15: #{tpu_custom_call.1} parent=11 // pred_region
          %s720 = ssub.s32 32, 32
          %721 = vsyncadd [#allocation8], %s720
          %s723 = sshll.u32 [#allocation9], 4
          %s724 = int_to_ptr.vmem [resolvable:$true] %s723
          %726 = dma.hbm_to_vmem [thread:$0]  %s2, 32, %s724, [#allocation8]
        $region16: #{tpu_custom_call.1} parent=11 // pred_fallthru
          _
        // Predicated region
        $region17: #{tpu_custom_call.1} parent=11 // pred_check
          %p727 = pneg %p153
        $region18: #{tpu_custom_call.1} parent=11 // pred_check_branch
          %729 = sbr.rel (%p727) target = $region20
        $region19: #{tpu_custom_call.1} parent=11 // pred_region
          %s731 = ssub.s32 16, 16
          %732 = vsyncadd [#allocation11], %s731
          %s734 = sshll.u32 [#allocation10], 4
          %s735 = int_to_ptr.vmem [resolvable:$true] %s734
          %737 = dma.hbm_to_vmem [thread:$0]  %s3, 16, %s735, [#allocation11]
        $region20: #{tpu_custom_call.1} parent=11 // pred_fallthru
          _
        // Predicated region
        $region21: #{tpu_custom_call.1} parent=11 // pred_check
          %p738 = pneg %p174
        $region22: #{tpu_custom_call.1} parent=11 // pred_check_branch
          %740 = sbr.rel (%p738) target = $region24
        $region23: #{tpu_custom_call.1} parent=11 // pred_region
          %s742 = ssub.s32 128, 128
          %743 = vsyncadd [#allocation11], %s742
          %s744 = sshll.u32 [#allocation12], 4
          %s745 = int_to_ptr.vmem [resolvable:$true] %s744
          %750 = dma.hbm_to_vmem [thread:$0]  %s4, 128, %s745, [#allocation11], 64, 64, 4
        $region24: #{tpu_custom_call.1} parent=11 // pred_fallthru
          _
        // Predicated region
        $region25: #{tpu_custom_call.1} parent=11 // pred_check
          %p751 = pneg %p195
        $region26: #{tpu_custom_call.1} parent=11 // pred_check_branch
          %753 = sbr.rel (%p751) target = $region28
        $region27: #{tpu_custom_call.1} parent=11 // pred_region
          %s755 = ssub.s32 256, 256
          %756 = vsyncadd [#allocation14], %s755
          %s757 = sshll.u32 [#allocation13], 4
          %s758 = int_to_ptr.vmem [resolvable:$true] %s757
          %763 = dma.hbm_to_vmem [thread:$0]  %s5, 256, %s758, [#allocation14], 128, 128, 8
        $region28: #{tpu_custom_call.1} parent=11 // pred_fallthru
          _
        // Predicated region
        $region29: #{tpu_custom_call.1} parent=11 // pred_check
          %p764 = pneg %p216
        $region30: #{tpu_custom_call.1} parent=11 // pred_check_branch
          %766 = sbr.rel (%p764) target = $region32
        $region31: #{tpu_custom_call.1} parent=11 // pred_region
          %s768 = ssub.s32 256, 256
          %769 = vsyncadd [#allocation14], %s768
          %s770 = sshll.u32 [#allocation15], 4
          %s771 = int_to_ptr.vmem [resolvable:$true] %s770
          %776 = dma.hbm_to_vmem [thread:$0]  %s6, 256, %s771, [#allocation14], 64, 64, 4
        $region32: #{tpu_custom_call.1} parent=11 // pred_fallthru
          _
        // Predicated region
        $region33: #{tpu_custom_call.1} parent=11 // pred_check
          %p777 = pneg %p237
        $region34: #{tpu_custom_call.1} parent=11 // pred_check_branch
          %779 = sbr.rel (%p777) target = $region36
        $region35: #{tpu_custom_call.1} parent=11 // pred_region
          %s781 = ssub.s32 16, 16
          %782 = vsyncadd [#allocation17], %s781
          %s784 = sshll.u32 [#allocation16], 4
          %s785 = int_to_ptr.vmem [resolvable:$true] %s784
          %787 = dma.hbm_to_vmem [thread:$0]  %s7, 16, %s785, [#allocation17]
        $region36: #{tpu_custom_call.1} parent=11 // pred_fallthru
          _
        // Predicated region
        $region37: #{tpu_custom_call.1} parent=11 // pred_check
          %p788 = pneg %p258
        $region38: #{tpu_custom_call.1} parent=11 // pred_check_branch
          %790 = sbr.rel (%p788) target = $region40
        $region39: #{tpu_custom_call.1} parent=11 // pred_region
          %s792 = ssub.s32 1024, 1024
          %793 = vsyncadd [#allocation17], %s792
          %s794 = sshll.u32 [#allocation18], 4
          %s795 = int_to_ptr.vmem [resolvable:$true] %s794
          %800 = dma.hbm_to_vmem [thread:$0]  %s8, 1024, %s795, [#allocation17], 64, 64, 4
        $region40: #{tpu_custom_call.1} parent=11 // pred_fallthru
          _
        // Predicated region
        $region41: #{tpu_custom_call.1} parent=11 // pred_check
          %p801 = pneg %p279
        $region42: #{tpu_custom_call.1} parent=11 // pred_check_branch
          %803 = sbr.rel (%p801) target = $region44
        $region43: #{tpu_custom_call.1} parent=11 // pred_region
          %s805 = ssub.s32 16, 16
          %806 = vsyncadd [#allocation20], %s805
          %s808 = sshll.u32 [#allocation19], 4
          %s809 = int_to_ptr.vmem [resolvable:$true] %s808
          %811 = dma.hbm_to_vmem [thread:$0]  %s9, 16, %s809, [#allocation20]
        $region44: #{tpu_custom_call.1} parent=11 // pred_fallthru
          _
        // Predicated region
        $region45: #{tpu_custom_call.1} parent=11 // pred_check
          %p812 = pneg %p612
        $region46: #{tpu_custom_call.1} parent=11 // pred_check_branch
          %814 = sbr.rel (%p812) target = $region48
        $region47: #{tpu_custom_call.1} parent=11 // pred_region
          %s816 = ssub.s32 16, 16
          %817 = vsyncadd [#allocation11], %s816
          %s819 = sshll.u32 [#allocation33], 4
          %s820 = int_to_ptr.vmem [resolvable:$true] %s819
          %822 = dma.hbm_to_vmem [thread:$0]  %s22, 16, %s820, [#allocation11]
        $region48: #{tpu_custom_call.1} parent=11 // pred_fallthru
          _
        // Predicated region
        $region49: #{tpu_custom_call.1} parent=11 // pred_check
          %p823 = pneg %p633
        $region50: #{tpu_custom_call.1} parent=11 // pred_check_branch
          %825 = sbr.rel (%p823) target = $region52
        $region51: #{tpu_custom_call.1} parent=11 // pred_region
          %s827 = ssub.s32 16, 16
          %828 = vsyncadd [#allocation14], %s827
          %s830 = sshll.u32 [#allocation34], 4
          %s831 = int_to_ptr.vmem [resolvable:$true] %s830
          %833 = dma.hbm_to_vmem [thread:$0]  %s23, 16, %s831, [#allocation14]
        $region52: #{tpu_custom_call.1} parent=11 // pred_fallthru
          _
        // Predicated region
        $region53: #{tpu_custom_call.1} parent=11 // pred_check
          %p834 = pneg %p654
        $region54: #{tpu_custom_call.1} parent=11 // pred_check_branch
          %836 = sbr.rel (%p834) target = $region56
        $region55: #{tpu_custom_call.1} parent=11 // pred_region
          %s838 = ssub.s32 16, 16
          %839 = vsyncadd [#allocation17], %s838
          %s841 = sshll.u32 [#allocation35], 4
          %s842 = int_to_ptr.vmem [resolvable:$true] %s841
          %844 = dma.hbm_to_vmem [thread:$0]  %s24, 16, %s842, [#allocation17]
        $region56: #{tpu_custom_call.1} parent=11 // pred_fallthru
          _
        // Predicated region
        $region57: #{tpu_custom_call.1} parent=11 // pred_check
          %p845 = pneg %p675
        $region58: #{tpu_custom_call.1} parent=11 // pred_check_branch
          %847 = sbr.rel (%p845) target = $region60
        $region59: #{tpu_custom_call.1} parent=11 // pred_region
          _
        $region60: #{tpu_custom_call.1} parent=11 // pred_fallthru
          _
      $region12: #{tpu_custom_call.1} parent=5 // pred_fallthru
        _
      %p848 = scmp.lt.s32.totalorder %s47, 4
      // Predicated region
      $region61: #{tpu_custom_call.1} parent=5 // pred_check
        %p849 = pneg %p848
      $region62: #{tpu_custom_call.1} parent=5 // pred_check_branch
        %851 = sbr.rel (%p849) target = $region64
      $region63: #{tpu_custom_call.1} parent=5 // pred_region
        // Predicated region
        $region65: #{tpu_custom_call.1} parent=63 // pred_check
          %p852 = pneg %p79
        $region66: #{tpu_custom_call.1} parent=63 // pred_check_branch
          %854 = sbr.rel (%p852) target = $region68
        $region67: #{tpu_custom_call.1} parent=63 // pred_region
          %s855 = sand.u32 %s47, 1
          %s856 = scalar_lea.sflag [#allocation5], %s855
          %s857 = sand.u32 %s69, 1
          %s858 = smul.addr %s857, 8
          %s859 = scalar_lea.vmem [#allocation4], %s858
          %s860 = smul.u32 2, %s54
          %s862 = ssub.s32 128, 128
          %863 = vsyncadd %s856, %s862
          %s864 = smul.addr %s860, 64
          %s865 = scalar_lea.hbm %s0, %s864
          %s866 = sshll.u32 %s859, 4
          %s867 = int_to_ptr.vmem [resolvable:$true] %s866
          %872 = dma.hbm_to_vmem [thread:$0]  %s865, 128, %s867, %s856, 64, 64, 4
        $region68: #{tpu_custom_call.1} parent=63 // pred_fallthru
          _
        // Predicated region
        $region69: #{tpu_custom_call.1} parent=63 // pred_check
          %p873 = pneg %p105
        $region70: #{tpu_custom_call.1} parent=63 // pred_check_branch
          %875 = sbr.rel (%p873) target = $region72
        $region71: #{tpu_custom_call.1} parent=63 // pred_region
          %s876 = sand.u32 %s47, 1
          %s877 = scalar_lea.sflag [#allocation8], %s876
          %s878 = sand.u32 %s95, 1
          %s879 = smul.addr %s878, 2
          %s880 = scalar_lea.vmem [#allocation7], %s879
          %s881 = smul.u32 2, %s54
          %s883 = ssub.s32 32, 32
          %884 = vsyncadd %s877, %s883
          %s885 = smul.addr %s881, 16
          %s886 = scalar_lea.hbm %s1, %s885
          %s887 = sshll.u32 %s880, 4
          %s888 = int_to_ptr.vmem [resolvable:$true] %s887
          %893 = dma.hbm_to_vmem [thread:$0]  %s886, 32, %s888, %s877, 16, 16, 1
        $region72: #{tpu_custom_call.1} parent=63 // pred_fallthru
          _
        // Predicated region
        $region73: #{tpu_custom_call.1} parent=63 // pred_check
          %p894 = pneg %p299
        $region74: #{tpu_custom_call.1} parent=63 // pred_check_branch
          %896 = sbr.rel (%p894) target = $region76
        $region75: #{tpu_custom_call.1} parent=63 // pred_region
          %s897 = sand.u32 %s47, 1
          %s898 = scalar_lea.sflag [#allocation5], %s897
          %s899 = sand.u32 %s289, 1
          %s900 = scalar_lea.vmem [#allocation21], %s899
          %s902 = ssub.s32 16, 16
          %903 = vsyncadd %s898, %s902
          %s904 = smul.addr %s55, 16
          %s905 = scalar_lea.hbm %s10, %s904
          %s907 = sshll.u32 %s900, 4
          %s908 = int_to_ptr.vmem [resolvable:$true] %s907
          %910 = dma.hbm_to_vmem [thread:$0]  %s905, 16, %s908, %s898
        $region76: #{tpu_custom_call.1} parent=63 // pred_fallthru
          _
        // Predicated region
        $region77: #{tpu_custom_call.1} parent=63 // pred_check
          %p911 = pneg %p325
        $region78: #{tpu_custom_call.1} parent=63 // pred_check_branch
          %913 = sbr.rel (%p911) target = $region80
        $region79: #{tpu_custom_call.1} parent=63 // pred_region
          %s914 = sand.u32 %s47, 1
          %s915 = scalar_lea.sflag [#allocation8], %s914
          %s916 = sand.u32 %s315, 1
          %s917 = scalar_lea.vmem [#allocation22], %s916
          %s919 = ssub.s32 16, 16
          %920 = vsyncadd %s915, %s919
          %s921 = smul.addr %s55, 16
          %s922 = scalar_lea.hbm %s11, %s921
          %s924 = sshll.u32 %s917, 4
          %s925 = int_to_ptr.vmem [resolvable:$true] %s924
          %927 = dma.hbm_to_vmem [thread:$0]  %s922, 16, %s925, %s915
        $region80: #{tpu_custom_call.1} parent=63 // pred_fallthru
          _
        // Predicated region
        $region81: #{tpu_custom_call.1} parent=63 // pred_check
          %p928 = pneg %p351
        $region82: #{tpu_custom_call.1} parent=63 // pred_check_branch
          %930 = sbr.rel (%p928) target = $region84
        $region83: #{tpu_custom_call.1} parent=63 // pred_region
          %s931 = sand.u32 %s47, 1
          %s932 = scalar_lea.sflag [#allocation5], %s931
          %s933 = sand.u32 %s341, 1
          %s934 = smul.addr %s933, 16
          %s935 = scalar_lea.vmem [#allocation23], %s934
          %s937 = ssub.s32 256, 256
          %938 = vsyncadd %s932, %s937
          %s939 = smul.addr %s55, 4
          %s940 = smul.addr %s939, 64
          %s941 = scalar_lea.hbm %s12, %s940
          %s942 = sshll.u32 %s935, 4
          %s943 = int_to_ptr.vmem [resolvable:$true] %s942
          %948 = dma.hbm_to_vmem [thread:$0]  %s941, 256, %s943, %s932, 64, 64, 4
        $region84: #{tpu_custom_call.1} parent=63 // pred_fallthru
          _
        // Predicated region
        $region85: #{tpu_custom_call.1} parent=63 // pred_check
          %p949 = pneg %p377
        $region86: #{tpu_custom_call.1} parent=63 // pred_check_branch
          %951 = sbr.rel (%p949) target = $region88
        $region87: #{tpu_custom_call.1} parent=63 // pred_region
          %s952 = sand.u32 %s47, 1
          %s953 = scalar_lea.sflag [#allocation8], %s952
          %s954 = sand.u32 %s367, 1
          %s955 = scalar_lea.vmem [#allocation24], %s954
          %s957 = ssub.s32 16, 16
          %958 = vsyncadd %s953, %s957
          %s959 = smul.addr %s55, 16
          %s960 = scalar_lea.hbm %s13, %s959
          %s962 = sshll.u32 %s955, 4
          %s963 = int_to_ptr.vmem [resolvable:$true] %s962
          %965 = dma.hbm_to_vmem [thread:$0]  %s960, 16, %s963, %s953
        $region88: #{tpu_custom_call.1} parent=63 // pred_fallthru
          _
        // Predicated region
        $region89: #{tpu_custom_call.1} parent=63 // pred_check
          %p966 = pneg %p403
        $region90: #{tpu_custom_call.1} parent=63 // pred_check_branch
          %968 = sbr.rel (%p966) target = $region92
        $region91: #{tpu_custom_call.1} parent=63 // pred_region
          %s969 = sand.u32 %s47, 1
          %s970 = scalar_lea.sflag [#allocation5], %s969
          %s971 = sand.u32 %s393, 1
          %s972 = smul.addr %s971, 16
          %s973 = scalar_lea.vmem [#allocation25], %s972
          %s975 = ssub.s32 256, 256
          %976 = vsyncadd %s970, %s975
          %s977 = smul.addr %s55, 4
          %s978 = smul.addr %s977, 64
          %s979 = scalar_lea.hbm %s14, %s978
          %s980 = sshll.u32 %s973, 4
          %s981 = int_to_ptr.vmem [resolvable:$true] %s980
          %986 = dma.hbm_to_vmem [thread:$0]  %s979, 256, %s981, %s970, 64, 64, 4
        $region92: #{tpu_custom_call.1} parent=63 // pred_fallthru
          _
        // Predicated region
        $region93: #{tpu_custom_call.1} parent=63 // pred_check
          %p987 = pneg %p429
        $region94: #{tpu_custom_call.1} parent=63 // pred_check_branch
          %989 = sbr.rel (%p987) target = $region96
        $region95: #{tpu_custom_call.1} parent=63 // pred_region
          %s990 = sand.u32 %s47, 1
          %s991 = scalar_lea.sflag [#allocation8], %s990
          %s992 = sand.u32 %s419, 1
          %s993 = scalar_lea.vmem [#allocation26], %s992
          %s995 = ssub.s32 16, 16
          %996 = vsyncadd %s991, %s995
          %s997 = smul.addr %s55, 16
          %s998 = scalar_lea.hbm %s15, %s997
          %s1000 = sshll.u32 %s993, 4
          %s1001 = int_to_ptr.vmem [resolvable:$true] %s1000
          %1003 = dma.hbm_to_vmem [thread:$0]  %s998, 16, %s1001, %s991
        $region96: #{tpu_custom_call.1} parent=63 // pred_fallthru
          _
        // Predicated region
        $region97: #{tpu_custom_call.1} parent=63 // pred_check
          %p1004 = pneg %p455
        $region98: #{tpu_custom_call.1} parent=63 // pred_check_branch
          %1006 = sbr.rel (%p1004) target = $region100
        $region99: #{tpu_custom_call.1} parent=63 // pred_region
          %s1007 = sand.u32 %s47, 1
          %s1008 = scalar_lea.sflag [#allocation5], %s1007
          %s1009 = sand.u32 %s445, 1
          %s1010 = scalar_lea.vmem [#allocation27], %s1009
          %s1012 = ssub.s32 16, 16
          %1013 = vsyncadd %s1008, %s1012
          %s1014 = smul.addr %s55, 16
          %s1015 = scalar_lea.hbm %s16, %s1014
          %s1017 = sshll.u32 %s1010, 4
          %s1018 = int_to_ptr.vmem [resolvable:$true] %s1017
          %1020 = dma.hbm_to_vmem [thread:$0]  %s1015, 16, %s1018, %s1008
        $region100: #{tpu_custom_call.1} parent=63 // pred_fallthru
          _
        // Predicated region
        $region101: #{tpu_custom_call.1} parent=63 // pred_check
          %p1021 = pneg %p481
        $region102: #{tpu_custom_call.1} parent=63 // pred_check_branch
          %1023 = sbr.rel (%p1021) target = $region104
        $region103: #{tpu_custom_call.1} parent=63 // pred_region
          %s1024 = sand.u32 %s47, 1
          %s1025 = scalar_lea.sflag [#allocation8], %s1024
          %s1026 = sand.u32 %s471, 1
          %s1027 = scalar_lea.vmem [#allocation28], %s1026
          %s1029 = ssub.s32 16, 16
          %1030 = vsyncadd %s1025, %s1029
          %s1031 = smul.addr %s55, 16
          %s1032 = scalar_lea.hbm %s17, %s1031
          %s1034 = sshll.u32 %s1027, 4
          %s1035 = int_to_ptr.vmem [resolvable:$true] %s1034
          %1037 = dma.hbm_to_vmem [thread:$0]  %s1032, 16, %s1035, %s1025
        $region104: #{tpu_custom_call.1} parent=63 // pred_fallthru
          _
        // Predicated region
        $region105: #{tpu_custom_call.1} parent=63 // pred_check
          %p1038 = pneg %p507
        $region106: #{tpu_custom_call.1} parent=63 // pred_check_branch
          %1040 = sbr.rel (%p1038) target = $region108
        $region107: #{tpu_custom_call.1} parent=63 // pred_region
          %s1041 = sand.u32 %s47, 1
          %s1042 = scalar_lea.sflag [#allocation5], %s1041
          %s1043 = sand.u32 %s497, 1
          %s1044 = smul.addr %s1043, 16
          %s1045 = scalar_lea.vmem [#allocation29], %s1044
          %s1047 = ssub.s32 256, 256
          %1048 = vsyncadd %s1042, %s1047
          %s1049 = smul.addr %s55, 4
          %s1050 = smul.addr %s1049, 64
          %s1051 = scalar_lea.hbm %s18, %s1050
          %s1052 = sshll.u32 %s1045, 4
          %s1053 = int_to_ptr.vmem [resolvable:$true] %s1052
          %1058 = dma.hbm_to_vmem [thread:$0]  %s1051, 256, %s1053, %s1042, 64, 64, 4
        $region108: #{tpu_custom_call.1} parent=63 // pred_fallthru
          _
        // Predicated region
        $region109: #{tpu_custom_call.1} parent=63 // pred_check
          %p1059 = pneg %p533
        $region110: #{tpu_custom_call.1} parent=63 // pred_check_branch
          %1061 = sbr.rel (%p1059) target = $region112
        $region111: #{tpu_custom_call.1} parent=63 // pred_region
          %s1062 = sand.u32 %s47, 1
          %s1063 = scalar_lea.sflag [#allocation8], %s1062
          %s1064 = sand.u32 %s523, 1
          %s1065 = scalar_lea.vmem [#allocation30], %s1064
          %s1067 = ssub.s32 16, 16
          %1068 = vsyncadd %s1063, %s1067
          %s1069 = smul.addr %s55, 16
          %s1070 = scalar_lea.hbm %s19, %s1069
          %s1072 = sshll.u32 %s1065, 4
          %s1073 = int_to_ptr.vmem [resolvable:$true] %s1072
          %1075 = dma.hbm_to_vmem [thread:$0]  %s1070, 16, %s1073, %s1063
        $region112: #{tpu_custom_call.1} parent=63 // pred_fallthru
          _
        // Predicated region
        $region113: #{tpu_custom_call.1} parent=63 // pred_check
          %p1076 = pneg %p559
        $region114: #{tpu_custom_call.1} parent=63 // pred_check_branch
          %1078 = sbr.rel (%p1076) target = $region116
        $region115: #{tpu_custom_call.1} parent=63 // pred_region
          %s1079 = sand.u32 %s47, 1
          %s1080 = scalar_lea.sflag [#allocation5], %s1079
          %s1081 = sand.u32 %s549, 1
          %s1082 = smul.addr %s1081, 64
          %s1083 = scalar_lea.vmem [#allocation31], %s1082
          %s1085 = ssub.s32 1024, 1024
          %1086 = vsyncadd %s1080, %s1085
          %s1087 = smul.addr %s55, 16
          %s1088 = smul.addr %s1087, 64
          %s1089 = scalar_lea.hbm %s20, %s1088
          %s1090 = sshll.u32 %s1083, 4
          %s1091 = int_to_ptr.vmem [resolvable:$true] %s1090
          %1096 = dma.hbm_to_vmem [thread:$0]  %s1089, 1024, %s1091, %s1080, 64, 64, 4
        $region116: #{tpu_custom_call.1} parent=63 // pred_fallthru
          _
        // Predicated region
        $region117: #{tpu_custom_call.1} parent=63 // pred_check
          %p1097 = pneg %p585
        $region118: #{tpu_custom_call.1} parent=63 // pred_check_branch
          %1099 = sbr.rel (%p1097) target = $region120
        $region119: #{tpu_custom_call.1} parent=63 // pred_region
          %s1100 = sand.u32 %s47, 1
          %s1101 = scalar_lea.sflag [#allocation8], %s1100
          %s1102 = sand.u32 %s575, 1
          %s1103 = scalar_lea.vmem [#allocation32], %s1102
          %s1105 = ssub.s32 16, 16
          %1106 = vsyncadd %s1101, %s1105
          %s1107 = smul.addr %s55, 16
          %s1108 = scalar_lea.hbm %s21, %s1107
          %s1110 = sshll.u32 %s1103, 4
          %s1111 = int_to_ptr.vmem [resolvable:$true] %s1110
          %1113 = dma.hbm_to_vmem [thread:$0]  %s1108, 16, %s1111, %s1101
        $region120: #{tpu_custom_call.1} parent=63 // pred_fallthru
          _
      $region64: #{tpu_custom_call.1} parent=5 // pred_fallthru
        _
      %p1114 = scmp.le.s32.totalorder 1, %s47
      %p1115 = scmp.lt.s32.totalorder %s47, 5
      %p1116 = pnand %p1114, %p1115
      %p1117 = pneg %p1116
      // Predicated region
      $region121: #{tpu_custom_call.1} parent=5 // pred_check
        _
      $region122: #{tpu_custom_call.1} parent=5 // pred_check_branch
        %1119 = sbr.rel (%p1116) target = $region124
      $region123: #{tpu_custom_call.1} parent=5 // pred_region
        %s1120 = ssub.s32 %s47, 1
        %s1121 = sand.u32 %s52, 1
        %s1122 = scalar_lea.sflag [#allocation5], %s1121
        %s1123 = sand.u32 %s72, 1
        %s1124 = smul.addr %s1123, 8
        %s1125 = scalar_lea.vmem [#allocation4], %s1124
        // Predicated region
        $region125: #{tpu_custom_call.1} parent=123 // pred_check
          %p1126 = pneg %p85
        $region126: #{tpu_custom_call.1} parent=123 // pred_check_branch
          %1128 = sbr.rel (%p1126) target = $region128
        $region127: #{tpu_custom_call.1} parent=123 // pred_region
          %1129 = dma.done %s1122, 128
        $region128: #{tpu_custom_call.1} parent=123 // pred_fallthru
          _
        %s1130 = sand.u32 %s52, 1
        %s1131 = scalar_lea.sflag [#allocation8], %s1130
        %s1132 = sand.u32 %s98, 1
        %s1133 = smul.addr %s1132, 2
        %s1134 = scalar_lea.vmem [#allocation7], %s1133
        // Predicated region
        $region129: #{tpu_custom_call.1} parent=123 // pred_check
          %p1135 = pneg %p111
        $region130: #{tpu_custom_call.1} parent=123 // pred_check_branch
          %1137 = sbr.rel (%p1135) target = $region132
        $region131: #{tpu_custom_call.1} parent=123 // pred_region
          %1138 = dma.done %s1131, 32
        $region132: #{tpu_custom_call.1} parent=123 // pred_fallthru
          _
        // Predicated region
        $region133: #{tpu_custom_call.1} parent=123 // pred_check
          %p1139 = pneg %p132
        $region134: #{tpu_custom_call.1} parent=123 // pred_check_branch
          %1141 = sbr.rel (%p1139) target = $region136
        $region135: #{tpu_custom_call.1} parent=123 // pred_region
          %1142 = dma.done [#allocation8], 32
        $region136: #{tpu_custom_call.1} parent=123 // pred_fallthru
          _
        // Predicated region
        $region137: #{tpu_custom_call.1} parent=123 // pred_check
          %p1143 = pneg %p153
        $region138: #{tpu_custom_call.1} parent=123 // pred_check_branch
          %1145 = sbr.rel (%p1143) target = $region140
        $region139: #{tpu_custom_call.1} parent=123 // pred_region
          %1146 = dma.done [#allocation11], 16
        $region140: #{tpu_custom_call.1} parent=123 // pred_fallthru
          _
        // Predicated region
        $region141: #{tpu_custom_call.1} parent=123 // pred_check
          %p1147 = pneg %p174
        $region142: #{tpu_custom_call.1} parent=123 // pred_check_branch
          %1149 = sbr.rel (%p1147) target = $region144
        $region143: #{tpu_custom_call.1} parent=123 // pred_region
          %1150 = dma.done [#allocation11], 128
        $region144: #{tpu_custom_call.1} parent=123 // pred_fallthru
          _
        // Predicated region
        $region145: #{tpu_custom_call.1} parent=123 // pred_check
          %p1151 = pneg %p195
        $region146: #{tpu_custom_call.1} parent=123 // pred_check_branch
          %1153 = sbr.rel (%p1151) target = $region148
        $region147: #{tpu_custom_call.1} parent=123 // pred_region
          %1154 = dma.done [#allocation14], 256
        $region148: #{tpu_custom_call.1} parent=123 // pred_fallthru
          _
        // Predicated region
        $region149: #{tpu_custom_call.1} parent=123 // pred_check
          %p1155 = pneg %p216
        $region150: #{tpu_custom_call.1} parent=123 // pred_check_branch
          %1157 = sbr.rel (%p1155) target = $region152
        $region151: #{tpu_custom_call.1} parent=123 // pred_region
          %1158 = dma.done [#allocation14], 256
        $region152: #{tpu_custom_call.1} parent=123 // pred_fallthru
          _
        // Predicated region
        $region153: #{tpu_custom_call.1} parent=123 // pred_check
          %p1159 = pneg %p237
        $region154: #{tpu_custom_call.1} parent=123 // pred_check_branch
          %1161 = sbr.rel (%p1159) target = $region156
        $region155: #{tpu_custom_call.1} parent=123 // pred_region
          %1162 = dma.done [#allocation17], 16
        $region156: #{tpu_custom_call.1} parent=123 // pred_fallthru
          _
        // Predicated region
        $region157: #{tpu_custom_call.1} parent=123 // pred_check
          %p1163 = pneg %p258
        $region158: #{tpu_custom_call.1} parent=123 // pred_check_branch
          %1165 = sbr.rel (%p1163) target = $region160
        $region159: #{tpu_custom_call.1} parent=123 // pred_region
          %1166 = dma.done [#allocation17], 1024
        $region160: #{tpu_custom_call.1} parent=123 // pred_fallthru
          _
        // Predicated region
        $region161: #{tpu_custom_call.1} parent=123 // pred_check
          %p1167 = pneg %p279
        $region162: #{tpu_custom_call.1} parent=123 // pred_check_branch
          %1169 = sbr.rel (%p1167) target = $region164
        $region163: #{tpu_custom_call.1} parent=123 // pred_region
          %1170 = dma.done [#allocation20], 16
        $region164: #{tpu_custom_call.1} parent=123 // pred_fallthru
          _
        %s1171 = sand.u32 %s52, 1
        %s1172 = scalar_lea.sflag [#allocation5], %s1171
        %s1173 = sand.u32 %s292, 1
        %s1174 = scalar_lea.vmem [#allocation21], %s1173
        // Predicated region
        $region165: #{tpu_custom_call.1} parent=123 // pred_check
          %p1175 = pneg %p305
        $region166: #{tpu_custom_call.1} parent=123 // pred_check_branch
          %1177 = sbr.rel (%p1175) target = $region168
        $region167: #{tpu_custom_call.1} parent=123 // pred_region
          %1178 = dma.done %s1172, 16
        $region168: #{tpu_custom_call.1} parent=123 // pred_fallthru
          _
        %s1179 = sand.u32 %s52, 1
        %s1180 = scalar_lea.sflag [#allocation8], %s1179
        %s1181 = sand.u32 %s318, 1
        %s1182 = scalar_lea.vmem [#allocation22], %s1181
        // Predicated region
        $region169: #{tpu_custom_call.1} parent=123 // pred_check
          %p1183 = pneg %p331
        $region170: #{tpu_custom_call.1} parent=123 // pred_check_branch
          %1185 = sbr.rel (%p1183) target = $region172
        $region171: #{tpu_custom_call.1} parent=123 // pred_region
          %1186 = dma.done %s1180, 16
        $region172: #{tpu_custom_call.1} parent=123 // pred_fallthru
          _
        %s1187 = sand.u32 %s52, 1
        %s1188 = scalar_lea.sflag [#allocation5], %s1187
        %s1189 = sand.u32 %s344, 1
        %s1190 = smul.addr %s1189, 16
        %s1191 = scalar_lea.vmem [#allocation23], %s1190
        // Predicated region
        $region173: #{tpu_custom_call.1} parent=123 // pred_check
          %p1192 = pneg %p357
        $region174: #{tpu_custom_call.1} parent=123 // pred_check_branch
          %1194 = sbr.rel (%p1192) target = $region176
        $region175: #{tpu_custom_call.1} parent=123 // pred_region
          %1195 = dma.done %s1188, 256
        $region176: #{tpu_custom_call.1} parent=123 // pred_fallthru
          _
        %s1196 = sand.u32 %s52, 1
        %s1197 = scalar_lea.sflag [#allocation8], %s1196
        %s1198 = sand.u32 %s370, 1
        %s1199 = scalar_lea.vmem [#allocation24], %s1198
        // Predicated region
        $region177: #{tpu_custom_call.1} parent=123 // pred_check
          %p1200 = pneg %p383
        $region178: #{tpu_custom_call.1} parent=123 // pred_check_branch
          %1202 = sbr.rel (%p1200) target = $region180
        $region179: #{tpu_custom_call.1} parent=123 // pred_region
          %1203 = dma.done %s1197, 16
        $region180: #{tpu_custom_call.1} parent=123 // pred_fallthru
          _
        %s1204 = sand.u32 %s52, 1
        %s1205 = scalar_lea.sflag [#allocation5], %s1204
        %s1206 = sand.u32 %s396, 1
        %s1207 = smul.addr %s1206, 16
        %s1208 = scalar_lea.vmem [#allocation25], %s1207
        // Predicated region
        $region181: #{tpu_custom_call.1} parent=123 // pred_check
          %p1209 = pneg %p409
        $region182: #{tpu_custom_call.1} parent=123 // pred_check_branch
          %1211 = sbr.rel (%p1209) target = $region184
        $region183: #{tpu_custom_call.1} parent=123 // pred_region
          %1212 = dma.done %s1205, 256
        $region184: #{tpu_custom_call.1} parent=123 // pred_fallthru
          _
        %s1213 = sand.u32 %s52, 1
        %s1214 = scalar_lea.sflag [#allocation8], %s1213
        %s1215 = sand.u32 %s422, 1
        %s1216 = scalar_lea.vmem [#allocation26], %s1215
        // Predicated region
        $region185: #{tpu_custom_call.1} parent=123 // pred_check
          %p1217 = pneg %p435
        $region186: #{tpu_custom_call.1} parent=123 // pred_check_branch
          %1219 = sbr.rel (%p1217) target = $region188
        $region187: #{tpu_custom_call.1} parent=123 // pred_region
          %1220 = dma.done %s1214, 16
        $region188: #{tpu_custom_call.1} parent=123 // pred_fallthru
          _
        %s1221 = sand.u32 %s52, 1
        %s1222 = scalar_lea.sflag [#allocation5], %s1221
        %s1223 = sand.u32 %s448, 1
        %s1224 = scalar_lea.vmem [#allocation27], %s1223
        // Predicated region
        $region189: #{tpu_custom_call.1} parent=123 // pred_check
          %p1225 = pneg %p461
        $region190: #{tpu_custom_call.1} parent=123 // pred_check_branch
          %1227 = sbr.rel (%p1225) target = $region192
        $region191: #{tpu_custom_call.1} parent=123 // pred_region
          %1228 = dma.done %s1222, 16
        $region192: #{tpu_custom_call.1} parent=123 // pred_fallthru
          _
        %s1229 = sand.u32 %s52, 1
        %s1230 = scalar_lea.sflag [#allocation8], %s1229
        %s1231 = sand.u32 %s474, 1
        %s1232 = scalar_lea.vmem [#allocation28], %s1231
        // Predicated region
        $region193: #{tpu_custom_call.1} parent=123 // pred_check
          %p1233 = pneg %p487
        $region194: #{tpu_custom_call.1} parent=123 // pred_check_branch
          %1235 = sbr.rel (%p1233) target = $region196
        $region195: #{tpu_custom_call.1} parent=123 // pred_region
          %1236 = dma.done %s1230, 16
        $region196: #{tpu_custom_call.1} parent=123 // pred_fallthru
          _
        %s1237 = sand.u32 %s52, 1
        %s1238 = scalar_lea.sflag [#allocation5], %s1237
        %s1239 = sand.u32 %s500, 1
        %s1240 = smul.addr %s1239, 16
        %s1241 = scalar_lea.vmem [#allocation29], %s1240
        // Predicated region
        $region197: #{tpu_custom_call.1} parent=123 // pred_check
          %p1242 = pneg %p513
        $region198: #{tpu_custom_call.1} parent=123 // pred_check_branch
          %1244 = sbr.rel (%p1242) target = $region200
        $region199: #{tpu_custom_call.1} parent=123 // pred_region
          %1245 = dma.done %s1238, 256
        $region200: #{tpu_custom_call.1} parent=123 // pred_fallthru
          _
        %s1246 = sand.u32 %s52, 1
        %s1247 = scalar_lea.sflag [#allocation8], %s1246
        %s1248 = sand.u32 %s526, 1
        %s1249 = scalar_lea.vmem [#allocation30], %s1248
        // Predicated region
        $region201: #{tpu_custom_call.1} parent=123 // pred_check
          %p1250 = pneg %p539
        $region202: #{tpu_custom_call.1} parent=123 // pred_check_branch
          %1252 = sbr.rel (%p1250) target = $region204
        $region203: #{tpu_custom_call.1} parent=123 // pred_region
          %1253 = dma.done %s1247, 16
        $region204: #{tpu_custom_call.1} parent=123 // pred_fallthru
          _
        %s1254 = sand.u32 %s52, 1
        %s1255 = scalar_lea.sflag [#allocation5], %s1254
        %s1256 = sand.u32 %s552, 1
        %s1257 = smul.addr %s1256, 64
        %s1258 = scalar_lea.vmem [#allocation31], %s1257
        // Predicated region
        $region205: #{tpu_custom_call.1} parent=123 // pred_check
          %p1259 = pneg %p565
        $region206: #{tpu_custom_call.1} parent=123 // pred_check_branch
          %1261 = sbr.rel (%p1259) target = $region208
        $region207: #{tpu_custom_call.1} parent=123 // pred_region
          %1262 = dma.done %s1255, 1024
        $region208: #{tpu_custom_call.1} parent=123 // pred_fallthru
          _
        %s1263 = sand.u32 %s52, 1
        %s1264 = scalar_lea.sflag [#allocation8], %s1263
        %s1265 = sand.u32 %s578, 1
        %s1266 = scalar_lea.vmem [#allocation32], %s1265
        // Predicated region
        $region209: #{tpu_custom_call.1} parent=123 // pred_check
          %p1267 = pneg %p591
        $region210: #{tpu_custom_call.1} parent=123 // pred_check_branch
          %1269 = sbr.rel (%p1267) target = $region212
        $region211: #{tpu_custom_call.1} parent=123 // pred_region
          %1270 = dma.done %s1264, 16
        $region212: #{tpu_custom_call.1} parent=123 // pred_fallthru
          _
        // Predicated region
        $region213: #{tpu_custom_call.1} parent=123 // pred_check
          %p1271 = pneg %p612
        $region214: #{tpu_custom_call.1} parent=123 // pred_check_branch
          %1273 = sbr.rel (%p1271) target = $region216
        $region215: #{tpu_custom_call.1} parent=123 // pred_region
          %1274 = dma.done [#allocation11], 16
        $region216: #{tpu_custom_call.1} parent=123 // pred_fallthru
          _
        // Predicated region
        $region217: #{tpu_custom_call.1} parent=123 // pred_check
          %p1275 = pneg %p633
        $region218: #{tpu_custom_call.1} parent=123 // pred_check_branch
          %1277 = sbr.rel (%p1275) target = $region220
        $region219: #{tpu_custom_call.1} parent=123 // pred_region
          %1278 = dma.done [#allocation14], 16
        $region220: #{tpu_custom_call.1} parent=123 // pred_fallthru
          _
        // Predicated region
        $region221: #{tpu_custom_call.1} parent=123 // pred_check
          %p1279 = pneg %p654
        $region222: #{tpu_custom_call.1} parent=123 // pred_check_branch
          %1281 = sbr.rel (%p1279) target = $region224
        $region223: #{tpu_custom_call.1} parent=123 // pred_region
          %1282 = dma.done [#allocation17], 16
        $region224: #{tpu_custom_call.1} parent=123 // pred_fallthru
          _
        %s1283 = sand.u32 %s52, 1
        %s1284 = scalar_lea.sflag [#allocation5], %s1283
        %s1285 = sand.u32 %s72, 1
        %s1286 = smul.addr %s1285, 8
        %s1287 = scalar_lea.vmem [#allocation4], %s1286
        %p1288 = pneg %p85
        %p1289 = pneg %p82
        %s1290 = sand.u32 %s52, 1
        %s1291 = scalar_lea.sflag [#allocation8], %s1290
        %s1292 = sand.u32 %s98, 1
        %s1293 = smul.addr %s1292, 2
        %s1294 = scalar_lea.vmem [#allocation7], %s1293
        %p1295 = pneg %p111
        %p1296 = pneg %p108
        %p1297 = pneg %p132
        %p1298 = pneg %p129
        %p1299 = pneg %p153
        %p1300 = pneg %p150
        %p1301 = pneg %p174
        %p1302 = pneg %p171
        %p1303 = pneg %p195
        %p1304 = pneg %p192
        %p1305 = pneg %p216
        %p1306 = pneg %p213
        %p1307 = pneg %p237
        %p1308 = pneg %p234
        %p1309 = pneg %p258
        %p1310 = pneg %p255
        %p1311 = pneg %p279
        %p1312 = pneg %p276
        %s1313 = sand.u32 %s52, 1
        %s1314 = scalar_lea.sflag [#allocation5], %s1313
        %s1315 = sand.u32 %s292, 1
        %s1316 = scalar_lea.vmem [#allocation21], %s1315
        %p1317 = pneg %p305
        %p1318 = pneg %p302
        %s1319 = sand.u32 %s52, 1
        %s1320 = scalar_lea.sflag [#allocation8], %s1319
        %s1321 = sand.u32 %s318, 1
        %s1322 = scalar_lea.vmem [#allocation22], %s1321
        %p1323 = pneg %p331
        %p1324 = pneg %p328
        %s1325 = sand.u32 %s52, 1
        %s1326 = scalar_lea.sflag [#allocation5], %s1325
        %s1327 = sand.u32 %s344, 1
        %s1328 = smul.addr %s1327, 16
        %s1329 = scalar_lea.vmem [#allocation23], %s1328
        %p1330 = pneg %p357
        %p1331 = pneg %p354
        %s1332 = sand.u32 %s52, 1
        %s1333 = scalar_lea.sflag [#allocation8], %s1332
        %s1334 = sand.u32 %s370, 1
        %s1335 = scalar_lea.vmem [#allocation24], %s1334
        %p1336 = pneg %p383
        %p1337 = pneg %p380
        %s1338 = sand.u32 %s52, 1
        %s1339 = scalar_lea.sflag [#allocation5], %s1338
        %s1340 = sand.u32 %s396, 1
        %s1341 = smul.addr %s1340, 16
        %s1342 = scalar_lea.vmem [#allocation25], %s1341
        %p1343 = pneg %p409
        %p1344 = pneg %p406
        %s1345 = sand.u32 %s52, 1
        %s1346 = scalar_lea.sflag [#allocation8], %s1345
        %s1347 = sand.u32 %s422, 1
        %s1348 = scalar_lea.vmem [#allocation26], %s1347
        %p1349 = pneg %p435
        %p1350 = pneg %p432
        %s1351 = sand.u32 %s52, 1
        %s1352 = scalar_lea.sflag [#allocation5], %s1351
        %s1353 = sand.u32 %s448, 1
        %s1354 = scalar_lea.vmem [#allocation27], %s1353
        %p1355 = pneg %p461
        %p1356 = pneg %p458
        %s1357 = sand.u32 %s52, 1
        %s1358 = scalar_lea.sflag [#allocation8], %s1357
        %s1359 = sand.u32 %s474, 1
        %s1360 = scalar_lea.vmem [#allocation28], %s1359
        %p1361 = pneg %p487
        %p1362 = pneg %p484
        %s1363 = sand.u32 %s52, 1
        %s1364 = scalar_lea.sflag [#allocation5], %s1363
        %s1365 = sand.u32 %s500, 1
        %s1366 = smul.addr %s1365, 16
        %s1367 = scalar_lea.vmem [#allocation29], %s1366
        %p1368 = pneg %p513
        %p1369 = pneg %p510
        %s1370 = sand.u32 %s52, 1
        %s1371 = scalar_lea.sflag [#allocation8], %s1370
        %s1372 = sand.u32 %s526, 1
        %s1373 = scalar_lea.vmem [#allocation30], %s1372
        %p1374 = pneg %p539
        %p1375 = pneg %p536
        %s1376 = sand.u32 %s52, 1
        %s1377 = scalar_lea.sflag [#allocation5], %s1376
        %s1378 = sand.u32 %s552, 1
        %s1379 = smul.addr %s1378, 64
        %s1380 = scalar_lea.vmem [#allocation31], %s1379
        %p1381 = pneg %p565
        %p1382 = pneg %p562
        %s1383 = sand.u32 %s52, 1
        %s1384 = scalar_lea.sflag [#allocation8], %s1383
        %s1385 = sand.u32 %s578, 1
        %s1386 = scalar_lea.vmem [#allocation32], %s1385
        %p1387 = pneg %p591
        %p1388 = pneg %p588
        %p1389 = pneg %p612
        %p1390 = pneg %p609
        %p1391 = pneg %p633
        %p1392 = pneg %p630
        %p1393 = pneg %p654
        %p1394 = pneg %p651
        %p1395 = pneg %p675
        %p1396 = pneg %p672
        %p1397 = pneg %p701
        %p1398 = pneg %p698
        %s1399 = sand.u32 %s688, 1
        %s1400 = scalar_lea.sflag [#allocation6], %s1399
        %s1401 = sand.u32 %s688, 1
        %s1402 = smul.addr %s1401, 2
        %s1403 = scalar_lea.vmem [#allocation36], %s1402
        %s1404 = smul.u32 2, %s56
        %s1405 = smul.u32 2, %s56
        %s1406 = smul.u32 2, %s56
        %p1408 = scmp.eq.s32.totalorder %s57, 0
        // Predicated region
        $region225: #{tpu_custom_call.1} parent=123 // pred_check
          %p1409 = pneg %p1408
        $region226: #{tpu_custom_call.1} parent=123 // pred_check_branch
          %1411 = sbr.rel (%p1409) target = $region228
        $region227: #{tpu_custom_call.1} parent=123 // pred_region
          %v1412 = vld [vmem:[%s1125] sm:$0xf]
          %v1413 = vpack.c.bf16 %v1412, %v1412
          %v1414 = vld [vmem:[#allocation9] sm:$0x3]
          %v1415 = vld [vmem:[#allocation10] sm:$0x1]
          %v1417 = vlaneseq
          %v1418 = vshrl.u32 %v1417, 7
          %v1419 = vsub.s32 0, %v1418
          %v1420 = vrot.slane %v1415, %v1419
          %vm1422 = vcmask 31744
          %v1424 = vsel %vm1422, %v1413, 0
          %vm1426 = vcmask 1041408
          %v1428 = vsel %vm1426, %v1414, 0
          %1430 = vmatprep.subr.bf16.mxu0 0
          %1431 = vmatpush1.bf16.msra.mxu0 %v1428
          %1432 = vmatprep.subr.bf16.mxu0 0
          %1433 = vmatpush1.bf16.msra.mxu0 0
          %1434 = vmatprep.subr.bf16.mxu0 0
          %1435 = vmatpush1.bf16.msra.mxu0 0
          %1436 = vmatprep.subr.bf16.mxu0 0
          %1437 = vmatpush1.bf16.msra.mxu0 0
          %1438 = vmatprep.subr.bf16.mxu0 0
          %1439 = vmatpush1.bf16.msra.mxu0 0
          %1440 = vmatprep.subr.bf16.mxu0 0
          %1441 = vmatpush1.bf16.msra.mxu0 0
          %1442 = vmatprep.subr.bf16.mxu0 0
          %1443 = vmatpush1.bf16.msra.mxu0 0
          %1444 = vmatprep.subr.bf16.mxu0 0
          %1445 = vmatpush1.bf16.msra.mxu0 0
          %1446 = vmatprep.subr.bf16.mxu0 0
          %1447 = vmatpush1.bf16.msra.mxu0 0
          %1448 = vmatprep.subr.bf16.mxu0 0
          %1449 = vmatpush1.bf16.msra.mxu0 0
          %1450 = vmatprep.subr.bf16.mxu0 0
          %1451 = vmatpush1.bf16.msra.mxu0 0
          %1452 = vmatprep.subr.bf16.mxu0 0
          %1453 = vmatpush1.bf16.msra.mxu0 0
          %1454 = vmatprep.subr.bf16.mxu0 0
          %1455 = vmatpush1.bf16.msra.mxu0 0
          %1456 = vmatprep.subr.bf16.mxu0 0
          %1457 = vmatpush1.bf16.msra.mxu0 0
          %1458 = vmatprep.subr.bf16.mxu0 0
          %1459 = vmatpush1.bf16.msra.mxu0 0
          %1460 = vmatprep.subr.bf16.mxu0 0
          %1461 = vmatpush1.bf16.msra.mxu0 0
          %1462 = vmatprep.mubr.bf16.mxu0 0
          %1463 = vmatmul.mubr.bf16.gmra.mrb[0].mxu0 %v1424
          %v1464 = vpop.f32.mrb[0].mxu0
          %v1465 = vadd.f32 %v1420, %v1464
          %v1466 = vpop.f32.mrb[0].mxu0
          %v1467 = vpop.f32.mrb[0].mxu0
          %v1468 = vpop.f32.mrb[0].mxu0
          %1469 = vdwg.mxu0
          %v1470 = vld [vmem:[#allocation12] sm:$0xf]
          %v1471 = vld [vmem:[#allocation12 + $0x4] sm:$0xf]
          %v1472 = vpack.c.bf16 %v1465, %v1465
          %v1473 = vld [vmem:[#allocation13] sm:$0xff]
          %v1474 = vld [vmem:[#allocation13 + $0x8] sm:$0xff]
          %1476 = vset.pattern.permute.xlu0 0
          %1477 = vperm.xlu0 %1476, %v1473
          %v1478 = vpop.permute.xlu0 %1477
          %1481 = vset.pattern.permute.xlu0 0
          %1482 = vperm.xlu0 %1481, %v1474
          %v1483 = vpop.permute.xlu0 %1482
          %v1487 = vunpack.c.l.b16 %v1470
          %v1488 = vunpack.c.l.b16 %v1471
          %v1489 = vpack.c.b16 %v1488, %v1487
          %v1491 = vsel %vm1422, %v1489, 0
          %v1494 = vsel %vm1426, %v1472, 0
          %1496 = vmatprep.subr.bf16.mxu0 0
          %1497 = vmatpush1.bf16.msra.mxu0 %v1494
          %1498 = vmatprep.subr.bf16.mxu0 0
          %1499 = vmatpush1.bf16.msra.mxu0 0
          %1500 = vmatprep.subr.bf16.mxu0 0
          %1501 = vmatpush1.bf16.msra.mxu0 0
          %1502 = vmatprep.subr.bf16.mxu0 0
          %1503 = vmatpush1.bf16.msra.mxu0 0
          %1504 = vmatprep.subr.bf16.mxu0 0
          %1505 = vmatpush1.bf16.msra.mxu0 0
          %1506 = vmatprep.subr.bf16.mxu0 0
          %1507 = vmatpush1.bf16.msra.mxu0 0
          %1508 = vmatprep.subr.bf16.mxu0 0
          %1509 = vmatpush1.bf16.msra.mxu0 0
          %1510 = vmatprep.subr.bf16.mxu0 0
          %1511 = vmatpush1.bf16.msra.mxu0 0
          %1512 = vmatprep.subr.bf16.mxu0 0
          %1513 = vmatpush1.bf16.msra.mxu0 0
          %1514 = vmatprep.subr.bf16.mxu0 0
          %1515 = vmatpush1.bf16.msra.mxu0 0
          %1516 = vmatprep.subr.bf16.mxu0 0
          %1517 = vmatpush1.bf16.msra.mxu0 0
          %1518 = vmatprep.subr.bf16.mxu0 0
          %1519 = vmatpush1.bf16.msra.mxu0 0
          %1520 = vmatprep.subr.bf16.mxu0 0
          %1521 = vmatpush1.bf16.msra.mxu0 0
          %1522 = vmatprep.subr.bf16.mxu0 0
          %1523 = vmatpush1.bf16.msra.mxu0 0
          %1524 = vmatprep.subr.bf16.mxu0 0
          %1525 = vmatpush1.bf16.msra.mxu0 0
          %1526 = vmatprep.subr.bf16.mxu0 0
          %1527 = vmatpush1.bf16.msra.mxu0 0
          %1528 = vmatprep.mubr.bf16.mxu0 0
          %1529 = vmatmul.mubr.bf16.gmra.mrb[0].mxu0 %v1491
          %v1530 = vpop.f32.mrb[0].mxu0
          %v1531 = vadd.f32 %v1478, %v1530
          %v1532 = vpop.f32.mrb[0].mxu0
          %v1533 = vpop.f32.mrb[0].mxu0
          %v1534 = vadd.f32 %v1483, %v1533
          %v1535 = vpop.f32.mrb[0].mxu0
          %1536 = vdwg.mxu0
          %v1537 = vld [vmem:[%s1134] sm:$0x1]
          %v1539 = vlaneseq
          %v1540 = vshrl.u32 %v1539, 7
          %v1541 = vsub.s32 0, %v1540
          %v1542 = vrot.slane %v1537, %v1541
          %v1544 = vadd.f32 %v1531, %v1542
          %v1545 = vadd.f32 %v1534, %v1542
          %vm1546 = vcmask 261120
          %1547 = vst.msk [vmem:[#allocation2] sm:$0xff] %vm1546, %v1544
          %1548 = vst.msk [vmem:[#allocation2 + $0x8] sm:$0xff] %vm1546, %v1545
          %s1549 = scalar_lea.vmem %s1125, 4 [#allocation4]
          %v1550 = vld [vmem:[%s1549] sm:$0xf]
          %v1551 = vpack.c.bf16 %v1550, %v1550
          %v1552 = vld [vmem:[#allocation9] sm:$0x3]
          %v1553 = vld [vmem:[#allocation10] sm:$0x1]
          %v1555 = vlaneseq
          %v1556 = vshrl.u32 %v1555, 7
          %v1557 = vsub.s32 0, %v1556
          %v1558 = vrot.slane %v1553, %v1557
          %v1561 = vsel %vm1422, %v1551, 0
          %v1564 = vsel %vm1426, %v1552, 0
          %1566 = vmatprep.subr.bf16.mxu0 0
          %1567 = vmatpush1.bf16.msra.mxu0 %v1564
          %1568 = vmatprep.subr.bf16.mxu0 0
          %1569 = vmatpush1.bf16.msra.mxu0 0
          %1570 = vmatprep.subr.bf16.mxu0 0
          %1571 = vmatpush1.bf16.msra.mxu0 0
          %1572 = vmatprep.subr.bf16.mxu0 0
          %1573 = vmatpush1.bf16.msra.mxu0 0
          %1574 = vmatprep.subr.bf16.mxu0 0
          %1575 = vmatpush1.bf16.msra.mxu0 0
          %1576 = vmatprep.subr.bf16.mxu0 0
          %1577 = vmatpush1.bf16.msra.mxu0 0
          %1578 = vmatprep.subr.bf16.mxu0 0
          %1579 = vmatpush1.bf16.msra.mxu0 0
          %1580 = vmatprep.subr.bf16.mxu0 0
          %1581 = vmatpush1.bf16.msra.mxu0 0
          %1582 = vmatprep.subr.bf16.mxu0 0
          %1583 = vmatpush1.bf16.msra.mxu0 0
          %1584 = vmatprep.subr.bf16.mxu0 0
          %1585 = vmatpush1.bf16.msra.mxu0 0
          %1586 = vmatprep.subr.bf16.mxu0 0
          %1587 = vmatpush1.bf16.msra.mxu0 0
          %1588 = vmatprep.subr.bf16.mxu0 0
          %1589 = vmatpush1.bf16.msra.mxu0 0
          %1590 = vmatprep.subr.bf16.mxu0 0
          %1591 = vmatpush1.bf16.msra.mxu0 0
          %1592 = vmatprep.subr.bf16.mxu0 0
          %1593 = vmatpush1.bf16.msra.mxu0 0
          %1594 = vmatprep.subr.bf16.mxu0 0
          %1595 = vmatpush1.bf16.msra.mxu0 0
          %1596 = vmatprep.subr.bf16.mxu0 0
          %1597 = vmatpush1.bf16.msra.mxu0 0
          %1598 = vmatprep.mubr.bf16.mxu0 0
          %1599 = vmatmul.mubr.bf16.gmra.mrb[0].mxu0 %v1561
          %v1600 = vpop.f32.mrb[0].mxu0
          %v1601 = vadd.f32 %v1558, %v1600
          %v1602 = vpop.f32.mrb[0].mxu0
          %v1603 = vpop.f32.mrb[0].mxu0
          %v1604 = vpop.f32.mrb[0].mxu0
          %1605 = vdwg.mxu0
          %v1606 = vld [vmem:[#allocation12] sm:$0xf]
          %v1607 = vld [vmem:[#allocation12 + $0x4] sm:$0xf]
          %v1608 = vpack.c.bf16 %v1601, %v1601
          %v1609 = vld [vmem:[#allocation13] sm:$0xff]
          %v1610 = vld [vmem:[#allocation13 + $0x8] sm:$0xff]
          %1612 = vset.pattern.permute.xlu0 0
          %1613 = vperm.xlu0 %1612, %v1609
          %v1614 = vpop.permute.xlu0 %1613
          %1617 = vset.pattern.permute.xlu0 0
          %1618 = vperm.xlu0 %1617, %v1610
          %v1619 = vpop.permute.xlu0 %1618
          %v1623 = vunpack.c.l.b16 %v1606
          %v1624 = vunpack.c.l.b16 %v1607
          %v1625 = vpack.c.b16 %v1624, %v1623
          %v1627 = vsel %vm1422, %v1625, 0
          %v1630 = vsel %vm1426, %v1608, 0
          %1632 = vmatprep.subr.bf16.mxu0 0
          %1633 = vmatpush1.bf16.msra.mxu0 %v1630
          %1634 = vmatprep.subr.bf16.mxu0 0
          %1635 = vmatpush1.bf16.msra.mxu0 0
          %1636 = vmatprep.subr.bf16.mxu0 0
          %1637 = vmatpush1.bf16.msra.mxu0 0
          %1638 = vmatprep.subr.bf16.mxu0 0
          %1639 = vmatpush1.bf16.msra.mxu0 0
          %1640 = vmatprep.subr.bf16.mxu0 0
          %1641 = vmatpush1.bf16.msra.mxu0 0
          %1642 = vmatprep.subr.bf16.mxu0 0
          %1643 = vmatpush1.bf16.msra.mxu0 0
          %1644 = vmatprep.subr.bf16.mxu0 0
          %1645 = vmatpush1.bf16.msra.mxu0 0
          %1646 = vmatprep.subr.bf16.mxu0 0
          %1647 = vmatpush1.bf16.msra.mxu0 0
          %1648 = vmatprep.subr.bf16.mxu0 0
          %1649 = vmatpush1.bf16.msra.mxu0 0
          %1650 = vmatprep.subr.bf16.mxu0 0
          %1651 = vmatpush1.bf16.msra.mxu0 0
          %1652 = vmatprep.subr.bf16.mxu0 0
          %1653 = vmatpush1.bf16.msra.mxu0 0
          %1654 = vmatprep.subr.bf16.mxu0 0
          %1655 = vmatpush1.bf16.msra.mxu0 0
          %1656 = vmatprep.subr.bf16.mxu0 0
          %1657 = vmatpush1.bf16.msra.mxu0 0
          %1658 = vmatprep.subr.bf16.mxu0 0
          %1659 = vmatpush1.bf16.msra.mxu0 0
          %1660 = vmatprep.subr.bf16.mxu0 0
          %1661 = vmatpush1.bf16.msra.mxu0 0
          %1662 = vmatprep.subr.bf16.mxu0 0
          %1663 = vmatpush1.bf16.msra.mxu0 0
          %1664 = vmatprep.mubr.bf16.mxu0 0
          %1665 = vmatmul.mubr.bf16.gmra.mrb[0].mxu0 %v1627
          %v1666 = vpop.f32.mrb[0].mxu0
          %v1667 = vadd.f32 %v1614, %v1666
          %v1668 = vpop.f32.mrb[0].mxu0
          %v1669 = vpop.f32.mrb[0].mxu0
          %v1670 = vadd.f32 %v1619, %v1669
          %v1671 = vpop.f32.mrb[0].mxu0
          %1672 = vdwg.mxu0
          %s1673 = scalar_lea.vmem %s1134, 1 [#allocation7]
          %v1674 = vld [vmem:[%s1673] sm:$0x1]
          %v1676 = vlaneseq
          %v1677 = vshrl.u32 %v1676, 7
          %v1678 = vsub.s32 0, %v1677
          %v1679 = vrot.slane %v1674, %v1678
          %v1681 = vadd.f32 %v1667, %v1679
          %v1682 = vadd.f32 %v1670, %v1679
          %1683 = vst.msk [vmem:[#allocation2 + $0x10] sm:$0xff] %vm1546, %v1681
          %1684 = vst.msk [vmem:[#allocation2 + $0x18] sm:$0xff] %vm1546, %v1682
          %v1685 = vld [vmem:[#allocation2] sm:$0xff]
          %v1686 = vld [vmem:[#allocation2 + $0x8] sm:$0xff]
          %v1687 = vld [vmem:[#allocation2 + $0x10] sm:$0xff]
          %v1688 = vld [vmem:[#allocation2 + $0x18] sm:$0xff]
          %v1689 = vpack.c.bf16 %v1686, %v1685
          %v1690 = vpack.c.bf16 %v1688, %v1687
          %v1691 = vld [vmem:[#allocation15] sm:$0xf]
          %v1692 = vld [vmem:[#allocation15 + $0x4] sm:$0xf]
          %v1693 = vld [vmem:[#allocation15 + $0x8] sm:$0xf]
          %v1694 = vld [vmem:[#allocation15 + $0xc] sm:$0xf]
          %v1695 = vld [vmem:[#allocation16] sm:$0x1]
          %v1697 = vlaneseq
          %v1698 = vshrl.u32 %v1697, 7
          %v1699 = vsub.s32 0, %v1698
          %v1700 = vrot.slane %v1695, %v1699
          %v1706 = vunpack.c.l.b16 %v1691
          %v1707 = vunpack.c.l.b16 %v1692
          %v1708 = vunpack.c.l.b16 %v1693
          %v1709 = vunpack.c.l.b16 %v1694
          %v1710 = vpack.c.b16 %v1707, %v1706
          %v1711 = vpack.c.b16 %v1709, %v1708
          %v1715 = vsel %vm1546, %v1689, 0
          %v1718 = vsel %vm1546, %v1690, 0
          %1720 = vmatprep.subr.bf16.mxu0 0
          %1721 = vmatpush1.bf16.msra.mxu0 %v1710
          %1722 = vmatprep.subr.bf16.mxu0 0
          %1723 = vmatpush1.bf16.msra.mxu0 %v1711
          %1724 = vmatprep.subr.bf16.mxu0 0
          %1725 = vmatpush1.bf16.msra.mxu0 0
          %1726 = vmatprep.subr.bf16.mxu0 0
          %1727 = vmatpush1.bf16.msra.mxu0 0
          %1728 = vmatprep.subr.bf16.mxu0 0
          %1729 = vmatpush1.bf16.msra.mxu0 0
          %1730 = vmatprep.subr.bf16.mxu0 0
          %1731 = vmatpush1.bf16.msra.mxu0 0
          %1732 = vmatprep.subr.bf16.mxu0 0
          %1733 = vmatpush1.bf16.msra.mxu0 0
          %1734 = vmatprep.subr.bf16.mxu0 0
          %1735 = vmatpush1.bf16.msra.mxu0 0
          %1736 = vmatprep.subr.bf16.mxu0 0
          %1737 = vmatpush1.bf16.msra.mxu0 0
          %1738 = vmatprep.subr.bf16.mxu0 0
          %1739 = vmatpush1.bf16.msra.mxu0 0
          %1740 = vmatprep.subr.bf16.mxu0 0
          %1741 = vmatpush1.bf16.msra.mxu0 0
          %1742 = vmatprep.subr.bf16.mxu0 0
          %1743 = vmatpush1.bf16.msra.mxu0 0
          %1744 = vmatprep.subr.bf16.mxu0 0
          %1745 = vmatpush1.bf16.msra.mxu0 0
          %1746 = vmatprep.subr.bf16.mxu0 0
          %1747 = vmatpush1.bf16.msra.mxu0 0
          %1748 = vmatprep.subr.bf16.mxu0 0
          %1749 = vmatpush1.bf16.msra.mxu0 0
          %1750 = vmatprep.subr.bf16.mxu0 0
          %1751 = vmatpush1.bf16.msra.mxu0 0
          %1752 = vmatprep.mubr.bf16.mxu0 0
          %1753 = vmatmul.mubr.bf16.gmra.mrb[0].mxu0 %v1715
          %v1754 = vpop.f32.mrb[0].mxu0
          %v1755 = vadd.f32 %v1700, %v1754
          %v1756 = vpop.f32.mrb[0].mxu0
          %v1757 = vpop.f32.mrb[0].mxu0
          %v1758 = vadd.f32 %v1700, %v1757
          %v1759 = vpop.f32.mrb[0].mxu0
          %1760 = vmatprep.mubr.bf16.mxu0 0
          %1761 = vmatmul.mubr.bf16.gmra.mrb[0].mxu0 %v1718
          %v1762 = vpop.f32.mrb[0].mxu0
          %v1763 = vadd.f32 %v1700, %v1762
          %v1764 = vpop.f32.mrb[0].mxu0
          %v1765 = vpop.f32.mrb[0].mxu0
          %v1766 = vadd.f32 %v1700, %v1765
          %v1767 = vpop.f32.mrb[0].mxu0
          %1768 = vdwg.mxu0
          %v1769 = vmul.f32 %v1755, 0.5
          %v1770 = vmul.f32 %v1758, 0.5
          %v1771 = vmul.f32 %v1763, 0.5
          %v1772 = vmul.f32 %v1766, 0.5
          %v1773 = vmul.f32 %v1755, 0.044715
          %v1774 = vmul.f32 %v1758, 0.044715
          %v1775 = vmul.f32 %v1763, 0.044715
          %v1776 = vmul.f32 %v1766, 0.044715
          %v1777 = vmul.f32 %v1773, %v1755
          %v1778 = vmul.f32 %v1774, %v1758
          %v1779 = vmul.f32 %v1775, %v1763
          %v1780 = vmul.f32 %v1776, %v1766
          %v1781 = vmul.f32 %v1777, %v1755
          %v1782 = vmul.f32 %v1778, %v1758
          %v1783 = vmul.f32 %v1779, %v1763
          %v1784 = vmul.f32 %v1780, %v1766
          %v1785 = vadd.f32 %v1755, %v1781
          %v1786 = vadd.f32 %v1758, %v1782
          %v1787 = vadd.f32 %v1763, %v1783
          %v1788 = vadd.f32 %v1766, %v1784
          %v1789 = vmul.f32 %v1785, 0.7978846
          %v1790 = vmul.f32 %v1786, 0.7978846
          %v1791 = vmul.f32 %v1787, 0.7978846
          %v1792 = vmul.f32 %v1788, 0.7978846
          %v1793 = vtanh.pop %v1789
          %v1794 = vtanh.pop %v1790
          %v1795 = vtanh.pop %v1791
          %v1796 = vtanh.pop %v1792
          %v1797 = vadd.f32 %v1793, 1.0
          %v1798 = vadd.f32 %v1794, 1.0
          %v1799 = vadd.f32 %v1795, 1.0
          %v1800 = vadd.f32 %v1796, 1.0
          %v1801 = vmul.f32 %v1769, %v1797
          %v1802 = vmul.f32 %v1770, %v1798
          %v1803 = vmul.f32 %v1771, %v1799
          %v1804 = vmul.f32 %v1772, %v1800
          %v1805 = vpack.c.bf16 %v1802, %v1801
          %v1806 = vpack.c.bf16 %v1804, %v1803
          %v1807 = vld [vmem:[#allocation18] sm:$0xf]
          %v1808 = vld [vmem:[#allocation18 + $0x4] sm:$0xf]
          %v1809 = vld [vmem:[#allocation18 + $0x8] sm:$0xf]
          %v1810 = vld [vmem:[#allocation18 + $0xc] sm:$0xf]
          %v1811 = vld [vmem:[#allocation18 + $0x10] sm:$0xf]
          %v1812 = vld [vmem:[#allocation18 + $0x14] sm:$0xf]
          %v1813 = vld [vmem:[#allocation18 + $0x18] sm:$0xf]
          %v1814 = vld [vmem:[#allocation18 + $0x1c] sm:$0xf]
          %v1815 = vld [vmem:[#allocation18 + $0x20] sm:$0xf]
          %v1816 = vld [vmem:[#allocation18 + $0x24] sm:$0xf]
          %v1817 = vld [vmem:[#allocation18 + $0x28] sm:$0xf]
          %v1818 = vld [vmem:[#allocation18 + $0x2c] sm:$0xf]
          %v1819 = vld [vmem:[#allocation18 + $0x30] sm:$0xf]
          %v1820 = vld [vmem:[#allocation18 + $0x34] sm:$0xf]
          %v1821 = vld [vmem:[#allocation18 + $0x38] sm:$0xf]
          %v1822 = vld [vmem:[#allocation18 + $0x3c] sm:$0xf]
          %v1823 = vld [vmem:[#allocation19] sm:$0x1]
          %v1825 = vlaneseq
          %v1826 = vshrl.u32 %v1825, 7
          %v1827 = vsub.s32 0, %v1826
          %v1828 = vrot.slane %v1823, %v1827
          %v1846 = vunpack.c.l.b16 %v1807
          %v1847 = vunpack.c.l.b16 %v1808
          %v1848 = vunpack.c.l.b16 %v1809
          %v1849 = vunpack.c.l.b16 %v1810
          %v1850 = vunpack.c.l.b16 %v1811
          %v1851 = vunpack.c.l.b16 %v1812
          %v1852 = vunpack.c.l.b16 %v1813
          %v1853 = vunpack.c.l.b16 %v1814
          %v1854 = vunpack.c.l.b16 %v1815
          %v1855 = vunpack.c.l.b16 %v1816
          %v1856 = vunpack.c.l.b16 %v1817
          %v1857 = vunpack.c.l.b16 %v1818
          %v1858 = vunpack.c.l.b16 %v1819
          %v1859 = vunpack.c.l.b16 %v1820
          %v1860 = vunpack.c.l.b16 %v1821
          %v1861 = vunpack.c.l.b16 %v1822
          %v1862 = vpack.c.b16 %v1847, %v1846
          %v1863 = vpack.c.b16 %v1849, %v1848
          %v1864 = vpack.c.b16 %v1851, %v1850
          %v1865 = vpack.c.b16 %v1853, %v1852
          %v1866 = vpack.c.b16 %v1855, %v1854
          %v1867 = vpack.c.b16 %v1857, %v1856
          %v1868 = vpack.c.b16 %v1859, %v1858
          %v1869 = vpack.c.b16 %v1861, %v1860
          %1878 = vmatprep.subr.bf16.mxu0 0
          %1879 = vmatpush1.bf16.msra.mxu0 %v1862
          %1880 = vmatprep.subr.bf16.mxu0 0
          %1881 = vmatpush1.bf16.msra.mxu0 %v1863
          %1882 = vmatprep.subr.bf16.mxu0 0
          %1883 = vmatpush1.bf16.msra.mxu0 %v1864
          %1884 = vmatprep.subr.bf16.mxu0 0
          %1885 = vmatpush1.bf16.msra.mxu0 %v1865
          %1886 = vmatprep.subr.bf16.mxu0 0
          %1887 = vmatpush1.bf16.msra.mxu0 %v1866
          %1888 = vmatprep.subr.bf16.mxu0 0
          %1889 = vmatpush1.bf16.msra.mxu0 %v1867
          %1890 = vmatprep.subr.bf16.mxu0 0
          %1891 = vmatpush1.bf16.msra.mxu0 %v1868
          %1892 = vmatprep.subr.bf16.mxu0 0
          %1893 = vmatpush1.bf16.msra.mxu0 %v1869
          %1894 = vmatprep.subr.bf16.mxu0 0
          %1895 = vmatpush1.bf16.msra.mxu0 0
          %1896 = vmatprep.subr.bf16.mxu0 0
          %1897 = vmatpush1.bf16.msra.mxu0 0
          %1898 = vmatprep.subr.bf16.mxu0 0
          %1899 = vmatpush1.bf16.msra.mxu0 0
          %1900 = vmatprep.subr.bf16.mxu0 0
          %1901 = vmatpush1.bf16.msra.mxu0 0
          %1902 = vmatprep.subr.bf16.mxu0 0
          %1903 = vmatpush1.bf16.msra.mxu0 0
          %1904 = vmatprep.subr.bf16.mxu0 0
          %1905 = vmatpush1.bf16.msra.mxu0 0
          %1906 = vmatprep.subr.bf16.mxu0 0
          %1907 = vmatpush1.bf16.msra.mxu0 0
          %1908 = vmatprep.subr.bf16.mxu0 0
          %1909 = vmatpush1.bf16.msra.mxu0 0
          %1910 = vmatprep.mubr.bf16.mxu0 0
          %1911 = vmatmul.mubr.bf16.gmra.mrb[0].mxu0 %v1805
          %v1912 = vpop.f32.mrb[0].mxu0
          %v1913 = vadd.f32 %v1828, %v1912
          %v1914 = vpop.f32.mrb[0].mxu0
          %v1915 = vpop.f32.mrb[0].mxu0
          %v1916 = vadd.f32 %v1828, %v1915
          %v1917 = vpop.f32.mrb[0].mxu0
          %1918 = vmatprep.mubr.bf16.mxu0 0
          %1919 = vmatmul.mubr.bf16.gmra.mrb[0].mxu0 %v1806
          %v1920 = vpop.f32.mrb[0].mxu0
          %v1921 = vadd.f32 %v1828, %v1920
          %v1922 = vpop.f32.mrb[0].mxu0
          %v1923 = vpop.f32.mrb[0].mxu0
          %v1924 = vadd.f32 %v1828, %v1923
          %v1925 = vpop.f32.mrb[0].mxu0
          %1926 = vdwg.mxu0
          %v1927 = vadd.f32 %v1685, %v1913
          %v1928 = vadd.f32 %v1686, %v1916
          %v1929 = vadd.f32 %v1687, %v1921
          %v1930 = vadd.f32 %v1688, %v1924
          %1931 = vst.msk [vmem:[#allocation2] sm:$0xff] %vm1546, %v1927
          %1932 = vst.msk [vmem:[#allocation2 + $0x8] sm:$0xff] %vm1546, %v1928
          %1933 = vst.msk [vmem:[#allocation2 + $0x10] sm:$0xff] %vm1546, %v1929
          %1934 = vst.msk [vmem:[#allocation2 + $0x18] sm:$0xff] %vm1546, %v1930
        $region228: #{tpu_custom_call.1} parent=123 // pred_fallthru
          _
        %v1935 = vld [vmem:[#allocation2] sm:$0xff]
        %v1936 = vld [vmem:[#allocation2 + $0x8] sm:$0xff]
        %v1937 = vld [vmem:[#allocation2 + $0x10] sm:$0xff]
        %v1938 = vld [vmem:[#allocation2 + $0x18] sm:$0xff]
        %v1939 = vld [vmem:[%s1174] sm:$0x1]
        %v1940 = vld [vmem:[%s1182] sm:$0x1]
        %vm1941 = vcmask 261120
        %v1942 = vsel %vm1941, %v1935, 0.0
        %1943 = vadd.xlane.f32.xlu0 %v1942
        %v1944 = vpop.xlane.xlu0 %1943
        %v1945 = vsel %vm1941, %v1936, 0.0
        %1946 = vadd.xlane.f32.xlu0 %v1945
        %v1947 = vpop.xlane.xlu0 %1946
        %v1948 = vsel %vm1941, %v1937, 0.0
        %1949 = vadd.xlane.f32.xlu0 %v1948
        %v1950 = vpop.xlane.xlu0 %1949
        %v1951 = vsel %vm1941, %v1938, 0.0
        %1952 = vadd.xlane.f32.xlu0 %v1951
        %v1953 = vpop.xlane.xlu0 %1952
        %v1954 = vrcp.pop 32.0
        %v1955 = vmul.f32 %v1944, %v1954
        %v1956 = vmul.f32 %v1947, %v1954
        %v1957 = vmul.f32 %v1950, %v1954
        %v1958 = vmul.f32 %v1953, %v1954
        %v1959 = vsub.f32 %v1935, %v1955
        %v1960 = vsub.f32 %v1936, %v1956
        %v1961 = vsub.f32 %v1937, %v1957
        %v1962 = vsub.f32 %v1938, %v1958
        %v1963 = vmul.f32 %v1959, %v1959
        %v1964 = vmul.f32 %v1960, %v1960
        %v1965 = vmul.f32 %v1961, %v1961
        %v1966 = vmul.f32 %v1962, %v1962
        %v1967 = vsel %vm1941, %v1963, 0.0
        %1968 = vadd.xlane.f32.xlu0 %v1967
        %v1969 = vpop.xlane.xlu0 %1968
        %v1970 = vsel %vm1941, %v1964, 0.0
        %1971 = vadd.xlane.f32.xlu0 %v1970
        %v1972 = vpop.xlane.xlu0 %1971
        %v1973 = vsel %vm1941, %v1965, 0.0
        %1974 = vadd.xlane.f32.xlu0 %v1973
        %v1975 = vpop.xlane.xlu0 %1974
        %v1976 = vsel %vm1941, %v1966, 0.0
        %1977 = vadd.xlane.f32.xlu0 %v1976
        %v1978 = vpop.xlane.xlu0 %1977
        %v1979 = vmul.f32 %v1969, %v1954
        %v1980 = vmul.f32 %v1972, %v1954
        %v1981 = vmul.f32 %v1975, %v1954
        %v1982 = vmul.f32 %v1978, %v1954
        %v1983 = vadd.f32 %v1979, 1e-05
        %v1984 = vadd.f32 %v1980, 1e-05
        %v1985 = vadd.f32 %v1981, 1e-05
        %v1986 = vadd.f32 %v1982, 1e-05
        %v1987 = vrsqrt.pop %v1983
        %v1988 = vrsqrt.pop %v1984
        %v1989 = vrsqrt.pop %v1985
        %v1990 = vrsqrt.pop %v1986
        %v1991 = vmul.f32 %v1959, %v1987
        %v1992 = vmul.f32 %v1960, %v1988
        %v1993 = vmul.f32 %v1961, %v1989
        %v1994 = vmul.f32 %v1962, %v1990
        %v1996 = vlaneseq
        %v1997 = vshrl.u32 %v1996, 7
        %v1998 = vsub.s32 0, %v1997
        %v1999 = vrot.slane %v1939, %v1998
        %v2001 = vmul.f32 %v1991, %v1999
        %v2002 = vmul.f32 %v1992, %v1999
        %v2003 = vmul.f32 %v1993, %v1999
        %v2004 = vmul.f32 %v1994, %v1999
        %v2006 = vlaneseq
        %v2007 = vshrl.u32 %v2006, 7
        %v2008 = vsub.s32 0, %v2007
        %v2009 = vrot.slane %v1940, %v2008
        %v2011 = vadd.f32 %v2001, %v2009
        %v2012 = vadd.f32 %v2002, %v2009
        %v2013 = vadd.f32 %v2003, %v2009
        %v2014 = vadd.f32 %v2004, %v2009
        %v2015 = vpack.c.bf16 %v2012, %v2011
        %v2016 = vpack.c.bf16 %v2014, %v2013
        %v2017 = vld [vmem:[%s1191] sm:$0xf]
        %v2018 = vld [vmem:[%s1191 + $0x4] sm:$0xf]
        %v2019 = vld [vmem:[%s1191 + $0x8] sm:$0xf]
        %v2020 = vld [vmem:[%s1191 + $0xc] sm:$0xf]
        %v2021 = vld [vmem:[%s1199] sm:$0x1]
        %v2023 = vlaneseq
        %v2024 = vshrl.u32 %v2023, 7
        %v2025 = vsub.s32 0, %v2024
        %v2026 = vrot.slane %v2021, %v2025
        %v2032 = vunpack.c.l.b16 %v2017
        %v2033 = vunpack.c.l.b16 %v2018
        %v2034 = vunpack.c.l.b16 %v2019
        %v2035 = vunpack.c.l.b16 %v2020
        %v2036 = vpack.c.b16 %v2033, %v2032
        %v2037 = vpack.c.b16 %v2035, %v2034
        %v2041 = vsel %vm1941, %v2015, 0
        %v2044 = vsel %vm1941, %v2016, 0
        %2046 = vmatprep.subr.bf16.mxu0 0
        %2047 = vmatpush1.bf16.msra.mxu0 %v2036
        %2048 = vmatprep.subr.bf16.mxu0 0
        %2049 = vmatpush1.bf16.msra.mxu0 %v2037
        %2050 = vmatprep.subr.bf16.mxu0 0
        %2051 = vmatpush1.bf16.msra.mxu0 0
        %2052 = vmatprep.subr.bf16.mxu0 0
        %2053 = vmatpush1.bf16.msra.mxu0 0
        %2054 = vmatprep.subr.bf16.mxu0 0
        %2055 = vmatpush1.bf16.msra.mxu0 0
        %2056 = vmatprep.subr.bf16.mxu0 0
        %2057 = vmatpush1.bf16.msra.mxu0 0
        %2058 = vmatprep.subr.bf16.mxu0 0
        %2059 = vmatpush1.bf16.msra.mxu0 0
        %2060 = vmatprep.subr.bf16.mxu0 0
        %2061 = vmatpush1.bf16.msra.mxu0 0
        %2062 = vmatprep.subr.bf16.mxu0 0
        %2063 = vmatpush1.bf16.msra.mxu0 0
        %2064 = vmatprep.subr.bf16.mxu0 0
        %2065 = vmatpush1.bf16.msra.mxu0 0
        %2066 = vmatprep.subr.bf16.mxu0 0
        %2067 = vmatpush1.bf16.msra.mxu0 0
        %2068 = vmatprep.subr.bf16.mxu0 0
        %2069 = vmatpush1.bf16.msra.mxu0 0
        %2070 = vmatprep.subr.bf16.mxu0 0
        %2071 = vmatpush1.bf16.msra.mxu0 0
        %2072 = vmatprep.subr.bf16.mxu0 0
        %2073 = vmatpush1.bf16.msra.mxu0 0
        %2074 = vmatprep.subr.bf16.mxu0 0
        %2075 = vmatpush1.bf16.msra.mxu0 0
        %2076 = vmatprep.subr.bf16.mxu0 0
        %2077 = vmatpush1.bf16.msra.mxu0 0
        %2078 = vmatprep.mubr.bf16.mxu0 0
        %2079 = vmatmul.mubr.bf16.gmra.mrb[0].mxu0 %v2041
        %v2080 = vpop.f32.mrb[0].mxu0
        %v2081 = vadd.f32 %v2026, %v2080
        %v2082 = vpop.f32.mrb[0].mxu0
        %v2083 = vpop.f32.mrb[0].mxu0
        %v2084 = vadd.f32 %v2026, %v2083
        %v2085 = vpop.f32.mrb[0].mxu0
        %2086 = vmatprep.mubr.bf16.mxu0 0
        %2087 = vmatmul.mubr.bf16.gmra.mrb[0].mxu0 %v2044
        %v2088 = vpop.f32.mrb[0].mxu0
        %v2089 = vadd.f32 %v2026, %v2088
        %v2090 = vpop.f32.mrb[0].mxu0
        %v2091 = vpop.f32.mrb[0].mxu0
        %v2092 = vadd.f32 %v2026, %v2091
        %v2093 = vpop.f32.mrb[0].mxu0
        %2094 = vdwg.mxu0
        %v2095 = vld [vmem:[%s1208] sm:$0xf]
        %v2096 = vld [vmem:[%s1208 + $0x4] sm:$0xf]
        %v2097 = vld [vmem:[%s1208 + $0x8] sm:$0xf]
        %v2098 = vld [vmem:[%s1208 + $0xc] sm:$0xf]
        %v2099 = vmul.f32 %v2081, 0.35355338
        %v2100 = vmul.f32 %v2084, 0.35355338
        %v2101 = vpack.c.bf16 %v2100, %v2099
        %v2102 = vpack.c.bf16 %v2084, %v2081
        %2104 = vrot.lane.b32.xlu0 %v2102, 96
        %v2105 = vpop.permute.xlu0 %2104
        %vm2106 = vcmask 64512
        %v2108 = vsel %vm2106, %v2101, 0
        %v2111 = vsel %vm2106, %v2105, 0
        %2113 = vmatprep.subr.bf16.mxu0 0
        %2114 = vmatpush1.bf16.xpose.msra.mxu0 %v2111
        %2115 = vmatprep.subr.bf16.mxu0 0
        %2116 = vmatpush1.bf16.xpose.msra.mxu0 0
        %2117 = vmatprep.subr.bf16.mxu0 0
        %2118 = vmatpush1.bf16.xpose.msra.mxu0 0
        %2119 = vmatprep.subr.bf16.mxu0 0
        %2120 = vmatpush1.bf16.xpose.msra.mxu0 0
        %2121 = vmatprep.subr.bf16.mxu0 0
        %2122 = vmatpush1.bf16.xpose.msra.mxu0 0
        %2123 = vmatprep.subr.bf16.mxu0 0
        %2124 = vmatpush1.bf16.xpose.msra.mxu0 0
        %2125 = vmatprep.subr.bf16.mxu0 0
        %2126 = vmatpush1.bf16.xpose.msra.mxu0 0
        %2127 = vmatprep.subr.bf16.mxu0 0
        %2128 = vmatpush1.bf16.xpose.msra.mxu0 0
        %2129 = vmatprep.subr.bf16.mxu0 0
        %2130 = vmatpush1.bf16.xpose.msra.mxu0 0
        %2131 = vmatprep.subr.bf16.mxu0 0
        %2132 = vmatpush1.bf16.xpose.msra.mxu0 0
        %2133 = vmatprep.subr.bf16.mxu0 0
        %2134 = vmatpush1.bf16.xpose.msra.mxu0 0
        %2135 = vmatprep.subr.bf16.mxu0 0
        %2136 = vmatpush1.bf16.xpose.msra.mxu0 0
        %2137 = vmatprep.subr.bf16.mxu0 0
        %2138 = vmatpush1.bf16.xpose.msra.mxu0 0
        %2139 = vmatprep.subr.bf16.mxu0 0
        %2140 = vmatpush1.bf16.xpose.msra.mxu0 0
        %2141 = vmatprep.subr.bf16.mxu0 0
        %2142 = vmatpush1.bf16.xpose.msra.mxu0 0
        %2143 = vmatprep.subr.bf16.mxu0 0
        %2144 = vmatpush1.bf16.xpose.msra.mxu0 0
        %2145 = vmatprep.mubr.bf16.mxu0 0
        %2146 = vmatmul.mubr.bf16.gmra.mrb[0].mxu0 %v2108
        %v2147 = vpop.f32.mrb[0].mxu0
        %v2148 = vadd.f32 0.0, %v2147
        %v2149 = vpop.f32.mrb[0].mxu0
        %v2150 = vpop.f32.mrb[0].mxu0
        %v2151 = vadd.f32 0.0, %v2150
        %v2152 = vpop.f32.mrb[0].mxu0
        %2153 = vdwg.mxu0
        %vm2154 = vcmask 130048
        %v2155 = vsel %vm2154, %v2148, -inf
        %2156 = vmax.xlane.f32.xlu0 %v2155
        %v2157 = vpop.xlane.xlu0 %2156
        %v2158 = vsel %vm2154, %v2151, -inf
        %2159 = vmax.xlane.f32.xlu0 %v2158
        %v2160 = vpop.xlane.xlu0 %2159
        %v2161 = vsub.f32 %v2148, %v2157
        %v2162 = vsub.f32 %v2151, %v2160
        %v2163 = vmul.f32 %v2161, 1.442695
        %v2164 = vpow.pop %v2163
        %v2165 = vmul.f32 %v2162, 1.442695
        %v2166 = vpow.pop %v2165
        %v2167 = vsel %vm2154, %v2164, 0.0
        %2168 = vadd.xlane.f32.xlu0 %v2167
        %v2169 = vpop.xlane.xlu0 %2168
        %v2170 = vsel %vm2154, %v2166, 0.0
        %2171 = vadd.xlane.f32.xlu0 %v2170
        %v2172 = vpop.xlane.xlu0 %2171
        %v2173 = vrcp.pop %v2169
        %v2174 = vrcp.pop %v2172
        %v2175 = vmul.f32 %v2164, %v2173
        %v2176 = vmul.f32 %v2166, %v2174
        %v2177 = vpack.c.bf16 %v2176, %v2175
        %2178 = vrot.lane.b32.xlu0 %v2102, 64
        %v2179 = vpop.permute.xlu0 %2178
        %v2182 = vsel %vm2154, %v2177, 0
        %2184 = vmatprep.subr.bf16.mxu0 0
        %2185 = vmatpush1.bf16.msra.mxu0 %v2179
        %2186 = vmatprep.subr.bf16.mxu0 0
        %2187 = vmatpush1.bf16.msra.mxu0 0
        %2188 = vmatprep.subr.bf16.mxu0 0
        %2189 = vmatpush1.bf16.msra.mxu0 0
        %2190 = vmatprep.subr.bf16.mxu0 0
        %2191 = vmatpush1.bf16.msra.mxu0 0
        %2192 = vmatprep.subr.bf16.mxu0 0
        %2193 = vmatpush1.bf16.msra.mxu0 0
        %2194 = vmatprep.subr.bf16.mxu0 0
        %2195 = vmatpush1.bf16.msra.mxu0 0
        %2196 = vmatprep.subr.bf16.mxu0 0
        %2197 = vmatpush1.bf16.msra.mxu0 0
        %2198 = vmatprep.subr.bf16.mxu0 0
        %2199 = vmatpush1.bf16.msra.mxu0 0
        %2200 = vmatprep.subr.bf16.mxu0 0
        %2201 = vmatpush1.bf16.msra.mxu0 0
        %2202 = vmatprep.subr.bf16.mxu0 0
        %2203 = vmatpush1.bf16.msra.mxu0 0
        %2204 = vmatprep.subr.bf16.mxu0 0
        %2205 = vmatpush1.bf16.msra.mxu0 0
        %2206 = vmatprep.subr.bf16.mxu0 0
        %2207 = vmatpush1.bf16.msra.mxu0 0
        %2208 = vmatprep.subr.bf16.mxu0 0
        %2209 = vmatpush1.bf16.msra.mxu0 0
        %2210 = vmatprep.subr.bf16.mxu0 0
        %2211 = vmatpush1.bf16.msra.mxu0 0
        %2212 = vmatprep.subr.bf16.mxu0 0
        %2213 = vmatpush1.bf16.msra.mxu0 0
        %2214 = vmatprep.subr.bf16.mxu0 0
        %2215 = vmatpush1.bf16.msra.mxu0 0
        %2216 = vmatprep.mubr.bf16.mxu0 0
        %2217 = vmatmul.mubr.bf16.gmra.mrb[0].mxu0 %v2182
        %v2218 = vpop.f32.mrb[0].mxu0
        %v2219 = vadd.f32 0.0, %v2218
        %v2220 = vpop.f32.mrb[0].mxu0
        %v2221 = vpop.f32.mrb[0].mxu0
        %v2222 = vadd.f32 0.0, %v2221
        %v2223 = vpop.f32.mrb[0].mxu0
        %2224 = vdwg.mxu0
        %v2225 = vpack.c.bf16 %v2222, %v2219
        %2227 = vrot.lane.b32.xlu0 %v2101, 120
        %v2228 = vpop.permute.xlu0 %2227
        %2229 = vrot.lane.b32.xlu0 %v2102, 88
        %v2230 = vpop.permute.xlu0 %2229
        %v2232 = vsel %vm2106, %v2228, 0
        %v2235 = vsel %vm2106, %v2230, 0
        %2237 = vmatprep.subr.bf16.mxu0 0
        %2238 = vmatpush1.bf16.xpose.msra.mxu0 %v2235
        %2239 = vmatprep.subr.bf16.mxu0 0
        %2240 = vmatpush1.bf16.xpose.msra.mxu0 0
        %2241 = vmatprep.subr.bf16.mxu0 0
        %2242 = vmatpush1.bf16.xpose.msra.mxu0 0
        %2243 = vmatprep.subr.bf16.mxu0 0
        %2244 = vmatpush1.bf16.xpose.msra.mxu0 0
        %2245 = vmatprep.subr.bf16.mxu0 0
        %2246 = vmatpush1.bf16.xpose.msra.mxu0 0
        %2247 = vmatprep.subr.bf16.mxu0 0
        %2248 = vmatpush1.bf16.xpose.msra.mxu0 0
        %2249 = vmatprep.subr.bf16.mxu0 0
        %2250 = vmatpush1.bf16.xpose.msra.mxu0 0
        %2251 = vmatprep.subr.bf16.mxu0 0
        %2252 = vmatpush1.bf16.xpose.msra.mxu0 0
        %2253 = vmatprep.subr.bf16.mxu0 0
        %2254 = vmatpush1.bf16.xpose.msra.mxu0 0
        %2255 = vmatprep.subr.bf16.mxu0 0
        %2256 = vmatpush1.bf16.xpose.msra.mxu0 0
        %2257 = vmatprep.subr.bf16.mxu0 0
        %2258 = vmatpush1.bf16.xpose.msra.mxu0 0
        %2259 = vmatprep.subr.bf16.mxu0 0
        %2260 = vmatpush1.bf16.xpose.msra.mxu0 0
        %2261 = vmatprep.subr.bf16.mxu0 0
        %2262 = vmatpush1.bf16.xpose.msra.mxu0 0
        %2263 = vmatprep.subr.bf16.mxu0 0
        %2264 = vmatpush1.bf16.xpose.msra.mxu0 0
        %2265 = vmatprep.subr.bf16.mxu0 0
        %2266 = vmatpush1.bf16.xpose.msra.mxu0 0
        %2267 = vmatprep.subr.bf16.mxu0 0
        %2268 = vmatpush1.bf16.xpose.msra.mxu0 0
        %2269 = vmatprep.mubr.bf16.mxu0 0
        %2270 = vmatmul.mubr.bf16.gmra.mrb[0].mxu0 %v2232
        %v2271 = vpop.f32.mrb[0].mxu0
        %v2272 = vadd.f32 0.0, %v2271
        %v2273 = vpop.f32.mrb[0].mxu0
        %v2274 = vpop.f32.mrb[0].mxu0
        %v2275 = vadd.f32 0.0, %v2274
        %v2276 = vpop.f32.mrb[0].mxu0
        %2277 = vdwg.mxu0
        %v2278 = vsel %vm2154, %v2272, -inf
        %2279 = vmax.xlane.f32.xlu0 %v2278
        %v2280 = vpop.xlane.xlu0 %2279
        %v2281 = vsel %vm2154, %v2275, -inf
        %2282 = vmax.xlane.f32.xlu0 %v2281
        %v2283 = vpop.xlane.xlu0 %2282
        %v2284 = vsub.f32 %v2272, %v2280
        %v2285 = vsub.f32 %v2275, %v2283
        %v2286 = vmul.f32 %v2284, 1.442695
        %v2287 = vpow.pop %v2286
        %v2288 = vmul.f32 %v2285, 1.442695
        %v2289 = vpow.pop %v2288
        %v2290 = vsel %vm2154, %v2287, 0.0
        %2291 = vadd.xlane.f32.xlu0 %v2290
        %v2292 = vpop.xlane.xlu0 %2291
        %v2293 = vsel %vm2154, %v2289, 0.0
        %2294 = vadd.xlane.f32.xlu0 %v2293
        %v2295 = vpop.xlane.xlu0 %2294
        %v2296 = vrcp.pop %v2292
        %v2297 = vrcp.pop %v2295
        %v2298 = vmul.f32 %v2287, %v2296
        %v2299 = vmul.f32 %v2289, %v2297
        %v2300 = vpack.c.bf16 %v2299, %v2298
        %2301 = vrot.lane.b32.xlu0 %v2102, 56
        %v2302 = vpop.permute.xlu0 %2301
        %v2305 = vsel %vm2154, %v2300, 0
        %2307 = vmatprep.subr.bf16.mxu0 0
        %2308 = vmatpush1.bf16.msra.mxu0 %v2302
        %2309 = vmatprep.subr.bf16.mxu0 0
        %2310 = vmatpush1.bf16.msra.mxu0 0
        %2311 = vmatprep.subr.bf16.mxu0 0
        %2312 = vmatpush1.bf16.msra.mxu0 0
        %2313 = vmatprep.subr.bf16.mxu0 0
        %2314 = vmatpush1.bf16.msra.mxu0 0
        %2315 = vmatprep.subr.bf16.mxu0 0
        %2316 = vmatpush1.bf16.msra.mxu0 0
        %2317 = vmatprep.subr.bf16.mxu0 0
        %2318 = vmatpush1.bf16.msra.mxu0 0
        %2319 = vmatprep.subr.bf16.mxu0 0
        %2320 = vmatpush1.bf16.msra.mxu0 0
        %2321 = vmatprep.subr.bf16.mxu0 0
        %2322 = vmatpush1.bf16.msra.mxu0 0
        %2323 = vmatprep.subr.bf16.mxu0 0
        %2324 = vmatpush1.bf16.msra.mxu0 0
        %2325 = vmatprep.subr.bf16.mxu0 0
        %2326 = vmatpush1.bf16.msra.mxu0 0
        %2327 = vmatprep.subr.bf16.mxu0 0
        %2328 = vmatpush1.bf16.msra.mxu0 0
        %2329 = vmatprep.subr.bf16.mxu0 0
        %2330 = vmatpush1.bf16.msra.mxu0 0
        %2331 = vmatprep.subr.bf16.mxu0 0
        %2332 = vmatpush1.bf16.msra.mxu0 0
        %2333 = vmatprep.subr.bf16.mxu0 0
        %2334 = vmatpush1.bf16.msra.mxu0 0
        %2335 = vmatprep.subr.bf16.mxu0 0
        %2336 = vmatpush1.bf16.msra.mxu0 0
        %2337 = vmatprep.subr.bf16.mxu0 0
        %2338 = vmatpush1.bf16.msra.mxu0 0
        %2339 = vmatprep.mubr.bf16.mxu0 0
        %2340 = vmatmul.mubr.bf16.gmra.mrb[0].mxu0 %v2305
        %v2341 = vpop.f32.mrb[0].mxu0
        %v2342 = vadd.f32 0.0, %v2341
        %v2343 = vpop.f32.mrb[0].mxu0
        %v2344 = vpop.f32.mrb[0].mxu0
        %v2345 = vadd.f32 0.0, %v2344
        %v2346 = vpop.f32.mrb[0].mxu0
        %2347 = vdwg.mxu0
        %v2348 = vpack.c.bf16 %v2345, %v2342
        %v2350 = vsel %vm2106, %v2348, 0
        %vm2352 = vcmask 1043456
        %v2354 = vsel %vm2352, %v2096, 0
        %2356 = vmatprep.subr.bf16.mxu0 0
        %2357 = vmatpush1.bf16.msra.mxu0 %v2354
        %2358 = vmatprep.subr.bf16.mxu0 0
        %2359 = vmatpush1.bf16.msra.mxu0 0
        %2360 = vmatprep.subr.bf16.mxu0 0
        %2361 = vmatpush1.bf16.msra.mxu0 0
        %2362 = vmatprep.subr.bf16.mxu0 0
        %2363 = vmatpush1.bf16.msra.mxu0 0
        %2364 = vmatprep.subr.bf16.mxu0 0
        %2365 = vmatpush1.bf16.msra.mxu0 0
        %2366 = vmatprep.subr.bf16.mxu0 0
        %2367 = vmatpush1.bf16.msra.mxu0 0
        %2368 = vmatprep.subr.bf16.mxu0 0
        %2369 = vmatpush1.bf16.msra.mxu0 0
        %2370 = vmatprep.subr.bf16.mxu0 0
        %2371 = vmatpush1.bf16.msra.mxu0 0
        %2372 = vmatprep.subr.bf16.mxu0 0
        %2373 = vmatpush1.bf16.msra.mxu0 0
        %2374 = vmatprep.subr.bf16.mxu0 0
        %2375 = vmatpush1.bf16.msra.mxu0 0
        %2376 = vmatprep.subr.bf16.mxu0 0
        %2377 = vmatpush1.bf16.msra.mxu0 0
        %2378 = vmatprep.subr.bf16.mxu0 0
        %2379 = vmatpush1.bf16.msra.mxu0 0
        %2380 = vmatprep.subr.bf16.mxu0 0
        %2381 = vmatpush1.bf16.msra.mxu0 0
        %2382 = vmatprep.subr.bf16.mxu0 0
        %2383 = vmatpush1.bf16.msra.mxu0 0
        %2384 = vmatprep.subr.bf16.mxu0 0
        %2385 = vmatpush1.bf16.msra.mxu0 0
        %2386 = vmatprep.subr.bf16.mxu0 0
        %2387 = vmatpush1.bf16.msra.mxu0 0
        %2388 = vmatprep.mubr.bf16.mxu0 0
        %2389 = vmatmul.mubr.bf16.gmra.mrb[0].mxu0 %v2350
        %v2390 = vpop.f32.mrb[0].mxu0
        %v2391 = vadd.f32 0.0, %v2390
        %v2392 = vpop.f32.mrb[0].mxu0
        %v2393 = vpop.f32.mrb[0].mxu0
        %v2394 = vadd.f32 0.0, %v2393
        %v2395 = vpop.f32.mrb[0].mxu0
        %2396 = vdwg.mxu0
        %v2398 = vsel %vm2106, %v2225, 0
        %v2401 = vsel %vm2352, %v2095, 0
        %2403 = vmatprep.subr.bf16.mxu0 0
        %2404 = vmatpush1.bf16.msra.mxu0 %v2401
        %2405 = vmatprep.subr.bf16.mxu0 0
        %2406 = vmatpush1.bf16.msra.mxu0 0
        %2407 = vmatprep.subr.bf16.mxu0 0
        %2408 = vmatpush1.bf16.msra.mxu0 0
        %2409 = vmatprep.subr.bf16.mxu0 0
        %2410 = vmatpush1.bf16.msra.mxu0 0
        %2411 = vmatprep.subr.bf16.mxu0 0
        %2412 = vmatpush1.bf16.msra.mxu0 0
        %2413 = vmatprep.subr.bf16.mxu0 0
        %2414 = vmatpush1.bf16.msra.mxu0 0
        %2415 = vmatprep.subr.bf16.mxu0 0
        %2416 = vmatpush1.bf16.msra.mxu0 0
        %2417 = vmatprep.subr.bf16.mxu0 0
        %2418 = vmatpush1.bf16.msra.mxu0 0
        %2419 = vmatprep.subr.bf16.mxu0 0
        %2420 = vmatpush1.bf16.msra.mxu0 0
        %2421 = vmatprep.subr.bf16.mxu0 0
        %2422 = vmatpush1.bf16.msra.mxu0 0
        %2423 = vmatprep.subr.bf16.mxu0 0
        %2424 = vmatpush1.bf16.msra.mxu0 0
        %2425 = vmatprep.subr.bf16.mxu0 0
        %2426 = vmatpush1.bf16.msra.mxu0 0
        %2427 = vmatprep.subr.bf16.mxu0 0
        %2428 = vmatpush1.bf16.msra.mxu0 0
        %2429 = vmatprep.subr.bf16.mxu0 0
        %2430 = vmatpush1.bf16.msra.mxu0 0
        %2431 = vmatprep.subr.bf16.mxu0 0
        %2432 = vmatpush1.bf16.msra.mxu0 0
        %2433 = vmatprep.subr.bf16.mxu0 0
        %2434 = vmatpush1.bf16.msra.mxu0 0
        %2435 = vmatprep.mubr.bf16.mxu0 0
        %2436 = vmatmul.mubr.bf16.gmra.mrb[0].mxu0 %v2398
        %v2437 = vpop.f32.mrb[0].mxu0
        %v2438 = vadd.f32 %v2391, %v2437
        %v2439 = vpop.f32.mrb[0].mxu0
        %v2440 = vpop.f32.mrb[0].mxu0
        %v2441 = vadd.f32 %v2394, %v2440
        %v2442 = vpop.f32.mrb[0].mxu0
        %2443 = vdwg.mxu0
        %2444 = vrot.lane.b32.xlu0 %v2101, 112
        %v2445 = vpop.permute.xlu0 %2444
        %2446 = vrot.lane.b32.xlu0 %v2102, 80
        %v2447 = vpop.permute.xlu0 %2446
        %v2449 = vsel %vm2106, %v2445, 0
        %v2452 = vsel %vm2106, %v2447, 0
        %2454 = vmatprep.subr.bf16.mxu0 0
        %2455 = vmatpush1.bf16.xpose.msra.mxu0 %v2452
        %2456 = vmatprep.subr.bf16.mxu0 0
        %2457 = vmatpush1.bf16.xpose.msra.mxu0 0
        %2458 = vmatprep.subr.bf16.mxu0 0
        %2459 = vmatpush1.bf16.xpose.msra.mxu0 0
        %2460 = vmatprep.subr.bf16.mxu0 0
        %2461 = vmatpush1.bf16.xpose.msra.mxu0 0
        %2462 = vmatprep.subr.bf16.mxu0 0
        %2463 = vmatpush1.bf16.xpose.msra.mxu0 0
        %2464 = vmatprep.subr.bf16.mxu0 0
        %2465 = vmatpush1.bf16.xpose.msra.mxu0 0
        %2466 = vmatprep.subr.bf16.mxu0 0
        %2467 = vmatpush1.bf16.xpose.msra.mxu0 0
        %2468 = vmatprep.subr.bf16.mxu0 0
        %2469 = vmatpush1.bf16.xpose.msra.mxu0 0
        %2470 = vmatprep.subr.bf16.mxu0 0
        %2471 = vmatpush1.bf16.xpose.msra.mxu0 0
        %2472 = vmatprep.subr.bf16.mxu0 0
        %2473 = vmatpush1.bf16.xpose.msra.mxu0 0
        %2474 = vmatprep.subr.bf16.mxu0 0
        %2475 = vmatpush1.bf16.xpose.msra.mxu0 0
        %2476 = vmatprep.subr.bf16.mxu0 0
        %2477 = vmatpush1.bf16.xpose.msra.mxu0 0
        %2478 = vmatprep.subr.bf16.mxu0 0
        %2479 = vmatpush1.bf16.xpose.msra.mxu0 0
        %2480 = vmatprep.subr.bf16.mxu0 0
        %2481 = vmatpush1.bf16.xpose.msra.mxu0 0
        %2482 = vmatprep.subr.bf16.mxu0 0
        %2483 = vmatpush1.bf16.xpose.msra.mxu0 0
        %2484 = vmatprep.subr.bf16.mxu0 0
        %2485 = vmatpush1.bf16.xpose.msra.mxu0 0
        %2486 = vmatprep.mubr.bf16.mxu0 0
        %2487 = vmatmul.mubr.bf16.gmra.mrb[0].mxu0 %v2449
        %v2488 = vpop.f32.mrb[0].mxu0
        %v2489 = vadd.f32 0.0, %v2488
        %v2490 = vpop.f32.mrb[0].mxu0
        %v2491 = vpop.f32.mrb[0].mxu0
        %v2492 = vadd.f32 0.0, %v2491
        %v2493 = vpop.f32.mrb[0].mxu0
        %2494 = vdwg.mxu0
        %v2495 = vsel %vm2154, %v2489, -inf
        %2496 = vmax.xlane.f32.xlu0 %v2495
        %v2497 = vpop.xlane.xlu0 %2496
        %v2498 = vsel %vm2154, %v2492, -inf
        %2499 = vmax.xlane.f32.xlu0 %v2498
        %v2500 = vpop.xlane.xlu0 %2499
        %v2501 = vsub.f32 %v2489, %v2497
        %v2502 = vsub.f32 %v2492, %v2500
        %v2503 = vmul.f32 %v2501, 1.442695
        %v2504 = vpow.pop %v2503
        %v2505 = vmul.f32 %v2502, 1.442695
        %v2506 = vpow.pop %v2505
        %v2507 = vsel %vm2154, %v2504, 0.0
        %2508 = vadd.xlane.f32.xlu0 %v2507
        %v2509 = vpop.xlane.xlu0 %2508
        %v2510 = vsel %vm2154, %v2506, 0.0
        %2511 = vadd.xlane.f32.xlu0 %v2510
        %v2512 = vpop.xlane.xlu0 %2511
        %v2513 = vrcp.pop %v2509
        %v2514 = vrcp.pop %v2512
        %v2515 = vmul.f32 %v2504, %v2513
        %v2516 = vmul.f32 %v2506, %v2514
        %v2517 = vpack.c.bf16 %v2516, %v2515
        %2518 = vrot.lane.b32.xlu0 %v2102, 48
        %v2519 = vpop.permute.xlu0 %2518
        %v2522 = vsel %vm2154, %v2517, 0
        %2524 = vmatprep.subr.bf16.mxu0 0
        %2525 = vmatpush1.bf16.msra.mxu0 %v2519
        %2526 = vmatprep.subr.bf16.mxu0 0
        %2527 = vmatpush1.bf16.msra.mxu0 0
        %2528 = vmatprep.subr.bf16.mxu0 0
        %2529 = vmatpush1.bf16.msra.mxu0 0
        %2530 = vmatprep.subr.bf16.mxu0 0
        %2531 = vmatpush1.bf16.msra.mxu0 0
        %2532 = vmatprep.subr.bf16.mxu0 0
        %2533 = vmatpush1.bf16.msra.mxu0 0
        %2534 = vmatprep.subr.bf16.mxu0 0
        %2535 = vmatpush1.bf16.msra.mxu0 0
        %2536 = vmatprep.subr.bf16.mxu0 0
        %2537 = vmatpush1.bf16.msra.mxu0 0
        %2538 = vmatprep.subr.bf16.mxu0 0
        %2539 = vmatpush1.bf16.msra.mxu0 0
        %2540 = vmatprep.subr.bf16.mxu0 0
        %2541 = vmatpush1.bf16.msra.mxu0 0
        %2542 = vmatprep.subr.bf16.mxu0 0
        %2543 = vmatpush1.bf16.msra.mxu0 0
        %2544 = vmatprep.subr.bf16.mxu0 0
        %2545 = vmatpush1.bf16.msra.mxu0 0
        %2546 = vmatprep.subr.bf16.mxu0 0
        %2547 = vmatpush1.bf16.msra.mxu0 0
        %2548 = vmatprep.subr.bf16.mxu0 0
        %2549 = vmatpush1.bf16.msra.mxu0 0
        %2550 = vmatprep.subr.bf16.mxu0 0
        %2551 = vmatpush1.bf16.msra.mxu0 0
        %2552 = vmatprep.subr.bf16.mxu0 0
        %2553 = vmatpush1.bf16.msra.mxu0 0
        %2554 = vmatprep.subr.bf16.mxu0 0
        %2555 = vmatpush1.bf16.msra.mxu0 0
        %2556 = vmatprep.mubr.bf16.mxu0 0
        %2557 = vmatmul.mubr.bf16.gmra.mrb[0].mxu0 %v2522
        %v2558 = vpop.f32.mrb[0].mxu0
        %v2559 = vadd.f32 0.0, %v2558
        %v2560 = vpop.f32.mrb[0].mxu0
        %v2561 = vpop.f32.mrb[0].mxu0
        %v2562 = vadd.f32 0.0, %v2561
        %v2563 = vpop.f32.mrb[0].mxu0
        %2564 = vdwg.mxu0
        %v2565 = vpack.c.bf16 %v2562, %v2559
        %v2567 = vsel %vm2106, %v2565, 0
        %v2570 = vsel %vm2352, %v2097, 0
        %2572 = vmatprep.subr.bf16.mxu0 0
        %2573 = vmatpush1.bf16.msra.mxu0 %v2570
        %2574 = vmatprep.subr.bf16.mxu0 0
        %2575 = vmatpush1.bf16.msra.mxu0 0
        %2576 = vmatprep.subr.bf16.mxu0 0
        %2577 = vmatpush1.bf16.msra.mxu0 0
        %2578 = vmatprep.subr.bf16.mxu0 0
        %2579 = vmatpush1.bf16.msra.mxu0 0
        %2580 = vmatprep.subr.bf16.mxu0 0
        %2581 = vmatpush1.bf16.msra.mxu0 0
        %2582 = vmatprep.subr.bf16.mxu0 0
        %2583 = vmatpush1.bf16.msra.mxu0 0
        %2584 = vmatprep.subr.bf16.mxu0 0
        %2585 = vmatpush1.bf16.msra.mxu0 0
        %2586 = vmatprep.subr.bf16.mxu0 0
        %2587 = vmatpush1.bf16.msra.mxu0 0
        %2588 = vmatprep.subr.bf16.mxu0 0
        %2589 = vmatpush1.bf16.msra.mxu0 0
        %2590 = vmatprep.subr.bf16.mxu0 0
        %2591 = vmatpush1.bf16.msra.mxu0 0
        %2592 = vmatprep.subr.bf16.mxu0 0
        %2593 = vmatpush1.bf16.msra.mxu0 0
        %2594 = vmatprep.subr.bf16.mxu0 0
        %2595 = vmatpush1.bf16.msra.mxu0 0
        %2596 = vmatprep.subr.bf16.mxu0 0
        %2597 = vmatpush1.bf16.msra.mxu0 0
        %2598 = vmatprep.subr.bf16.mxu0 0
        %2599 = vmatpush1.bf16.msra.mxu0 0
        %2600 = vmatprep.subr.bf16.mxu0 0
        %2601 = vmatpush1.bf16.msra.mxu0 0
        %2602 = vmatprep.subr.bf16.mxu0 0
        %2603 = vmatpush1.bf16.msra.mxu0 0
        %2604 = vmatprep.mubr.bf16.mxu0 0
        %2605 = vmatmul.mubr.bf16.gmra.mrb[0].mxu0 %v2567
        %v2606 = vpop.f32.mrb[0].mxu0
        %v2607 = vadd.f32 0.0, %v2606
        %v2608 = vpop.f32.mrb[0].mxu0
        %v2609 = vpop.f32.mrb[0].mxu0
        %v2610 = vadd.f32 0.0, %v2609
        %v2611 = vpop.f32.mrb[0].mxu0
        %2612 = vdwg.mxu0
        %v2613 = vadd.f32 %v2438, %v2607
        %v2614 = vadd.f32 %v2441, %v2610
        %2615 = vrot.lane.b32.xlu0 %v2101, 104
        %v2616 = vpop.permute.xlu0 %2615
        %2617 = vrot.lane.b32.xlu0 %v2102, 72
        %v2618 = vpop.permute.xlu0 %2617
        %v2620 = vsel %vm2106, %v2616, 0
        %v2623 = vsel %vm2106, %v2618, 0
        %2625 = vmatprep.subr.bf16.mxu0 0
        %2626 = vmatpush1.bf16.xpose.msra.mxu0 %v2623
        %2627 = vmatprep.subr.bf16.mxu0 0
        %2628 = vmatpush1.bf16.xpose.msra.mxu0 0
        %2629 = vmatprep.subr.bf16.mxu0 0
        %2630 = vmatpush1.bf16.xpose.msra.mxu0 0
        %2631 = vmatprep.subr.bf16.mxu0 0
        %2632 = vmatpush1.bf16.xpose.msra.mxu0 0
        %2633 = vmatprep.subr.bf16.mxu0 0
        %2634 = vmatpush1.bf16.xpose.msra.mxu0 0
        %2635 = vmatprep.subr.bf16.mxu0 0
        %2636 = vmatpush1.bf16.xpose.msra.mxu0 0
        %2637 = vmatprep.subr.bf16.mxu0 0
        %2638 = vmatpush1.bf16.xpose.msra.mxu0 0
        %2639 = vmatprep.subr.bf16.mxu0 0
        %2640 = vmatpush1.bf16.xpose.msra.mxu0 0
        %2641 = vmatprep.subr.bf16.mxu0 0
        %2642 = vmatpush1.bf16.xpose.msra.mxu0 0
        %2643 = vmatprep.subr.bf16.mxu0 0
        %2644 = vmatpush1.bf16.xpose.msra.mxu0 0
        %2645 = vmatprep.subr.bf16.mxu0 0
        %2646 = vmatpush1.bf16.xpose.msra.mxu0 0
        %2647 = vmatprep.subr.bf16.mxu0 0
        %2648 = vmatpush1.bf16.xpose.msra.mxu0 0
        %2649 = vmatprep.subr.bf16.mxu0 0
        %2650 = vmatpush1.bf16.xpose.msra.mxu0 0
        %2651 = vmatprep.subr.bf16.mxu0 0
        %2652 = vmatpush1.bf16.xpose.msra.mxu0 0
        %2653 = vmatprep.subr.bf16.mxu0 0
        %2654 = vmatpush1.bf16.xpose.msra.mxu0 0
        %2655 = vmatprep.subr.bf16.mxu0 0
        %2656 = vmatpush1.bf16.xpose.msra.mxu0 0
        %2657 = vmatprep.mubr.bf16.mxu0 0
        %2658 = vmatmul.mubr.bf16.gmra.mrb[0].mxu0 %v2620
        %v2659 = vpop.f32.mrb[0].mxu0
        %v2660 = vadd.f32 0.0, %v2659
        %v2661 = vpop.f32.mrb[0].mxu0
        %v2662 = vpop.f32.mrb[0].mxu0
        %v2663 = vadd.f32 0.0, %v2662
        %v2664 = vpop.f32.mrb[0].mxu0
        %2665 = vdwg.mxu0
        %v2666 = vsel %vm2154, %v2660, -inf
        %2667 = vmax.xlane.f32.xlu0 %v2666
        %v2668 = vpop.xlane.xlu0 %2667
        %v2669 = vsel %vm2154, %v2663, -inf
        %2670 = vmax.xlane.f32.xlu0 %v2669
        %v2671 = vpop.xlane.xlu0 %2670
        %v2672 = vsub.f32 %v2660, %v2668
        %v2673 = vsub.f32 %v2663, %v2671
        %v2674 = vmul.f32 %v2672, 1.442695
        %v2675 = vpow.pop %v2674
        %v2676 = vmul.f32 %v2673, 1.442695
        %v2677 = vpow.pop %v2676
        %v2678 = vsel %vm2154, %v2675, 0.0
        %2679 = vadd.xlane.f32.xlu0 %v2678
        %v2680 = vpop.xlane.xlu0 %2679
        %v2681 = vsel %vm2154, %v2677, 0.0
        %2682 = vadd.xlane.f32.xlu0 %v2681
        %v2683 = vpop.xlane.xlu0 %2682
        %v2684 = vrcp.pop %v2680
        %v2685 = vrcp.pop %v2683
        %v2686 = vmul.f32 %v2675, %v2684
        %v2687 = vmul.f32 %v2677, %v2685
        %v2688 = vpack.c.bf16 %v2687, %v2686
        %2689 = vrot.lane.b32.xlu0 %v2102, 40
        %v2690 = vpop.permute.xlu0 %2689
        %v2693 = vsel %vm2154, %v2688, 0
        %2695 = vmatprep.subr.bf16.mxu0 0
        %2696 = vmatpush1.bf16.msra.mxu0 %v2690
        %2697 = vmatprep.subr.bf16.mxu0 0
        %2698 = vmatpush1.bf16.msra.mxu0 0
        %2699 = vmatprep.subr.bf16.mxu0 0
        %2700 = vmatpush1.bf16.msra.mxu0 0
        %2701 = vmatprep.subr.bf16.mxu0 0
        %2702 = vmatpush1.bf16.msra.mxu0 0
        %2703 = vmatprep.subr.bf16.mxu0 0
        %2704 = vmatpush1.bf16.msra.mxu0 0
        %2705 = vmatprep.subr.bf16.mxu0 0
        %2706 = vmatpush1.bf16.msra.mxu0 0
        %2707 = vmatprep.subr.bf16.mxu0 0
        %2708 = vmatpush1.bf16.msra.mxu0 0
        %2709 = vmatprep.subr.bf16.mxu0 0
        %2710 = vmatpush1.bf16.msra.mxu0 0
        %2711 = vmatprep.subr.bf16.mxu0 0
        %2712 = vmatpush1.bf16.msra.mxu0 0
        %2713 = vmatprep.subr.bf16.mxu0 0
        %2714 = vmatpush1.bf16.msra.mxu0 0
        %2715 = vmatprep.subr.bf16.mxu0 0
        %2716 = vmatpush1.bf16.msra.mxu0 0
        %2717 = vmatprep.subr.bf16.mxu0 0
        %2718 = vmatpush1.bf16.msra.mxu0 0
        %2719 = vmatprep.subr.bf16.mxu0 0
        %2720 = vmatpush1.bf16.msra.mxu0 0
        %2721 = vmatprep.subr.bf16.mxu0 0
        %2722 = vmatpush1.bf16.msra.mxu0 0
        %2723 = vmatprep.subr.bf16.mxu0 0
        %2724 = vmatpush1.bf16.msra.mxu0 0
        %2725 = vmatprep.subr.bf16.mxu0 0
        %2726 = vmatpush1.bf16.msra.mxu0 0
        %2727 = vmatprep.mubr.bf16.mxu0 0
        %2728 = vmatmul.mubr.bf16.gmra.mrb[0].mxu0 %v2693
        %v2729 = vpop.f32.mrb[0].mxu0
        %v2730 = vadd.f32 0.0, %v2729
        %v2731 = vpop.f32.mrb[0].mxu0
        %v2732 = vpop.f32.mrb[0].mxu0
        %v2733 = vadd.f32 0.0, %v2732
        %v2734 = vpop.f32.mrb[0].mxu0
        %2735 = vdwg.mxu0
        %v2736 = vpack.c.bf16 %v2733, %v2730
        %v2738 = vsel %vm2106, %v2736, 0
        %v2741 = vsel %vm2352, %v2098, 0
        %2743 = vmatprep.subr.bf16.mxu0 0
        %2744 = vmatpush1.bf16.msra.mxu0 %v2741
        %2745 = vmatprep.subr.bf16.mxu0 0
        %2746 = vmatpush1.bf16.msra.mxu0 0
        %2747 = vmatprep.subr.bf16.mxu0 0
        %2748 = vmatpush1.bf16.msra.mxu0 0
        %2749 = vmatprep.subr.bf16.mxu0 0
        %2750 = vmatpush1.bf16.msra.mxu0 0
        %2751 = vmatprep.subr.bf16.mxu0 0
        %2752 = vmatpush1.bf16.msra.mxu0 0
        %2753 = vmatprep.subr.bf16.mxu0 0
        %2754 = vmatpush1.bf16.msra.mxu0 0
        %2755 = vmatprep.subr.bf16.mxu0 0
        %2756 = vmatpush1.bf16.msra.mxu0 0
        %2757 = vmatprep.subr.bf16.mxu0 0
        %2758 = vmatpush1.bf16.msra.mxu0 0
        %2759 = vmatprep.subr.bf16.mxu0 0
        %2760 = vmatpush1.bf16.msra.mxu0 0
        %2761 = vmatprep.subr.bf16.mxu0 0
        %2762 = vmatpush1.bf16.msra.mxu0 0
        %2763 = vmatprep.subr.bf16.mxu0 0
        %2764 = vmatpush1.bf16.msra.mxu0 0
        %2765 = vmatprep.subr.bf16.mxu0 0
        %2766 = vmatpush1.bf16.msra.mxu0 0
        %2767 = vmatprep.subr.bf16.mxu0 0
        %2768 = vmatpush1.bf16.msra.mxu0 0
        %2769 = vmatprep.subr.bf16.mxu0 0
        %2770 = vmatpush1.bf16.msra.mxu0 0
        %2771 = vmatprep.subr.bf16.mxu0 0
        %2772 = vmatpush1.bf16.msra.mxu0 0
        %2773 = vmatprep.subr.bf16.mxu0 0
        %2774 = vmatpush1.bf16.msra.mxu0 0
        %2775 = vmatprep.mubr.bf16.mxu0 0
        %2776 = vmatmul.mubr.bf16.gmra.mrb[0].mxu0 %v2738
        %v2777 = vpop.f32.mrb[0].mxu0
        %v2778 = vadd.f32 0.0, %v2777
        %v2779 = vpop.f32.mrb[0].mxu0
        %v2780 = vpop.f32.mrb[0].mxu0
        %v2781 = vadd.f32 0.0, %v2780
        %v2782 = vpop.f32.mrb[0].mxu0
        %2783 = vdwg.mxu0
        %v2784 = vadd.f32 %v2613, %v2778
        %v2785 = vadd.f32 %v2614, %v2781
        %v2786 = vadd.f32 %v1935, %v2784
        %v2787 = vadd.f32 %v1936, %v2785
        %v2788 = vld [vmem:[%s1216] sm:$0x1]
        %v2790 = vlaneseq
        %v2791 = vshrl.u32 %v2790, 7
        %v2792 = vsub.s32 0, %v2791
        %v2793 = vrot.slane %v2788, %v2792
        %v2795 = vadd.f32 %v2786, %v2793
        %v2796 = vadd.f32 %v2787, %v2793
        %2797 = vst.msk [vmem:[#allocation2] sm:$0xff] %vm1941, %v2795
        %2798 = vst.msk [vmem:[#allocation2 + $0x8] sm:$0xff] %vm1941, %v2796
        %v2799 = vmul.f32 %v2089, 0.35355338
        %v2800 = vmul.f32 %v2092, 0.35355338
        %v2801 = vpack.c.bf16 %v2800, %v2799
        %v2802 = vpack.c.bf16 %v2092, %v2089
        %2804 = vrot.lane.b32.xlu0 %v2802, 96
        %v2805 = vpop.permute.xlu0 %2804
        %v2807 = vsel %vm2106, %v2801, 0
        %v2810 = vsel %vm2106, %v2805, 0
        %2812 = vmatprep.subr.bf16.mxu0 0
        %2813 = vmatpush1.bf16.xpose.msra.mxu0 %v2810
        %2814 = vmatprep.subr.bf16.mxu0 0
        %2815 = vmatpush1.bf16.xpose.msra.mxu0 0
        %2816 = vmatprep.subr.bf16.mxu0 0
        %2817 = vmatpush1.bf16.xpose.msra.mxu0 0
        %2818 = vmatprep.subr.bf16.mxu0 0
        %2819 = vmatpush1.bf16.xpose.msra.mxu0 0
        %2820 = vmatprep.subr.bf16.mxu0 0
        %2821 = vmatpush1.bf16.xpose.msra.mxu0 0
        %2822 = vmatprep.subr.bf16.mxu0 0
        %2823 = vmatpush1.bf16.xpose.msra.mxu0 0
        %2824 = vmatprep.subr.bf16.mxu0 0
        %2825 = vmatpush1.bf16.xpose.msra.mxu0 0
        %2826 = vmatprep.subr.bf16.mxu0 0
        %2827 = vmatpush1.bf16.xpose.msra.mxu0 0
        %2828 = vmatprep.subr.bf16.mxu0 0
        %2829 = vmatpush1.bf16.xpose.msra.mxu0 0
        %2830 = vmatprep.subr.bf16.mxu0 0
        %2831 = vmatpush1.bf16.xpose.msra.mxu0 0
        %2832 = vmatprep.subr.bf16.mxu0 0
        %2833 = vmatpush1.bf16.xpose.msra.mxu0 0
        %2834 = vmatprep.subr.bf16.mxu0 0
        %2835 = vmatpush1.bf16.xpose.msra.mxu0 0
        %2836 = vmatprep.subr.bf16.mxu0 0
        %2837 = vmatpush1.bf16.xpose.msra.mxu0 0
        %2838 = vmatprep.subr.bf16.mxu0 0
        %2839 = vmatpush1.bf16.xpose.msra.mxu0 0
        %2840 = vmatprep.subr.bf16.mxu0 0
        %2841 = vmatpush1.bf16.xpose.msra.mxu0 0
        %2842 = vmatprep.subr.bf16.mxu0 0
        %2843 = vmatpush1.bf16.xpose.msra.mxu0 0
        %2844 = vmatprep.mubr.bf16.mxu0 0
        %2845 = vmatmul.mubr.bf16.gmra.mrb[0].mxu0 %v2807
        %v2846 = vpop.f32.mrb[0].mxu0
        %v2847 = vadd.f32 0.0, %v2846
        %v2848 = vpop.f32.mrb[0].mxu0
        %v2849 = vpop.f32.mrb[0].mxu0
        %v2850 = vadd.f32 0.0, %v2849
        %v2851 = vpop.f32.mrb[0].mxu0
        %2852 = vdwg.mxu0
        %v2853 = vsel %vm2154, %v2847, -inf
        %2854 = vmax.xlane.f32.xlu0 %v2853
        %v2855 = vpop.xlane.xlu0 %2854
        %v2856 = vsel %vm2154, %v2850, -inf
        %2857 = vmax.xlane.f32.xlu0 %v2856
        %v2858 = vpop.xlane.xlu0 %2857
        %v2859 = vsub.f32 %v2847, %v2855
        %v2860 = vsub.f32 %v2850, %v2858
        %v2861 = vmul.f32 %v2859, 1.442695
        %v2862 = vpow.pop %v2861
        %v2863 = vmul.f32 %v2860, 1.442695
        %v2864 = vpow.pop %v2863
        %v2865 = vsel %vm2154, %v2862, 0.0
        %2866 = vadd.xlane.f32.xlu0 %v2865
        %v2867 = vpop.xlane.xlu0 %2866
        %v2868 = vsel %vm2154, %v2864, 0.0
        %2869 = vadd.xlane.f32.xlu0 %v2868
        %v2870 = vpop.xlane.xlu0 %2869
        %v2871 = vrcp.pop %v2867
        %v2872 = vrcp.pop %v2870
        %v2873 = vmul.f32 %v2862, %v2871
        %v2874 = vmul.f32 %v2864, %v2872
        %v2875 = vpack.c.bf16 %v2874, %v2873
        %2876 = vrot.lane.b32.xlu0 %v2802, 64
        %v2877 = vpop.permute.xlu0 %2876
        %v2880 = vsel %vm2154, %v2875, 0
        %2882 = vmatprep.subr.bf16.mxu0 0
        %2883 = vmatpush1.bf16.msra.mxu0 %v2877
        %2884 = vmatprep.subr.bf16.mxu0 0
        %2885 = vmatpush1.bf16.msra.mxu0 0
        %2886 = vmatprep.subr.bf16.mxu0 0
        %2887 = vmatpush1.bf16.msra.mxu0 0
        %2888 = vmatprep.subr.bf16.mxu0 0
        %2889 = vmatpush1.bf16.msra.mxu0 0
        %2890 = vmatprep.subr.bf16.mxu0 0
        %2891 = vmatpush1.bf16.msra.mxu0 0
        %2892 = vmatprep.subr.bf16.mxu0 0
        %2893 = vmatpush1.bf16.msra.mxu0 0
        %2894 = vmatprep.subr.bf16.mxu0 0
        %2895 = vmatpush1.bf16.msra.mxu0 0
        %2896 = vmatprep.subr.bf16.mxu0 0
        %2897 = vmatpush1.bf16.msra.mxu0 0
        %2898 = vmatprep.subr.bf16.mxu0 0
        %2899 = vmatpush1.bf16.msra.mxu0 0
        %2900 = vmatprep.subr.bf16.mxu0 0
        %2901 = vmatpush1.bf16.msra.mxu0 0
        %2902 = vmatprep.subr.bf16.mxu0 0
        %2903 = vmatpush1.bf16.msra.mxu0 0
        %2904 = vmatprep.subr.bf16.mxu0 0
        %2905 = vmatpush1.bf16.msra.mxu0 0
        %2906 = vmatprep.subr.bf16.mxu0 0
        %2907 = vmatpush1.bf16.msra.mxu0 0
        %2908 = vmatprep.subr.bf16.mxu0 0
        %2909 = vmatpush1.bf16.msra.mxu0 0
        %2910 = vmatprep.subr.bf16.mxu0 0
        %2911 = vmatpush1.bf16.msra.mxu0 0
        %2912 = vmatprep.subr.bf16.mxu0 0
        %2913 = vmatpush1.bf16.msra.mxu0 0
        %2914 = vmatprep.mubr.bf16.mxu0 0
        %2915 = vmatmul.mubr.bf16.gmra.mrb[0].mxu0 %v2880
        %v2916 = vpop.f32.mrb[0].mxu0
        %v2917 = vadd.f32 0.0, %v2916
        %v2918 = vpop.f32.mrb[0].mxu0
        %v2919 = vpop.f32.mrb[0].mxu0
        %v2920 = vadd.f32 0.0, %v2919
        %v2921 = vpop.f32.mrb[0].mxu0
        %2922 = vdwg.mxu0
        %v2923 = vpack.c.bf16 %v2920, %v2917
        %2925 = vrot.lane.b32.xlu0 %v2801, 120
        %v2926 = vpop.permute.xlu0 %2925
        %2927 = vrot.lane.b32.xlu0 %v2802, 88
        %v2928 = vpop.permute.xlu0 %2927
        %v2930 = vsel %vm2106, %v2926, 0
        %v2933 = vsel %vm2106, %v2928, 0
        %2935 = vmatprep.subr.bf16.mxu0 0
        %2936 = vmatpush1.bf16.xpose.msra.mxu0 %v2933
        %2937 = vmatprep.subr.bf16.mxu0 0
        %2938 = vmatpush1.bf16.xpose.msra.mxu0 0
        %2939 = vmatprep.subr.bf16.mxu0 0
        %2940 = vmatpush1.bf16.xpose.msra.mxu0 0
        %2941 = vmatprep.subr.bf16.mxu0 0
        %2942 = vmatpush1.bf16.xpose.msra.mxu0 0
        %2943 = vmatprep.subr.bf16.mxu0 0
        %2944 = vmatpush1.bf16.xpose.msra.mxu0 0
        %2945 = vmatprep.subr.bf16.mxu0 0
        %2946 = vmatpush1.bf16.xpose.msra.mxu0 0
        %2947 = vmatprep.subr.bf16.mxu0 0
        %2948 = vmatpush1.bf16.xpose.msra.mxu0 0
        %2949 = vmatprep.subr.bf16.mxu0 0
        %2950 = vmatpush1.bf16.xpose.msra.mxu0 0
        %2951 = vmatprep.subr.bf16.mxu0 0
        %2952 = vmatpush1.bf16.xpose.msra.mxu0 0
        %2953 = vmatprep.subr.bf16.mxu0 0
        %2954 = vmatpush1.bf16.xpose.msra.mxu0 0
        %2955 = vmatprep.subr.bf16.mxu0 0
        %2956 = vmatpush1.bf16.xpose.msra.mxu0 0
        %2957 = vmatprep.subr.bf16.mxu0 0
        %2958 = vmatpush1.bf16.xpose.msra.mxu0 0
        %2959 = vmatprep.subr.bf16.mxu0 0
        %2960 = vmatpush1.bf16.xpose.msra.mxu0 0
        %2961 = vmatprep.subr.bf16.mxu0 0
        %2962 = vmatpush1.bf16.xpose.msra.mxu0 0
        %2963 = vmatprep.subr.bf16.mxu0 0
        %2964 = vmatpush1.bf16.xpose.msra.mxu0 0
        %2965 = vmatprep.subr.bf16.mxu0 0
        %2966 = vmatpush1.bf16.xpose.msra.mxu0 0
        %2967 = vmatprep.mubr.bf16.mxu0 0
        %2968 = vmatmul.mubr.bf16.gmra.mrb[0].mxu0 %v2930
        %v2969 = vpop.f32.mrb[0].mxu0
        %v2970 = vadd.f32 0.0, %v2969
        %v2971 = vpop.f32.mrb[0].mxu0
        %v2972 = vpop.f32.mrb[0].mxu0
        %v2973 = vadd.f32 0.0, %v2972
        %v2974 = vpop.f32.mrb[0].mxu0
        %2975 = vdwg.mxu0
        %v2976 = vsel %vm2154, %v2970, -inf
        %2977 = vmax.xlane.f32.xlu0 %v2976
        %v2978 = vpop.xlane.xlu0 %2977
        %v2979 = vsel %vm2154, %v2973, -inf
        %2980 = vmax.xlane.f32.xlu0 %v2979
        %v2981 = vpop.xlane.xlu0 %2980
        %v2982 = vsub.f32 %v2970, %v2978
        %v2983 = vsub.f32 %v2973, %v2981
        %v2984 = vmul.f32 %v2982, 1.442695
        %v2985 = vpow.pop %v2984
        %v2986 = vmul.f32 %v2983, 1.442695
        %v2987 = vpow.pop %v2986
        %v2988 = vsel %vm2154, %v2985, 0.0
        %2989 = vadd.xlane.f32.xlu0 %v2988
        %v2990 = vpop.xlane.xlu0 %2989
        %v2991 = vsel %vm2154, %v2987, 0.0
        %2992 = vadd.xlane.f32.xlu0 %v2991
        %v2993 = vpop.xlane.xlu0 %2992
        %v2994 = vrcp.pop %v2990
        %v2995 = vrcp.pop %v2993
        %v2996 = vmul.f32 %v2985, %v2994
        %v2997 = vmul.f32 %v2987, %v2995
        %v2998 = vpack.c.bf16 %v2997, %v2996
        %2999 = vrot.lane.b32.xlu0 %v2802, 56
        %v3000 = vpop.permute.xlu0 %2999
        %v3003 = vsel %vm2154, %v2998, 0
        %3005 = vmatprep.subr.bf16.mxu0 0
        %3006 = vmatpush1.bf16.msra.mxu0 %v3000
        %3007 = vmatprep.subr.bf16.mxu0 0
        %3008 = vmatpush1.bf16.msra.mxu0 0
        %3009 = vmatprep.subr.bf16.mxu0 0
        %3010 = vmatpush1.bf16.msra.mxu0 0
        %3011 = vmatprep.subr.bf16.mxu0 0
        %3012 = vmatpush1.bf16.msra.mxu0 0
        %3013 = vmatprep.subr.bf16.mxu0 0
        %3014 = vmatpush1.bf16.msra.mxu0 0
        %3015 = vmatprep.subr.bf16.mxu0 0
        %3016 = vmatpush1.bf16.msra.mxu0 0
        %3017 = vmatprep.subr.bf16.mxu0 0
        %3018 = vmatpush1.bf16.msra.mxu0 0
        %3019 = vmatprep.subr.bf16.mxu0 0
        %3020 = vmatpush1.bf16.msra.mxu0 0
        %3021 = vmatprep.subr.bf16.mxu0 0
        %3022 = vmatpush1.bf16.msra.mxu0 0
        %3023 = vmatprep.subr.bf16.mxu0 0
        %3024 = vmatpush1.bf16.msra.mxu0 0
        %3025 = vmatprep.subr.bf16.mxu0 0
        %3026 = vmatpush1.bf16.msra.mxu0 0
        %3027 = vmatprep.subr.bf16.mxu0 0
        %3028 = vmatpush1.bf16.msra.mxu0 0
        %3029 = vmatprep.subr.bf16.mxu0 0
        %3030 = vmatpush1.bf16.msra.mxu0 0
        %3031 = vmatprep.subr.bf16.mxu0 0
        %3032 = vmatpush1.bf16.msra.mxu0 0
        %3033 = vmatprep.subr.bf16.mxu0 0
        %3034 = vmatpush1.bf16.msra.mxu0 0
        %3035 = vmatprep.subr.bf16.mxu0 0
        %3036 = vmatpush1.bf16.msra.mxu0 0
        %3037 = vmatprep.mubr.bf16.mxu0 0
        %3038 = vmatmul.mubr.bf16.gmra.mrb[0].mxu0 %v3003
        %v3039 = vpop.f32.mrb[0].mxu0
        %v3040 = vadd.f32 0.0, %v3039
        %v3041 = vpop.f32.mrb[0].mxu0
        %v3042 = vpop.f32.mrb[0].mxu0
        %v3043 = vadd.f32 0.0, %v3042
        %v3044 = vpop.f32.mrb[0].mxu0
        %3045 = vdwg.mxu0
        %v3046 = vpack.c.bf16 %v3043, %v3040
        %v3048 = vsel %vm2106, %v3046, 0
        %3050 = vmatprep.subr.bf16.mxu0 0
        %3051 = vmatpush1.bf16.msra.mxu0 %v2354
        %3052 = vmatprep.subr.bf16.mxu0 0
        %3053 = vmatpush1.bf16.msra.mxu0 0
        %3054 = vmatprep.subr.bf16.mxu0 0
        %3055 = vmatpush1.bf16.msra.mxu0 0
        %3056 = vmatprep.subr.bf16.mxu0 0
        %3057 = vmatpush1.bf16.msra.mxu0 0
        %3058 = vmatprep.subr.bf16.mxu0 0
        %3059 = vmatpush1.bf16.msra.mxu0 0
        %3060 = vmatprep.subr.bf16.mxu0 0
        %3061 = vmatpush1.bf16.msra.mxu0 0
        %3062 = vmatprep.subr.bf16.mxu0 0
        %3063 = vmatpush1.bf16.msra.mxu0 0
        %3064 = vmatprep.subr.bf16.mxu0 0
        %3065 = vmatpush1.bf16.msra.mxu0 0
        %3066 = vmatprep.subr.bf16.mxu0 0
        %3067 = vmatpush1.bf16.msra.mxu0 0
        %3068 = vmatprep.subr.bf16.mxu0 0
        %3069 = vmatpush1.bf16.msra.mxu0 0
        %3070 = vmatprep.subr.bf16.mxu0 0
        %3071 = vmatpush1.bf16.msra.mxu0 0
        %3072 = vmatprep.subr.bf16.mxu0 0
        %3073 = vmatpush1.bf16.msra.mxu0 0
        %3074 = vmatprep.subr.bf16.mxu0 0
        %3075 = vmatpush1.bf16.msra.mxu0 0
        %3076 = vmatprep.subr.bf16.mxu0 0
        %3077 = vmatpush1.bf16.msra.mxu0 0
        %3078 = vmatprep.subr.bf16.mxu0 0
        %3079 = vmatpush1.bf16.msra.mxu0 0
        %3080 = vmatprep.subr.bf16.mxu0 0
        %3081 = vmatpush1.bf16.msra.mxu0 0
        %3082 = vmatprep.mubr.bf16.mxu0 0
        %3083 = vmatmul.mubr.bf16.gmra.mrb[0].mxu0 %v3048
        %v3084 = vpop.f32.mrb[0].mxu0
        %v3085 = vadd.f32 0.0, %v3084
        %v3086 = vpop.f32.mrb[0].mxu0
        %v3087 = vpop.f32.mrb[0].mxu0
        %v3088 = vadd.f32 0.0, %v3087
        %v3089 = vpop.f32.mrb[0].mxu0
        %3090 = vdwg.mxu0
        %v3092 = vsel %vm2106, %v2923, 0
        %3094 = vmatprep.subr.bf16.mxu0 0
        %3095 = vmatpush1.bf16.msra.mxu0 %v2401
        %3096 = vmatprep.subr.bf16.mxu0 0
        %3097 = vmatpush1.bf16.msra.mxu0 0
        %3098 = vmatprep.subr.bf16.mxu0 0
        %3099 = vmatpush1.bf16.msra.mxu0 0
        %3100 = vmatprep.subr.bf16.mxu0 0
        %3101 = vmatpush1.bf16.msra.mxu0 0
        %3102 = vmatprep.subr.bf16.mxu0 0
        %3103 = vmatpush1.bf16.msra.mxu0 0
        %3104 = vmatprep.subr.bf16.mxu0 0
        %3105 = vmatpush1.bf16.msra.mxu0 0
        %3106 = vmatprep.subr.bf16.mxu0 0
        %3107 = vmatpush1.bf16.msra.mxu0 0
        %3108 = vmatprep.subr.bf16.mxu0 0
        %3109 = vmatpush1.bf16.msra.mxu0 0
        %3110 = vmatprep.subr.bf16.mxu0 0
        %3111 = vmatpush1.bf16.msra.mxu0 0
        %3112 = vmatprep.subr.bf16.mxu0 0
        %3113 = vmatpush1.bf16.msra.mxu0 0
        %3114 = vmatprep.subr.bf16.mxu0 0
        %3115 = vmatpush1.bf16.msra.mxu0 0
        %3116 = vmatprep.subr.bf16.mxu0 0
        %3117 = vmatpush1.bf16.msra.mxu0 0
        %3118 = vmatprep.subr.bf16.mxu0 0
        %3119 = vmatpush1.bf16.msra.mxu0 0
        %3120 = vmatprep.subr.bf16.mxu0 0
        %3121 = vmatpush1.bf16.msra.mxu0 0
        %3122 = vmatprep.subr.bf16.mxu0 0
        %3123 = vmatpush1.bf16.msra.mxu0 0
        %3124 = vmatprep.subr.bf16.mxu0 0
        %3125 = vmatpush1.bf16.msra.mxu0 0
        %3126 = vmatprep.mubr.bf16.mxu0 0
        %3127 = vmatmul.mubr.bf16.gmra.mrb[0].mxu0 %v3092
        %v3128 = vpop.f32.mrb[0].mxu0
        %v3129 = vadd.f32 %v3085, %v3128
        %v3130 = vpop.f32.mrb[0].mxu0
        %v3131 = vpop.f32.mrb[0].mxu0
        %v3132 = vadd.f32 %v3088, %v3131
        %v3133 = vpop.f32.mrb[0].mxu0
        %3134 = vdwg.mxu0
        %3135 = vrot.lane.b32.xlu0 %v2801, 112
        %v3136 = vpop.permute.xlu0 %3135
        %3137 = vrot.lane.b32.xlu0 %v2802, 80
        %v3138 = vpop.permute.xlu0 %3137
        %v3140 = vsel %vm2106, %v3136, 0
        %v3143 = vsel %vm2106, %v3138, 0
        %3145 = vmatprep.subr.bf16.mxu0 0
        %3146 = vmatpush1.bf16.xpose.msra.mxu0 %v3143
        %3147 = vmatprep.subr.bf16.mxu0 0
        %3148 = vmatpush1.bf16.xpose.msra.mxu0 0
        %3149 = vmatprep.subr.bf16.mxu0 0
        %3150 = vmatpush1.bf16.xpose.msra.mxu0 0
        %3151 = vmatprep.subr.bf16.mxu0 0
        %3152 = vmatpush1.bf16.xpose.msra.mxu0 0
        %3153 = vmatprep.subr.bf16.mxu0 0
        %3154 = vmatpush1.bf16.xpose.msra.mxu0 0
        %3155 = vmatprep.subr.bf16.mxu0 0
        %3156 = vmatpush1.bf16.xpose.msra.mxu0 0
        %3157 = vmatprep.subr.bf16.mxu0 0
        %3158 = vmatpush1.bf16.xpose.msra.mxu0 0
        %3159 = vmatprep.subr.bf16.mxu0 0
        %3160 = vmatpush1.bf16.xpose.msra.mxu0 0
        %3161 = vmatprep.subr.bf16.mxu0 0
        %3162 = vmatpush1.bf16.xpose.msra.mxu0 0
        %3163 = vmatprep.subr.bf16.mxu0 0
        %3164 = vmatpush1.bf16.xpose.msra.mxu0 0
        %3165 = vmatprep.subr.bf16.mxu0 0
        %3166 = vmatpush1.bf16.xpose.msra.mxu0 0
        %3167 = vmatprep.subr.bf16.mxu0 0
        %3168 = vmatpush1.bf16.xpose.msra.mxu0 0
        %3169 = vmatprep.subr.bf16.mxu0 0
        %3170 = vmatpush1.bf16.xpose.msra.mxu0 0
        %3171 = vmatprep.subr.bf16.mxu0 0
        %3172 = vmatpush1.bf16.xpose.msra.mxu0 0
        %3173 = vmatprep.subr.bf16.mxu0 0
        %3174 = vmatpush1.bf16.xpose.msra.mxu0 0
        %3175 = vmatprep.subr.bf16.mxu0 0
        %3176 = vmatpush1.bf16.xpose.msra.mxu0 0
        %3177 = vmatprep.mubr.bf16.mxu0 0
        %3178 = vmatmul.mubr.bf16.gmra.mrb[0].mxu0 %v3140
        %v3179 = vpop.f32.mrb[0].mxu0
        %v3180 = vadd.f32 0.0, %v3179
        %v3181 = vpop.f32.mrb[0].mxu0
        %v3182 = vpop.f32.mrb[0].mxu0
        %v3183 = vadd.f32 0.0, %v3182
        %v3184 = vpop.f32.mrb[0].mxu0
        %3185 = vdwg.mxu0
        %v3186 = vsel %vm2154, %v3180, -inf
        %3187 = vmax.xlane.f32.xlu0 %v3186
        %v3188 = vpop.xlane.xlu0 %3187
        %v3189 = vsel %vm2154, %v3183, -inf
        %3190 = vmax.xlane.f32.xlu0 %v3189
        %v3191 = vpop.xlane.xlu0 %3190
        %v3192 = vsub.f32 %v3180, %v3188
        %v3193 = vsub.f32 %v3183, %v3191
        %v3194 = vmul.f32 %v3192, 1.442695
        %v3195 = vpow.pop %v3194
        %v3196 = vmul.f32 %v3193, 1.442695
        %v3197 = vpow.pop %v3196
        %v3198 = vsel %vm2154, %v3195, 0.0
        %3199 = vadd.xlane.f32.xlu0 %v3198
        %v3200 = vpop.xlane.xlu0 %3199
        %v3201 = vsel %vm2154, %v3197, 0.0
        %3202 = vadd.xlane.f32.xlu0 %v3201
        %v3203 = vpop.xlane.xlu0 %3202
        %v3204 = vrcp.pop %v3200
        %v3205 = vrcp.pop %v3203
        %v3206 = vmul.f32 %v3195, %v3204
        %v3207 = vmul.f32 %v3197, %v3205
        %v3208 = vpack.c.bf16 %v3207, %v3206
        %3209 = vrot.lane.b32.xlu0 %v2802, 48
        %v3210 = vpop.permute.xlu0 %3209
        %v3213 = vsel %vm2154, %v3208, 0
        %3215 = vmatprep.subr.bf16.mxu0 0
        %3216 = vmatpush1.bf16.msra.mxu0 %v3210
        %3217 = vmatprep.subr.bf16.mxu0 0
        %3218 = vmatpush1.bf16.msra.mxu0 0
        %3219 = vmatprep.subr.bf16.mxu0 0
        %3220 = vmatpush1.bf16.msra.mxu0 0
        %3221 = vmatprep.subr.bf16.mxu0 0
        %3222 = vmatpush1.bf16.msra.mxu0 0
        %3223 = vmatprep.subr.bf16.mxu0 0
        %3224 = vmatpush1.bf16.msra.mxu0 0
        %3225 = vmatprep.subr.bf16.mxu0 0
        %3226 = vmatpush1.bf16.msra.mxu0 0
        %3227 = vmatprep.subr.bf16.mxu0 0
        %3228 = vmatpush1.bf16.msra.mxu0 0
        %3229 = vmatprep.subr.bf16.mxu0 0
        %3230 = vmatpush1.bf16.msra.mxu0 0
        %3231 = vmatprep.subr.bf16.mxu0 0
        %3232 = vmatpush1.bf16.msra.mxu0 0
        %3233 = vmatprep.subr.bf16.mxu0 0
        %3234 = vmatpush1.bf16.msra.mxu0 0
        %3235 = vmatprep.subr.bf16.mxu0 0
        %3236 = vmatpush1.bf16.msra.mxu0 0
        %3237 = vmatprep.subr.bf16.mxu0 0
        %3238 = vmatpush1.bf16.msra.mxu0 0
        %3239 = vmatprep.subr.bf16.mxu0 0
        %3240 = vmatpush1.bf16.msra.mxu0 0
        %3241 = vmatprep.subr.bf16.mxu0 0
        %3242 = vmatpush1.bf16.msra.mxu0 0
        %3243 = vmatprep.subr.bf16.mxu0 0
        %3244 = vmatpush1.bf16.msra.mxu0 0
        %3245 = vmatprep.subr.bf16.mxu0 0
        %3246 = vmatpush1.bf16.msra.mxu0 0
        %3247 = vmatprep.mubr.bf16.mxu0 0
        %3248 = vmatmul.mubr.bf16.gmra.mrb[0].mxu0 %v3213
        %v3249 = vpop.f32.mrb[0].mxu0
        %v3250 = vadd.f32 0.0, %v3249
        %v3251 = vpop.f32.mrb[0].mxu0
        %v3252 = vpop.f32.mrb[0].mxu0
        %v3253 = vadd.f32 0.0, %v3252
        %v3254 = vpop.f32.mrb[0].mxu0
        %3255 = vdwg.mxu0
        %v3256 = vpack.c.bf16 %v3253, %v3250
        %v3258 = vsel %vm2106, %v3256, 0
        %3260 = vmatprep.subr.bf16.mxu0 0
        %3261 = vmatpush1.bf16.msra.mxu0 %v2570
        %3262 = vmatprep.subr.bf16.mxu0 0
        %3263 = vmatpush1.bf16.msra.mxu0 0
        %3264 = vmatprep.subr.bf16.mxu0 0
        %3265 = vmatpush1.bf16.msra.mxu0 0
        %3266 = vmatprep.subr.bf16.mxu0 0
        %3267 = vmatpush1.bf16.msra.mxu0 0
        %3268 = vmatprep.subr.bf16.mxu0 0
        %3269 = vmatpush1.bf16.msra.mxu0 0
        %3270 = vmatprep.subr.bf16.mxu0 0
        %3271 = vmatpush1.bf16.msra.mxu0 0
        %3272 = vmatprep.subr.bf16.mxu0 0
        %3273 = vmatpush1.bf16.msra.mxu0 0
        %3274 = vmatprep.subr.bf16.mxu0 0
        %3275 = vmatpush1.bf16.msra.mxu0 0
        %3276 = vmatprep.subr.bf16.mxu0 0
        %3277 = vmatpush1.bf16.msra.mxu0 0
        %3278 = vmatprep.subr.bf16.mxu0 0
        %3279 = vmatpush1.bf16.msra.mxu0 0
        %3280 = vmatprep.subr.bf16.mxu0 0
        %3281 = vmatpush1.bf16.msra.mxu0 0
        %3282 = vmatprep.subr.bf16.mxu0 0
        %3283 = vmatpush1.bf16.msra.mxu0 0
        %3284 = vmatprep.subr.bf16.mxu0 0
        %3285 = vmatpush1.bf16.msra.mxu0 0
        %3286 = vmatprep.subr.bf16.mxu0 0
        %3287 = vmatpush1.bf16.msra.mxu0 0
        %3288 = vmatprep.subr.bf16.mxu0 0
        %3289 = vmatpush1.bf16.msra.mxu0 0
        %3290 = vmatprep.subr.bf16.mxu0 0
        %3291 = vmatpush1.bf16.msra.mxu0 0
        %3292 = vmatprep.mubr.bf16.mxu0 0
        %3293 = vmatmul.mubr.bf16.gmra.mrb[0].mxu0 %v3258
        %v3294 = vpop.f32.mrb[0].mxu0
        %v3295 = vadd.f32 0.0, %v3294
        %v3296 = vpop.f32.mrb[0].mxu0
        %v3297 = vpop.f32.mrb[0].mxu0
        %v3298 = vadd.f32 0.0, %v3297
        %v3299 = vpop.f32.mrb[0].mxu0
        %3300 = vdwg.mxu0
        %v3301 = vadd.f32 %v3129, %v3295
        %v3302 = vadd.f32 %v3132, %v3298
        %3303 = vrot.lane.b32.xlu0 %v2801, 104
        %v3304 = vpop.permute.xlu0 %3303
        %3305 = vrot.lane.b32.xlu0 %v2802, 72
        %v3306 = vpop.permute.xlu0 %3305
        %v3308 = vsel %vm2106, %v3304, 0
        %v3311 = vsel %vm2106, %v3306, 0
        %3313 = vmatprep.subr.bf16.mxu0 0
        %3314 = vmatpush1.bf16.xpose.msra.mxu0 %v3311
        %3315 = vmatprep.subr.bf16.mxu0 0
        %3316 = vmatpush1.bf16.xpose.msra.mxu0 0
        %3317 = vmatprep.subr.bf16.mxu0 0
        %3318 = vmatpush1.bf16.xpose.msra.mxu0 0
        %3319 = vmatprep.subr.bf16.mxu0 0
        %3320 = vmatpush1.bf16.xpose.msra.mxu0 0
        %3321 = vmatprep.subr.bf16.mxu0 0
        %3322 = vmatpush1.bf16.xpose.msra.mxu0 0
        %3323 = vmatprep.subr.bf16.mxu0 0
        %3324 = vmatpush1.bf16.xpose.msra.mxu0 0
        %3325 = vmatprep.subr.bf16.mxu0 0
        %3326 = vmatpush1.bf16.xpose.msra.mxu0 0
        %3327 = vmatprep.subr.bf16.mxu0 0
        %3328 = vmatpush1.bf16.xpose.msra.mxu0 0
        %3329 = vmatprep.subr.bf16.mxu0 0
        %3330 = vmatpush1.bf16.xpose.msra.mxu0 0
        %3331 = vmatprep.subr.bf16.mxu0 0
        %3332 = vmatpush1.bf16.xpose.msra.mxu0 0
        %3333 = vmatprep.subr.bf16.mxu0 0
        %3334 = vmatpush1.bf16.xpose.msra.mxu0 0
        %3335 = vmatprep.subr.bf16.mxu0 0
        %3336 = vmatpush1.bf16.xpose.msra.mxu0 0
        %3337 = vmatprep.subr.bf16.mxu0 0
        %3338 = vmatpush1.bf16.xpose.msra.mxu0 0
        %3339 = vmatprep.subr.bf16.mxu0 0
        %3340 = vmatpush1.bf16.xpose.msra.mxu0 0
        %3341 = vmatprep.subr.bf16.mxu0 0
        %3342 = vmatpush1.bf16.xpose.msra.mxu0 0
        %3343 = vmatprep.subr.bf16.mxu0 0
        %3344 = vmatpush1.bf16.xpose.msra.mxu0 0
        %3345 = vmatprep.mubr.bf16.mxu0 0
        %3346 = vmatmul.mubr.bf16.gmra.mrb[0].mxu0 %v3308
        %v3347 = vpop.f32.mrb[0].mxu0
        %v3348 = vadd.f32 0.0, %v3347
        %v3349 = vpop.f32.mrb[0].mxu0
        %v3350 = vpop.f32.mrb[0].mxu0
        %v3351 = vadd.f32 0.0, %v3350
        %v3352 = vpop.f32.mrb[0].mxu0
        %3353 = vdwg.mxu0
        %v3354 = vsel %vm2154, %v3348, -inf
        %3355 = vmax.xlane.f32.xlu0 %v3354
        %v3356 = vpop.xlane.xlu0 %3355
        %v3357 = vsel %vm2154, %v3351, -inf
        %3358 = vmax.xlane.f32.xlu0 %v3357
        %v3359 = vpop.xlane.xlu0 %3358
        %v3360 = vsub.f32 %v3348, %v3356
        %v3361 = vsub.f32 %v3351, %v3359
        %v3362 = vmul.f32 %v3360, 1.442695
        %v3363 = vpow.pop %v3362
        %v3364 = vmul.f32 %v3361, 1.442695
        %v3365 = vpow.pop %v3364
        %v3366 = vsel %vm2154, %v3363, 0.0
        %3367 = vadd.xlane.f32.xlu0 %v3366
        %v3368 = vpop.xlane.xlu0 %3367
        %v3369 = vsel %vm2154, %v3365, 0.0
        %3370 = vadd.xlane.f32.xlu0 %v3369
        %v3371 = vpop.xlane.xlu0 %3370
        %v3372 = vrcp.pop %v3368
        %v3373 = vrcp.pop %v3371
        %v3374 = vmul.f32 %v3363, %v3372
        %v3375 = vmul.f32 %v3365, %v3373
        %v3376 = vpack.c.bf16 %v3375, %v3374
        %3377 = vrot.lane.b32.xlu0 %v2802, 40
        %v3378 = vpop.permute.xlu0 %3377
        %v3381 = vsel %vm2154, %v3376, 0
        %3383 = vmatprep.subr.bf16.mxu0 0
        %3384 = vmatpush1.bf16.msra.mxu0 %v3378
        %3385 = vmatprep.subr.bf16.mxu0 0
        %3386 = vmatpush1.bf16.msra.mxu0 0
        %3387 = vmatprep.subr.bf16.mxu0 0
        %3388 = vmatpush1.bf16.msra.mxu0 0
        %3389 = vmatprep.subr.bf16.mxu0 0
        %3390 = vmatpush1.bf16.msra.mxu0 0
        %3391 = vmatprep.subr.bf16.mxu0 0
        %3392 = vmatpush1.bf16.msra.mxu0 0
        %3393 = vmatprep.subr.bf16.mxu0 0
        %3394 = vmatpush1.bf16.msra.mxu0 0
        %3395 = vmatprep.subr.bf16.mxu0 0
        %3396 = vmatpush1.bf16.msra.mxu0 0
        %3397 = vmatprep.subr.bf16.mxu0 0
        %3398 = vmatpush1.bf16.msra.mxu0 0
        %3399 = vmatprep.subr.bf16.mxu0 0
        %3400 = vmatpush1.bf16.msra.mxu0 0
        %3401 = vmatprep.subr.bf16.mxu0 0
        %3402 = vmatpush1.bf16.msra.mxu0 0
        %3403 = vmatprep.subr.bf16.mxu0 0
        %3404 = vmatpush1.bf16.msra.mxu0 0
        %3405 = vmatprep.subr.bf16.mxu0 0
        %3406 = vmatpush1.bf16.msra.mxu0 0
        %3407 = vmatprep.subr.bf16.mxu0 0
        %3408 = vmatpush1.bf16.msra.mxu0 0
        %3409 = vmatprep.subr.bf16.mxu0 0
        %3410 = vmatpush1.bf16.msra.mxu0 0
        %3411 = vmatprep.subr.bf16.mxu0 0
        %3412 = vmatpush1.bf16.msra.mxu0 0
        %3413 = vmatprep.subr.bf16.mxu0 0
        %3414 = vmatpush1.bf16.msra.mxu0 0
        %3415 = vmatprep.mubr.bf16.mxu0 0
        %3416 = vmatmul.mubr.bf16.gmra.mrb[0].mxu0 %v3381
        %v3417 = vpop.f32.mrb[0].mxu0
        %v3418 = vadd.f32 0.0, %v3417
        %v3419 = vpop.f32.mrb[0].mxu0
        %v3420 = vpop.f32.mrb[0].mxu0
        %v3421 = vadd.f32 0.0, %v3420
        %v3422 = vpop.f32.mrb[0].mxu0
        %3423 = vdwg.mxu0
        %v3424 = vpack.c.bf16 %v3421, %v3418
        %v3426 = vsel %vm2106, %v3424, 0
        %3428 = vmatprep.subr.bf16.mxu0 0
        %3429 = vmatpush1.bf16.msra.mxu0 %v2741
        %3430 = vmatprep.subr.bf16.mxu0 0
        %3431 = vmatpush1.bf16.msra.mxu0 0
        %3432 = vmatprep.subr.bf16.mxu0 0
        %3433 = vmatpush1.bf16.msra.mxu0 0
        %3434 = vmatprep.subr.bf16.mxu0 0
        %3435 = vmatpush1.bf16.msra.mxu0 0
        %3436 = vmatprep.subr.bf16.mxu0 0
        %3437 = vmatpush1.bf16.msra.mxu0 0
        %3438 = vmatprep.subr.bf16.mxu0 0
        %3439 = vmatpush1.bf16.msra.mxu0 0
        %3440 = vmatprep.subr.bf16.mxu0 0
        %3441 = vmatpush1.bf16.msra.mxu0 0
        %3442 = vmatprep.subr.bf16.mxu0 0
        %3443 = vmatpush1.bf16.msra.mxu0 0
        %3444 = vmatprep.subr.bf16.mxu0 0
        %3445 = vmatpush1.bf16.msra.mxu0 0
        %3446 = vmatprep.subr.bf16.mxu0 0
        %3447 = vmatpush1.bf16.msra.mxu0 0
        %3448 = vmatprep.subr.bf16.mxu0 0
        %3449 = vmatpush1.bf16.msra.mxu0 0
        %3450 = vmatprep.subr.bf16.mxu0 0
        %3451 = vmatpush1.bf16.msra.mxu0 0
        %3452 = vmatprep.subr.bf16.mxu0 0
        %3453 = vmatpush1.bf16.msra.mxu0 0
        %3454 = vmatprep.subr.bf16.mxu0 0
        %3455 = vmatpush1.bf16.msra.mxu0 0
        %3456 = vmatprep.subr.bf16.mxu0 0
        %3457 = vmatpush1.bf16.msra.mxu0 0
        %3458 = vmatprep.subr.bf16.mxu0 0
        %3459 = vmatpush1.bf16.msra.mxu0 0
        %3460 = vmatprep.mubr.bf16.mxu0 0
        %3461 = vmatmul.mubr.bf16.gmra.mrb[0].mxu0 %v3426
        %v3462 = vpop.f32.mrb[0].mxu0
        %v3463 = vadd.f32 0.0, %v3462
        %v3464 = vpop.f32.mrb[0].mxu0
        %v3465 = vpop.f32.mrb[0].mxu0
        %v3466 = vadd.f32 0.0, %v3465
        %v3467 = vpop.f32.mrb[0].mxu0
        %3468 = vdwg.mxu0
        %v3469 = vadd.f32 %v3301, %v3463
        %v3470 = vadd.f32 %v3302, %v3466
        %v3471 = vadd.f32 %v1937, %v3469
        %v3472 = vadd.f32 %v1938, %v3470
        %v3473 = vld [vmem:[%s1216] sm:$0x1]
        %v3475 = vlaneseq
        %v3476 = vshrl.u32 %v3475, 7
        %v3477 = vsub.s32 0, %v3476
        %v3478 = vrot.slane %v3473, %v3477
        %v3480 = vadd.f32 %v3471, %v3478
        %v3481 = vadd.f32 %v3472, %v3478
        %3482 = vst.msk [vmem:[#allocation2 + $0x10] sm:$0xff] %vm1941, %v3480
        %3483 = vst.msk [vmem:[#allocation2 + $0x18] sm:$0xff] %vm1941, %v3481
        %v3484 = vld [vmem:[#allocation2] sm:$0xff]
        %v3485 = vld [vmem:[#allocation2 + $0x8] sm:$0xff]
        %v3486 = vld [vmem:[#allocation2 + $0x10] sm:$0xff]
        %v3487 = vld [vmem:[#allocation2 + $0x18] sm:$0xff]
        %v3488 = vld [vmem:[%s1224] sm:$0x1]
        %v3489 = vld [vmem:[%s1232] sm:$0x1]
        %v3490 = vsel %vm1941, %v3484, 0.0
        %3491 = vadd.xlane.f32.xlu0 %v3490
        %v3492 = vpop.xlane.xlu0 %3491
        %v3493 = vsel %vm1941, %v3485, 0.0
        %3494 = vadd.xlane.f32.xlu0 %v3493
        %v3495 = vpop.xlane.xlu0 %3494
        %v3496 = vsel %vm1941, %v3486, 0.0
        %3497 = vadd.xlane.f32.xlu0 %v3496
        %v3498 = vpop.xlane.xlu0 %3497
        %v3499 = vsel %vm1941, %v3487, 0.0
        %3500 = vadd.xlane.f32.xlu0 %v3499
        %v3501 = vpop.xlane.xlu0 %3500
        %v3502 = vmul.f32 %v3492, %v1954
        %v3503 = vmul.f32 %v3495, %v1954
        %v3504 = vmul.f32 %v3498, %v1954
        %v3505 = vmul.f32 %v3501, %v1954
        %v3506 = vsub.f32 %v3484, %v3502
        %v3507 = vsub.f32 %v3485, %v3503
        %v3508 = vsub.f32 %v3486, %v3504
        %v3509 = vsub.f32 %v3487, %v3505
        %v3510 = vmul.f32 %v3506, %v3506
        %v3511 = vmul.f32 %v3507, %v3507
        %v3512 = vmul.f32 %v3508, %v3508
        %v3513 = vmul.f32 %v3509, %v3509
        %v3514 = vsel %vm1941, %v3510, 0.0
        %3515 = vadd.xlane.f32.xlu0 %v3514
        %v3516 = vpop.xlane.xlu0 %3515
        %v3517 = vsel %vm1941, %v3511, 0.0
        %3518 = vadd.xlane.f32.xlu0 %v3517
        %v3519 = vpop.xlane.xlu0 %3518
        %v3520 = vsel %vm1941, %v3512, 0.0
        %3521 = vadd.xlane.f32.xlu0 %v3520
        %v3522 = vpop.xlane.xlu0 %3521
        %v3523 = vsel %vm1941, %v3513, 0.0
        %3524 = vadd.xlane.f32.xlu0 %v3523
        %v3525 = vpop.xlane.xlu0 %3524
        %v3526 = vmul.f32 %v3516, %v1954
        %v3527 = vmul.f32 %v3519, %v1954
        %v3528 = vmul.f32 %v3522, %v1954
        %v3529 = vmul.f32 %v3525, %v1954
        %v3530 = vadd.f32 %v3526, 1e-05
        %v3531 = vadd.f32 %v3527, 1e-05
        %v3532 = vadd.f32 %v3528, 1e-05
        %v3533 = vadd.f32 %v3529, 1e-05
        %v3534 = vrsqrt.pop %v3530
        %v3535 = vrsqrt.pop %v3531
        %v3536 = vrsqrt.pop %v3532
        %v3537 = vrsqrt.pop %v3533
        %v3538 = vmul.f32 %v3506, %v3534
        %v3539 = vmul.f32 %v3507, %v3535
        %v3540 = vmul.f32 %v3508, %v3536
        %v3541 = vmul.f32 %v3509, %v3537
        %v3543 = vlaneseq
        %v3544 = vshrl.u32 %v3543, 7
        %v3545 = vsub.s32 0, %v3544
        %v3546 = vrot.slane %v3488, %v3545
        %v3548 = vmul.f32 %v3538, %v3546
        %v3549 = vmul.f32 %v3539, %v3546
        %v3550 = vmul.f32 %v3540, %v3546
        %v3551 = vmul.f32 %v3541, %v3546
        %v3553 = vlaneseq
        %v3554 = vshrl.u32 %v3553, 7
        %v3555 = vsub.s32 0, %v3554
        %v3556 = vrot.slane %v3489, %v3555
        %v3558 = vadd.f32 %v3548, %v3556
        %v3559 = vadd.f32 %v3549, %v3556
        %v3560 = vadd.f32 %v3550, %v3556
        %v3561 = vadd.f32 %v3551, %v3556
        %v3562 = vpack.c.bf16 %v3559, %v3558
        %v3563 = vpack.c.bf16 %v3561, %v3560
        %v3564 = vld [vmem:[%s1241] sm:$0xf]
        %v3565 = vld [vmem:[%s1241 + $0x4] sm:$0xf]
        %v3566 = vld [vmem:[%s1241 + $0x8] sm:$0xf]
        %v3567 = vld [vmem:[%s1241 + $0xc] sm:$0xf]
        %v3568 = vld [vmem:[%s1249] sm:$0x1]
        %v3570 = vlaneseq
        %v3571 = vshrl.u32 %v3570, 7
        %v3572 = vsub.s32 0, %v3571
        %v3573 = vrot.slane %v3568, %v3572
        %v3579 = vunpack.c.l.b16 %v3564
        %v3580 = vunpack.c.l.b16 %v3565
        %v3581 = vunpack.c.l.b16 %v3566
        %v3582 = vunpack.c.l.b16 %v3567
        %v3583 = vpack.c.b16 %v3580, %v3579
        %v3584 = vpack.c.b16 %v3582, %v3581
        %v3588 = vsel %vm1941, %v3562, 0
        %v3591 = vsel %vm1941, %v3563, 0
        %3593 = vmatprep.subr.bf16.mxu0 0
        %3594 = vmatpush1.bf16.msra.mxu0 %v3583
        %3595 = vmatprep.subr.bf16.mxu0 0
        %3596 = vmatpush1.bf16.msra.mxu0 %v3584
        %3597 = vmatprep.subr.bf16.mxu0 0
        %3598 = vmatpush1.bf16.msra.mxu0 0
        %3599 = vmatprep.subr.bf16.mxu0 0
        %3600 = vmatpush1.bf16.msra.mxu0 0
        %3601 = vmatprep.subr.bf16.mxu0 0
        %3602 = vmatpush1.bf16.msra.mxu0 0
        %3603 = vmatprep.subr.bf16.mxu0 0
        %3604 = vmatpush1.bf16.msra.mxu0 0
        %3605 = vmatprep.subr.bf16.mxu0 0
        %3606 = vmatpush1.bf16.msra.mxu0 0
        %3607 = vmatprep.subr.bf16.mxu0 0
        %3608 = vmatpush1.bf16.msra.mxu0 0
        %3609 = vmatprep.subr.bf16.mxu0 0
        %3610 = vmatpush1.bf16.msra.mxu0 0
        %3611 = vmatprep.subr.bf16.mxu0 0
        %3612 = vmatpush1.bf16.msra.mxu0 0
        %3613 = vmatprep.subr.bf16.mxu0 0
        %3614 = vmatpush1.bf16.msra.mxu0 0
        %3615 = vmatprep.subr.bf16.mxu0 0
        %3616 = vmatpush1.bf16.msra.mxu0 0
        %3617 = vmatprep.subr.bf16.mxu0 0
        %3618 = vmatpush1.bf16.msra.mxu0 0
        %3619 = vmatprep.subr.bf16.mxu0 0
        %3620 = vmatpush1.bf16.msra.mxu0 0
        %3621 = vmatprep.subr.bf16.mxu0 0
        %3622 = vmatpush1.bf16.msra.mxu0 0
        %3623 = vmatprep.subr.bf16.mxu0 0
        %3624 = vmatpush1.bf16.msra.mxu0 0
        %3625 = vmatprep.mubr.bf16.mxu0 0
        %3626 = vmatmul.mubr.bf16.gmra.mrb[0].mxu0 %v3588
        %v3627 = vpop.f32.mrb[0].mxu0
        %v3628 = vadd.f32 %v3573, %v3627
        %v3629 = vpop.f32.mrb[0].mxu0
        %v3630 = vpop.f32.mrb[0].mxu0
        %v3631 = vadd.f32 %v3573, %v3630
        %v3632 = vpop.f32.mrb[0].mxu0
        %3633 = vmatprep.mubr.bf16.mxu0 0
        %3634 = vmatmul.mubr.bf16.gmra.mrb[0].mxu0 %v3591
        %v3635 = vpop.f32.mrb[0].mxu0
        %v3636 = vadd.f32 %v3573, %v3635
        %v3637 = vpop.f32.mrb[0].mxu0
        %v3638 = vpop.f32.mrb[0].mxu0
        %v3639 = vadd.f32 %v3573, %v3638
        %v3640 = vpop.f32.mrb[0].mxu0
        %3641 = vdwg.mxu0
        %v3642 = vmul.f32 %v3628, 0.5
        %v3643 = vmul.f32 %v3631, 0.5
        %v3644 = vmul.f32 %v3636, 0.5
        %v3645 = vmul.f32 %v3639, 0.5
        %v3646 = vmul.f32 %v3628, 0.044715
        %v3647 = vmul.f32 %v3631, 0.044715
        %v3648 = vmul.f32 %v3636, 0.044715
        %v3649 = vmul.f32 %v3639, 0.044715
        %v3650 = vmul.f32 %v3646, %v3628
        %v3651 = vmul.f32 %v3647, %v3631
        %v3652 = vmul.f32 %v3648, %v3636
        %v3653 = vmul.f32 %v3649, %v3639
        %v3654 = vmul.f32 %v3650, %v3628
        %v3655 = vmul.f32 %v3651, %v3631
        %v3656 = vmul.f32 %v3652, %v3636
        %v3657 = vmul.f32 %v3653, %v3639
        %v3658 = vadd.f32 %v3628, %v3654
        %v3659 = vadd.f32 %v3631, %v3655
        %v3660 = vadd.f32 %v3636, %v3656
        %v3661 = vadd.f32 %v3639, %v3657
        %v3662 = vmul.f32 %v3658, 0.7978846
        %v3663 = vmul.f32 %v3659, 0.7978846
        %v3664 = vmul.f32 %v3660, 0.7978846
        %v3665 = vmul.f32 %v3661, 0.7978846
        %v3666 = vtanh.pop %v3662
        %v3667 = vtanh.pop %v3663
        %v3668 = vtanh.pop %v3664
        %v3669 = vtanh.pop %v3665
        %v3670 = vadd.f32 %v3666, 1.0
        %v3671 = vadd.f32 %v3667, 1.0
        %v3672 = vadd.f32 %v3668, 1.0
        %v3673 = vadd.f32 %v3669, 1.0
        %v3674 = vmul.f32 %v3642, %v3670
        %v3675 = vmul.f32 %v3643, %v3671
        %v3676 = vmul.f32 %v3644, %v3672
        %v3677 = vmul.f32 %v3645, %v3673
        %v3678 = vpack.c.bf16 %v3675, %v3674
        %v3679 = vpack.c.bf16 %v3677, %v3676
        %v3680 = vld [vmem:[%s1258] sm:$0xf]
        %v3681 = vld [vmem:[%s1258 + $0x4] sm:$0xf]
        %v3682 = vld [vmem:[%s1258 + $0x8] sm:$0xf]
        %v3683 = vld [vmem:[%s1258 + $0xc] sm:$0xf]
        %v3684 = vld [vmem:[%s1258 + $0x10] sm:$0xf]
        %v3685 = vld [vmem:[%s1258 + $0x14] sm:$0xf]
        %v3686 = vld [vmem:[%s1258 + $0x18] sm:$0xf]
        %v3687 = vld [vmem:[%s1258 + $0x1c] sm:$0xf]
        %v3688 = vld [vmem:[%s1258 + $0x20] sm:$0xf]
        %v3689 = vld [vmem:[%s1258 + $0x24] sm:$0xf]
        %v3690 = vld [vmem:[%s1258 + $0x28] sm:$0xf]
        %v3691 = vld [vmem:[%s1258 + $0x2c] sm:$0xf]
        %v3692 = vld [vmem:[%s1258 + $0x30] sm:$0xf]
        %v3693 = vld [vmem:[%s1258 + $0x34] sm:$0xf]
        %v3694 = vld [vmem:[%s1258 + $0x38] sm:$0xf]
        %v3695 = vld [vmem:[%s1258 + $0x3c] sm:$0xf]
        %v3696 = vld [vmem:[%s1266] sm:$0x1]
        %v3698 = vlaneseq
        %v3699 = vshrl.u32 %v3698, 7
        %v3700 = vsub.s32 0, %v3699
        %v3701 = vrot.slane %v3696, %v3700
        %v3719 = vunpack.c.l.b16 %v3680
        %v3720 = vunpack.c.l.b16 %v3681
        %v3721 = vunpack.c.l.b16 %v3682
        %v3722 = vunpack.c.l.b16 %v3683
        %v3723 = vunpack.c.l.b16 %v3684
        %v3724 = vunpack.c.l.b16 %v3685
        %v3725 = vunpack.c.l.b16 %v3686
        %v3726 = vunpack.c.l.b16 %v3687
        %v3727 = vunpack.c.l.b16 %v3688
        %v3728 = vunpack.c.l.b16 %v3689
        %v3729 = vunpack.c.l.b16 %v3690
        %v3730 = vunpack.c.l.b16 %v3691
        %v3731 = vunpack.c.l.b16 %v3692
        %v3732 = vunpack.c.l.b16 %v3693
        %v3733 = vunpack.c.l.b16 %v3694
        %v3734 = vunpack.c.l.b16 %v3695
        %v3735 = vpack.c.b16 %v3720, %v3719
        %v3736 = vpack.c.b16 %v3722, %v3721
        %v3737 = vpack.c.b16 %v3724, %v3723
        %v3738 = vpack.c.b16 %v3726, %v3725
        %v3739 = vpack.c.b16 %v3728, %v3727
        %v3740 = vpack.c.b16 %v3730, %v3729
        %v3741 = vpack.c.b16 %v3732, %v3731
        %v3742 = vpack.c.b16 %v3734, %v3733
        %3751 = vmatprep.subr.bf16.mxu0 0
        %3752 = vmatpush1.bf16.msra.mxu0 %v3735
        %3753 = vmatprep.subr.bf16.mxu0 0
        %3754 = vmatpush1.bf16.msra.mxu0 %v3736
        %3755 = vmatprep.subr.bf16.mxu0 0
        %3756 = vmatpush1.bf16.msra.mxu0 %v3737
        %3757 = vmatprep.subr.bf16.mxu0 0
        %3758 = vmatpush1.bf16.msra.mxu0 %v3738
        %3759 = vmatprep.subr.bf16.mxu0 0
        %3760 = vmatpush1.bf16.msra.mxu0 %v3739
        %3761 = vmatprep.subr.bf16.mxu0 0
        %3762 = vmatpush1.bf16.msra.mxu0 %v3740
        %3763 = vmatprep.subr.bf16.mxu0 0
        %3764 = vmatpush1.bf16.msra.mxu0 %v3741
        %3765 = vmatprep.subr.bf16.mxu0 0
        %3766 = vmatpush1.bf16.msra.mxu0 %v3742
        %3767 = vmatprep.subr.bf16.mxu0 0
        %3768 = vmatpush1.bf16.msra.mxu0 0
        %3769 = vmatprep.subr.bf16.mxu0 0
        %3770 = vmatpush1.bf16.msra.mxu0 0
        %3771 = vmatprep.subr.bf16.mxu0 0
        %3772 = vmatpush1.bf16.msra.mxu0 0
        %3773 = vmatprep.subr.bf16.mxu0 0
        %3774 = vmatpush1.bf16.msra.mxu0 0
        %3775 = vmatprep.subr.bf16.mxu0 0
        %3776 = vmatpush1.bf16.msra.mxu0 0
        %3777 = vmatprep.subr.bf16.mxu0 0
        %3778 = vmatpush1.bf16.msra.mxu0 0
        %3779 = vmatprep.subr.bf16.mxu0 0
        %3780 = vmatpush1.bf16.msra.mxu0 0
        %3781 = vmatprep.subr.bf16.mxu0 0
        %3782 = vmatpush1.bf16.msra.mxu0 0
        %3783 = vmatprep.mubr.bf16.mxu0 0
        %3784 = vmatmul.mubr.bf16.gmra.mrb[0].mxu0 %v3678
        %v3785 = vpop.f32.mrb[0].mxu0
        %v3786 = vadd.f32 %v3701, %v3785
        %v3787 = vpop.f32.mrb[0].mxu0
        %v3788 = vpop.f32.mrb[0].mxu0
        %v3789 = vadd.f32 %v3701, %v3788
        %v3790 = vpop.f32.mrb[0].mxu0
        %3791 = vmatprep.mubr.bf16.mxu0 0
        %3792 = vmatmul.mubr.bf16.gmra.mrb[0].mxu0 %v3679
        %v3793 = vpop.f32.mrb[0].mxu0
        %v3794 = vadd.f32 %v3701, %v3793
        %v3795 = vpop.f32.mrb[0].mxu0
        %v3796 = vpop.f32.mrb[0].mxu0
        %v3797 = vadd.f32 %v3701, %v3796
        %v3798 = vpop.f32.mrb[0].mxu0
        %3799 = vdwg.mxu0
        %v3800 = vadd.f32 %v3484, %v3786
        %v3801 = vadd.f32 %v3485, %v3789
        %v3802 = vadd.f32 %v3486, %v3794
        %v3803 = vadd.f32 %v3487, %v3797
        %3804 = vst.msk [vmem:[#allocation2] sm:$0xff] %vm1941, %v3800
        %3805 = vst.msk [vmem:[#allocation2 + $0x8] sm:$0xff] %vm1941, %v3801
        %3806 = vst.msk [vmem:[#allocation2 + $0x10] sm:$0xff] %vm1941, %v3802
        %3807 = vst.msk [vmem:[#allocation2 + $0x18] sm:$0xff] %vm1941, %v3803
        %p3808 = scmp.eq.s32.totalorder %s57, 1
        // Predicated region
        $region229: #{tpu_custom_call.1} parent=123 // pred_check
          %p3809 = pneg %p3808
        $region230: #{tpu_custom_call.1} parent=123 // pred_check_branch
          %3811 = sbr.rel (%p3809) target = $region232
        $region231: #{tpu_custom_call.1} parent=123 // pred_region
          %v3812 = vld [vmem:[#allocation33] sm:$0x1]
          %v3813 = vld [vmem:[#allocation34] sm:$0x1]
          %v3814 = vsel %vm1941, %v3800, 0.0
          %3815 = vadd.xlane.f32.xlu0 %v3814
          %v3816 = vpop.xlane.xlu0 %3815
          %v3817 = vsel %vm1941, %v3801, 0.0
          %3818 = vadd.xlane.f32.xlu0 %v3817
          %v3819 = vpop.xlane.xlu0 %3818
          %v3820 = vsel %vm1941, %v3802, 0.0
          %3821 = vadd.xlane.f32.xlu0 %v3820
          %v3822 = vpop.xlane.xlu0 %3821
          %v3823 = vsel %vm1941, %v3803, 0.0
          %3824 = vadd.xlane.f32.xlu0 %v3823
          %v3825 = vpop.xlane.xlu0 %3824
          %v3826 = vmul.f32 %v3816, %v1954
          %v3827 = vmul.f32 %v3819, %v1954
          %v3828 = vmul.f32 %v3822, %v1954
          %v3829 = vmul.f32 %v3825, %v1954
          %v3830 = vsub.f32 %v3800, %v3826
          %v3831 = vsub.f32 %v3801, %v3827
          %v3832 = vsub.f32 %v3802, %v3828
          %v3833 = vsub.f32 %v3803, %v3829
          %v3834 = vmul.f32 %v3830, %v3830
          %v3835 = vmul.f32 %v3831, %v3831
          %v3836 = vmul.f32 %v3832, %v3832
          %v3837 = vmul.f32 %v3833, %v3833
          %v3838 = vsel %vm1941, %v3834, 0.0
          %3839 = vadd.xlane.f32.xlu0 %v3838
          %v3840 = vpop.xlane.xlu0 %3839
          %v3841 = vsel %vm1941, %v3835, 0.0
          %3842 = vadd.xlane.f32.xlu0 %v3841
          %v3843 = vpop.xlane.xlu0 %3842
          %v3844 = vsel %vm1941, %v3836, 0.0
          %3845 = vadd.xlane.f32.xlu0 %v3844
          %v3846 = vpop.xlane.xlu0 %3845
          %v3847 = vsel %vm1941, %v3837, 0.0
          %3848 = vadd.xlane.f32.xlu0 %v3847
          %v3849 = vpop.xlane.xlu0 %3848
          %v3850 = vmul.f32 %v3840, %v1954
          %v3851 = vmul.f32 %v3843, %v1954
          %v3852 = vmul.f32 %v3846, %v1954
          %v3853 = vmul.f32 %v3849, %v1954
          %v3854 = vadd.f32 %v3850, 1e-05
          %v3855 = vadd.f32 %v3851, 1e-05
          %v3856 = vadd.f32 %v3852, 1e-05
          %v3857 = vadd.f32 %v3853, 1e-05
          %v3858 = vrsqrt.pop %v3854
          %v3859 = vrsqrt.pop %v3855
          %v3860 = vrsqrt.pop %v3856
          %v3861 = vrsqrt.pop %v3857
          %v3862 = vmul.f32 %v3830, %v3858
          %v3863 = vmul.f32 %v3831, %v3859
          %v3864 = vmul.f32 %v3832, %v3860
          %v3865 = vmul.f32 %v3833, %v3861
          %v3867 = vlaneseq
          %v3868 = vshrl.u32 %v3867, 7
          %v3869 = vsub.s32 0, %v3868
          %v3870 = vrot.slane %v3812, %v3869
          %v3872 = vmul.f32 %v3862, %v3870
          %v3873 = vmul.f32 %v3863, %v3870
          %v3874 = vmul.f32 %v3864, %v3870
          %v3875 = vmul.f32 %v3865, %v3870
          %v3877 = vlaneseq
          %v3878 = vshrl.u32 %v3877, 7
          %v3879 = vsub.s32 0, %v3878
          %v3880 = vrot.slane %v3813, %v3879
          %v3882 = vadd.f32 %v3872, %v3880
          %v3883 = vadd.f32 %v3873, %v3880
          %v3884 = vadd.f32 %v3874, %v3880
          %v3885 = vadd.f32 %v3875, %v3880
          %v3886 = vld [vmem:[#allocation35] sm:$0x1]
          %v3887 = vpack.c.bf16 %v3886, %v3886
          %v3888 = vpack.c.bf16 %v3883, %v3882
          %v3889 = vld [vmem:[#allocation3] sm:$0x1]
          %3891 = vset.pattern.permute.xlu0 0
          %3892 = vperm.xlu0 %3891, %v3889
          %v3893 = vpop.permute.xlu0 %3892
          %v3895 = vlaneseq
          %v3896 = vshrl.u32 %v3895, 7
          %v3897 = vsub.s32 0, %v3896
          %v3898 = vrot.slane %v3893, %v3897
          %v3900 = vsel %vm1941, %v3887, 0
          %v3903 = vsel %vm1941, %v3888, 0
          %3905 = vmatprep.subr.bf16.mxu0 0
          %3906 = vmatpush1.bf16.xpose.msra.mxu0 %v3903
          %3907 = vmatprep.subr.bf16.mxu0 0
          %3908 = vmatpush1.bf16.xpose.msra.mxu0 0
          %3909 = vmatprep.subr.bf16.mxu0 0
          %3910 = vmatpush1.bf16.xpose.msra.mxu0 0
          %3911 = vmatprep.subr.bf16.mxu0 0
          %3912 = vmatpush1.bf16.xpose.msra.mxu0 0
          %3913 = vmatprep.subr.bf16.mxu0 0
          %3914 = vmatpush1.bf16.xpose.msra.mxu0 0
          %3915 = vmatprep.subr.bf16.mxu0 0
          %3916 = vmatpush1.bf16.xpose.msra.mxu0 0
          %3917 = vmatprep.subr.bf16.mxu0 0
          %3918 = vmatpush1.bf16.xpose.msra.mxu0 0
          %3919 = vmatprep.subr.bf16.mxu0 0
          %3920 = vmatpush1.bf16.xpose.msra.mxu0 0
          %3921 = vmatprep.subr.bf16.mxu0 0
          %3922 = vmatpush1.bf16.xpose.msra.mxu0 0
          %3923 = vmatprep.subr.bf16.mxu0 0
          %3924 = vmatpush1.bf16.xpose.msra.mxu0 0
          %3925 = vmatprep.subr.bf16.mxu0 0
          %3926 = vmatpush1.bf16.xpose.msra.mxu0 0
          %3927 = vmatprep.subr.bf16.mxu0 0
          %3928 = vmatpush1.bf16.xpose.msra.mxu0 0
          %3929 = vmatprep.subr.bf16.mxu0 0
          %3930 = vmatpush1.bf16.xpose.msra.mxu0 0
          %3931 = vmatprep.subr.bf16.mxu0 0
          %3932 = vmatpush1.bf16.xpose.msra.mxu0 0
          %3933 = vmatprep.subr.bf16.mxu0 0
          %3934 = vmatpush1.bf16.xpose.msra.mxu0 0
          %3935 = vmatprep.subr.bf16.mxu0 0
          %3936 = vmatpush1.bf16.xpose.msra.mxu0 0
          %3937 = vmatprep.mubr.bf16.mxu0 0
          %3938 = vmatmul.mubr.bf16.gmra.mrb[0].mxu0 %v3900
          %v3939 = vpop.f32.mrb[0].mxu0
          %v3940 = vadd.f32 %v3898, %v3939
          %v3941 = vpop.f32.mrb[0].mxu0
          %v3942 = vpop.f32.mrb[0].mxu0
          %v3943 = vpop.f32.mrb[0].mxu0
          %3944 = vdwg.mxu0
          %vm3945 = vcmask 122880
          %3946 = vst.msk [vmem:[%s1403] sm:$0x1] %vm3945, %v3940
          %v3947 = vpack.c.bf16 %v3885, %v3884
          %v3948 = vld [vmem:[#allocation3] sm:$0x1]
          %3950 = vset.pattern.permute.xlu0 0
          %3951 = vperm.xlu0 %3950, %v3948
          %v3952 = vpop.permute.xlu0 %3951
          %v3954 = vlaneseq
          %v3955 = vshrl.u32 %v3954, 7
          %v3956 = vsub.s32 0, %v3955
          %v3957 = vrot.slane %v3952, %v3956
          %v3959 = vsel %vm1941, %v3947, 0
          %3961 = vmatprep.subr.bf16.mxu0 0
          %3962 = vmatpush1.bf16.xpose.msra.mxu0 %v3959
          %3963 = vmatprep.subr.bf16.mxu0 0
          %3964 = vmatpush1.bf16.xpose.msra.mxu0 0
          %3965 = vmatprep.subr.bf16.mxu0 0
          %3966 = vmatpush1.bf16.xpose.msra.mxu0 0
          %3967 = vmatprep.subr.bf16.mxu0 0
          %3968 = vmatpush1.bf16.xpose.msra.mxu0 0
          %3969 = vmatprep.subr.bf16.mxu0 0
          %3970 = vmatpush1.bf16.xpose.msra.mxu0 0
          %3971 = vmatprep.subr.bf16.mxu0 0
          %3972 = vmatpush1.bf16.xpose.msra.mxu0 0
          %3973 = vmatprep.subr.bf16.mxu0 0
          %3974 = vmatpush1.bf16.xpose.msra.mxu0 0
          %3975 = vmatprep.subr.bf16.mxu0 0
          %3976 = vmatpush1.bf16.xpose.msra.mxu0 0
          %3977 = vmatprep.subr.bf16.mxu0 0
          %3978 = vmatpush1.bf16.xpose.msra.mxu0 0
          %3979 = vmatprep.subr.bf16.mxu0 0
          %3980 = vmatpush1.bf16.xpose.msra.mxu0 0
          %3981 = vmatprep.subr.bf16.mxu0 0
          %3982 = vmatpush1.bf16.xpose.msra.mxu0 0
          %3983 = vmatprep.subr.bf16.mxu0 0
          %3984 = vmatpush1.bf16.xpose.msra.mxu0 0
          %3985 = vmatprep.subr.bf16.mxu0 0
          %3986 = vmatpush1.bf16.xpose.msra.mxu0 0
          %3987 = vmatprep.subr.bf16.mxu0 0
          %3988 = vmatpush1.bf16.xpose.msra.mxu0 0
          %3989 = vmatprep.subr.bf16.mxu0 0
          %3990 = vmatpush1.bf16.xpose.msra.mxu0 0
          %3991 = vmatprep.subr.bf16.mxu0 0
          %3992 = vmatpush1.bf16.xpose.msra.mxu0 0
          %3993 = vmatprep.mubr.bf16.mxu0 0
          %3994 = vmatmul.mubr.bf16.gmra.mrb[0].mxu0 %v3900
          %v3995 = vpop.f32.mrb[0].mxu0
          %v3996 = vadd.f32 %v3957, %v3995
          %v3997 = vpop.f32.mrb[0].mxu0
          %v3998 = vpop.f32.mrb[0].mxu0
          %v3999 = vpop.f32.mrb[0].mxu0
          %4000 = vdwg.mxu0
          %s4001 = scalar_lea.vmem %s1403, 1 [#allocation36]
          %4002 = vst.msk [vmem:[%s4001] sm:$0x1] %vm3945, %v3996
        $region232: #{tpu_custom_call.1} parent=123 // pred_fallthru
          _
        %s4003 = sand.u32 %s688, 1
        %s4004 = scalar_lea.sflag [#allocation6], %s4003
        %s4005 = sand.u32 %s688, 1
        %s4006 = smul.addr %s4005, 2
        %s4007 = scalar_lea.vmem [#allocation36], %s4006
        // Predicated region
        $region233: #{tpu_custom_call.1} parent=123 // pred_check
          %p4008 = pneg %p698
        $region234: #{tpu_custom_call.1} parent=123 // pred_check_branch
          %4010 = sbr.rel (%p4008) target = $region236
        $region235: #{tpu_custom_call.1} parent=123 // pred_region
          %s4011 = smul.u32 2, %s56
          %s4013 = ssub.s32 32, 32
          %4014 = vsyncadd %s4004, %s4013
          %s4015 = smul.addr %s4011, 16
          %s4016 = scalar_lea.hbm %s26, %s4015
          %s4017 = sshll.u32 %s4007, 4
          %s4018 = int_to_ptr.vmem [resolvable:$true] %s4017
          %4023 = dma.vmem_to_hbm [thread:$0]  %s4018, 32, %s4016, %s4004, 16, 16, 1
        $region236: #{tpu_custom_call.1} parent=123 // pred_fallthru
          _
      $region124: #{tpu_custom_call.1} parent=5 // pred_fallthru
        _
      %p4024 = scmp.le.s32.totalorder 2, %s47
      // Predicated region
      $region237: #{tpu_custom_call.1} parent=5 // pred_check
        %p4025 = pneg %p4024
      $region238: #{tpu_custom_call.1} parent=5 // pred_check_branch
        %4027 = sbr.rel (%p4025) target = $region240
      $region239: #{tpu_custom_call.1} parent=5 // pred_region
        %s4028 = ssub.s32 %s47, 2
        // Predicated region
        $region241: #{tpu_custom_call.1} parent=239 // pred_check
          %p4029 = pneg %p704
        $region242: #{tpu_custom_call.1} parent=239 // pred_check_branch
          %4031 = sbr.rel (%p4029) target = $region244
        $region243: #{tpu_custom_call.1} parent=239 // pred_region
          %s4032 = sand.u32 %s689, 1
          %s4033 = scalar_lea.sflag [#allocation6], %s4032
          %s4034 = sand.u32 %s689, 1
          %s4035 = smul.addr %s4034, 2
          %s4036 = scalar_lea.vmem [#allocation36], %s4035
          %4037 = dma.done %s4033, 32
        $region244: #{tpu_custom_call.1} parent=239 // pred_fallthru
          _
      $region240: #{tpu_custom_call.1} parent=5 // pred_fallthru
        _
    $region6: #{tpu_custom_call.1} parent=1 // loop_footer
      %s51 = sadd.s32 1, %s47
    $region7: #{tpu_custom_call.1} parent=1 // loop_footer_branch
      %46 = sbr.rel target = $region3
    $region8: #{tpu_custom_call.1} parent=1 // loop_exit
      _
    %4038 = vsyncpa [#allocation5], 1
    %s4039 = scalar_lea.sflag [#allocation5], 1
    %4040 = vsyncpa %s4039, 1
    %4041 = vsyncpa [#allocation8], 1
    %s4042 = scalar_lea.sflag [#allocation8], 1
    %4043 = vsyncpa %s4042, 1
    %4044 = vsyncpa [#allocation11], 1
    %4045 = vsyncpa [#allocation14], 1
    %4046 = vsyncpa [#allocation17], 1
    %4047 = vsyncpa [#allocation20], 1
    %4048 = vsyncpa [#allocation6], 1
    %s4049 = scalar_lea.sflag [#allocation6], 1
    %4050 = vsyncpa %s4049, 1

// kernel: tpu_custom_call.1
$region0: #{tpu_custom_call.1}
  #allocation0 [shape = 'u32[]', space=smem, size = 0x4, offset = 0x4, fixed_abs, tag = 'smem constant byte address 0x4 - core index']
  #allocation1 [shape = 'u32[144,128]{1,0:T(1,128)}', space=vmem, size = 0x12000, scoped, tag = 'internal scratch']
  #allocation2 [shape = 'f32[32,32]{1,0:T(8,128)}', space=vmem, size = 0x4000, scoped, tag = 'scratch operand']
  #allocation3 [shape = 'f32[1,1]{1,0:T(1,128)S(1)}', space=vmem, size = 0x200, scoped, tag = 'scoped memory for tpu_custom_call.1']
  %s0 = inlined_call_operand.hbm [shape: f32[4,4,4], index: 0, kind: input, shape index: {}]
  %s1 = inlined_call_operand.hbm [shape: f32[4,1,32], index: 1, kind: input, shape index: {}]
  %s2 = inlined_call_operand.hbm [shape: bf16[4,32], index: 2, kind: input, shape index: {}]
  %s3 = inlined_call_operand.hbm [shape: f32[1,32], index: 3, kind: input, shape index: {}]
  %s4 = inlined_call_operand.hbm [shape: bf16[16,4], index: 4, kind: input, shape index: {}]
  %s5 = inlined_call_operand.hbm [shape: f32[16,1], index: 5, kind: input, shape index: {}]
  %s6 = inlined_call_operand.hbm [shape: bf16[32,128], index: 6, kind: input, shape index: {}]
  %s7 = inlined_call_operand.hbm [shape: f32[1,128], index: 7, kind: input, shape index: {}]
  %s8 = inlined_call_operand.hbm [shape: bf16[128,32], index: 8, kind: input, shape index: {}]
  %s9 = inlined_call_operand.hbm [shape: f32[1,32], index: 9, kind: input, shape index: {}]
  %s10 = inlined_call_operand.hbm [shape: f32[2,1,32], index: 10, kind: input, shape index: {}]
  %s11 = inlined_call_operand.hbm [shape: f32[2,1,32], index: 11, kind: input, shape index: {}]
  %s12 = inlined_call_operand.hbm [shape: bf16[2,32,96], index: 12, kind: input, shape index: {}]
  %s13 = inlined_call_operand.hbm [shape: f32[2,1,96], index: 13, kind: input, shape index: {}]
  %s14 = inlined_call_operand.hbm [shape: bf16[2,32,32], index: 14, kind: input, shape index: {}]
  %s15 = inlined_call_operand.hbm [shape: f32[2,1,32], index: 15, kind: input, shape index: {}]
  %s16 = inlined_call_operand.hbm [shape: f32[2,1,32], index: 16, kind: input, shape index: {}]
  %s17 = inlined_call_operand.hbm [shape: f32[2,1,32], index: 17, kind: input, shape index: {}]
  %s18 = inlined_call_operand.hbm [shape: bf16[2,32,128], index: 18, kind: input, shape index: {}]
  %s19 = inlined_call_operand.hbm [shape: f32[2,1,128], index: 19, kind: input, shape index: {}]
  %s20 = inlined_call_operand.hbm [shape: bf16[2,128,32], index: 20, kind: input, shape index: {}]
  %s21 = inlined_call_operand.hbm [shape: f32[2,1,32], index: 21, kind: input, shape index: {}]
  %s22 = inlined_call_operand.hbm [shape: f32[1,32], index: 22, kind: input, shape index: {}]
  %s23 = inlined_call_operand.hbm [shape: f32[1,32], index: 23, kind: input, shape index: {}]
  %s24 = inlined_call_operand.hbm [shape: f32[1,32], index: 24, kind: input, shape index: {}]
  %s25 = inlined_call_operand.<no memory space> [shape: f32[1,1], index: 25, kind: input, shape index: {}]
  %s26 = inlined_call_operand.hbm [shape: f32[4,1,16], index: 26, kind: output, shape index: {}]
  %s27 = sld [smem:[#allocation0]]
  $region245: #{tpu_custom_call.1} parent=0
    _
  %s29 = ssub.s32 1, %s27
  %s30 = scalar_select 0, %s29, %s27
  %v31 = vstv %s25
  %32 = vst [vmem:[#allocation3] sm:$0x1] %v31
  $region1: #{tpu_custom_call.1} parent=0
    #allocation4 [shape = 'u8[8192]{0}', space=vmem, size = 0x2000, scoped, tag = 'input window, operand 0']
    #allocation5 [shape = 's32[2]{0}', space=sflag, size = 0x8, scoped, tag = 'scoped memory for tpu_custom_call.1']
    #allocation6 [shape = 's32[2]{0}', space=sflag, size = 0x8, scoped, tag = 'scoped memory for tpu_custom_call.1']
    #allocation7 [shape = 'u8[2048]{0}', space=vmem, size = 0x800, scoped, tag = 'input window, operand 1']
    #allocation8 [shape = 's32[2]{0}', space=sflag, size = 0x8, scoped, tag = 'scoped memory for tpu_custom_call.1']
    #allocation9 [shape = 'u8[1024]{0}', space=vmem, size = 0x400, scoped, tag = 'input window, operand 2, single buffered']
    #allocation10 [shape = 'u8[512]{0}', space=vmem, size = 0x400, scoped, tag = 'input window, operand 3, single buffered']
    #allocation11 [shape = 's32[1]{0}', space=sflag, size = 0x4, scoped, tag = 'scoped memory for tpu_custom_call.1']
    #allocation12 [shape = 'u8[4096]{0}', space=vmem, size = 0x1000, scoped, tag = 'input window, operand 4, single buffered']
    #allocation13 [shape = 'u8[8192]{0}', space=vmem, size = 0x2000, scoped, tag = 'input window, operand 5, single buffered']
    #allocation14 [shape = 's32[1]{0}', space=sflag, size = 0x4, scoped, tag = 'scoped memory for tpu_custom_call.1']
    #allocation15 [shape = 'u8[8192]{0}', space=vmem, size = 0x2000, scoped, tag = 'input window, operand 6, single buffered']
    #allocation16 [shape = 'u8[512]{0}', space=vmem, size = 0x400, scoped, tag = 'input window, operand 7, single buffered']
    #allocation17 [shape = 's32[1]{0}', space=sflag, size = 0x4, scoped, tag = 'scoped memory for tpu_custom_call.1']
    #allocation18 [shape = 'u8[32768]{0}', space=vmem, size = 0x8000, scoped, tag = 'input window, operand 8, single buffered']
    #allocation19 [shape = 'u8[512]{0}', space=vmem, size = 0x400, scoped, tag = 'input window, operand 9, single buffered']
    #allocation20 [shape = 's32[1]{0}', space=sflag, size = 0x4, scoped, tag = 'scoped memory for tpu_custom_call.1']
    #allocation21 [shape = 'u8[1024]{0}', space=vmem, size = 0x400, scoped, tag = 'input window, operand 10']
    #allocation22 [shape = 'u8[1024]{0}', space=vmem, size = 0x400, scoped, tag = 'input window, operand 11']
    #allocation23 [shape = 'u8[16384]{0}', space=vmem, size = 0x4000, scoped, tag = 'input window, operand 12']
    #allocation24 [shape = 'u8[1024]{0}', space=vmem, size = 0x400, scoped, tag = 'input window, operand 13']
    #allocation25 [shape = 'u8[16384]{0}', space=vmem, size = 0x4000, scoped, tag = 'input window, operand 14']
    #allocation26 [shape = 'u8[1024]{0}', space=vmem, size = 0x400, scoped, tag = 'input window, operand 15']
    #allocation27 [shape = 'u8[1024]{0}', space=vmem, size = 0x400, scoped, tag = 'input window, operand 16']
    #allocation28 [shape = 'u8[1024]{0}', space=vmem, size = 0x400, scoped, tag = 'input window, operand 17']
    #allocation29 [shape = 'u8[16384]{0}', space=vmem, size = 0x4000, scoped, tag = 'input window, operand 18']
    #allocation30 [shape = 'u8[1024]{0}', space=vmem, size = 0x400, scoped, tag = 'input window, operand 19']
    #allocation31 [shape = 'u8[65536]{0}', space=vmem, size = 0x10000, scoped, tag = 'input window, operand 20']
    #allocation32 [shape = 'u8[1024]{0}', space=vmem, size = 0x400, scoped, tag = 'input window, operand 21']
    #allocation33 [shape = 'u8[512]{0}', space=vmem, size = 0x400, scoped, tag = 'input window, operand 22, single buffered']
    #allocation34 [shape = 'u8[512]{0}', space=vmem, size = 0x400, scoped, tag = 'input window, operand 23, single buffered']
    #allocation35 [shape = 'u8[512]{0}', space=vmem, size = 0x400, scoped, tag = 'input window, operand 24, single buffered']
    #allocation36 [shape = 'u8[2048]{0}', space=vmem, size = 0x800, scoped, tag = 'output window, operand 0']
    %33 = vsyncpa [#allocation5], 0
    %s34 = scalar_lea.sflag [#allocation5], 1
    %35 = vsyncpa %s34, 0
    %36 = vsyncpa [#allocation8], 0
    %s37 = scalar_lea.sflag [#allocation8], 1
    %38 = vsyncpa %s37, 0
    %39 = vsyncpa [#allocation11], 0
    %40 = vsyncpa [#allocation14], 0
    %41 = vsyncpa [#allocation17], 0
    %42 = vsyncpa [#allocation20], 0
    %43 = vsyncpa [#allocation6], 0
    %s44 = scalar_lea.sflag [#allocation6], 1
    %45 = vsyncpa %s44, 0
    loop: start=0, step=1, limit=6
    $region2: #{tpu_custom_call.1} parent=1 // loop_pre_header
      _
    $region3: #{tpu_custom_call.1} parent=1 // loop_header
      %s47 = sphi 0, %s51
      %p48 = scmp.ge.s32.totalorder %s47, 6
      %s54 = sphi 0, %s66
      %s55 = sphi 0, %s62
      %s56 = sphi 0, %s54
      %s57 = sphi 0, %s55
      %s58 = sphi 0, %s56
      %s59 = sphi 0, %s57
      %s69 = sphi 0, %s71
      %s72 = sphi 0, %s69
      %s73 = sphi 0, %s72
      %s89 = sphi 0, %s73
      %s95 = sphi 0, %s97
      %s98 = sphi 0, %s95
      %s99 = sphi 0, %s98
      %s115 = sphi 0, %s99
      %s119 = sphi 0, %s119
      %s121 = sphi 0, %s119
      %s122 = sphi 0, %s121
      %s136 = sphi 0, %s122
      %s140 = sphi 0, %s140
      %s142 = sphi 0, %s140
      %s143 = sphi 0, %s142
      %s157 = sphi 0, %s143
      %s161 = sphi 0, %s161
      %s163 = sphi 0, %s161
      %s164 = sphi 0, %s163
      %s178 = sphi 0, %s164
      %s182 = sphi 0, %s182
      %s184 = sphi 0, %s182
      %s185 = sphi 0, %s184
      %s199 = sphi 0, %s185
      %s203 = sphi 0, %s203
      %s205 = sphi 0, %s203
      %s206 = sphi 0, %s205
      %s220 = sphi 0, %s206
      %s224 = sphi 0, %s224
      %s226 = sphi 0, %s224
      %s227 = sphi 0, %s226
      %s241 = sphi 0, %s227
      %s245 = sphi 0, %s245
      %s247 = sphi 0, %s245
      %s248 = sphi 0, %s247
      %s262 = sphi 0, %s248
      %s266 = sphi 0, %s266
      %s268 = sphi 0, %s266
      %s269 = sphi 0, %s268
      %s283 = sphi 0, %s269
      %s289 = sphi 0, %s291
      %s292 = sphi 0, %s289
      %s293 = sphi 0, %s292
      %s309 = sphi 0, %s293
      %s315 = sphi 0, %s317
      %s318 = sphi 0, %s315
      %s319 = sphi 0, %s318
      %s335 = sphi 0, %s319
      %s341 = sphi 0, %s343
      %s344 = sphi 0, %s341
      %s345 = sphi 0, %s344
      %s361 = sphi 0, %s345
      %s367 = sphi 0, %s369
      %s370 = sphi 0, %s367
      %s371 = sphi 0, %s370
      %s387 = sphi 0, %s371
      %s393 = sphi 0, %s395
      %s396 = sphi 0, %s393
      %s397 = sphi 0, %s396
      %s413 = sphi 0, %s397
      %s419 = sphi 0, %s421
      %s422 = sphi 0, %s419
      %s423 = sphi 0, %s422
      %s439 = sphi 0, %s423
      %s445 = sphi 0, %s447
      %s448 = sphi 0, %s445
      %s449 = sphi 0, %s448
      %s465 = sphi 0, %s449
      %s471 = sphi 0, %s473
      %s474 = sphi 0, %s471
      %s475 = sphi 0, %s474
      %s491 = sphi 0, %s475
      %s497 = sphi 0, %s499
      %s500 = sphi 0, %s497
      %s501 = sphi 0, %s500
      %s517 = sphi 0, %s501
      %s523 = sphi 0, %s525
      %s526 = sphi 0, %s523
      %s527 = sphi 0, %s526
      %s543 = sphi 0, %s527
      %s549 = sphi 0, %s551
      %s552 = sphi 0, %s549
      %s553 = sphi 0, %s552
      %s569 = sphi 0, %s553
      %s575 = sphi 0, %s577
      %s578 = sphi 0, %s575
      %s579 = sphi 0, %s578
      %s595 = sphi 0, %s579
      %s599 = sphi 0, %s599
      %s601 = sphi 0, %s599
      %s602 = sphi 0, %s601
      %s616 = sphi 0, %s602
      %s620 = sphi 0, %s620
      %s622 = sphi 0, %s620
      %s623 = sphi 0, %s622
      %s637 = sphi 0, %s623
      %s641 = sphi 0, %s641
      %s643 = sphi 0, %s641
      %s644 = sphi 0, %s643
      %s658 = sphi 0, %s644
      %s662 = sphi 0, %s662
      %s664 = sphi 0, %s662
      %s665 = sphi 0, %s664
      %s679 = sphi 0, %s665
      %s685 = sphi 0, %s687
      %s688 = sphi 0, %s685
      %s689 = sphi 0, %s688
      %s705 = sphi 0, %s689
    $region4: #{tpu_custom_call.1} parent=1 // loop_header_branch
      %50 = sbr.rel (%p48) target = $region8
    $region5: #{tpu_custom_call.1} parent=1 // loop_body
      %s52 = ssub.s32 %s47, 1
      %s53 = ssub.s32 %s47, 2
      %s60 = sadd.s32 1, %s55
      %p61 = scmp.ge.s32.totalorder %s60, 2
      %s62 = scalar_select %p61, 0, %s60
      %s63 = sadd.s32 1, %s54
      %s64 = scalar_select %p61, %s63, %s54
      %p65 = scmp.ge.s32.totalorder %s64, 2
      %s66 = scalar_select %p65, 0, %s64
      %s67 = ssub.s32 %s54, %s66
      %p68 = scmp.eq.s32.totalorder %s67, 0
      %s70 = sadd.s32 %s69, 1
      %s71 = scalar_select %p68, %s69, %s70
      %p74 = pneg %p68
      %p75 = scmp.eq.s32.totalorder %s47, 3
      %p76 = por %p74, %p75
      %p77 = scmp.ne.s32.totalorder %s69, %s72
      %p78 = scmp.eq.s32.totalorder %s47, 0
      %p79 = por %p77, %p78
      %p80 = scmp.ne.s32.totalorder %s69, %s72
      %p81 = scmp.eq.s32.totalorder %s52, 3
      %p82 = por %p80, %p81
      %p83 = scmp.ne.s32.totalorder %s72, %s73
      %p84 = scmp.eq.s32.totalorder %s52, 0
      %p85 = por %p83, %p84
      %p86 = scmp.ne.s32.totalorder %s72, %s73
      %p87 = scmp.eq.s32.totalorder %s53, 3
      %p88 = por %p86, %p87
      %p90 = scmp.ne.s32.totalorder %s73, %s89
      %p91 = scmp.eq.s32.totalorder %s53, 0
      %p92 = por %p90, %p91
      %s93 = ssub.s32 %s54, %s66
      %p94 = scmp.eq.s32.totalorder %s93, 0
      %s96 = sadd.s32 %s95, 1
      %s97 = scalar_select %p94, %s95, %s96
      %p100 = pneg %p94
      %p101 = scmp.eq.s32.totalorder %s47, 3
      %p102 = por %p100, %p101
      %p103 = scmp.ne.s32.totalorder %s95, %s98
      %p104 = scmp.eq.s32.totalorder %s47, 0
      %p105 = por %p103, %p104
      %p106 = scmp.ne.s32.totalorder %s95, %s98
      %p107 = scmp.eq.s32.totalorder %s52, 3
      %p108 = por %p106, %p107
      %p109 = scmp.ne.s32.totalorder %s98, %s99
      %p110 = scmp.eq.s32.totalorder %s52, 0
      %p111 = por %p109, %p110
      %p112 = scmp.ne.s32.totalorder %s98, %s99
      %p113 = scmp.eq.s32.totalorder %s53, 3
      %p114 = por %p112, %p113
      %p116 = scmp.ne.s32.totalorder %s99, %s115
      %p117 = scmp.eq.s32.totalorder %s53, 0
      %p118 = por %p116, %p117
      %s120 = sadd.s32 %s119, 1
      %p123 = scmp.eq.s32.totalorder %s47, 3
      %p124 = scmp.ne.s32.totalorder %s119, %s121
      %p125 = scmp.eq.s32.totalorder %s47, 0
      %p126 = por %p124, %p125
      %p127 = scmp.ne.s32.totalorder %s119, %s121
      %p128 = scmp.eq.s32.totalorder %s52, 3
      %p129 = por %p127, %p128
      %p130 = scmp.ne.s32.totalorder %s121, %s122
      %p131 = scmp.eq.s32.totalorder %s52, 0
      %p132 = por %p130, %p131
      %p133 = scmp.ne.s32.totalorder %s121, %s122
      %p134 = scmp.eq.s32.totalorder %s53, 3
      %p135 = por %p133, %p134
      %p137 = scmp.ne.s32.totalorder %s122, %s136
      %p138 = scmp.eq.s32.totalorder %s53, 0
      %p139 = por %p137, %p138
      %s141 = sadd.s32 %s140, 1
      %p144 = scmp.eq.s32.totalorder %s47, 3
      %p145 = scmp.ne.s32.totalorder %s140, %s142
      %p146 = scmp.eq.s32.totalorder %s47, 0
      %p147 = por %p145, %p146
      %p148 = scmp.ne.s32.totalorder %s140, %s142
      %p149 = scmp.eq.s32.totalorder %s52, 3
      %p150 = por %p148, %p149
      %p151 = scmp.ne.s32.totalorder %s142, %s143
      %p152 = scmp.eq.s32.totalorder %s52, 0
      %p153 = por %p151, %p152
      %p154 = scmp.ne.s32.totalorder %s142, %s143
      %p155 = scmp.eq.s32.totalorder %s53, 3
      %p156 = por %p154, %p155
      %p158 = scmp.ne.s32.totalorder %s143, %s157
      %p159 = scmp.eq.s32.totalorder %s53, 0
      %p160 = por %p158, %p159
      %s162 = sadd.s32 %s161, 1
      %p165 = scmp.eq.s32.totalorder %s47, 3
      %p166 = scmp.ne.s32.totalorder %s161, %s163
      %p167 = scmp.eq.s32.totalorder %s47, 0
      %p168 = por %p166, %p167
      %p169 = scmp.ne.s32.totalorder %s161, %s163
      %p170 = scmp.eq.s32.totalorder %s52, 3
      %p171 = por %p169, %p170
      %p172 = scmp.ne.s32.totalorder %s163, %s164
      %p173 = scmp.eq.s32.totalorder %s52, 0
      %p174 = por %p172, %p173
      %p175 = scmp.ne.s32.totalorder %s163, %s164
      %p176 = scmp.eq.s32.totalorder %s53, 3
      %p177 = por %p175, %p176
      %p179 = scmp.ne.s32.totalorder %s164, %s178
      %p180 = scmp.eq.s32.totalorder %s53, 0
      %p181 = por %p179, %p180
      %s183 = sadd.s32 %s182, 1
      %p186 = scmp.eq.s32.totalorder %s47, 3
      %p187 = scmp.ne.s32.totalorder %s182, %s184
      %p188 = scmp.eq.s32.totalorder %s47, 0
      %p189 = por %p187, %p188
      %p190 = scmp.ne.s32.totalorder %s182, %s184
      %p191 = scmp.eq.s32.totalorder %s52, 3
      %p192 = por %p190, %p191
      %p193 = scmp.ne.s32.totalorder %s184, %s185
      %p194 = scmp.eq.s32.totalorder %s52, 0
      %p195 = por %p193, %p194
      %p196 = scmp.ne.s32.totalorder %s184, %s185
      %p197 = scmp.eq.s32.totalorder %s53, 3
      %p198 = por %p196, %p197
      %p200 = scmp.ne.s32.totalorder %s185, %s199
      %p201 = scmp.eq.s32.totalorder %s53, 0
      %p202 = por %p200, %p201
      %s204 = sadd.s32 %s203, 1
      %p207 = scmp.eq.s32.totalorder %s47, 3
      %p208 = scmp.ne.s32.totalorder %s203, %s205
      %p209 = scmp.eq.s32.totalorder %s47, 0
      %p210 = por %p208, %p209
      %p211 = scmp.ne.s32.totalorder %s203, %s205
      %p212 = scmp.eq.s32.totalorder %s52, 3
      %p213 = por %p211, %p212
      %p214 = scmp.ne.s32.totalorder %s205, %s206
      %p215 = scmp.eq.s32.totalorder %s52, 0
      %p216 = por %p214, %p215
      %p217 = scmp.ne.s32.totalorder %s205, %s206
      %p218 = scmp.eq.s32.totalorder %s53, 3
      %p219 = por %p217, %p218
      %p221 = scmp.ne.s32.totalorder %s206, %s220
      %p222 = scmp.eq.s32.totalorder %s53, 0
      %p223 = por %p221, %p222
      %s225 = sadd.s32 %s224, 1
      %p228 = scmp.eq.s32.totalorder %s47, 3
      %p229 = scmp.ne.s32.totalorder %s224, %s226
      %p230 = scmp.eq.s32.totalorder %s47, 0
      %p231 = por %p229, %p230
      %p232 = scmp.ne.s32.totalorder %s224, %s226
      %p233 = scmp.eq.s32.totalorder %s52, 3
      %p234 = por %p232, %p233
      %p235 = scmp.ne.s32.totalorder %s226, %s227
      %p236 = scmp.eq.s32.totalorder %s52, 0
      %p237 = por %p235, %p236
      %p238 = scmp.ne.s32.totalorder %s226, %s227
      %p239 = scmp.eq.s32.totalorder %s53, 3
      %p240 = por %p238, %p239
      %p242 = scmp.ne.s32.totalorder %s227, %s241
      %p243 = scmp.eq.s32.totalorder %s53, 0
      %p244 = por %p242, %p243
      %s246 = sadd.s32 %s245, 1
      %p249 = scmp.eq.s32.totalorder %s47, 3
      %p250 = scmp.ne.s32.totalorder %s245, %s247
      %p251 = scmp.eq.s32.totalorder %s47, 0
      %p252 = por %p250, %p251
      %p253 = scmp.ne.s32.totalorder %s245, %s247
      %p254 = scmp.eq.s32.totalorder %s52, 3
      %p255 = por %p253, %p254
      %p256 = scmp.ne.s32.totalorder %s247, %s248
      %p257 = scmp.eq.s32.totalorder %s52, 0
      %p258 = por %p256, %p257
      %p259 = scmp.ne.s32.totalorder %s247, %s248
      %p260 = scmp.eq.s32.totalorder %s53, 3
      %p261 = por %p259, %p260
      %p263 = scmp.ne.s32.totalorder %s248, %s262
      %p264 = scmp.eq.s32.totalorder %s53, 0
      %p265 = por %p263, %p264
      %s267 = sadd.s32 %s266, 1
      %p270 = scmp.eq.s32.totalorder %s47, 3
      %p271 = scmp.ne.s32.totalorder %s266, %s268
      %p272 = scmp.eq.s32.totalorder %s47, 0
      %p273 = por %p271, %p272
      %p274 = scmp.ne.s32.totalorder %s266, %s268
      %p275 = scmp.eq.s32.totalorder %s52, 3
      %p276 = por %p274, %p275
      %p277 = scmp.ne.s32.totalorder %s268, %s269
      %p278 = scmp.eq.s32.totalorder %s52, 0
      %p279 = por %p277, %p278
      %p280 = scmp.ne.s32.totalorder %s268, %s269
      %p281 = scmp.eq.s32.totalorder %s53, 3
      %p282 = por %p280, %p281
      %p284 = scmp.ne.s32.totalorder %s269, %s283
      %p285 = scmp.eq.s32.totalorder %s53, 0
      %p286 = por %p284, %p285
      %s287 = ssub.s32 %s55, %s62
      %p288 = scmp.eq.s32.totalorder %s287, 0
      %s290 = sadd.s32 %s289, 1
      %s291 = scalar_select %p288, %s289, %s290
      %p294 = pneg %p288
      %p295 = scmp.eq.s32.totalorder %s47, 3
      %p296 = por %p294, %p295
      %p297 = scmp.ne.s32.totalorder %s289, %s292
      %p298 = scmp.eq.s32.totalorder %s47, 0
      %p299 = por %p297, %p298
      %p300 = scmp.ne.s32.totalorder %s289, %s292
      %p301 = scmp.eq.s32.totalorder %s52, 3
      %p302 = por %p300, %p301
      %p303 = scmp.ne.s32.totalorder %s292, %s293
      %p304 = scmp.eq.s32.totalorder %s52, 0
      %p305 = por %p303, %p304
      %p306 = scmp.ne.s32.totalorder %s292, %s293
      %p307 = scmp.eq.s32.totalorder %s53, 3
      %p308 = por %p306, %p307
      %p310 = scmp.ne.s32.totalorder %s293, %s309
      %p311 = scmp.eq.s32.totalorder %s53, 0
      %p312 = por %p310, %p311
      %s313 = ssub.s32 %s55, %s62
      %p314 = scmp.eq.s32.totalorder %s313, 0
      %s316 = sadd.s32 %s315, 1
      %s317 = scalar_select %p314, %s315, %s316
      %p320 = pneg %p314
      %p321 = scmp.eq.s32.totalorder %s47, 3
      %p322 = por %p320, %p321
      %p323 = scmp.ne.s32.totalorder %s315, %s318
      %p324 = scmp.eq.s32.totalorder %s47, 0
      %p325 = por %p323, %p324
      %p326 = scmp.ne.s32.totalorder %s315, %s318
      %p327 = scmp.eq.s32.totalorder %s52, 3
      %p328 = por %p326, %p327
      %p329 = scmp.ne.s32.totalorder %s318, %s319
      %p330 = scmp.eq.s32.totalorder %s52, 0
      %p331 = por %p329, %p330
      %p332 = scmp.ne.s32.totalorder %s318, %s319
      %p333 = scmp.eq.s32.totalorder %s53, 3
      %p334 = por %p332, %p333
      %p336 = scmp.ne.s32.totalorder %s319, %s335
      %p337 = scmp.eq.s32.totalorder %s53, 0
      %p338 = por %p336, %p337
      %s339 = ssub.s32 %s55, %s62
      %p340 = scmp.eq.s32.totalorder %s339, 0
      %s342 = sadd.s32 %s341, 1
      %s343 = scalar_select %p340, %s341, %s342
      %p346 = pneg %p340
      %p347 = scmp.eq.s32.totalorder %s47, 3
      %p348 = por %p346, %p347
      %p349 = scmp.ne.s32.totalorder %s341, %s344
      %p350 = scmp.eq.s32.totalorder %s47, 0
      %p351 = por %p349, %p350
      %p352 = scmp.ne.s32.totalorder %s341, %s344
      %p353 = scmp.eq.s32.totalorder %s52, 3
      %p354 = por %p352, %p353
      %p355 = scmp.ne.s32.totalorder %s344, %s345
      %p356 = scmp.eq.s32.totalorder %s52, 0
      %p357 = por %p355, %p356
      %p358 = scmp.ne.s32.totalorder %s344, %s345
      %p359 = scmp.eq.s32.totalorder %s53, 3
      %p360 = por %p358, %p359
      %p362 = scmp.ne.s32.totalorder %s345, %s361
      %p363 = scmp.eq.s32.totalorder %s53, 0
      %p364 = por %p362, %p363
      %s365 = ssub.s32 %s55, %s62
      %p366 = scmp.eq.s32.totalorder %s365, 0
      %s368 = sadd.s32 %s367, 1
      %s369 = scalar_select %p366, %s367, %s368
      %p372 = pneg %p366
      %p373 = scmp.eq.s32.totalorder %s47, 3
      %p374 = por %p372, %p373
      %p375 = scmp.ne.s32.totalorder %s367, %s370
      %p376 = scmp.eq.s32.totalorder %s47, 0
      %p377 = por %p375, %p376
      %p378 = scmp.ne.s32.totalorder %s367, %s370
      %p379 = scmp.eq.s32.totalorder %s52, 3
      %p380 = por %p378, %p379
      %p381 = scmp.ne.s32.totalorder %s370, %s371
      %p382 = scmp.eq.s32.totalorder %s52, 0
      %p383 = por %p381, %p382
      %p384 = scmp.ne.s32.totalorder %s370, %s371
      %p385 = scmp.eq.s32.totalorder %s53, 3
      %p386 = por %p384, %p385
      %p388 = scmp.ne.s32.totalorder %s371, %s387
      %p389 = scmp.eq.s32.totalorder %s53, 0
      %p390 = por %p388, %p389
      %s391 = ssub.s32 %s55, %s62
      %p392 = scmp.eq.s32.totalorder %s391, 0
      %s394 = sadd.s32 %s393, 1
      %s395 = scalar_select %p392, %s393, %s394
      %p398 = pneg %p392
      %p399 = scmp.eq.s32.totalorder %s47, 3
      %p400 = por %p398, %p399
      %p401 = scmp.ne.s32.totalorder %s393, %s396
      %p402 = scmp.eq.s32.totalorder %s47, 0
      %p403 = por %p401, %p402
      %p404 = scmp.ne.s32.totalorder %s393, %s396
      %p405 = scmp.eq.s32.totalorder %s52, 3
      %p406 = por %p404, %p405
      %p407 = scmp.ne.s32.totalorder %s396, %s397
      %p408 = scmp.eq.s32.totalorder %s52, 0
      %p409 = por %p407, %p408
      %p410 = scmp.ne.s32.totalorder %s396, %s397
      %p411 = scmp.eq.s32.totalorder %s53, 3
      %p412 = por %p410, %p411
      %p414 = scmp.ne.s32.totalorder %s397, %s413
      %p415 = scmp.eq.s32.totalorder %s53, 0
      %p416 = por %p414, %p415
      %s417 = ssub.s32 %s55, %s62
      %p418 = scmp.eq.s32.totalorder %s417, 0
      %s420 = sadd.s32 %s419, 1
      %s421 = scalar_select %p418, %s419, %s420
      %p424 = pneg %p418
      %p425 = scmp.eq.s32.totalorder %s47, 3
      %p426 = por %p424, %p425
      %p427 = scmp.ne.s32.totalorder %s419, %s422
      %p428 = scmp.eq.s32.totalorder %s47, 0
      %p429 = por %p427, %p428
      %p430 = scmp.ne.s32.totalorder %s419, %s422
      %p431 = scmp.eq.s32.totalorder %s52, 3
      %p432 = por %p430, %p431
      %p433 = scmp.ne.s32.totalorder %s422, %s423
      %p434 = scmp.eq.s32.totalorder %s52, 0
      %p435 = por %p433, %p434
      %p436 = scmp.ne.s32.totalorder %s422, %s423
      %p437 = scmp.eq.s32.totalorder %s53, 3
      %p438 = por %p436, %p437
      %p440 = scmp.ne.s32.totalorder %s423, %s439
      %p441 = scmp.eq.s32.totalorder %s53, 0
      %p442 = por %p440, %p441
      %s443 = ssub.s32 %s55, %s62
      %p444 = scmp.eq.s32.totalorder %s443, 0
      %s446 = sadd.s32 %s445, 1
      %s447 = scalar_select %p444, %s445, %s446
      %p450 = pneg %p444
      %p451 = scmp.eq.s32.totalorder %s47, 3
      %p452 = por %p450, %p451
      %p453 = scmp.ne.s32.totalorder %s445, %s448
      %p454 = scmp.eq.s32.totalorder %s47, 0
      %p455 = por %p453, %p454
      %p456 = scmp.ne.s32.totalorder %s445, %s448
      %p457 = scmp.eq.s32.totalorder %s52, 3
      %p458 = por %p456, %p457
      %p459 = scmp.ne.s32.totalorder %s448, %s449
      %p460 = scmp.eq.s32.totalorder %s52, 0
      %p461 = por %p459, %p460
      %p462 = scmp.ne.s32.totalorder %s448, %s449
      %p463 = scmp.eq.s32.totalorder %s53, 3
      %p464 = por %p462, %p463
      %p466 = scmp.ne.s32.totalorder %s449, %s465
      %p467 = scmp.eq.s32.totalorder %s53, 0
      %p468 = por %p466, %p467
      %s469 = ssub.s32 %s55, %s62
      %p470 = scmp.eq.s32.totalorder %s469, 0
      %s472 = sadd.s32 %s471, 1
      %s473 = scalar_select %p470, %s471, %s472
      %p476 = pneg %p470
      %p477 = scmp.eq.s32.totalorder %s47, 3
      %p478 = por %p476, %p477
      %p479 = scmp.ne.s32.totalorder %s471, %s474
      %p480 = scmp.eq.s32.totalorder %s47, 0
      %p481 = por %p479, %p480
      %p482 = scmp.ne.s32.totalorder %s471, %s474
      %p483 = scmp.eq.s32.totalorder %s52, 3
      %p484 = por %p482, %p483
      %p485 = scmp.ne.s32.totalorder %s474, %s475
      %p486 = scmp.eq.s32.totalorder %s52, 0
      %p487 = por %p485, %p486
      %p488 = scmp.ne.s32.totalorder %s474, %s475
      %p489 = scmp.eq.s32.totalorder %s53, 3
      %p490 = por %p488, %p489
      %p492 = scmp.ne.s32.totalorder %s475, %s491
      %p493 = scmp.eq.s32.totalorder %s53, 0
      %p494 = por %p492, %p493
      %s495 = ssub.s32 %s55, %s62
      %p496 = scmp.eq.s32.totalorder %s495, 0
      %s498 = sadd.s32 %s497, 1
      %s499 = scalar_select %p496, %s497, %s498
      %p502 = pneg %p496
      %p503 = scmp.eq.s32.totalorder %s47, 3
      %p504 = por %p502, %p503
      %p505 = scmp.ne.s32.totalorder %s497, %s500
      %p506 = scmp.eq.s32.totalorder %s47, 0
      %p507 = por %p505, %p506
      %p508 = scmp.ne.s32.totalorder %s497, %s500
      %p509 = scmp.eq.s32.totalorder %s52, 3
      %p510 = por %p508, %p509
      %p511 = scmp.ne.s32.totalorder %s500, %s501
      %p512 = scmp.eq.s32.totalorder %s52, 0
      %p513 = por %p511, %p512
      %p514 = scmp.ne.s32.totalorder %s500, %s501
      %p515 = scmp.eq.s32.totalorder %s53, 3
      %p516 = por %p514, %p515
      %p518 = scmp.ne.s32.totalorder %s501, %s517
      %p519 = scmp.eq.s32.totalorder %s53, 0
      %p520 = por %p518, %p519
      %s521 = ssub.s32 %s55, %s62
      %p522 = scmp.eq.s32.totalorder %s521, 0
      %s524 = sadd.s32 %s523, 1
      %s525 = scalar_select %p522, %s523, %s524
      %p528 = pneg %p522
      %p529 = scmp.eq.s32.totalorder %s47, 3
      %p530 = por %p528, %p529
      %p531 = scmp.ne.s32.totalorder %s523, %s526
      %p532 = scmp.eq.s32.totalorder %s47, 0
      %p533 = por %p531, %p532
      %p534 = scmp.ne.s32.totalorder %s523, %s526
      %p535 = scmp.eq.s32.totalorder %s52, 3
      %p536 = por %p534, %p535
      %p537 = scmp.ne.s32.totalorder %s526, %s527
      %p538 = scmp.eq.s32.totalorder %s52, 0
      %p539 = por %p537, %p538
      %p540 = scmp.ne.s32.totalorder %s526, %s527
      %p541 = scmp.eq.s32.totalorder %s53, 3
      %p542 = por %p540, %p541
      %p544 = scmp.ne.s32.totalorder %s527, %s543
      %p545 = scmp.eq.s32.totalorder %s53, 0
      %p546 = por %p544, %p545
      %s547 = ssub.s32 %s55, %s62
      %p548 = scmp.eq.s32.totalorder %s547, 0
      %s550 = sadd.s32 %s549, 1
      %s551 = scalar_select %p548, %s549, %s550
      %p554 = pneg %p548
      %p555 = scmp.eq.s32.totalorder %s47, 3
      %p556 = por %p554, %p555
      %p557 = scmp.ne.s32.totalorder %s549, %s552
      %p558 = scmp.eq.s32.totalorder %s47, 0
      %p559 = por %p557, %p558
      %p560 = scmp.ne.s32.totalorder %s549, %s552
      %p561 = scmp.eq.s32.totalorder %s52, 3
      %p562 = por %p560, %p561
      %p563 = scmp.ne.s32.totalorder %s552, %s553
      %p564 = scmp.eq.s32.totalorder %s52, 0
      %p565 = por %p563, %p564
      %p566 = scmp.ne.s32.totalorder %s552, %s553
      %p567 = scmp.eq.s32.totalorder %s53, 3
      %p568 = por %p566, %p567
      %p570 = scmp.ne.s32.totalorder %s553, %s569
      %p571 = scmp.eq.s32.totalorder %s53, 0
      %p572 = por %p570, %p571
      %s573 = ssub.s32 %s55, %s62
      %p574 = scmp.eq.s32.totalorder %s573, 0
      %s576 = sadd.s32 %s575, 1
      %s577 = scalar_select %p574, %s575, %s576
      %p580 = pneg %p574
      %p581 = scmp.eq.s32.totalorder %s47, 3
      %p582 = por %p580, %p581
      %p583 = scmp.ne.s32.totalorder %s575, %s578
      %p584 = scmp.eq.s32.totalorder %s47, 0
      %p585 = por %p583, %p584
      %p586 = scmp.ne.s32.totalorder %s575, %s578
      %p587 = scmp.eq.s32.totalorder %s52, 3
      %p588 = por %p586, %p587
      %p589 = scmp.ne.s32.totalorder %s578, %s579
      %p590 = scmp.eq.s32.totalorder %s52, 0
      %p591 = por %p589, %p590
      %p592 = scmp.ne.s32.totalorder %s578, %s579
      %p593 = scmp.eq.s32.totalorder %s53, 3
      %p594 = por %p592, %p593
      %p596 = scmp.ne.s32.totalorder %s579, %s595
      %p597 = scmp.eq.s32.totalorder %s53, 0
      %p598 = por %p596, %p597
      %s600 = sadd.s32 %s599, 1
      %p603 = scmp.eq.s32.totalorder %s47, 3
      %p604 = scmp.ne.s32.totalorder %s599, %s601
      %p605 = scmp.eq.s32.totalorder %s47, 0
      %p606 = por %p604, %p605
      %p607 = scmp.ne.s32.totalorder %s599, %s601
      %p608 = scmp.eq.s32.totalorder %s52, 3
      %p609 = por %p607, %p608
      %p610 = scmp.ne.s32.totalorder %s601, %s602
      %p611 = scmp.eq.s32.totalorder %s52, 0
      %p612 = por %p610, %p611
      %p613 = scmp.ne.s32.totalorder %s601, %s602
      %p614 = scmp.eq.s32.totalorder %s53, 3
      %p615 = por %p613, %p614
      %p617 = scmp.ne.s32.totalorder %s602, %s616
      %p618 = scmp.eq.s32.totalorder %s53, 0
      %p619 = por %p617, %p618
      %s621 = sadd.s32 %s620, 1
      %p624 = scmp.eq.s32.totalorder %s47, 3
      %p625 = scmp.ne.s32.totalorder %s620, %s622
      %p626 = scmp.eq.s32.totalorder %s47, 0
      %p627 = por %p625, %p626
      %p628 = scmp.ne.s32.totalorder %s620, %s622
      %p629 = scmp.eq.s32.totalorder %s52, 3
      %p630 = por %p628, %p629
      %p631 = scmp.ne.s32.totalorder %s622, %s623
      %p632 = scmp.eq.s32.totalorder %s52, 0
      %p633 = por %p631, %p632
      %p634 = scmp.ne.s32.totalorder %s622, %s623
      %p635 = scmp.eq.s32.totalorder %s53, 3
      %p636 = por %p634, %p635
      %p638 = scmp.ne.s32.totalorder %s623, %s637
      %p639 = scmp.eq.s32.totalorder %s53, 0
      %p640 = por %p638, %p639
      %s642 = sadd.s32 %s641, 1
      %p645 = scmp.eq.s32.totalorder %s47, 3
      %p646 = scmp.ne.s32.totalorder %s641, %s643
      %p647 = scmp.eq.s32.totalorder %s47, 0
      %p648 = por %p646, %p647
      %p649 = scmp.ne.s32.totalorder %s641, %s643
      %p650 = scmp.eq.s32.totalorder %s52, 3
      %p651 = por %p649, %p650
      %p652 = scmp.ne.s32.totalorder %s643, %s644
      %p653 = scmp.eq.s32.totalorder %s52, 0
      %p654 = por %p652, %p653
      %p655 = scmp.ne.s32.totalorder %s643, %s644
      %p656 = scmp.eq.s32.totalorder %s53, 3
      %p657 = por %p655, %p656
      %p659 = scmp.ne.s32.totalorder %s644, %s658
      %p660 = scmp.eq.s32.totalorder %s53, 0
      %p661 = por %p659, %p660
      %s663 = sadd.s32 %s662, 1
      %p666 = scmp.eq.s32.totalorder %s47, 3
      %p667 = scmp.ne.s32.totalorder %s662, %s664
      %p668 = scmp.eq.s32.totalorder %s47, 0
      %p669 = por %p667, %p668
      %p670 = scmp.ne.s32.totalorder %s662, %s664
      %p671 = scmp.eq.s32.totalorder %s52, 3
      %p672 = por %p670, %p671
      %p673 = scmp.ne.s32.totalorder %s664, %s665
      %p674 = scmp.eq.s32.totalorder %s52, 0
      %p675 = por %p673, %p674
      %p676 = scmp.ne.s32.totalorder %s664, %s665
      %p677 = scmp.eq.s32.totalorder %s53, 3
      %p678 = por %p676, %p677
      %p680 = scmp.ne.s32.totalorder %s665, %s679
      %p681 = scmp.eq.s32.totalorder %s53, 0
      %p682 = por %p680, %p681
      %s683 = ssub.s32 %s54, %s66
      %p684 = scmp.eq.s32.totalorder %s683, 0
      %s686 = sadd.s32 %s685, 1
      %s687 = scalar_select %p684, %s685, %s686
      %p690 = pneg %p684
      %p691 = scmp.eq.s32.totalorder %s47, 3
      %p692 = por %p690, %p691
      %p693 = scmp.ne.s32.totalorder %s685, %s688
      %p694 = scmp.eq.s32.totalorder %s47, 0
      %p695 = por %p693, %p694
      %p696 = scmp.ne.s32.totalorder %s685, %s688
      %p697 = scmp.eq.s32.totalorder %s52, 3
      %p698 = por %p696, %p697
      %p699 = scmp.ne.s32.totalorder %s688, %s689
      %p700 = scmp.eq.s32.totalorder %s52, 0
      %p701 = por %p699, %p700
      %p702 = scmp.ne.s32.totalorder %s688, %s689
      %p703 = scmp.eq.s32.totalorder %s53, 3
      %p704 = por %p702, %p703
      %p706 = scmp.ne.s32.totalorder %s689, %s705
      %p707 = scmp.eq.s32.totalorder %s53, 0
      %p708 = por %p706, %p707
      %p709 = scmp.le.s32.totalorder 1, %s47
      %p710 = scmp.lt.s32.totalorder %s47, 5
      %p711 = pnand %p709, %p710
      %p712 = pneg %p711
      // Predicated region
      $region9: #{tpu_custom_call.1} parent=5 // pred_check
        _
      $region10: #{tpu_custom_call.1} parent=5 // pred_check_branch
        %714 = sbr.rel (%p711) target = $region12
      $region11: #{tpu_custom_call.1} parent=5 // pred_region
        %s715 = ssub.s32 %s47, 1
        // Predicated region
        $region13: #{tpu_custom_call.1} parent=11 // pred_check
          %p716 = pneg %p132
        $region14: #{tpu_custom_call.1} parent=11 // pred_check_branch
          %718 = sbr.rel (%p716) target = $region16
        $region15: #{tpu_custom_call.1} parent=11 // pred_region
          %s720 = ssub.s32 32, 32
          %721 = vsyncadd [#allocation8], %s720
          %s723 = sshll.u32 [#allocation9], 4
          %s724 = int_to_ptr.vmem [resolvable:$true] %s723
          %726 = dma.hbm_to_vmem [thread:$0]  %s2, 32, %s724, [#allocation8]
        $region16: #{tpu_custom_call.1} parent=11 // pred_fallthru
          _
        // Predicated region
        $region17: #{tpu_custom_call.1} parent=11 // pred_check
          %p727 = pneg %p153
        $region18: #{tpu_custom_call.1} parent=11 // pred_check_branch
          %729 = sbr.rel (%p727) target = $region20
        $region19: #{tpu_custom_call.1} parent=11 // pred_region
          %s731 = ssub.s32 16, 16
          %732 = vsyncadd [#allocation11], %s731
          %s734 = sshll.u32 [#allocation10], 4
          %s735 = int_to_ptr.vmem [resolvable:$true] %s734
          %737 = dma.hbm_to_vmem [thread:$0]  %s3, 16, %s735, [#allocation11]
        $region20: #{tpu_custom_call.1} parent=11 // pred_fallthru
          _
        // Predicated region
        $region21: #{tpu_custom_call.1} parent=11 // pred_check
          %p738 = pneg %p174
        $region22: #{tpu_custom_call.1} parent=11 // pred_check_branch
          %740 = sbr.rel (%p738) target = $region24
        $region23: #{tpu_custom_call.1} parent=11 // pred_region
          %s742 = ssub.s32 128, 128
          %743 = vsyncadd [#allocation11], %s742
          %s744 = sshll.u32 [#allocation12], 4
          %s745 = int_to_ptr.vmem [resolvable:$true] %s744
          %750 = dma.hbm_to_vmem [thread:$0]  %s4, 128, %s745, [#allocation11], 64, 64, 4
        $region24: #{tpu_custom_call.1} parent=11 // pred_fallthru
          _
        // Predicated region
        $region25: #{tpu_custom_call.1} parent=11 // pred_check
          %p751 = pneg %p195
        $region26: #{tpu_custom_call.1} parent=11 // pred_check_branch
          %753 = sbr.rel (%p751) target = $region28
        $region27: #{tpu_custom_call.1} parent=11 // pred_region
          %s755 = ssub.s32 256, 256
          %756 = vsyncadd [#allocation14], %s755
          %s757 = sshll.u32 [#allocation13], 4
          %s758 = int_to_ptr.vmem [resolvable:$true] %s757
          %763 = dma.hbm_to_vmem [thread:$0]  %s5, 256, %s758, [#allocation14], 128, 128, 8
        $region28: #{tpu_custom_call.1} parent=11 // pred_fallthru
          _
        // Predicated region
        $region29: #{tpu_custom_call.1} parent=11 // pred_check
          %p764 = pneg %p216
        $region30: #{tpu_custom_call.1} parent=11 // pred_check_branch
          %766 = sbr.rel (%p764) target = $region32
        $region31: #{tpu_custom_call.1} parent=11 // pred_region
          %s768 = ssub.s32 256, 256
          %769 = vsyncadd [#allocation14], %s768
          %s770 = sshll.u32 [#allocation15], 4
          %s771 = int_to_ptr.vmem [resolvable:$true] %s770
          %776 = dma.hbm_to_vmem [thread:$0]  %s6, 256, %s771, [#allocation14], 64, 64, 4
        $region32: #{tpu_custom_call.1} parent=11 // pred_fallthru
          _
        // Predicated region
        $region33: #{tpu_custom_call.1} parent=11 // pred_check
          %p777 = pneg %p237
        $region34: #{tpu_custom_call.1} parent=11 // pred_check_branch
          %779 = sbr.rel (%p777) target = $region36
        $region35: #{tpu_custom_call.1} parent=11 // pred_region
          %s781 = ssub.s32 16, 16
          %782 = vsyncadd [#allocation17], %s781
          %s784 = sshll.u32 [#allocation16], 4
          %s785 = int_to_ptr.vmem [resolvable:$true] %s784
          %787 = dma.hbm_to_vmem [thread:$0]  %s7, 16, %s785, [#allocation17]
        $region36: #{tpu_custom_call.1} parent=11 // pred_fallthru
          _
        // Predicated region
        $region37: #{tpu_custom_call.1} parent=11 // pred_check
          %p788 = pneg %p258
        $region38: #{tpu_custom_call.1} parent=11 // pred_check_branch
          %790 = sbr.rel (%p788) target = $region40
        $region39: #{tpu_custom_call.1} parent=11 // pred_region
          %s792 = ssub.s32 1024, 1024
          %793 = vsyncadd [#allocation17], %s792
          %s794 = sshll.u32 [#allocation18], 4
          %s795 = int_to_ptr.vmem [resolvable:$true] %s794
          %800 = dma.hbm_to_vmem [thread:$0]  %s8, 1024, %s795, [#allocation17], 64, 64, 4
        $region40: #{tpu_custom_call.1} parent=11 // pred_fallthru
          _
        // Predicated region
        $region41: #{tpu_custom_call.1} parent=11 // pred_check
          %p801 = pneg %p279
        $region42: #{tpu_custom_call.1} parent=11 // pred_check_branch
          %803 = sbr.rel (%p801) target = $region44
        $region43: #{tpu_custom_call.1} parent=11 // pred_region
          %s805 = ssub.s32 16, 16
          %806 = vsyncadd [#allocation20], %s805
          %s808 = sshll.u32 [#allocation19], 4
          %s809 = int_to_ptr.vmem [resolvable:$true] %s808
          %811 = dma.hbm_to_vmem [thread:$0]  %s9, 16, %s809, [#allocation20]
        $region44: #{tpu_custom_call.1} parent=11 // pred_fallthru
          _
        // Predicated region
        $region45: #{tpu_custom_call.1} parent=11 // pred_check
          %p812 = pneg %p612
        $region46: #{tpu_custom_call.1} parent=11 // pred_check_branch
          %814 = sbr.rel (%p812) target = $region48
        $region47: #{tpu_custom_call.1} parent=11 // pred_region
          %s816 = ssub.s32 16, 16
          %817 = vsyncadd [#allocation11], %s816
          %s819 = sshll.u32 [#allocation33], 4
          %s820 = int_to_ptr.vmem [resolvable:$true] %s819
          %822 = dma.hbm_to_vmem [thread:$0]  %s22, 16, %s820, [#allocation11]
        $region48: #{tpu_custom_call.1} parent=11 // pred_fallthru
          _
        // Predicated region
        $region49: #{tpu_custom_call.1} parent=11 // pred_check
          %p823 = pneg %p633
        $region50: #{tpu_custom_call.1} parent=11 // pred_check_branch
          %825 = sbr.rel (%p823) target = $region52
        $region51: #{tpu_custom_call.1} parent=11 // pred_region
          %s827 = ssub.s32 16, 16
          %828 = vsyncadd [#allocation14], %s827
          %s830 = sshll.u32 [#allocation34], 4
          %s831 = int_to_ptr.vmem [resolvable:$true] %s830
          %833 = dma.hbm_to_vmem [thread:$0]  %s23, 16, %s831, [#allocation14]
        $region52: #{tpu_custom_call.1} parent=11 // pred_fallthru
          _
        // Predicated region
        $region53: #{tpu_custom_call.1} parent=11 // pred_check
          %p834 = pneg %p654
        $region54: #{tpu_custom_call.1} parent=11 // pred_check_branch
          %836 = sbr.rel (%p834) target = $region56
        $region55: #{tpu_custom_call.1} parent=11 // pred_region
          %s838 = ssub.s32 16, 16
          %839 = vsyncadd [#allocation17], %s838
          %s841 = sshll.u32 [#allocation35], 4
          %s842 = int_to_ptr.vmem [resolvable:$true] %s841
          %844 = dma.hbm_to_vmem [thread:$0]  %s24, 16, %s842, [#allocation17]
        $region56: #{tpu_custom_call.1} parent=11 // pred_fallthru
          _
        // Predicated region
        $region57: #{tpu_custom_call.1} parent=11 // pred_check
          %p845 = pneg %p675
        $region58: #{tpu_custom_call.1} parent=11 // pred_check_branch
          %847 = sbr.rel (%p845) target = $region60
        $region59: #{tpu_custom_call.1} parent=11 // pred_region
          _
        $region60: #{tpu_custom_call.1} parent=11 // pred_fallthru
          _
      $region12: #{tpu_custom_call.1} parent=5 // pred_fallthru
        _
      %p848 = scmp.lt.s32.totalorder %s47, 4
      // Predicated region
      $region61: #{tpu_custom_call.1} parent=5 // pred_check
        %p849 = pneg %p848
      $region62: #{tpu_custom_call.1} parent=5 // pred_check_branch
        %851 = sbr.rel (%p849) target = $region64
      $region63: #{tpu_custom_call.1} parent=5 // pred_region
        // Predicated region
        $region65: #{tpu_custom_call.1} parent=63 // pred_check
          %p852 = pneg %p79
        $region66: #{tpu_custom_call.1} parent=63 // pred_check_branch
          %854 = sbr.rel (%p852) target = $region68
        $region67: #{tpu_custom_call.1} parent=63 // pred_region
          %s855 = sand.u32 %s47, 1
          %s856 = scalar_lea.sflag [#allocation5], %s855
          %s857 = sand.u32 %s69, 1
          %s858 = smul.addr %s857, 8
          %s859 = scalar_lea.vmem [#allocation4], %s858
          %s860 = smul.u32 2, %s54
          %s862 = ssub.s32 128, 128
          %863 = vsyncadd %s856, %s862
          %s864 = smul.addr %s860, 64
          %s865 = scalar_lea.hbm %s0, %s864
          %s866 = sshll.u32 %s859, 4
          %s867 = int_to_ptr.vmem [resolvable:$true] %s866
          %872 = dma.hbm_to_vmem [thread:$0]  %s865, 128, %s867, %s856, 64, 64, 4
        $region68: #{tpu_custom_call.1} parent=63 // pred_fallthru
          _
        // Predicated region
        $region69: #{tpu_custom_call.1} parent=63 // pred_check
          %p873 = pneg %p105
        $region70: #{tpu_custom_call.1} parent=63 // pred_check_branch
          %875 = sbr.rel (%p873) target = $region72
        $region71: #{tpu_custom_call.1} parent=63 // pred_region
          %s876 = sand.u32 %s47, 1
          %s877 = scalar_lea.sflag [#allocation8], %s876
          %s878 = sand.u32 %s95, 1
          %s879 = smul.addr %s878, 2
          %s880 = scalar_lea.vmem [#allocation7], %s879
          %s881 = smul.u32 2, %s54
          %s883 = ssub.s32 32, 32
          %884 = vsyncadd %s877, %s883
          %s885 = smul.addr %s881, 16
          %s886 = scalar_lea.hbm %s1, %s885
          %s887 = sshll.u32 %s880, 4
          %s888 = int_to_ptr.vmem [resolvable:$true] %s887
          %893 = dma.hbm_to_vmem [thread:$0]  %s886, 32, %s888, %s877, 16, 16, 1
        $region72: #{tpu_custom_call.1} parent=63 // pred_fallthru
          _
        // Predicated region
        $region73: #{tpu_custom_call.1} parent=63 // pred_check
          %p894 = pneg %p299
        $region74: #{tpu_custom_call.1} parent=63 // pred_check_branch
          %896 = sbr.rel (%p894) target = $region76
        $region75: #{tpu_custom_call.1} parent=63 // pred_region
          %s897 = sand.u32 %s47, 1
          %s898 = scalar_lea.sflag [#allocation5], %s897
          %s899 = sand.u32 %s289, 1
          %s900 = scalar_lea.vmem [#allocation21], %s899
          %s902 = ssub.s32 16, 16
          %903 = vsyncadd %s898, %s902
          %s904 = smul.addr %s55, 16
          %s905 = scalar_lea.hbm %s10, %s904
          %s907 = sshll.u32 %s900, 4
          %s908 = int_to_ptr.vmem [resolvable:$true] %s907
          %910 = dma.hbm_to_vmem [thread:$0]  %s905, 16, %s908, %s898
        $region76: #{tpu_custom_call.1} parent=63 // pred_fallthru
          _
        // Predicated region
        $region77: #{tpu_custom_call.1} parent=63 // pred_check
          %p911 = pneg %p325
        $region78: #{tpu_custom_call.1} parent=63 // pred_check_branch
          %913 = sbr.rel (%p911) target = $region80
        $region79: #{tpu_custom_call.1} parent=63 // pred_region
          %s914 = sand.u32 %s47, 1
          %s915 = scalar_lea.sflag [#allocation8], %s914
          %s916 = sand.u32 %s315, 1
          %s917 = scalar_lea.vmem [#allocation22], %s916
          %s919 = ssub.s32 16, 16
          %920 = vsyncadd %s915, %s919
          %s921 = smul.addr %s55, 16
          %s922 = scalar_lea.hbm %s11, %s921
          %s924 = sshll.u32 %s917, 4
          %s925 = int_to_ptr.vmem [resolvable:$true] %s924
          %927 = dma.hbm_to_vmem [thread:$0]  %s922, 16, %s925, %s915
        $region80: #{tpu_custom_call.1} parent=63 // pred_fallthru
          _
        // Predicated region
        $region81: #{tpu_custom_call.1} parent=63 // pred_check
          %p928 = pneg %p351
        $region82: #{tpu_custom_call.1} parent=63 // pred_check_branch
          %930 = sbr.rel (%p928) target = $region84
        $region83: #{tpu_custom_call.1} parent=63 // pred_region
          %s931 = sand.u32 %s47, 1
          %s932 = scalar_lea.sflag [#allocation5], %s931
          %s933 = sand.u32 %s341, 1
          %s934 = smul.addr %s933, 16
          %s935 = scalar_lea.vmem [#allocation23], %s934
          %s937 = ssub.s32 256, 256
          %938 = vsyncadd %s932, %s937
          %s939 = smul.addr %s55, 4
          %s940 = smul.addr %s939, 64
          %s941 = scalar_lea.hbm %s12, %s940
          %s942 = sshll.u32 %s935, 4
          %s943 = int_to_ptr.vmem [resolvable:$true] %s942
          %948 = dma.hbm_to_vmem [thread:$0]  %s941, 256, %s943, %s932, 64, 64, 4
        $region84: #{tpu_custom_call.1} parent=63 // pred_fallthru
          _
        // Predicated region
        $region85: #{tpu_custom_call.1} parent=63 // pred_check
          %p949 = pneg %p377
        $region86: #{tpu_custom_call.1} parent=63 // pred_check_branch
          %951 = sbr.rel (%p949) target = $region88
        $region87: #{tpu_custom_call.1} parent=63 // pred_region
          %s952 = sand.u32 %s47, 1
          %s953 = scalar_lea.sflag [#allocation8], %s952
          %s954 = sand.u32 %s367, 1
          %s955 = scalar_lea.vmem [#allocation24], %s954
          %s957 = ssub.s32 16, 16
          %958 = vsyncadd %s953, %s957
          %s959 = smul.addr %s55, 16
          %s960 = scalar_lea.hbm %s13, %s959
          %s962 = sshll.u32 %s955, 4
          %s963 = int_to_ptr.vmem [resolvable:$true] %s962
          %965 = dma.hbm_to_vmem [thread:$0]  %s960, 16, %s963, %s953
        $region88: #{tpu_custom_call.1} parent=63 // pred_fallthru
          _
        // Predicated region
        $region89: #{tpu_custom_call.1} parent=63 // pred_check
          %p966 = pneg %p403
        $region90: #{tpu_custom_call.1} parent=63 // pred_check_branch
          %968 = sbr.rel (%p966) target = $region92
        $region91: #{tpu_custom_call.1} parent=63 // pred_region
          %s969 = sand.u32 %s47, 1
          %s970 = scalar_lea.sflag [#allocation5], %s969
          %s971 = sand.u32 %s393, 1
          %s972 = smul.addr %s971, 16
          %s973 = scalar_lea.vmem [#allocation25], %s972
          %s975 = ssub.s32 256, 256
          %976 = vsyncadd %s970, %s975
          %s977 = smul.addr %s55, 4
          %s978 = smul.addr %s977, 64
          %s979 = scalar_lea.hbm %s14, %s978
          %s980 = sshll.u32 %s973, 4
          %s981 = int_to_ptr.vmem [resolvable:$true] %s980
          %986 = dma.hbm_to_vmem [thread:$0]  %s979, 256, %s981, %s970, 64, 64, 4
        $region92: #{tpu_custom_call.1} parent=63 // pred_fallthru
          _
        // Predicated region
        $region93: #{tpu_custom_call.1} parent=63 // pred_check
          %p987 = pneg %p429
        $region94: #{tpu_custom_call.1} parent=63 // pred_check_branch
          %989 = sbr.rel (%p987) target = $region96
        $region95: #{tpu_custom_call.1} parent=63 // pred_region
          %s990 = sand.u32 %s47, 1
          %s991 = scalar_lea.sflag [#allocation8], %s990
          %s992 = sand.u32 %s419, 1
          %s993 = scalar_lea.vmem [#allocation26], %s992
          %s995 = ssub.s32 16, 16
          %996 = vsyncadd %s991, %s995
          %s997 = smul.addr %s55, 16
          %s998 = scalar_lea.hbm %s15, %s997
          %s1000 = sshll.u32 %s993, 4
          %s1001 = int_to_ptr.vmem [resolvable:$true] %s1000
          %1003 = dma.hbm_to_vmem [thread:$0]  %s998, 16, %s1001, %s991
        $region96: #{tpu_custom_call.1} parent=63 // pred_fallthru
          _
        // Predicated region
        $region97: #{tpu_custom_call.1} parent=63 // pred_check
          %p1004 = pneg %p455
        $region98: #{tpu_custom_call.1} parent=63 // pred_check_branch
          %1006 = sbr.rel (%p1004) target = $region100
        $region99: #{tpu_custom_call.1} parent=63 // pred_region
          %s1007 = sand.u32 %s47, 1
          %s1008 = scalar_lea.sflag [#allocation5], %s1007
          %s1009 = sand.u32 %s445, 1
          %s1010 = scalar_lea.vmem [#allocation27], %s1009
          %s1012 = ssub.s32 16, 16
          %1013 = vsyncadd %s1008, %s1012
          %s1014 = smul.addr %s55, 16
          %s1015 = scalar_lea.hbm %s16, %s1014
          %s1017 = sshll.u32 %s1010, 4
          %s1018 = int_to_ptr.vmem [resolvable:$true] %s1017
          %1020 = dma.hbm_to_vmem [thread:$0]  %s1015, 16, %s1018, %s1008
        $region100: #{tpu_custom_call.1} parent=63 // pred_fallthru
          _
        // Predicated region
        $region101: #{tpu_custom_call.1} parent=63 // pred_check
          %p1021 = pneg %p481
        $region102: #{tpu_custom_call.1} parent=63 // pred_check_branch
          %1023 = sbr.rel (%p1021) target = $region104
        $region103: #{tpu_custom_call.1} parent=63 // pred_region
          %s1024 = sand.u32 %s47, 1
          %s1025 = scalar_lea.sflag [#allocation8], %s1024
          %s1026 = sand.u32 %s471, 1
          %s1027 = scalar_lea.vmem [#allocation28], %s1026
          %s1029 = ssub.s32 16, 16
          %1030 = vsyncadd %s1025, %s1029
          %s1031 = smul.addr %s55, 16
          %s1032 = scalar_lea.hbm %s17, %s1031
          %s1034 = sshll.u32 %s1027, 4
          %s1035 = int_to_ptr.vmem [resolvable:$true] %s1034
          %1037 = dma.hbm_to_vmem [thread:$0]  %s1032, 16, %s1035, %s1025
        $region104: #{tpu_custom_call.1} parent=63 // pred_fallthru
          _
        // Predicated region
        $region105: #{tpu_custom_call.1} parent=63 // pred_check
          %p1038 = pneg %p507
        $region106: #{tpu_custom_call.1} parent=63 // pred_check_branch
          %1040 = sbr.rel (%p1038) target = $region108
        $region107: #{tpu_custom_call.1} parent=63 // pred_region
          %s1041 = sand.u32 %s47, 1
          %s1042 = scalar_lea.sflag [#allocation5], %s1041
          %s1043 = sand.u32 %s497, 1
          %s1044 = smul.addr %s1043, 16
          %s1045 = scalar_lea.vmem [#allocation29], %s1044
          %s1047 = ssub.s32 256, 256
          %1048 = vsyncadd %s1042, %s1047
          %s1049 = smul.addr %s55, 4
          %s1050 = smul.addr %s1049, 64
          %s1051 = scalar_lea.hbm %s18, %s1050
          %s1052 = sshll.u32 %s1045, 4
          %s1053 = int_to_ptr.vmem [resolvable:$true] %s1052
          %1058 = dma.hbm_to_vmem [thread:$0]  %s1051, 256, %s1053, %s1042, 64, 64, 4
        $region108: #{tpu_custom_call.1} parent=63 // pred_fallthru
          _
        // Predicated region
        $region109: #{tpu_custom_call.1} parent=63 // pred_check
          %p1059 = pneg %p533
        $region110: #{tpu_custom_call.1} parent=63 // pred_check_branch
          %1061 = sbr.rel (%p1059) target = $region112
        $region111: #{tpu_custom_call.1} parent=63 // pred_region
          %s1062 = sand.u32 %s47, 1
          %s1063 = scalar_lea.sflag [#allocation8], %s1062
          %s1064 = sand.u32 %s523, 1
          %s1065 = scalar_lea.vmem [#allocation30], %s1064
          %s1067 = ssub.s32 16, 16
          %1068 = vsyncadd %s1063, %s1067
          %s1069 = smul.addr %s55, 16
          %s1070 = scalar_lea.hbm %s19, %s1069
          %s1072 = sshll.u32 %s1065, 4
          %s1073 = int_to_ptr.vmem [resolvable:$true] %s1072
          %1075 = dma.hbm_to_vmem [thread:$0]  %s1070, 16, %s1073, %s1063
        $region112: #{tpu_custom_call.1} parent=63 // pred_fallthru
          _
        // Predicated region
        $region113: #{tpu_custom_call.1} parent=63 // pred_check
          %p1076 = pneg %p559
        $region114: #{tpu_custom_call.1} parent=63 // pred_check_branch
          %1078 = sbr.rel (%p1076) target = $region116
        $region115: #{tpu_custom_call.1} parent=63 // pred_region
          %s1079 = sand.u32 %s47, 1
          %s1080 = scalar_lea.sflag [#allocation5], %s1079
          %s1081 = sand.u32 %s549, 1
          %s1082 = smul.addr %s1081, 64
          %s1083 = scalar_lea.vmem [#allocation31], %s1082
          %s1085 = ssub.s32 1024, 1024
          %1086 = vsyncadd %s1080, %s1085
          %s1087 = smul.addr %s55, 16
          %s1088 = smul.addr %s1087, 64
          %s1089 = scalar_lea.hbm %s20, %s1088
          %s1090 = sshll.u32 %s1083, 4
          %s1091 = int_to_ptr.vmem [resolvable:$true] %s1090
          %1096 = dma.hbm_to_vmem [thread:$0]  %s1089, 1024, %s1091, %s1080, 64, 64, 4
        $region116: #{tpu_custom_call.1} parent=63 // pred_fallthru
          _
        // Predicated region
        $region117: #{tpu_custom_call.1} parent=63 // pred_check
          %p1097 = pneg %p585
        $region118: #{tpu_custom_call.1} parent=63 // pred_check_branch
          %1099 = sbr.rel (%p1097) target = $region120
        $region119: #{tpu_custom_call.1} parent=63 // pred_region
          %s1100 = sand.u32 %s47, 1
          %s1101 = scalar_lea.sflag [#allocation8], %s1100
          %s1102 = sand.u32 %s575, 1
          %s1103 = scalar_lea.vmem [#allocation32], %s1102
          %s1105 = ssub.s32 16, 16
          %1106 = vsyncadd %s1101, %s1105
          %s1107 = smul.addr %s55, 16
          %s1108 = scalar_lea.hbm %s21, %s1107
          %s1110 = sshll.u32 %s1103, 4
          %s1111 = int_to_ptr.vmem [resolvable:$true] %s1110
          %1113 = dma.hbm_to_vmem [thread:$0]  %s1108, 16, %s1111, %s1101
        $region120: #{tpu_custom_call.1} parent=63 // pred_fallthru
          _
      $region64: #{tpu_custom_call.1} parent=5 // pred_fallthru
        _
      %p1114 = scmp.le.s32.totalorder 1, %s47
      %p1115 = scmp.lt.s32.totalorder %s47, 5
      %p1116 = pnand %p1114, %p1115
      %p1117 = pneg %p1116
      // Predicated region
      $region121: #{tpu_custom_call.1} parent=5 // pred_check
        _
      $region122: #{tpu_custom_call.1} parent=5 // pred_check_branch
        %1119 = sbr.rel (%p1116) target = $region124
      $region123: #{tpu_custom_call.1} parent=5 // pred_region
        %s1120 = ssub.s32 %s47, 1
        %s1121 = sand.u32 %s52, 1
        %s1122 = scalar_lea.sflag [#allocation5], %s1121
        %s1123 = sand.u32 %s72, 1
        %s1124 = smul.addr %s1123, 8
        %s1125 = scalar_lea.vmem [#allocation4], %s1124
        // Predicated region
        $region125: #{tpu_custom_call.1} parent=123 // pred_check
          %p1126 = pneg %p85
        $region126: #{tpu_custom_call.1} parent=123 // pred_check_branch
          %1128 = sbr.rel (%p1126) target = $region128
        $region127: #{tpu_custom_call.1} parent=123 // pred_region
          %1129 = dma.done %s1122, 128
        $region128: #{tpu_custom_call.1} parent=123 // pred_fallthru
          _
        %s1130 = sand.u32 %s52, 1
        %s1131 = scalar_lea.sflag [#allocation8], %s1130
        %s1132 = sand.u32 %s98, 1
        %s1133 = smul.addr %s1132, 2
        %s1134 = scalar_lea.vmem [#allocation7], %s1133
        // Predicated region
        $region129: #{tpu_custom_call.1} parent=123 // pred_check
          %p1135 = pneg %p111
        $region130: #{tpu_custom_call.1} parent=123 // pred_check_branch
          %1137 = sbr.rel (%p1135) target = $region132
        $region131: #{tpu_custom_call.1} parent=123 // pred_region
          %1138 = dma.done %s1131, 32
        $region132: #{tpu_custom_call.1} parent=123 // pred_fallthru
          _
        // Predicated region
        $region133: #{tpu_custom_call.1} parent=123 // pred_check
          %p1139 = pneg %p132
        $region134: #{tpu_custom_call.1} parent=123 // pred_check_branch
          %1141 = sbr.rel (%p1139) target = $region136
        $region135: #{tpu_custom_call.1} parent=123 // pred_region
          %1142 = dma.done [#allocation8], 32
        $region136: #{tpu_custom_call.1} parent=123 // pred_fallthru
          _
        // Predicated region
        $region137: #{tpu_custom_call.1} parent=123 // pred_check
          %p1143 = pneg %p153
        $region138: #{tpu_custom_call.1} parent=123 // pred_check_branch
          %1145 = sbr.rel (%p1143) target = $region140
        $region139: #{tpu_custom_call.1} parent=123 // pred_region
          %1146 = dma.done [#allocation11], 16
        $region140: #{tpu_custom_call.1} parent=123 // pred_fallthru
          _
        // Predicated region
        $region141: #{tpu_custom_call.1} parent=123 // pred_check
          %p1147 = pneg %p174
        $region142: #{tpu_custom_call.1} parent=123 // pred_check_branch
          %1149 = sbr.rel (%p1147) target = $region144
        $region143: #{tpu_custom_call.1} parent=123 // pred_region
          %1150 = dma.done [#allocation11], 128
        $region144: #{tpu_custom_call.1} parent=123 // pred_fallthru
          _
        // Predicated region
        $region145: #{tpu_custom_call.1} parent=123 // pred_check
          %p1151 = pneg %p195
        $region146: #{tpu_custom_call.1} parent=123 // pred_check_branch
          %1153 = sbr.rel (%p1151) target = $region148
        $region147: #{tpu_custom_call.1} parent=123 // pred_region
          %1154 = dma.done [#allocation14], 256
        $region148: #{tpu_custom_call.1} parent=123 // pred_fallthru
          _
        // Predicated region
        $region149: #{tpu_custom_call.1} parent=123 // pred_check
          %p1155 = pneg %p216
        $region150: #{tpu_custom_call.1} parent=123 // pred_check_branch
          %1157 = sbr.rel (%p1155) target = $region152
        $region151: #{tpu_custom_call.1} parent=123 // pred_region
          %1158 = dma.done [#allocation14], 256
        $region152: #{tpu_custom_call.1} parent=123 // pred_fallthru
          _
        // Predicated region
        $region153: #{tpu_custom_call.1} parent=123 // pred_check
          %p1159 = pneg %p237
        $region154: #{tpu_custom_call.1} parent=123 // pred_check_branch
          %1161 = sbr.rel (%p1159) target = $region156
        $region155: #{tpu_custom_call.1} parent=123 // pred_region
          %1162 = dma.done [#allocation17], 16
        $region156: #{tpu_custom_call.1} parent=123 // pred_fallthru
          _
        // Predicated region
        $region157: #{tpu_custom_call.1} parent=123 // pred_check
          %p1163 = pneg %p258
        $region158: #{tpu_custom_call.1} parent=123 // pred_check_branch
          %1165 = sbr.rel (%p1163) target = $region160
        $region159: #{tpu_custom_call.1} parent=123 // pred_region
          %1166 = dma.done [#allocation17], 1024
        $region160: #{tpu_custom_call.1} parent=123 // pred_fallthru
          _
        // Predicated region
        $region161: #{tpu_custom_call.1} parent=123 // pred_check
          %p1167 = pneg %p279
        $region162: #{tpu_custom_call.1} parent=123 // pred_check_branch
          %1169 = sbr.rel (%p1167) target = $region164
        $region163: #{tpu_custom_call.1} parent=123 // pred_region
          %1170 = dma.done [#allocation20], 16
        $region164: #{tpu_custom_call.1} parent=123 // pred_fallthru
          _
        %s1171 = sand.u32 %s52, 1
        %s1172 = scalar_lea.sflag [#allocation5], %s1171
        %s1173 = sand.u32 %s292, 1
        %s1174 = scalar_lea.vmem [#allocation21], %s1173
        // Predicated region
        $region165: #{tpu_custom_call.1} parent=123 // pred_check
          %p1175 = pneg %p305
        $region166: #{tpu_custom_call.1} parent=123 // pred_check_branch
          %1177 = sbr.rel (%p1175) target = $region168
        $region167: #{tpu_custom_call.1} parent=123 // pred_region
          %1178 = dma.done %s1172, 16
        $region168: #{tpu_custom_call.1} parent=123 // pred_fallthru
          _
        %s1179 = sand.u32 %s52, 1
        %s1180 = scalar_lea.sflag [#allocation8], %s1179
        %s1181 = sand.u32 %s318, 1
        %s1182 = scalar_lea.vmem [#allocation22], %s1181
        // Predicated region
        $region169: #{tpu_custom_call.1} parent=123 // pred_check
          %p1183 = pneg %p331
        $region170: #{tpu_custom_call.1} parent=123 // pred_check_branch
          %1185 = sbr.rel (%p1183) target = $region172
        $region171: #{tpu_custom_call.1} parent=123 // pred_region
          %1186 = dma.done %s1180, 16
        $region172: #{tpu_custom_call.1} parent=123 // pred_fallthru
          _
        %s1187 = sand.u32 %s52, 1
        %s1188 = scalar_lea.sflag [#allocation5], %s1187
        %s1189 = sand.u32 %s344, 1
        %s1190 = smul.addr %s1189, 16
        %s1191 = scalar_lea.vmem [#allocation23], %s1190
        // Predicated region
        $region173: #{tpu_custom_call.1} parent=123 // pred_check
          %p1192 = pneg %p357
        $region174: #{tpu_custom_call.1} parent=123 // pred_check_branch
          %1194 = sbr.rel (%p1192) target = $region176
        $region175: #{tpu_custom_call.1} parent=123 // pred_region
          %1195 = dma.done %s1188, 256
        $region176: #{tpu_custom_call.1} parent=123 // pred_fallthru
          _
        %s1196 = sand.u32 %s52, 1
        %s1197 = scalar_lea.sflag [#allocation8], %s1196
        %s1198 = sand.u32 %s370, 1
        %s1199 = scalar_lea.vmem [#allocation24], %s1198
        // Predicated region
        $region177: #{tpu_custom_call.1} parent=123 // pred_check
          %p1200 = pneg %p383
        $region178: #{tpu_custom_call.1} parent=123 // pred_check_branch
          %1202 = sbr.rel (%p1200) target = $region180
        $region179: #{tpu_custom_call.1} parent=123 // pred_region
          %1203 = dma.done %s1197, 16
        $region180: #{tpu_custom_call.1} parent=123 // pred_fallthru
          _
        %s1204 = sand.u32 %s52, 1
        %s1205 = scalar_lea.sflag [#allocation5], %s1204
        %s1206 = sand.u32 %s396, 1
        %s1207 = smul.addr %s1206, 16
        %s1208 = scalar_lea.vmem [#allocation25], %s1207
        // Predicated region
        $region181: #{tpu_custom_call.1} parent=123 // pred_check
          %p1209 = pneg %p409
        $region182: #{tpu_custom_call.1} parent=123 // pred_check_branch
          %1211 = sbr.rel (%p1209) target = $region184
        $region183: #{tpu_custom_call.1} parent=123 // pred_region
          %1212 = dma.done %s1205, 256
        $region184: #{tpu_custom_call.1} parent=123 // pred_fallthru
          _
        %s1213 = sand.u32 %s52, 1
        %s1214 = scalar_lea.sflag [#allocation8], %s1213
        %s1215 = sand.u32 %s422, 1
        %s1216 = scalar_lea.vmem [#allocation26], %s1215
        // Predicated region
        $region185: #{tpu_custom_call.1} parent=123 // pred_check
          %p1217 = pneg %p435
        $region186: #{tpu_custom_call.1} parent=123 // pred_check_branch
          %1219 = sbr.rel (%p1217) target = $region188
        $region187: #{tpu_custom_call.1} parent=123 // pred_region
          %1220 = dma.done %s1214, 16
        $region188: #{tpu_custom_call.1} parent=123 // pred_fallthru
          _
        %s1221 = sand.u32 %s52, 1
        %s1222 = scalar_lea.sflag [#allocation5], %s1221
        %s1223 = sand.u32 %s448, 1
        %s1224 = scalar_lea.vmem [#allocation27], %s1223
        // Predicated region
        $region189: #{tpu_custom_call.1} parent=123 // pred_check
          %p1225 = pneg %p461
        $region190: #{tpu_custom_call.1} parent=123 // pred_check_branch
          %1227 = sbr.rel (%p1225) target = $region192
        $region191: #{tpu_custom_call.1} parent=123 // pred_region
          %1228 = dma.done %s1222, 16
        $region192: #{tpu_custom_call.1} parent=123 // pred_fallthru
          _
        %s1229 = sand.u32 %s52, 1
        %s1230 = scalar_lea.sflag [#allocation8], %s1229
        %s1231 = sand.u32 %s474, 1
        %s1232 = scalar_lea.vmem [#allocation28], %s1231
        // Predicated region
        $region193: #{tpu_custom_call.1} parent=123 // pred_check
          %p1233 = pneg %p487
        $region194: #{tpu_custom_call.1} parent=123 // pred_check_branch
          %1235 = sbr.rel (%p1233) target = $region196
        $region195: #{tpu_custom_call.1} parent=123 // pred_region
          %1236 = dma.done %s1230, 16
        $region196: #{tpu_custom_call.1} parent=123 // pred_fallthru
          _
        %s1237 = sand.u32 %s52, 1
        %s1238 = scalar_lea.sflag [#allocation5], %s1237
        %s1239 = sand.u32 %s500, 1
        %s1240 = smul.addr %s1239, 16
        %s1241 = scalar_lea.vmem [#allocation29], %s1240
        // Predicated region
        $region197: #{tpu_custom_call.1} parent=123 // pred_check
          %p1242 = pneg %p513
        $region198: #{tpu_custom_call.1} parent=123 // pred_check_branch
          %1244 = sbr.rel (%p1242) target = $region200
        $region199: #{tpu_custom_call.1} parent=123 // pred_region
          %1245 = dma.done %s1238, 256
        $region200: #{tpu_custom_call.1} parent=123 // pred_fallthru
          _
        %s1246 = sand.u32 %s52, 1
        %s1247 = scalar_lea.sflag [#allocation8], %s1246
        %s1248 = sand.u32 %s526, 1
        %s1249 = scalar_lea.vmem [#allocation30], %s1248
        // Predicated region
        $region201: #{tpu_custom_call.1} parent=123 // pred_check
          %p1250 = pneg %p539
        $region202: #{tpu_custom_call.1} parent=123 // pred_check_branch
          %1252 = sbr.rel (%p1250) target = $region204
        $region203: #{tpu_custom_call.1} parent=123 // pred_region
          %1253 = dma.done %s1247, 16
        $region204: #{tpu_custom_call.1} parent=123 // pred_fallthru
          _
        %s1254 = sand.u32 %s52, 1
        %s1255 = scalar_lea.sflag [#allocation5], %s1254
        %s1256 = sand.u32 %s552, 1
        %s1257 = smul.addr %s1256, 64
        %s1258 = scalar_lea.vmem [#allocation31], %s1257
        // Predicated region
        $region205: #{tpu_custom_call.1} parent=123 // pred_check
          %p1259 = pneg %p565
        $region206: #{tpu_custom_call.1} parent=123 // pred_check_branch
          %1261 = sbr.rel (%p1259) target = $region208
        $region207: #{tpu_custom_call.1} parent=123 // pred_region
          %1262 = dma.done %s1255, 1024
        $region208: #{tpu_custom_call.1} parent=123 // pred_fallthru
          _
        %s1263 = sand.u32 %s52, 1
        %s1264 = scalar_lea.sflag [#allocation8], %s1263
        %s1265 = sand.u32 %s578, 1
        %s1266 = scalar_lea.vmem [#allocation32], %s1265
        // Predicated region
        $region209: #{tpu_custom_call.1} parent=123 // pred_check
          %p1267 = pneg %p591
        $region210: #{tpu_custom_call.1} parent=123 // pred_check_branch
          %1269 = sbr.rel (%p1267) target = $region212
        $region211: #{tpu_custom_call.1} parent=123 // pred_region
          %1270 = dma.done %s1264, 16
        $region212: #{tpu_custom_call.1} parent=123 // pred_fallthru
          _
        // Predicated region
        $region213: #{tpu_custom_call.1} parent=123 // pred_check
          %p1271 = pneg %p612
        $region214: #{tpu_custom_call.1} parent=123 // pred_check_branch
          %1273 = sbr.rel (%p1271) target = $region216
        $region215: #{tpu_custom_call.1} parent=123 // pred_region
          %1274 = dma.done [#allocation11], 16
        $region216: #{tpu_custom_call.1} parent=123 // pred_fallthru
          _
        // Predicated region
        $region217: #{tpu_custom_call.1} parent=123 // pred_check
          %p1275 = pneg %p633
        $region218: #{tpu_custom_call.1} parent=123 // pred_check_branch
          %1277 = sbr.rel (%p1275) target = $region220
        $region219: #{tpu_custom_call.1} parent=123 // pred_region
          %1278 = dma.done [#allocation14], 16
        $region220: #{tpu_custom_call.1} parent=123 // pred_fallthru
          _
        // Predicated region
        $region221: #{tpu_custom_call.1} parent=123 // pred_check
          %p1279 = pneg %p654
        $region222: #{tpu_custom_call.1} parent=123 // pred_check_branch
          %1281 = sbr.rel (%p1279) target = $region224
        $region223: #{tpu_custom_call.1} parent=123 // pred_region
          %1282 = dma.done [#allocation17], 16
        $region224: #{tpu_custom_call.1} parent=123 // pred_fallthru
          _
        %s1283 = sand.u32 %s52, 1
        %s1284 = scalar_lea.sflag [#allocation5], %s1283
        %s1285 = sand.u32 %s72, 1
        %s1286 = smul.addr %s1285, 8
        %s1287 = scalar_lea.vmem [#allocation4], %s1286
        %p1288 = pneg %p85
        %p1289 = pneg %p82
        %s1290 = sand.u32 %s52, 1
        %s1291 = scalar_lea.sflag [#allocation8], %s1290
        %s1292 = sand.u32 %s98, 1
        %s1293 = smul.addr %s1292, 2
        %s1294 = scalar_lea.vmem [#allocation7], %s1293
        %p1295 = pneg %p111
        %p1296 = pneg %p108
        %p1297 = pneg %p132
        %p1298 = pneg %p129
        %p1299 = pneg %p153
        %p1300 = pneg %p150
        %p1301 = pneg %p174
        %p1302 = pneg %p171
        %p1303 = pneg %p195
        %p1304 = pneg %p192
        %p1305 = pneg %p216
        %p1306 = pneg %p213
        %p1307 = pneg %p237
        %p1308 = pneg %p234
        %p1309 = pneg %p258
        %p1310 = pneg %p255
        %p1311 = pneg %p279
        %p1312 = pneg %p276
        %s1313 = sand.u32 %s52, 1
        %s1314 = scalar_lea.sflag [#allocation5], %s1313
        %s1315 = sand.u32 %s292, 1
        %s1316 = scalar_lea.vmem [#allocation21], %s1315
        %p1317 = pneg %p305
        %p1318 = pneg %p302
        %s1319 = sand.u32 %s52, 1
        %s1320 = scalar_lea.sflag [#allocation8], %s1319
        %s1321 = sand.u32 %s318, 1
        %s1322 = scalar_lea.vmem [#allocation22], %s1321
        %p1323 = pneg %p331
        %p1324 = pneg %p328
        %s1325 = sand.u32 %s52, 1
        %s1326 = scalar_lea.sflag [#allocation5], %s1325
        %s1327 = sand.u32 %s344, 1
        %s1328 = smul.addr %s1327, 16
        %s1329 = scalar_lea.vmem [#allocation23], %s1328
        %p1330 = pneg %p357
        %p1331 = pneg %p354
        %s1332 = sand.u32 %s52, 1
        %s1333 = scalar_lea.sflag [#allocation8], %s1332
        %s1334 = sand.u32 %s370, 1
        %s1335 = scalar_lea.vmem [#allocation24], %s1334
        %p1336 = pneg %p383
        %p1337 = pneg %p380
        %s1338 = sand.u32 %s52, 1
        %s1339 = scalar_lea.sflag [#allocation5], %s1338
        %s1340 = sand.u32 %s396, 1
        %s1341 = smul.addr %s1340, 16
        %s1342 = scalar_lea.vmem [#allocation25], %s1341
        %p1343 = pneg %p409
        %p1344 = pneg %p406
        %s1345 = sand.u32 %s52, 1
        %s1346 = scalar_lea.sflag [#allocation8], %s1345
        %s1347 = sand.u32 %s422, 1
        %s1348 = scalar_lea.vmem [#allocation26], %s1347
        %p1349 = pneg %p435
        %p1350 = pneg %p432
        %s1351 = sand.u32 %s52, 1
        %s1352 = scalar_lea.sflag [#allocation5], %s1351
        %s1353 = sand.u32 %s448, 1
        %s1354 = scalar_lea.vmem [#allocation27], %s1353
        %p1355 = pneg %p461
        %p1356 = pneg %p458
        %s1357 = sand.u32 %s52, 1
        %s1358 = scalar_lea.sflag [#allocation8], %s1357
        %s1359 = sand.u32 %s474, 1
        %s1360 = scalar_lea.vmem [#allocation28], %s1359
        %p1361 = pneg %p487
        %p1362 = pneg %p484
        %s1363 = sand.u32 %s52, 1
        %s1364 = scalar_lea.sflag [#allocation5], %s1363
        %s1365 = sand.u32 %s500, 1
        %s1366 = smul.addr %s1365, 16
        %s1367 = scalar_lea.vmem [#allocation29], %s1366
        %p1368 = pneg %p513
        %p1369 = pneg %p510
        %s1370 = sand.u32 %s52, 1
        %s1371 = scalar_lea.sflag [#allocation8], %s1370
        %s1372 = sand.u32 %s526, 1
        %s1373 = scalar_lea.vmem [#allocation30], %s1372
        %p1374 = pneg %p539
        %p1375 = pneg %p536
        %s1376 = sand.u32 %s52, 1
        %s1377 = scalar_lea.sflag [#allocation5], %s1376
        %s1378 = sand.u32 %s552, 1
        %s1379 = smul.addr %s1378, 64
        %s1380 = scalar_lea.vmem [#allocation31], %s1379
        %p1381 = pneg %p565
        %p1382 = pneg %p562
        %s1383 = sand.u32 %s52, 1
        %s1384 = scalar_lea.sflag [#allocation8], %s1383
        %s1385 = sand.u32 %s578, 1
        %s1386 = scalar_lea.vmem [#allocation32], %s1385
        %p1387 = pneg %p591
        %p1388 = pneg %p588
        %p1389 = pneg %p612
        %p1390 = pneg %p609
        %p1391 = pneg %p633
        %p1392 = pneg %p630
        %p1393 = pneg %p654
        %p1394 = pneg %p651
        %p1395 = pneg %p675
        %p1396 = pneg %p672
        %p1397 = pneg %p701
        %p1398 = pneg %p698
        %s1399 = sand.u32 %s688, 1
        %s1400 = scalar_lea.sflag [#allocation6], %s1399
        %s1401 = sand.u32 %s688, 1
        %s1402 = smul.addr %s1401, 2
        %s1403 = scalar_lea.vmem [#allocation36], %s1402
        %s1404 = smul.u32 2, %s56
        %s1405 = smul.u32 2, %s56
        %s1406 = smul.u32 2, %s56
        %p1408 = scmp.eq.s32.totalorder %s57, 0
        // Predicated region
        $region225: #{tpu_custom_call.1} parent=123 // pred_check
          %p1409 = pneg %p1408
        $region226: #{tpu_custom_call.1} parent=123 // pred_check_branch
          %1411 = sbr.rel (%p1409) target = $region228
        $region227: #{tpu_custom_call.1} parent=123 // pred_region
          %v1412 = vld [vmem:[%s1125] sm:$0xf]
          %v1413 = vpack.c.bf16 %v1412, %v1412
          %v1414 = vld [vmem:[#allocation9] sm:$0x3]
          %v1415 = vld [vmem:[#allocation10] sm:$0x1]
          %v1417 = vlaneseq
          %v1418 = vshrl.u32 %v1417, 7
          %v1419 = vsub.s32 0, %v1418
          %v1420 = vrot.slane %v1415, %v1419
          %vm1422 = vcmask 31744
          %v1424 = vsel %vm1422, %v1413, 0
          %vm1426 = vcmask 1041408
          %v1428 = vsel %vm1426, %v1414, 0
          %1430 = vmatprep.subr.bf16.mxu0 0
          %1431 = vmatpush1.bf16.msra.mxu0 %v1428
          %1432 = vmatprep.subr.bf16.mxu0 0
          %1433 = vmatpush1.bf16.msra.mxu0 0
          %1434 = vmatprep.subr.bf16.mxu0 0
          %1435 = vmatpush1.bf16.msra.mxu0 0
          %1436 = vmatprep.subr.bf16.mxu0 0
          %1437 = vmatpush1.bf16.msra.mxu0 0
          %1438 = vmatprep.subr.bf16.mxu0 0
          %1439 = vmatpush1.bf16.msra.mxu0 0
          %1440 = vmatprep.subr.bf16.mxu0 0
          %1441 = vmatpush1.bf16.msra.mxu0 0
          %1442 = vmatprep.subr.bf16.mxu0 0
          %1443 = vmatpush1.bf16.msra.mxu0 0
          %1444 = vmatprep.subr.bf16.mxu0 0
          %1445 = vmatpush1.bf16.msra.mxu0 0
          %1446 = vmatprep.subr.bf16.mxu0 0
          %1447 = vmatpush1.bf16.msra.mxu0 0
          %1448 = vmatprep.subr.bf16.mxu0 0
          %1449 = vmatpush1.bf16.msra.mxu0 0
          %1450 = vmatprep.subr.bf16.mxu0 0
          %1451 = vmatpush1.bf16.msra.mxu0 0
          %1452 = vmatprep.subr.bf16.mxu0 0
          %1453 = vmatpush1.bf16.msra.mxu0 0
          %1454 = vmatprep.subr.bf16.mxu0 0
          %1455 = vmatpush1.bf16.msra.mxu0 0
          %1456 = vmatprep.subr.bf16.mxu0 0
          %1457 = vmatpush1.bf16.msra.mxu0 0
          %1458 = vmatprep.subr.bf16.mxu0 0
          %1459 = vmatpush1.bf16.msra.mxu0 0
          %1460 = vmatprep.subr.bf16.mxu0 0
          %1461 = vmatpush1.bf16.msra.mxu0 0
          %1462 = vmatprep.mubr.bf16.mxu0 0
          %1463 = vmatmul.mubr.bf16.gmra.mrb[0].mxu0 %v1424
          %v1464 = vpop.f32.mrb[0].mxu0
          %v1465 = vadd.f32 %v1420, %v1464
          %v1466 = vpop.f32.mrb[0].mxu0
          %v1467 = vpop.f32.mrb[0].mxu0
          %v1468 = vpop.f32.mrb[0].mxu0
          %1469 = vdwg.mxu0
          %v1470 = vld [vmem:[#allocation12] sm:$0xf]
          %v1471 = vld [vmem:[#allocation12 + $0x4] sm:$0xf]
          %v1472 = vpack.c.bf16 %v1465, %v1465
          %v1473 = vld [vmem:[#allocation13] sm:$0xff]
          %v1474 = vld [vmem:[#allocation13 + $0x8] sm:$0xff]
          %1476 = vset.pattern.permute.xlu0 0
          %1477 = vperm.xlu0 %1476, %v1473
          %v1478 = vpop.permute.xlu0 %1477
          %1481 = vset.pattern.permute.xlu0 0
          %1482 = vperm.xlu0 %1481, %v1474
          %v1483 = vpop.permute.xlu0 %1482
          %v1487 = vunpack.c.l.b16 %v1470
          %v1488 = vunpack.c.l.b16 %v1471
          %v1489 = vpack.c.b16 %v1488, %v1487
          %v1491 = vsel %vm1422, %v1489, 0
          %v1494 = vsel %vm1426, %v1472, 0
          %1496 = vmatprep.subr.bf16.mxu0 0
          %1497 = vmatpush1.bf16.msra.mxu0 %v1494
          %1498 = vmatprep.subr.bf16.mxu0 0
          %1499 = vmatpush1.bf16.msra.mxu0 0
          %1500 = vmatprep.subr.bf16.mxu0 0
          %1501 = vmatpush1.bf16.msra.mxu0 0
          %1502 = vmatprep.subr.bf16.mxu0 0
          %1503 = vmatpush1.bf16.msra.mxu0 0
          %1504 = vmatprep.subr.bf16.mxu0 0
          %1505 = vmatpush1.bf16.msra.mxu0 0
          %1506 = vmatprep.subr.bf16.mxu0 0
          %1507 = vmatpush1.bf16.msra.mxu0 0
          %1508 = vmatprep.subr.bf16.mxu0 0
          %1509 = vmatpush1.bf16.msra.mxu0 0
          %1510 = vmatprep.subr.bf16.mxu0 0
          %1511 = vmatpush1.bf16.msra.mxu0 0
          %1512 = vmatprep.subr.bf16.mxu0 0
          %1513 = vmatpush1.bf16.msra.mxu0 0
          %1514 = vmatprep.subr.bf16.mxu0 0
          %1515 = vmatpush1.bf16.msra.mxu0 0
          %1516 = vmatprep.subr.bf16.mxu0 0
          %1517 = vmatpush1.bf16.msra.mxu0 0
          %1518 = vmatprep.subr.bf16.mxu0 0
          %1519 = vmatpush1.bf16.msra.mxu0 0
          %1520 = vmatprep.subr.bf16.mxu0 0
          %1521 = vmatpush1.bf16.msra.mxu0 0
          %1522 = vmatprep.subr.bf16.mxu0 0
          %1523 = vmatpush1.bf16.msra.mxu0 0
          %1524 = vmatprep.subr.bf16.mxu0 0
          %1525 = vmatpush1.bf16.msra.mxu0 0
          %1526 = vmatprep.subr.bf16.mxu0 0
          %1527 = vmatpush1.bf16.msra.mxu0 0
          %1528 = vmatprep.mubr.bf16.mxu0 0
          %1529 = vmatmul.mubr.bf16.gmra.mrb[0].mxu0 %v1491
          %v1530 = vpop.f32.mrb[0].mxu0
          %v1531 = vadd.f32 %v1478, %v1530
          %v1532 = vpop.f32.mrb[0].mxu0
          %v1533 = vpop.f32.mrb[0].mxu0
          %v1534 = vadd.f32 %v1483, %v1533
          %v1535 = vpop.f32.mrb[0].mxu0
          %1536 = vdwg.mxu0
          %v1537 = vld [vmem:[%s1134] sm:$0x1]
          %v1539 = vlaneseq
          %v1540 = vshrl.u32 %v1539, 7
          %v1541 = vsub.s32 0, %v1540
          %v1542 = vrot.slane %v1537, %v1541
          %v1544 = vadd.f32 %v1531, %v1542
          %v1545 = vadd.f32 %v1534, %v1542
          %vm1546 = vcmask 261120
          %1547 = vst.msk [vmem:[#allocation2] sm:$0xff] %vm1546, %v1544
          %1548 = vst.msk [vmem:[#allocation2 + $0x8] sm:$0xff] %vm1546, %v1545
          %s1549 = scalar_lea.vmem %s1125, 4 [#allocation4]
          %v1550 = vld [vmem:[%s1549] sm:$0xf]
          %v1551 = vpack.c.bf16 %v1550, %v1550
          %v1552 = vld [vmem:[#allocation9] sm:$0x3]
          %v1553 = vld [vmem:[#allocation10] sm:$0x1]
          %v1555 = vlaneseq
          %v1556 = vshrl.u32 %v1555, 7
          %v1557 = vsub.s32 0, %v1556
          %v1558 = vrot.slane %v1553, %v1557
          %v1561 = vsel %vm1422, %v1551, 0
          %v1564 = vsel %vm1426, %v1552, 0
          %1566 = vmatprep.subr.bf16.mxu0 0
          %1567 = vmatpush1.bf16.msra.mxu0 %v1564
          %1568 = vmatprep.subr.bf16.mxu0 0
          %1569 = vmatpush1.bf16.msra.mxu0 0
          %1570 = vmatprep.subr.bf16.mxu0 0
          %1571 = vmatpush1.bf16.msra.mxu0 0
          %1572 = vmatprep.subr.bf16.mxu0 0
          %1573 = vmatpush1.bf16.msra.mxu0 0
          %1574 = vmatprep.subr.bf16.mxu0 0
          %1575 = vmatpush1.bf16.msra.mxu0 0
          %1576 = vmatprep.subr.bf16.mxu0 0
          %1577 = vmatpush1.bf16.msra.mxu0 0
          %1578 = vmatprep.subr.bf16.mxu0 0
          %1579 = vmatpush1.bf16.msra.mxu0 0
          %1580 = vmatprep.subr.bf16.mxu0 0
          %1581 = vmatpush1.bf16.msra.mxu0 0
          %1582 = vmatprep.subr.bf16.mxu0 0
          %1583 = vmatpush1.bf16.msra.mxu0 0
          %1584 = vmatprep.subr.bf16.mxu0 0
          %1585 = vmatpush1.bf16.msra.mxu0 0
          %1586 = vmatprep.subr.bf16.mxu0 0
          %1587 = vmatpush1.bf16.msra.mxu0 0
          %1588 = vmatprep.subr.bf16.mxu0 0
          %1589 = vmatpush1.bf16.msra.mxu0 0
          %1590 = vmatprep.subr.bf16.mxu0 0
          %1591 = vmatpush1.bf16.msra.mxu0 0
          %1592 = vmatprep.subr.bf16.mxu0 0
          %1593 = vmatpush1.bf16.msra.mxu0 0
          %1594 = vmatprep.subr.bf16.mxu0 0
          %1595 = vmatpush1.bf16.msra.mxu0 0
          %1596 = vmatprep.subr.bf16.mxu0 0
          %1597 = vmatpush1.bf16.msra.mxu0 0
          %1598 = vmatprep.mubr.bf16.mxu0 0
          %1599 = vmatmul.mubr.bf16.gmra.mrb[0].mxu0 %v1561
          %v1600 = vpop.f32.mrb[0].mxu0
          %v1601 = vadd.f32 %v1558, %v1600
          %v1602 = vpop.f32.mrb[0].mxu0
          %v1603 = vpop.f32.mrb[0].mxu0
          %v1604 = vpop.f32.mrb[0].mxu0
          %1605 = vdwg.mxu0
          %v1606 = vld [vmem:[#allocation12] sm:$0xf]
          %v1607 = vld [vmem:[#allocation12 + $0x4] sm:$0xf]
          %v1608 = vpack.c.bf16 %v1601, %v1601
          %v1609 = vld [vmem:[#allocation13] sm:$0xff]
          %v1610 = vld [vmem:[#allocation13 + $0x8] sm:$0xff]
          %1612 = vset.pattern.permute.xlu0 0
          %1613 = vperm.xlu0 %1612, %v1609
          %v1614 = vpop.permute.xlu0 %1613
          %1617 = vset.pattern.permute.xlu0 0
          %1618 = vperm.xlu0 %1617, %v1610
          %v1619 = vpop.permute.xlu0 %1618
          %v1623 = vunpack.c.l.b16 %v1606
          %v1624 = vunpack.c.l.b16 %v1607
          %v1625 = vpack.c.b16 %v1624, %v1623
          %v1627 = vsel %vm1422, %v1625, 0
          %v1630 = vsel %vm1426, %v1608, 0
          %1632 = vmatprep.subr.bf16.mxu0 0
          %1633 = vmatpush1.bf16.msra.mxu0 %v1630
          %1634 = vmatprep.subr.bf16.mxu0 0
          %1635 = vmatpush1.bf16.msra.mxu0 0
          %1636 = vmatprep.subr.bf16.mxu0 0
          %1637 = vmatpush1.bf16.msra.mxu0 0
          %1638 = vmatprep.subr.bf16.mxu0 0
          %1639 = vmatpush1.bf16.msra.mxu0 0
          %1640 = vmatprep.subr.bf16.mxu0 0
          %1641 = vmatpush1.bf16.msra.mxu0 0
          %1642 = vmatprep.subr.bf16.mxu0 0
          %1643 = vmatpush1.bf16.msra.mxu0 0
          %1644 = vmatprep.subr.bf16.mxu0 0
          %1645 = vmatpush1.bf16.msra.mxu0 0
          %1646 = vmatprep.subr.bf16.mxu0 0
          %1647 = vmatpush1.bf16.msra.mxu0 0
          %1648 = vmatprep.subr.bf16.mxu0 0
          %1649 = vmatpush1.bf16.msra.mxu0 0
          %1650 = vmatprep.subr.bf16.mxu0 0
          %1651 = vmatpush1.bf16.msra.mxu0 0
          %1652 = vmatprep.subr.bf16.mxu0 0
          %1653 = vmatpush1.bf16.msra.mxu0 0
          %1654 = vmatprep.subr.bf16.mxu0 0
          %1655 = vmatpush1.bf16.msra.mxu0 0
          %1656 = vmatprep.subr.bf16.mxu0 0
          %1657 = vmatpush1.bf16.msra.mxu0 0
          %1658 = vmatprep.subr.bf16.mxu0 0
          %1659 = vmatpush1.bf16.msra.mxu0 0
          %1660 = vmatprep.subr.bf16.mxu0 0
          %1661 = vmatpush1.bf16.msra.mxu0 0
          %1662 = vmatprep.subr.bf16.mxu0 0
          %1663 = vmatpush1.bf16.msra.mxu0 0
          %1664 = vmatprep.mubr.bf16.mxu0 0
          %1665 = vmatmul.mubr.bf16.gmra.mrb[0].mxu0 %v1627
          %v1666 = vpop.f32.mrb[0].mxu0
          %v1667 = vadd.f32 %v1614, %v1666
          %v1668 = vpop.f32.mrb[0].mxu0
          %v1669 = vpop.f32.mrb[0].mxu0
          %v1670 = vadd.f32 %v1619, %v1669
          %v1671 = vpop.f32.mrb[0].mxu0
          %1672 = vdwg.mxu0
          %s1673 = scalar_lea.vmem %s1134, 1 [#allocation7]
          %v1674 = vld [vmem:[%s1673] sm:$0x1]
          %v1676 = vlaneseq
          %v1677 = vshrl.u32 %v1676, 7
          %v1678 = vsub.s32 0, %v1677
          %v1679 = vrot.slane %v1674, %v1678
          %v1681 = vadd.f32 %v1667, %v1679
          %v1682 = vadd.f32 %v1670, %v1679
          %1683 = vst.msk [vmem:[#allocation2 + $0x10] sm:$0xff] %vm1546, %v1681
          %1684 = vst.msk [vmem:[#allocation2 + $0x18] sm:$0xff] %vm1546, %v1682
          %v1685 = vld [vmem:[#allocation2] sm:$0xff]
          %v1686 = vld [vmem:[#allocation2 + $0x8] sm:$0xff]
          %v1687 = vld [vmem:[#allocation2 + $0x10] sm:$0xff]
          %v1688 = vld [vmem:[#allocation2 + $0x18] sm:$0xff]
          %v1689 = vpack.c.bf16 %v1686, %v1685
          %v1690 = vpack.c.bf16 %v1688, %v1687
          %v1691 = vld [vmem:[#allocation15] sm:$0xf]
          %v1692 = vld [vmem:[#allocation15 + $0x4] sm:$0xf]
          %v1693 = vld [vmem:[#allocation15 + $0x8] sm:$0xf]
          %v1694 = vld [vmem:[#allocation15 + $0xc] sm:$0xf]
          %v1695 = vld [vmem:[#allocation16] sm:$0x1]
          %v1697 = vlaneseq
          %v1698 = vshrl.u32 %v1697, 7
          %v1699 = vsub.s32 0, %v1698
          %v1700 = vrot.slane %v1695, %v1699
          %v1706 = vunpack.c.l.b16 %v1691
          %v1707 = vunpack.c.l.b16 %v1692
          %v1708 = vunpack.c.l.b16 %v1693
          %v1709 = vunpack.c.l.b16 %v1694
          %v1710 = vpack.c.b16 %v1707, %v1706
          %v1711 = vpack.c.b16 %v1709, %v1708
          %v1715 = vsel %vm1546, %v1689, 0
          %v1718 = vsel %vm1546, %v1690, 0
          %1720 = vmatprep.subr.bf16.mxu0 0
          %1721 = vmatpush1.bf16.msra.mxu0 %v1710
          %1722 = vmatprep.subr.bf16.mxu0 0
          %1723 = vmatpush1.bf16.msra.mxu0 %v1711
          %1724 = vmatprep.subr.bf16.mxu0 0
          %1725 = vmatpush1.bf16.msra.mxu0 0
          %1726 = vmatprep.subr.bf16.mxu0 0
          %1727 = vmatpush1.bf16.msra.mxu0 0
          %1728 = vmatprep.subr.bf16.mxu0 0
          %1729 = vmatpush1.bf16.msra.mxu0 0
          %1730 = vmatprep.subr.bf16.mxu0 0
          %1731 = vmatpush1.bf16.msra.mxu0 0
          %1732 = vmatprep.subr.bf16.mxu0 0
          %1733 = vmatpush1.bf16.msra.mxu0 0
          %1734 = vmatprep.subr.bf16.mxu0 0
          %1735 = vmatpush1.bf16.msra.mxu0 0
          %1736 = vmatprep.subr.bf16.mxu0 0
          %1737 = vmatpush1.bf16.msra.mxu0 0
          %1738 = vmatprep.subr.bf16.mxu0 0
          %1739 = vmatpush1.bf16.msra.mxu0 0
          %1740 = vmatprep.subr.bf16.mxu0 0
          %1741 = vmatpush1.bf16.msra.mxu0 0
          %1742 = vmatprep.subr.bf16.mxu0 0
          %1743 = vmatpush1.bf16.msra.mxu0 0
          %1744 = vmatprep.subr.bf16.mxu0 0
          %1745 = vmatpush1.bf16.msra.mxu0 0
          %1746 = vmatprep.subr.bf16.mxu0 0
          %1747 = vmatpush1.bf16.msra.mxu0 0
          %1748 = vmatprep.subr.bf16.mxu0 0
          %1749 = vmatpush1.bf16.msra.mxu0 0
          %1750 = vmatprep.subr.bf16.mxu0 0
          %1751 = vmatpush1.bf16.msra.mxu0 0
          %1752 = vmatprep.mubr.bf16.mxu0 0
          %1753 = vmatmul.mubr.bf16.gmra.mrb[0].mxu0 %v1715
          %v1754 = vpop.f32.mrb[0].mxu0
          %v1755 = vadd.f32 %v1700, %v1754
          %v1756 = vpop.f32.mrb[0].mxu0
          %v1757 = vpop.f32.mrb[0].mxu0
          %v1758 = vadd.f32 %v1700, %v1757
          %v1759 = vpop.f32.mrb[0].mxu0
          %1760 = vmatprep.mubr.bf16.mxu0 0
          %1761 = vmatmul.mubr.bf16.gmra.mrb[0].mxu0 %v1718
          %v1762 = vpop.f32.mrb[0].mxu0
          %v1763 = vadd.f32 %v1700, %v1762
          %v1764 = vpop.f32.mrb[0].mxu0
          %v1765 = vpop.f32.mrb[0].mxu0
          %v1766 = vadd.f32 %v1700, %v1765
          %v1767 = vpop.f32.mrb[0].mxu0
          %1768 = vdwg.mxu0
          %v1769 = vmul.f32 %v1755, 0.5
          %v1770 = vmul.f32 %v1758, 0.5
          %v1771 = vmul.f32 %v1763, 0.5
          %v1772 = vmul.f32 %v1766, 0.5
          %v1773 = vmul.f32 %v1755, 0.044715
          %v1774 = vmul.f32 %v1758, 0.044715
          %v1775 = vmul.f32 %v1763, 0.044715
          %v1776 = vmul.f32 %v1766, 0.044715
          %v1777 = vmul.f32 %v1773, %v1755
          %v1778 = vmul.f32 %v1774, %v1758
          %v1779 = vmul.f32 %v1775, %v1763
          %v1780 = vmul.f32 %v1776, %v1766
          %v1781 = vmul.f32 %v1777, %v1755
          %v1782 = vmul.f32 %v1778, %v1758
          %v1783 = vmul.f32 %v1779, %v1763
          %v1784 = vmul.f32 %v1780, %v1766
          %v1785 = vadd.f32 %v1755, %v1781
          %v1786 = vadd.f32 %v1758, %v1782
          %v1787 = vadd.f32 %v1763, %v1783
          %v1788 = vadd.f32 %v1766, %v1784
          %v1789 = vmul.f32 %v1785, 0.7978846
          %v1790 = vmul.f32 %v1786, 0.7978846
          %v1791 = vmul.f32 %v1787, 0.7978846
          %v1792 = vmul.f32 %v1788, 0.7978846
          %v1793 = vtanh.pop %v1789
          %v1794 = vtanh.pop %v1790
          %v1795 = vtanh.pop %v1791
          %v1796 = vtanh.pop %v1792
          %v1797 = vadd.f32 %v1793, 1.0
          %v1798 = vadd.f32 %v1794, 1.0
          %v1799 = vadd.f32 %v1795, 1.0
          %v1800 = vadd.f32 %v1796, 1.0
          %v1801 = vmul.f32 %v1769, %v1797
          %v1802 = vmul.f32 %v1770, %v1798
          %v1803 = vmul.f32 %v1771, %v1799
          %v1804 = vmul.f32 %v1772, %v1800
          %v1805 = vpack.c.bf16 %v1802, %v1801
          %v1806 = vpack.c.bf16 %v1804, %v1803
          %v1807 = vld [vmem:[#allocation18] sm:$0xf]
          %v1808 = vld [vmem:[#allocation18 + $0x4] sm:$0xf]
          %v1809 = vld [vmem:[#allocation18 + $0x8] sm:$0xf]
          %v1810 = vld [vmem:[#allocation18 + $0xc] sm:$0xf]
          %v1811 = vld [vmem:[#allocation18 + $0x10] sm:$0xf]
          %v1812 = vld [vmem:[#allocation18 + $0x14] sm:$0xf]
          %v1813 = vld [vmem:[#allocation18 + $0x18] sm:$0xf]
          %v1814 = vld [vmem:[#allocation18 + $0x1c] sm:$0xf]
          %v1815 = vld [vmem:[#allocation18 + $0x20] sm:$0xf]
          %v1816 = vld [vmem:[#allocation18 + $0x24] sm:$0xf]
          %v1817 = vld [vmem:[#allocation18 + $0x28] sm:$0xf]
          %v1818 = vld [vmem:[#allocation18 + $0x2c] sm:$0xf]
          %v1819 = vld [vmem:[#allocation18 + $0x30] sm:$0xf]
          %v1820 = vld [vmem:[#allocation18 + $0x34] sm:$0xf]
          %v1821 = vld [vmem:[#allocation18 + $0x38] sm:$0xf]
          %v1822 = vld [vmem:[#allocation18 + $0x3c] sm:$0xf]
          %v1823 = vld [vmem:[#allocation19] sm:$0x1]
          %v1825 = vlaneseq
          %v1826 = vshrl.u32 %v1825, 7
          %v1827 = vsub.s32 0, %v1826
          %v1828 = vrot.slane %v1823, %v1827
          %v1846 = vunpack.c.l.b16 %v1807
          %v1847 = vunpack.c.l.b16 %v1808
          %v1848 = vunpack.c.l.b16 %v1809
          %v1849 = vunpack.c.l.b16 %v1810
          %v1850 = vunpack.c.l.b16 %v1811
          %v1851 = vunpack.c.l.b16 %v1812
          %v1852 = vunpack.c.l.b16 %v1813
          %v1853 = vunpack.c.l.b16 %v1814
          %v1854 = vunpack.c.l.b16 %v1815
          %v1855 = vunpack.c.l.b16 %v1816
          %v1856 = vunpack.c.l.b16 %v1817
          %v1857 = vunpack.c.l.b16 %v1818
          %v1858 = vunpack.c.l.b16 %v1819
          %v1859 = vunpack.c.l.b16 %v1820
          %v1860 = vunpack.c.l.b16 %v1821
          %v1861 = vunpack.c.l.b16 %v1822
          %v1862 = vpack.c.b16 %v1847, %v1846
          %v1863 = vpack.c.b16 %v1849, %v1848
          %v1864 = vpack.c.b16 %v1851, %v1850
          %v1865 = vpack.c.b16 %v1853, %v1852
          %v1866 = vpack.c.b16 %v1855, %v1854
          %v1867 = vpack.c.b16 %v1857, %v1856
          %v1868 = vpack.c.b16 %v1859, %v1858
          %v1869 = vpack.c.b16 %v1861, %v1860
          %1878 = vmatprep.subr.bf16.mxu0 0
          %1879 = vmatpush1.bf16.msra.mxu0 %v1862
          %1880 = vmatprep.subr.bf16.mxu0 0
          %1881 = vmatpush1.bf16.msra.mxu0 %v1863
          %1882 = vmatprep.subr.bf16.mxu0 0
          %1883 = vmatpush1.bf16.msra.mxu0 %v1864
          %1884 = vmatprep.subr.bf16.mxu0 0
          %1885 = vmatpush1.bf16.msra.mxu0 %v1865
          %1886 = vmatprep.subr.bf16.mxu0 0
          %1887 = vmatpush1.bf16.msra.mxu0 %v1866
          %1888 = vmatprep.subr.bf16.mxu0 0
          %1889 = vmatpush1.bf16.msra.mxu0 %v1867
          %1890 = vmatprep.subr.bf16.mxu0 0
          %1891 = vmatpush1.bf16.msra.mxu0 %v1868
          %1892 = vmatprep.subr.bf16.mxu0 0
          %1893 = vmatpush1.bf16.msra.mxu0 %v1869
          %1894 = vmatprep.subr.bf16.mxu0 0
          %1895 = vmatpush1.bf16.msra.mxu0 0
          %1896 = vmatprep.subr.bf16.mxu0 0
          %1897 = vmatpush1.bf16.msra.mxu0 0
          %1898 = vmatprep.subr.bf16.mxu0 0
          %1899 = vmatpush1.bf16.msra.mxu0 0
          %1900 = vmatprep.subr.bf16.mxu0 0
          %1901 = vmatpush1.bf16.msra.mxu0 0
          %1902 = vmatprep.subr.bf16.mxu0 0
          %1903 = vmatpush1.bf16.msra.mxu0 0
          %1904 = vmatprep.subr.bf16.mxu0 0
          %1905 = vmatpush1.bf16.msra.mxu0 0
          %1906 = vmatprep.subr.bf16.mxu0 0
          %1907 = vmatpush1.bf16.msra.mxu0 0
          %1908 = vmatprep.subr.bf16.mxu0 0
          %1909 = vmatpush1.bf16.msra.mxu0 0
          %1910 = vmatprep.mubr.bf16.mxu0 0
          %1911 = vmatmul.mubr.bf16.gmra.mrb[0].mxu0 %v1805
          %v1912 = vpop.f32.mrb[0].mxu0
          %v1913 = vadd.f32 %v1828, %v1912
          %v1914 = vpop.f32.mrb[0].mxu0
          %v1915 = vpop.f32.mrb[0].mxu0
          %v1916 = vadd.f32 %v1828, %v1915
          %v1917 = vpop.f32.mrb[0].mxu0
          %1918 = vmatprep.mubr.bf16.mxu0 0
          %1919 = vmatmul.mubr.bf16.gmra.mrb[0].mxu0 %v1806
          %v1920 = vpop.f32.mrb[0].mxu0
          %v1921 = vadd.f32 %v1828, %v1920
          %v1922 = vpop.f32.mrb[0].mxu0
          %v1923 = vpop.f32.mrb[0].mxu0
          %v1924 = vadd.f32 %v1828, %v1923
          %v1925 = vpop.f32.mrb[0].mxu0
          %1926 = vdwg.mxu0
          %v1927 = vadd.f32 %v1685, %v1913
          %v1928 = vadd.f32 %v1686, %v1916
          %v1929 = vadd.f32 %v1687, %v1921
          %v1930 = vadd.f32 %v1688, %v1924
          %1931 = vst.msk [vmem:[#allocation2] sm:$0xff] %vm1546, %v1927
          %1932 = vst.msk [vmem:[#allocation2 + $0x8] sm:$0xff] %vm1546, %v1928
          %1933 = vst.msk [vmem:[#allocation2 + $0x10] sm:$0xff] %vm1546, %v1929
          %1934 = vst.msk [vmem:[#allocation2 + $0x18] sm:$0xff] %vm1546, %v1930
        $region228: #{tpu_custom_call.1} parent=123 // pred_fallthru
          _
        %v1935 = vld [vmem:[#allocation2] sm:$0xff]
        %v1936 = vld [vmem:[#allocation2 + $0x8] sm:$0xff]
        %v1937 = vld [vmem:[#allocation2 + $0x10] sm:$0xff]
        %v1938 = vld [vmem:[#allocation2 + $0x18] sm:$0xff]
        %v1939 = vld [vmem:[%s1174] sm:$0x1]
        %v1940 = vld [vmem:[%s1182] sm:$0x1]
        %vm1941 = vcmask 261120
        %v1942 = vsel %vm1941, %v1935, 0.0
        %1943 = vadd.xlane.f32.xlu0 %v1942
        %v1944 = vpop.xlane.xlu0 %1943
        %v1945 = vsel %vm1941, %v1936, 0.0
        %1946 = vadd.xlane.f32.xlu0 %v1945
        %v1947 = vpop.xlane.xlu0 %1946
        %v1948 = vsel %vm1941, %v1937, 0.0
        %1949 = vadd.xlane.f32.xlu0 %v1948
        %v1950 = vpop.xlane.xlu0 %1949
        %v1951 = vsel %vm1941, %v1938, 0.0
        %1952 = vadd.xlane.f32.xlu0 %v1951
        %v1953 = vpop.xlane.xlu0 %1952
        %v1954 = vrcp.pop 32.0
        %v1955 = vmul.f32 %v1944, %v1954
        %v1956 = vmul.f32 %v1947, %v1954
        %v1957 = vmul.f32 %v1950, %v1954
        %v1958 = vmul.f32 %v1953, %v1954
        %v1959 = vsub.f32 %v1935, %v1955
        %v1960 = vsub.f32 %v1936, %v1956
        %v1961 = vsub.f32 %v1937, %v1957
        %v1962 = vsub.f32 %v1938, %v1958
        %v1963 = vmul.f32 %v1959, %v1959
        %v1964 = vmul.f32 %v1960, %v1960
        %v1965 = vmul.f32 %v1961, %v1961
        %v1966 = vmul.f32 %v1962, %v1962
        %v1967 = vsel %vm1941, %v1963, 0.0
        %1968 = vadd.xlane.f32.xlu0 %v1967
        %v1969 = vpop.xlane.xlu0 %1968
        %v1970 = vsel %vm1941, %v1964, 0.0
        %1971 = vadd.xlane.f32.xlu0 %v1970
        %v1972 = vpop.xlane.xlu0 %1971
        %v1973 = vsel %vm1941, %v1965, 0.0
        %1974 = vadd.xlane.f32.xlu0 %v1973
        %v1975 = vpop.xlane.xlu0 %1974
        %v1976 = vsel %vm1941, %v1966, 0.0
        %1977 = vadd.xlane.f32.xlu0 %v1976
        %v1978 = vpop.xlane.xlu0 %1977
        %v1979 = vmul.f32 %v1969, %v1954
        %v1980 = vmul.f32 %v1972, %v1954
        %v1981 = vmul.f32 %v1975, %v1954
        %v1982 = vmul.f32 %v1978, %v1954
        %v1983 = vadd.f32 %v1979, 1e-05
        %v1984 = vadd.f32 %v1980, 1e-05
        %v1985 = vadd.f32 %v1981, 1e-05
        %v1986 = vadd.f32 %v1982, 1e-05
        %v1987 = vrsqrt.pop %v1983
        %v1988 = vrsqrt.pop %v1984
        %v1989 = vrsqrt.pop %v1985
        %v1990 = vrsqrt.pop %v1986
        %v1991 = vmul.f32 %v1959, %v1987
        %v1992 = vmul.f32 %v1960, %v1988
        %v1993 = vmul.f32 %v1961, %v1989
        %v1994 = vmul.f32 %v1962, %v1990
        %v1996 = vlaneseq
        %v1997 = vshrl.u32 %v1996, 7
        %v1998 = vsub.s32 0, %v1997
        %v1999 = vrot.slane %v1939, %v1998
        %v2001 = vmul.f32 %v1991, %v1999
        %v2002 = vmul.f32 %v1992, %v1999
        %v2003 = vmul.f32 %v1993, %v1999
        %v2004 = vmul.f32 %v1994, %v1999
        %v2006 = vlaneseq
        %v2007 = vshrl.u32 %v2006, 7
        %v2008 = vsub.s32 0, %v2007
        %v2009 = vrot.slane %v1940, %v2008
        %v2011 = vadd.f32 %v2001, %v2009
        %v2012 = vadd.f32 %v2002, %v2009
        %v2013 = vadd.f32 %v2003, %v2009
        %v2014 = vadd.f32 %v2004, %v2009
        %v2015 = vpack.c.bf16 %v2012, %v2011
        %v2016 = vpack.c.bf16 %v2014, %v2013
        %v2017 = vld [vmem:[%s1191] sm:$0xf]
        %v2018 = vld [vmem:[%s1191 + $0x4] sm:$0xf]
        %v2019 = vld [vmem:[%s1191 + $0x8] sm:$0xf]
        %v2020 = vld [vmem:[%s1191 + $0xc] sm:$0xf]
        %v2021 = vld [vmem:[%s1199] sm:$0x1]
        %v2023 = vlaneseq
        %v2024 = vshrl.u32 %v2023, 7
        %v2025 = vsub.s32 0, %v2024
        %v2026 = vrot.slane %v2021, %v2025
        %v2032 = vunpack.c.l.b16 %v2017
        %v2033 = vunpack.c.l.b16 %v2018
        %v2034 = vunpack.c.l.b16 %v2019
        %v2035 = vunpack.c.l.b16 %v2020
        %v2036 = vpack.c.b16 %v2033, %v2032
        %v2037 = vpack.c.b16 %v2035, %v2034
        %v2041 = vsel %vm1941, %v2015, 0
        %v2044 = vsel %vm1941, %v2016, 0
        %2046 = vmatprep.subr.bf16.mxu0 0
        %2047 = vmatpush1.bf16.msra.mxu0 %v2036
        %2048 = vmatprep.subr.bf16.mxu0 0
        %2049 = vmatpush1.bf16.msra.mxu0 %v2037
        %2050 = vmatprep.subr.bf16.mxu0 0
        %2051 = vmatpush1.bf16.msra.mxu0 0
        %2052 = vmatprep.subr.bf16.mxu0 0
        %2053 = vmatpush1.bf16.msra.mxu0 0
        %2054 = vmatprep.subr.bf16.mxu0 0
        %2055 = vmatpush1.bf16.msra.mxu0 0
        %2056 = vmatprep.subr.bf16.mxu0 0
        %2057 = vmatpush1.bf16.msra.mxu0 0
        %2058 = vmatprep.subr.bf16.mxu0 0
        %2059 = vmatpush1.bf16.msra.mxu0 0
        %2060 = vmatprep.subr.bf16.mxu0 0
        %2061 = vmatpush1.bf16.msra.mxu0 0
        %2062 = vmatprep.subr.bf16.mxu0 0
        %2063 = vmatpush1.bf16.msra.mxu0 0
        %2064 = vmatprep.subr.bf16.mxu0 0
        %2065 = vmatpush1.bf16.msra.mxu0 0
        %2066 = vmatprep.subr.bf16.mxu0 0
        %2067 = vmatpush1.bf16.msra.mxu0 0
        %2068 = vmatprep.subr.bf16.mxu0 0
        %2069 = vmatpush1.bf16.msra.mxu0 0
        %2070 = vmatprep.subr.bf16.mxu0 0
        %2071 = vmatpush1.bf16.msra.mxu0 0
        %2072 = vmatprep.subr.bf16.mxu0 0
        %2073 = vmatpush1.bf16.msra.mxu0 0
        %2074 = vmatprep.subr.bf16.mxu0 0
        %2075 = vmatpush1.bf16.msra.mxu0 0
        %2076 = vmatprep.subr.bf16.mxu0 0
        %2077 = vmatpush1.bf16.msra.mxu0 0
        %2078 = vmatprep.mubr.bf16.mxu0 0
        %2079 = vmatmul.mubr.bf16.gmra.mrb[0].mxu0 %v2041
        %v2080 = vpop.f32.mrb[0].mxu0
        %v2081 = vadd.f32 %v2026, %v2080
        %v2082 = vpop.f32.mrb[0].mxu0
        %v2083 = vpop.f32.mrb[0].mxu0
        %v2084 = vadd.f32 %v2026, %v2083
        %v2085 = vpop.f32.mrb[0].mxu0
        %2086 = vmatprep.mubr.bf16.mxu0 0
        %2087 = vmatmul.mubr.bf16.gmra.mrb[0].mxu0 %v2044
        %v2088 = vpop.f32.mrb[0].mxu0
        %v2089 = vadd.f32 %v2026, %v2088
        %v2090 = vpop.f32.mrb[0].mxu0
        %v2091 = vpop.f32.mrb[0].mxu0
        %v2092 = vadd.f32 %v2026, %v2091
        %v2093 = vpop.f32.mrb[0].mxu0
        %2094 = vdwg.mxu0
        %v2095 = vld [vmem:[%s1208] sm:$0xf]
        %v2096 = vld [vmem:[%s1208 + $0x4] sm:$0xf]
        %v2097 = vld [vmem:[%s1208 + $0x8] sm:$0xf]
        %v2098 = vld [vmem:[%s1208 + $0xc] sm:$0xf]
        %v2099 = vmul.f32 %v2081, 0.35355338
        %v2100 = vmul.f32 %v2084, 0.35355338
        %v2101 = vpack.c.bf16 %v2100, %v2099
        %v2102 = vpack.c.bf16 %v2084, %v2081
        %2104 = vrot.lane.b32.xlu0 %v2102, 96
        %v2105 = vpop.permute.xlu0 %2104
        %vm2106 = vcmask 64512
        %v2108 = vsel %vm2106, %v2101, 0
        %v2111 = vsel %vm2106, %v2105, 0
        %2113 = vmatprep.subr.bf16.mxu0 0
        %2114 = vmatpush1.bf16.xpose.msra.mxu0 %v2111
        %2115 = vmatprep.subr.bf16.mxu0 0
        %2116 = vmatpush1.bf16.xpose.msra.mxu0 0
        %2117 = vmatprep.subr.bf16.mxu0 0
        %2118 = vmatpush1.bf16.xpose.msra.mxu0 0
        %2119 = vmatprep.subr.bf16.mxu0 0
        %2120 = vmatpush1.bf16.xpose.msra.mxu0 0
        %2121 = vmatprep.subr.bf16.mxu0 0
        %2122 = vmatpush1.bf16.xpose.msra.mxu0 0
        %2123 = vmatprep.subr.bf16.mxu0 0
        %2124 = vmatpush1.bf16.xpose.msra.mxu0 0
        %2125 = vmatprep.subr.bf16.mxu0 0
        %2126 = vmatpush1.bf16.xpose.msra.mxu0 0
        %2127 = vmatprep.subr.bf16.mxu0 0
        %2128 = vmatpush1.bf16.xpose.msra.mxu0 0
        %2129 = vmatprep.subr.bf16.mxu0 0
        %2130 = vmatpush1.bf16.xpose.msra.mxu0 0
        %2131 = vmatprep.subr.bf16.mxu0 0
        %2132 = vmatpush1.bf16.xpose.msra.mxu0 0
        %2133 = vmatprep.subr.bf16.mxu0 0
        %2134 = vmatpush1.bf16.xpose.msra.mxu0 0
        %2135 = vmatprep.subr.bf16.mxu0 0
        %2136 = vmatpush1.bf16.xpose.msra.mxu0 0
        %2137 = vmatprep.subr.bf16.mxu0 0
        %2138 = vmatpush1.bf16.xpose.msra.mxu0 0
        %2139 = vmatprep.subr.bf16.mxu0 0
        %2140 = vmatpush1.bf16.xpose.msra.mxu0 0
        %2141 = vmatprep.subr.bf16.mxu0 0
        %2142 = vmatpush1.bf16.xpose.msra.mxu0 0
        %2143 = vmatprep.subr.bf16.mxu0 0
        %2144 = vmatpush1.bf16.xpose.msra.mxu0 0
        %2145 = vmatprep.mubr.bf16.mxu0 0
        %2146 = vmatmul.mubr.bf16.gmra.mrb[0].mxu0 %v2108
        %v2147 = vpop.f32.mrb[0].mxu0
        %v2148 = vadd.f32 0.0, %v2147
        %v2149 = vpop.f32.mrb[0].mxu0
        %v2150 = vpop.f32.mrb[0].mxu0
        %v2151 = vadd.f32 0.0, %v2150
        %v2152 = vpop.f32.mrb[0].mxu0
        %2153 = vdwg.mxu0
        %vm2154 = vcmask 130048
        %v2155 = vsel %vm2154, %v2148, -inf
        %2156 = vmax.xlane.f32.xlu0 %v2155
        %v2157 = vpop.xlane.xlu0 %2156
        %v2158 = vsel %vm2154, %v2151, -inf
        %2159 = vmax.xlane.f32.xlu0 %v2158
        %v2160 = vpop.xlane.xlu0 %2159
        %v2161 = vsub.f32 %v2148, %v2157
        %v2162 = vsub.f32 %v2151, %v2160
        %v2163 = vmul.f32 %v2161, 1.442695
        %v2164 = vpow.pop %v2163
        %v2165 = vmul.f32 %v2162, 1.442695
        %v2166 = vpow.pop %v2165
        %v2167 = vsel %vm2154, %v2164, 0.0
        %2168 = vadd.xlane.f32.xlu0 %v2167
        %v2169 = vpop.xlane.xlu0 %2168
        %v2170 = vsel %vm2154, %v2166, 0.0
        %2171 = vadd.xlane.f32.xlu0 %v2170
        %v2172 = vpop.xlane.xlu0 %2171
        %v2173 = vrcp.pop %v2169
        %v2174 = vrcp.pop %v2172
        %v2175 = vmul.f32 %v2164, %v2173
        %v2176 = vmul.f32 %v2166, %v2174
        %v2177 = vpack.c.bf16 %v2176, %v2175
        %2178 = vrot.lane.b32.xlu0 %v2102, 64
        %v2179 = vpop.permute.xlu0 %2178
        %v2182 = vsel %vm2154, %v2177, 0
        %2184 = vmatprep.subr.bf16.mxu0 0
        %2185 = vmatpush1.bf16.msra.mxu0 %v2179
        %2186 = vmatprep.subr.bf16.mxu0 0
        %2187 = vmatpush1.bf16.msra.mxu0 0
        %2188 = vmatprep.subr.bf16.mxu0 0
        %2189 = vmatpush1.bf16.msra.mxu0 0
        %2190 = vmatprep.subr.bf16.mxu0 0
        %2191 = vmatpush1.bf16.msra.mxu0 0
        %2192 = vmatprep.subr.bf16.mxu0 0
        %2193 = vmatpush1.bf16.msra.mxu0 0
        %2194 = vmatprep.subr.bf16.mxu0 0
        %2195 = vmatpush1.bf16.msra.mxu0 0
        %2196 = vmatprep.subr.bf16.mxu0 0
        %2197 = vmatpush1.bf16.msra.mxu0 0
        %2198 = vmatprep.subr.bf16.mxu0 0
        %2199 = vmatpush1.bf16.msra.mxu0 0
        %2200 = vmatprep.subr.bf16.mxu0 0
        %2201 = vmatpush1.bf16.msra.mxu0 0
        %2202 = vmatprep.subr.bf16.mxu0 0
        %2203 = vmatpush1.bf16.msra.mxu0 0
        %2204 = vmatprep.subr.bf16.mxu0 0
        %2205 = vmatpush1.bf16.msra.mxu0 0
        %2206 = vmatprep.subr.bf16.mxu0 0
        %2207 = vmatpush1.bf16.msra.mxu0 0
        %2208 = vmatprep.subr.bf16.mxu0 0
        %2209 = vmatpush1.bf16.msra.mxu0 0
        %2210 = vmatprep.subr.bf16.mxu0 0
        %2211 = vmatpush1.bf16.msra.mxu0 0
        %2212 = vmatprep.subr.bf16.mxu0 0
        %2213 = vmatpush1.bf16.msra.mxu0 0
        %2214 = vmatprep.subr.bf16.mxu0 0
        %2215 = vmatpush1.bf16.msra.mxu0 0
        %2216 = vmatprep.mubr.bf16.mxu0 0
        %2217 = vmatmul.mubr.bf16.gmra.mrb[0].mxu0 %v2182
        %v2218 = vpop.f32.mrb[0].mxu0
        %v2219 = vadd.f32 0.0, %v2218
        %v2220 = vpop.f32.mrb[0].mxu0
        %v2221 = vpop.f32.mrb[0].mxu0
        %v2222 = vadd.f32 0.0, %v2221
        %v2223 = vpop.f32.mrb[0].mxu0
        %2224 = vdwg.mxu0
        %v2225 = vpack.c.bf16 %v2222, %v2219
        %2227 = vrot.lane.b32.xlu0 %v2101, 120
        %v2228 = vpop.permute.xlu0 %2227
        %2229 = vrot.lane.b32.xlu0 %v2102, 88
        %v2230 = vpop.permute.xlu0 %2229
        %v2232 = vsel %vm2106, %v2228, 0
        %v2235 = vsel %vm2106, %v2230, 0
        %2237 = vmatprep.subr.bf16.mxu0 0
        %2238 = vmatpush1.bf16.xpose.msra.mxu0 %v2235
        %2239 = vmatprep.subr.bf16.mxu0 0
        %2240 = vmatpush1.bf16.xpose.msra.mxu0 0
        %2241 = vmatprep.subr.bf16.mxu0 0
        %2242 = vmatpush1.bf16.xpose.msra.mxu0 0
        %2243 = vmatprep.subr.bf16.mxu0 0
        %2244 = vmatpush1.bf16.xpose.msra.mxu0 0
        %2245 = vmatprep.subr.bf16.mxu0 0
        %2246 = vmatpush1.bf16.xpose.msra.mxu0 0
        %2247 = vmatprep.subr.bf16.mxu0 0
        %2248 = vmatpush1.bf16.xpose.msra.mxu0 0
        %2249 = vmatprep.subr.bf16.mxu0 0
        %2250 = vmatpush1.bf16.xpose.msra.mxu0 0
        %2251 = vmatprep.subr.bf16.mxu0 0
        %2252 = vmatpush1.bf16.xpose.msra.mxu0 0
        %2253 = vmatprep.subr.bf16.mxu0 0
        %2254 = vmatpush1.bf16.xpose.msra.mxu0 0
        %2255 = vmatprep.subr.bf16.mxu0 0
        %2256 = vmatpush1.bf16.xpose.msra.mxu0 0
        %2257 = vmatprep.subr.bf16.mxu0 0
        %2258 = vmatpush1.bf16.xpose.msra.mxu0 0
        %2259 = vmatprep.subr.bf16.mxu0 0
        %2260 = vmatpush1.bf16.xpose.msra.mxu0 0
        %2261 = vmatprep.subr.bf16.mxu0 0
        %2262 = vmatpush1.bf16.xpose.msra.mxu0 0
        %2263 = vmatprep.subr.bf16.mxu0 0
        %2264 = vmatpush1.bf16.xpose.msra.mxu0 0
        %2265 = vmatprep.subr.bf16.mxu0 0
        %2266 = vmatpush1.bf16.xpose.msra.mxu0 0
        %2267 = vmatprep.subr.bf16.mxu0 0
        %2268 = vmatpush1.bf16.xpose.msra.mxu0 0
        %2269 = vmatprep.mubr.bf16.mxu0 0
        %2270 = vmatmul.mubr.bf16.gmra.mrb[0].mxu0 %v2232
        %v2271 = vpop.f32.mrb[0].mxu0
        %v2272 = vadd.f32 0.0, %v2271
        %v2273 = vpop.f32.mrb[0].mxu0
        %v2274 = vpop.f32.mrb[0].mxu0
        %v2275 = vadd.f32 0.0, %v2274
        %v2276 = vpop.f32.mrb[0].mxu0
        %2277 = vdwg.mxu0
        %v2278 = vsel %vm2154, %v2272, -inf
        %2279 = vmax.xlane.f32.xlu0 %v2278
        %v2280 = vpop.xlane.xlu0 %2279
        %v2281 = vsel %vm2154, %v2275, -inf
        %2282 = vmax.xlane.f32.xlu0 %v2281
        %v2283 = vpop.xlane.xlu0 %2282
        %v2284 = vsub.f32 %v2272, %v2280
        %v2285 = vsub.f32 %v2275, %v2283
        %v2286 = vmul.f32 %v2284, 1.442695
        %v2287 = vpow.pop %v2286
        %v2288 = vmul.f32 %v2285, 1.442695
        %v2289 = vpow.pop %v2288
        %v2290 = vsel %vm2154, %v2287, 0.0
        %2291 = vadd.xlane.f32.xlu0 %v2290
        %v2292 = vpop.xlane.xlu0 %2291
        %v2293 = vsel %vm2154, %v2289, 0.0
        %2294 = vadd.xlane.f32.xlu0 %v2293
        %v2295 = vpop.xlane.xlu0 %2294
        %v2296 = vrcp.pop %v2292
        %v2297 = vrcp.pop %v2295
        %v2298 = vmul.f32 %v2287, %v2296
        %v2299 = vmul.f32 %v2289, %v2297
        %v2300 = vpack.c.bf16 %v2299, %v2298
        %2301 = vrot.lane.b32.xlu0 %v2102, 56
        %v2302 = vpop.permute.xlu0 %2301
        %v2305 = vsel %vm2154, %v2300, 0
        %2307 = vmatprep.subr.bf16.mxu0 0
        %2308 = vmatpush1.bf16.msra.mxu0 %v2302
        %2309 = vmatprep.subr.bf16.mxu0 0
        %2310 = vmatpush1.bf16.msra.mxu0 0
        %2311 = vmatprep.subr.bf16.mxu0 0
        %2312 = vmatpush1.bf16.msra.mxu0 0
        %2313 = vmatprep.subr.bf16.mxu0 0
        %2314 = vmatpush1.bf16.msra.mxu0 0
        %2315 = vmatprep.subr.bf16.mxu0 0
        %2316 = vmatpush1.bf16.msra.mxu0 0
        %2317 = vmatprep.subr.bf16.mxu0 0
        %2318 = vmatpush1.bf16.msra.mxu0 0
        %2319 = vmatprep.subr.bf16.mxu0 0
        %2320 = vmatpush1.bf16.msra.mxu0 0
        %2321 = vmatprep.subr.bf16.mxu0 0
        %2322 = vmatpush1.bf16.msra.mxu0 0
        %2323 = vmatprep.subr.bf16.mxu0 0
        %2324 = vmatpush1.bf16.msra.mxu0 0
        %2325 = vmatprep.subr.bf16.mxu0 0
        %2326 = vmatpush1.bf16.msra.mxu0 0
        %2327 = vmatprep.subr.bf16.mxu0 0
        %2328 = vmatpush1.bf16.msra.mxu0 0
        %2329 = vmatprep.subr.bf16.mxu0 0
        %2330 = vmatpush1.bf16.msra.mxu0 0
        %2331 = vmatprep.subr.bf16.mxu0 0
        %2332 = vmatpush1.bf16.msra.mxu0 0
        %2333 = vmatprep.subr.bf16.mxu0 0
        %2334 = vmatpush1.bf16.msra.mxu0 0
        %2335 = vmatprep.subr.bf16.mxu0 0
        %2336 = vmatpush1.bf16.msra.mxu0 0
        %2337 = vmatprep.subr.bf16.mxu0 0
        %2338 = vmatpush1.bf16.msra.mxu0 0
        %2339 = vmatprep.mubr.bf16.mxu0 0
        %2340 = vmatmul.mubr.bf16.gmra.mrb[0].mxu0 %v2305
        %v2341 = vpop.f32.mrb[0].mxu0
        %v2342 = vadd.f32 0.0, %v2341
        %v2343 = vpop.f32.mrb[0].mxu0
        %v2344 = vpop.f32.mrb[0].mxu0
        %v2345 = vadd.f32 0.0, %v2344
        %v2346 = vpop.f32.mrb[0].mxu0
        %2347 = vdwg.mxu0
        %v2348 = vpack.c.bf16 %v2345, %v2342
        %v2350 = vsel %vm2106, %v2348, 0
        %vm2352 = vcmask 1043456
        %v2354 = vsel %vm2352, %v2096, 0
        %2356 = vmatprep.subr.bf16.mxu0 0
        %2357 = vmatpush1.bf16.msra.mxu0 %v2354
        %2358 = vmatprep.subr.bf16.mxu0 0
        %2359 = vmatpush1.bf16.msra.mxu0 0
        %2360 = vmatprep.subr.bf16.mxu0 0
        %2361 = vmatpush1.bf16.msra.mxu0 0
        %2362 = vmatprep.subr.bf16.mxu0 0
        %2363 = vmatpush1.bf16.msra.mxu0 0
        %2364 = vmatprep.subr.bf16.mxu0 0
        %2365 = vmatpush1.bf16.msra.mxu0 0
        %2366 = vmatprep.subr.bf16.mxu0 0
        %2367 = vmatpush1.bf16.msra.mxu0 0
        %2368 = vmatprep.subr.bf16.mxu0 0
        %2369 = vmatpush1.bf16.msra.mxu0 0
        %2370 = vmatprep.subr.bf16.mxu0 0
        %2371 = vmatpush1.bf16.msra.mxu0 0
        %2372 = vmatprep.subr.bf16.mxu0 0
        %2373 = vmatpush1.bf16.msra.mxu0 0
        %2374 = vmatprep.subr.bf16.mxu0 0
        %2375 = vmatpush1.bf16.msra.mxu0 0
        %2376 = vmatprep.subr.bf16.mxu0 0
        %2377 = vmatpush1.bf16.msra.mxu0 0
        %2378 = vmatprep.subr.bf16.mxu0 0
        %2379 = vmatpush1.bf16.msra.mxu0 0
        %2380 = vmatprep.subr.bf16.mxu0 0
        %2381 = vmatpush1.bf16.msra.mxu0 0
        %2382 = vmatprep.subr.bf16.mxu0 0
        %2383 = vmatpush1.bf16.msra.mxu0 0
        %2384 = vmatprep.subr.bf16.mxu0 0
        %2385 = vmatpush1.bf16.msra.mxu0 0
        %2386 = vmatprep.subr.bf16.mxu0 0
        %2387 = vmatpush1.bf16.msra.mxu0 0
        %2388 = vmatprep.mubr.bf16.mxu0 0
        %2389 = vmatmul.mubr.bf16.gmra.mrb[0].mxu0 %v2350
        %v2390 = vpop.f32.mrb[0].mxu0
        %v2391 = vadd.f32 0.0, %v2390
        %v2392 = vpop.f32.mrb[0].mxu0
        %v2393 = vpop.f32.mrb[0].mxu0
        %v2394 = vadd.f32 0.0, %v2393
        %v2395 = vpop.f32.mrb[0].mxu0
        %2396 = vdwg.mxu0
        %v2398 = vsel %vm2106, %v2225, 0
        %v2401 = vsel %vm2352, %v2095, 0
        %2403 = vmatprep.subr.bf16.mxu0 0
        %2404 = vmatpush1.bf16.msra.mxu0 %v2401
        %2405 = vmatprep.subr.bf16.mxu0 0
        %2406 = vmatpush1.bf16.msra.mxu0 0
        %2407 = vmatprep.subr.bf16.mxu0 0
        %2408 = vmatpush1.bf16.msra.mxu0 0
        %2409 = vmatprep.subr.bf16.mxu0 0
        %2410 = vmatpush1.bf16.msra.mxu0 0
        %2411 = vmatprep.subr.bf16.mxu0 0
        %2412 = vmatpush1.bf16.msra.mxu0 0
        %2413 = vmatprep.subr.bf16.mxu0 0
        %2414 = vmatpush1.bf16.msra.mxu0 0
        %2415 = vmatprep.subr.bf16.mxu0 0
        %2416 = vmatpush1.bf16.msra.mxu0 0
        %2417 = vmatprep.subr.bf16.mxu0 0
        %2418 = vmatpush1.bf16.msra.mxu0 0
        %2419 = vmatprep.subr.bf16.mxu0 0
        %2420 = vmatpush1.bf16.msra.mxu0 0
        %2421 = vmatprep.subr.bf16.mxu0 0
        %2422 = vmatpush1.bf16.msra.mxu0 0
        %2423 = vmatprep.subr.bf16.mxu0 0
        %2424 = vmatpush1.bf16.msra.mxu0 0
        %2425 = vmatprep.subr.bf16.mxu0 0
        %2426 = vmatpush1.bf16.msra.mxu0 0
        %2427 = vmatprep.subr.bf16.mxu0 0
        %2428 = vmatpush1.bf16.msra.mxu0 0
        %2429 = vmatprep.subr.bf16.mxu0 0
        %2430 = vmatpush1.bf16.msra.mxu0 0
        %2431 = vmatprep.subr.bf16.mxu0 0
        %2432 = vmatpush1.bf16.msra.mxu0 0
        %2433 = vmatprep.subr.bf16.mxu0 0
        %2434 = vmatpush1.bf16.msra.mxu0 0
        %2435 = vmatprep.mubr.bf16.mxu0 0
        %2436 = vmatmul.mubr.bf16.gmra.mrb[0].mxu0 %v2398
        %v2437 = vpop.f32.mrb[0].mxu0
        %v2438 = vadd.f32 %v2391, %v2437
        %v2439 = vpop.f32.mrb[0].mxu0
        %v2440 = vpop.f32.mrb[0].mxu0
        %v2441 = vadd.f32 %v2394, %v2440
        %v2442 = vpop.f32.mrb[0].mxu0
        %2443 = vdwg.mxu0
        %2444 = vrot.lane.b32.xlu0 %v2101, 112
        %v2445 = vpop.permute.xlu0 %2444
        %2446 = vrot.lane.b32.xlu0 %v2102, 80
        %v2447 = vpop.permute.xlu0 %2446
        %v2449 = vsel %vm2106, %v2445, 0
        %v2452 = vsel %vm2106, %v2447, 0
        %2454 = vmatprep.subr.bf16.mxu0 0
        %2455 = vmatpush1.bf16.xpose.msra.mxu0 %v2452
        %2456 = vmatprep.subr.bf16.mxu0 0
        %2457 = vmatpush1.bf16.xpose.msra.mxu0 0
        %2458 = vmatprep.subr.bf16.mxu0 0
        %2459 = vmatpush1.bf16.xpose.msra.mxu0 0
        %2460 = vmatprep.subr.bf16.mxu0 0
        %2461 = vmatpush1.bf16.xpose.msra.mxu0 0
        %2462 = vmatprep.subr.bf16.mxu0 0
        %2463 = vmatpush1.bf16.xpose.msra.mxu0 0
        %2464 = vmatprep.subr.bf16.mxu0 0
        %2465 = vmatpush1.bf16.xpose.msra.mxu0 0
        %2466 = vmatprep.subr.bf16.mxu0 0
        %2467 = vmatpush1.bf16.xpose.msra.mxu0 0
        %2468 = vmatprep.subr.bf16.mxu0 0
        %2469 = vmatpush1.bf16.xpose.msra.mxu0 0
        %2470 = vmatprep.subr.bf16.mxu0 0
        %2471 = vmatpush1.bf16.xpose.msra.mxu0 0
        %2472 = vmatprep.subr.bf16.mxu0 0
        %2473 = vmatpush1.bf16.xpose.msra.mxu0 0
        %2474 = vmatprep.subr.bf16.mxu0 0
        %2475 = vmatpush1.bf16.xpose.msra.mxu0 0
        %2476 = vmatprep.subr.bf16.mxu0 0
        %2477 = vmatpush1.bf16.xpose.msra.mxu0 0
        %2478 = vmatprep.subr.bf16.mxu0 0
        %2479 = vmatpush1.bf16.xpose.msra.mxu0 0
        %2480 = vmatprep.subr.bf16.mxu0 0
        %2481 = vmatpush1.bf16.xpose.msra.mxu0 0
        %2482 = vmatprep.subr.bf16.mxu0 0
        %2483 = vmatpush1.bf16.xpose.msra.mxu0 0
        %2484 = vmatprep.subr.bf16.mxu0 0
        %2485 = vmatpush1.bf16.xpose.msra.mxu0 0
        %2486 = vmatprep.mubr.bf16.mxu0 0
        %2487 = vmatmul.mubr.bf16.gmra.mrb[0].mxu0 %v2449
        %v2488 = vpop.f32.mrb[0].mxu0
        %v2489 = vadd.f32 0.0, %v2488
        %v2490 = vpop.f32.mrb[0].mxu0
        %v2491 = vpop.f32.mrb[0].mxu0
        %v2492 = vadd.f32 0.0, %v2491
        %v2493 = vpop.f32.mrb[0].mxu0
        %2494 = vdwg.mxu0
        %v2495 = vsel %vm2154, %v2489, -inf
        %2496 = vmax.xlane.f32.xlu0 %v2495
        %v2497 = vpop.xlane.xlu0 %2496
        %v2498 = vsel %vm2154, %v2492, -inf
        %2499 = vmax.xlane.f32.xlu0 %v2498
        %v2500 = vpop.xlane.xlu0 %2499
        %v2501 = vsub.f32 %v2489, %v2497
        %v2502 = vsub.f32 %v2492, %v2500
        %v2503 = vmul.f32 %v2501, 1.442695
        %v2504 = vpow.pop %v2503
        %v2505 = vmul.f32 %v2502, 1.442695
        %v2506 = vpow.pop %v2505
        %v2507 = vsel %vm2154, %v2504, 0.0
        %2508 = vadd.xlane.f32.xlu0 %v2507
        %v2509 = vpop.xlane.xlu0 %2508
        %v2510 = vsel %vm2154, %v2506, 0.0
        %2511 = vadd.xlane.f32.xlu0 %v2510
        %v2512 = vpop.xlane.xlu0 %2511
        %v2513 = vrcp.pop %v2509
        %v2514 = vrcp.pop %v2512
        %v2515 = vmul.f32 %v2504, %v2513
        %v2516 = vmul.f32 %v2506, %v2514
        %v2517 = vpack.c.bf16 %v2516, %v2515
        %2518 = vrot.lane.b32.xlu0 %v2102, 48
        %v2519 = vpop.permute.xlu0 %2518
        %v2522 = vsel %vm2154, %v2517, 0
        %2524 = vmatprep.subr.bf16.mxu0 0
        %2525 = vmatpush1.bf16.msra.mxu0 %v2519
        %2526 = vmatprep.subr.bf16.mxu0 0
        %2527 = vmatpush1.bf16.msra.mxu0 0
        %2528 = vmatprep.subr.bf16.mxu0 0
        %2529 = vmatpush1.bf16.msra.mxu0 0
        %2530 = vmatprep.subr.bf16.mxu0 0
        %2531 = vmatpush1.bf16.msra.mxu0 0
        %2532 = vmatprep.subr.bf16.mxu0 0
        %2533 = vmatpush1.bf16.msra.mxu0 0
        %2534 = vmatprep.subr.bf16.mxu0 0
        %2535 = vmatpush1.bf16.msra.mxu0 0
        %2536 = vmatprep.subr.bf16.mxu0 0
        %2537 = vmatpush1.bf16.msra.mxu0 0
        %2538 = vmatprep.subr.bf16.mxu0 0
        %2539 = vmatpush1.bf16.msra.mxu0 0
        %2540 = vmatprep.subr.bf16.mxu0 0
        %2541 = vmatpush1.bf16.msra.mxu0 0
        %2542 = vmatprep.subr.bf16.mxu0 0
        %2543 = vmatpush1.bf16.msra.mxu0 0
        %2544 = vmatprep.subr.bf16.mxu0 0
        %2545 = vmatpush1.bf16.msra.mxu0 0
        %2546 = vmatprep.subr.bf16.mxu0 0
        %2547 = vmatpush1.bf16.msra.mxu0 0
        %2548 = vmatprep.subr.bf16.mxu0 0
        %2549 = vmatpush1.bf16.msra.mxu0 0
        %2550 = vmatprep.subr.bf16.mxu0 0
        %2551 = vmatpush1.bf16.msra.mxu0 0
        %2552 = vmatprep.subr.bf16.mxu0 0
        %2553 = vmatpush1.bf16.msra.mxu0 0
        %2554 = vmatprep.subr.bf16.mxu0 0
        %2555 = vmatpush1.bf16.msra.mxu0 0
        %2556 = vmatprep.mubr.bf16.mxu0 0
        %2557 = vmatmul.mubr.bf16.gmra.mrb[0].mxu0 %v2522
        %v2558 = vpop.f32.mrb[0].mxu0
        %v2559 = vadd.f32 0.0, %v2558
        %v2560 = vpop.f32.mrb[0].mxu0
        %v2561 = vpop.f32.mrb[0].mxu0
        %v2562 = vadd.f32 0.0, %v2561
        %v2563 = vpop.f32.mrb[0].mxu0
        %2564 = vdwg.mxu0
        %v2565 = vpack.c.bf16 %v2562, %v2559
        %v2567 = vsel %vm2106, %v2565, 0
        %v2570 = vsel %vm2352, %v2097, 0
        %2572 = vmatprep.subr.bf16.mxu0 0
        %2573 = vmatpush1.bf16.msra.mxu0 %v2570
        %2574 = vmatprep.subr.bf16.mxu0 0
        %2575 = vmatpush1.bf16.msra.mxu0 0
        %2576 = vmatprep.subr.bf16.mxu0 0
        %2577 = vmatpush1.bf16.msra.mxu0 0
        %2578 = vmatprep.subr.bf16.mxu0 0
        %2579 = vmatpush1.bf16.msra.mxu0 0
        %2580 = vmatprep.subr.bf16.mxu0 0
        %2581 = vmatpush1.bf16.msra.mxu0 0
        %2582 = vmatprep.subr.bf16.mxu0 0
        %2583 = vmatpush1.bf16.msra.mxu0 0
        %2584 = vmatprep.subr.bf16.mxu0 0
        %2585 = vmatpush1.bf16.msra.mxu0 0
        %2586 = vmatprep.subr.bf16.mxu0 0
        %2587 = vmatpush1.bf16.msra.mxu0 0
        %2588 = vmatprep.subr.bf16.mxu0 0
        %2589 = vmatpush1.bf16.msra.mxu0 0
        %2590 = vmatprep.subr.bf16.mxu0 0
        %2591 = vmatpush1.bf16.msra.mxu0 0
        %2592 = vmatprep.subr.bf16.mxu0 0
        %2593 = vmatpush1.bf16.msra.mxu0 0
        %2594 = vmatprep.subr.bf16.mxu0 0
        %2595 = vmatpush1.bf16.msra.mxu0 0
        %2596 = vmatprep.subr.bf16.mxu0 0
        %2597 = vmatpush1.bf16.msra.mxu0 0
        %2598 = vmatprep.subr.bf16.mxu0 0
        %2599 = vmatpush1.bf16.msra.mxu0 0
        %2600 = vmatprep.subr.bf16.mxu0 0
        %2601 = vmatpush1.bf16.msra.mxu0 0
        %2602 = vmatprep.subr.bf16.mxu0 0
        %2603 = vmatpush1.bf16.msra.mxu0 0
        %2604 = vmatprep.mubr.bf16.mxu0 0
        %2605 = vmatmul.mubr.bf16.gmra.mrb[0].mxu0 %v2567
        %v2606 = vpop.f32.mrb[0].mxu0
        %v2607 = vadd.f32 0.0, %v2606
        %v2608 = vpop.f32.mrb[0].mxu0
        %v2609 = vpop.f32.mrb[0].mxu0
        %v2610 = vadd.f32 0.0, %v2609
        %v2611 = vpop.f32.mrb[0].mxu0
        %2612 = vdwg.mxu0
        %v2613 = vadd.f32 %v2438, %v2607
        %v2614 = vadd.f32 %v2441, %v2610
        %2615 = vrot.lane.b32.xlu0 %v2101, 104
        %v2616 = vpop.permute.xlu0 %2615
        %2617 = vrot.lane.b32.xlu0 %v2102, 72
        %v2618 = vpop.permute.xlu0 %2617
        %v2620 = vsel %vm2106, %v2616, 0
        %v2623 = vsel %vm2106, %v2618, 0
        %2625 = vmatprep.subr.bf16.mxu0 0
        %2626 = vmatpush1.bf16.xpose.msra.mxu0 %v2623
        %2627 = vmatprep.subr.bf16.mxu0 0
        %2628 = vmatpush1.bf16.xpose.msra.mxu0 0
        %2629 = vmatprep.subr.bf16.mxu0 0
        %2630 = vmatpush1.bf16.xpose.msra.mxu0 0
        %2631 = vmatprep.subr.bf16.mxu0 0
        %2632 = vmatpush1.bf16.xpose.msra.mxu0 0
        %2633 = vmatprep.subr.bf16.mxu0 0
        %2634 = vmatpush1.bf16.xpose.msra.mxu0 0
        %2635 = vmatprep.subr.bf16.mxu0 0
        %2636 = vmatpush1.bf16.xpose.msra.mxu0 0
        %2637 = vmatprep.subr.bf16.mxu0 0
        %2638 = vmatpush1.bf16.xpose.msra.mxu0 0
        %2639 = vmatprep.subr.bf16.mxu0 0
        %2640 = vmatpush1.bf16.xpose.msra.mxu0 0
        %2641 = vmatprep.subr.bf16.mxu0 0
        %2642 = vmatpush1.bf16.xpose.msra.mxu0 0
        %2643 = vmatprep.subr.bf16.mxu0 0
        %2644 = vmatpush1.bf16.xpose.msra.mxu0 0
        %2645 = vmatprep.subr.bf16.mxu0 0
        %2646 = vmatpush1.bf16.xpose.msra.mxu0 0
        %2647 = vmatprep.subr.bf16.mxu0 0
        %2648 = vmatpush1.bf16.xpose.msra.mxu0 0
        %2649 = vmatprep.subr.bf16.mxu0 0
        %2650 = vmatpush1.bf16.xpose.msra.mxu0 0
        %2651 = vmatprep.subr.bf16.mxu0 0
        %2652 = vmatpush1.bf16.xpose.msra.mxu0 0
        %2653 = vmatprep.subr.bf16.mxu0 0
        %2654 = vmatpush1.bf16.xpose.msra.mxu0 0
        %2655 = vmatprep.subr.bf16.mxu0 0
        %2656 = vmatpush1.bf16.xpose.msra.mxu0 0
        %2657 = vmatprep.mubr.bf16.mxu0 0
        %2658 = vmatmul.mubr.bf16.gmra.mrb[0].mxu0 %v2620
        %v2659 = vpop.f32.mrb[0].mxu0
        %v2660 = vadd.f32 0.0, %v2659
        %v2661 = vpop.f32.mrb[0].mxu0
        %v2662 = vpop.f32.mrb[0].mxu0
        %v2663 = vadd.f32 0.0, %v2662
        %v2664 = vpop.f32.mrb[0].mxu0
        %2665 = vdwg.mxu0
        %v2666 = vsel %vm2154, %v2660, -inf
        %2667 = vmax.xlane.f32.xlu0 %v2666
        %v2668 = vpop.xlane.xlu0 %2667
        %v2669 = vsel %vm2154, %v2663, -inf
        %2670 = vmax.xlane.f32.xlu0 %v2669
        %v2671 = vpop.xlane.xlu0 %2670
        %v2672 = vsub.f32 %v2660, %v2668
        %v2673 = vsub.f32 %v2663, %v2671
        %v2674 = vmul.f32 %v2672, 1.442695
        %v2675 = vpow.pop %v2674
        %v2676 = vmul.f32 %v2673, 1.442695
        %v2677 = vpow.pop %v2676
        %v2678 = vsel %vm2154, %v2675, 0.0
        %2679 = vadd.xlane.f32.xlu0 %v2678
        %v2680 = vpop.xlane.xlu0 %2679
        %v2681 = vsel %vm2154, %v2677, 0.0
        %2682 = vadd.xlane.f32.xlu0 %v2681
        %v2683 = vpop.xlane.xlu0 %2682
        %v2684 = vrcp.pop %v2680
        %v2685 = vrcp.pop %v2683
        %v2686 = vmul.f32 %v2675, %v2684
        %v2687 = vmul.f32 %v2677, %v2685
        %v2688 = vpack.c.bf16 %v2687, %v2686
        %2689 = vrot.lane.b32.xlu0 %v2102, 40
        %v2690 = vpop.permute.xlu0 %2689
        %v2693 = vsel %vm2154, %v2688, 0
        %2695 = vmatprep.subr.bf16.mxu0 0
        %2696 = vmatpush1.bf16.msra.mxu0 %v2690
        %2697 = vmatprep.subr.bf16.mxu0 0
        %2698 = vmatpush1.bf16.msra.mxu0 0
        %2699 = vmatprep.subr.bf16.mxu0 0
        %2700 = vmatpush1.bf16.msra.mxu0 0
        %2701 = vmatprep.subr.bf16.mxu0 0
        %2702 = vmatpush1.bf16.msra.mxu0 0
        %2703 = vmatprep.subr.bf16.mxu0 0
        %2704 = vmatpush1.bf16.msra.mxu0 0
        %2705 = vmatprep.subr.bf16.mxu0 0
        %2706 = vmatpush1.bf16.msra.mxu0 0
        %2707 = vmatprep.subr.bf16.mxu0 0
        %2708 = vmatpush1.bf16.msra.mxu0 0
        %2709 = vmatprep.subr.bf16.mxu0 0
        %2710 = vmatpush1.bf16.msra.mxu0 0
        %2711 = vmatprep.subr.bf16.mxu0 0
        %2712 = vmatpush1.bf16.msra.mxu0 0
        %2713 = vmatprep.subr.bf16.mxu0 0
        %2714 = vmatpush1.bf16.msra.mxu0 0
        %2715 = vmatprep.subr.bf16.mxu0 0
        %2716 = vmatpush1.bf16.msra.mxu0 0
        %2717 = vmatprep.subr.bf16.mxu0 0
        %2718 = vmatpush1.bf16.msra.mxu0 0
        %2719 = vmatprep.subr.bf16.mxu0 0
        %2720 = vmatpush1.bf16.msra.mxu0 0
        %2721 = vmatprep.subr.bf16.mxu0 0
        %2722 = vmatpush1.bf16.msra.mxu0 0
        %2723 = vmatprep.subr.bf16.mxu0 0
        %2724 = vmatpush1.bf16.msra.mxu0 0
        %2725 = vmatprep.subr.bf16.mxu0 0
        %2726 = vmatpush1.bf16.msra.mxu0 0
        %2727 = vmatprep.mubr.bf16.mxu0 0
        %2728 = vmatmul.mubr.bf16.gmra.mrb[0].mxu0 %v2693
        %v2729 = vpop.f32.mrb[0].mxu0
        %v2730 = vadd.f32 0.0, %v2729
        %v2731 = vpop.f32.mrb[0].mxu0
        %v2732 = vpop.f32.mrb[0].mxu0
        %v2733 = vadd.f32 0.0, %v2732
        %v2734 = vpop.f32.mrb[0].mxu0
        %2735 = vdwg.mxu0
        %v2736 = vpack.c.bf16 %v2733, %v2730
        %v2738 = vsel %vm2106, %v2736, 0
        %v2741 = vsel %vm2352, %v2098, 0
        %2743 = vmatprep.subr.bf16.mxu0 0
        %2744 = vmatpush1.bf16.msra.mxu0 %v2741
        %2745 = vmatprep.subr.bf16.mxu0 0
        %2746 = vmatpush1.bf16.msra.mxu0 0
        %2747 = vmatprep.subr.bf16.mxu0 0
        %2748 = vmatpush1.bf16.msra.mxu0 0
        %2749 = vmatprep.subr.bf16.mxu0 0
        %2750 = vmatpush1.bf16.msra.mxu0 0
        %2751 = vmatprep.subr.bf16.mxu0 0
        %2752 = vmatpush1.bf16.msra.mxu0 0
        %2753 = vmatprep.subr.bf16.mxu0 0
        %2754 = vmatpush1.bf16.msra.mxu0 0
        %2755 = vmatprep.subr.bf16.mxu0 0
        %2756 = vmatpush1.bf16.msra.mxu0 0
        %2757 = vmatprep.subr.bf16.mxu0 0
        %2758 = vmatpush1.bf16.msra.mxu0 0
        %2759 = vmatprep.subr.bf16.mxu0 0
        %2760 = vmatpush1.bf16.msra.mxu0 0
        %2761 = vmatprep.subr.bf16.mxu0 0
        %2762 = vmatpush1.bf16.msra.mxu0 0
        %2763 = vmatprep.subr.bf16.mxu0 0
        %2764 = vmatpush1.bf16.msra.mxu0 0
        %2765 = vmatprep.subr.bf16.mxu0 0
        %2766 = vmatpush1.bf16.msra.mxu0 0
        %2767 = vmatprep.subr.bf16.mxu0 0
        %2768 = vmatpush1.bf16.msra.mxu0 0
        %2769 = vmatprep.subr.bf16.mxu0 0
        %2770 = vmatpush1.bf16.msra.mxu0 0
        %2771 = vmatprep.subr.bf16.mxu0 0
        %2772 = vmatpush1.bf16.msra.mxu0 0
        %2773 = vmatprep.subr.bf16.mxu0 0
        %2774 = vmatpush1.bf16.msra.mxu0 0
        %2775 = vmatprep.mubr.bf16.mxu0 0
        %2776 = vmatmul.mubr.bf16.gmra.mrb[0].mxu0 %v2738
        %v2777 = vpop.f32.mrb[0].mxu0
        %v2778 = vadd.f32 0.0, %v2777
        %v2779 = vpop.f32.mrb[0].mxu0
        %v2780 = vpop.f32.mrb[0].mxu0
        %v2781 = vadd.f32 0.0, %v2780
        %v2782 = vpop.f32.mrb[0].mxu0
        %2783 = vdwg.mxu0
        %v2784 = vadd.f32 %v2613, %v2778
        %v2785 = vadd.f32 %v2614, %v2781
        %v2786 = vadd.f32 %v1935, %v2784
        %v2787 = vadd.f32 %v1936, %v2785
        %v2788 = vld [vmem:[%s1216] sm:$0x1]
        %v2790 = vlaneseq
        %v2791 = vshrl.u32 %v2790, 7
        %v2792 = vsub.s32 0, %v2791
        %v2793 = vrot.slane %v2788, %v2792
        %v2795 = vadd.f32 %v2786, %v2793
        %v2796 = vadd.f32 %v2787, %v2793
        %2797 = vst.msk [vmem:[#allocation2] sm:$0xff] %vm1941, %v2795
        %2798 = vst.msk [vmem:[#allocation2 + $0x8] sm:$0xff] %vm1941, %v2796
        %v2799 = vmul.f32 %v2089, 0.35355338
        %v2800 = vmul.f32 %v2092, 0.35355338
        %v2801 = vpack.c.bf16 %v2800, %v2799
        %v2802 = vpack.c.bf16 %v2092, %v2089
        %2804 = vrot.lane.b32.xlu0 %v2802, 96
        %v2805 = vpop.permute.xlu0 %2804
        %v2807 = vsel %vm2106, %v2801, 0
        %v2810 = vsel %vm2106, %v2805, 0
        %2812 = vmatprep.subr.bf16.mxu0 0
        %2813 = vmatpush1.bf16.xpose.msra.mxu0 %v2810
        %2814 = vmatprep.subr.bf16.mxu0 0
        %2815 = vmatpush1.bf16.xpose.msra.mxu0 0
        %2816 = vmatprep.subr.bf16.mxu0 0
        %2817 = vmatpush1.bf16.xpose.msra.mxu0 0
        %2818 = vmatprep.subr.bf16.mxu0 0
        %2819 = vmatpush1.bf16.xpose.msra.mxu0 0
        %2820 = vmatprep.subr.bf16.mxu0 0
        %2821 = vmatpush1.bf16.xpose.msra.mxu0 0
        %2822 = vmatprep.subr.bf16.mxu0 0
        %2823 = vmatpush1.bf16.xpose.msra.mxu0 0
        %2824 = vmatprep.subr.bf16.mxu0 0
        %2825 = vmatpush1.bf16.xpose.msra.mxu0 0
        %2826 = vmatprep.subr.bf16.mxu0 0
        %2827 = vmatpush1.bf16.xpose.msra.mxu0 0
        %2828 = vmatprep.subr.bf16.mxu0 0
        %2829 = vmatpush1.bf16.xpose.msra.mxu0 0
        %2830 = vmatprep.subr.bf16.mxu0 0
        %2831 = vmatpush1.bf16.xpose.msra.mxu0 0
        %2832 = vmatprep.subr.bf16.mxu0 0
        %2833 = vmatpush1.bf16.xpose.msra.mxu0 0
        %2834 = vmatprep.subr.bf16.mxu0 0
        %2835 = vmatpush1.bf16.xpose.msra.mxu0 0
        %2836 = vmatprep.subr.bf16.mxu0 0
        %2837 = vmatpush1.bf16.xpose.msra.mxu0 0
        %2838 = vmatprep.subr.bf16.mxu0 0
        %2839 = vmatpush1.bf16.xpose.msra.mxu0 0
        %2840 = vmatprep.subr.bf16.mxu0 0
        %2841 = vmatpush1.bf16.xpose.msra.mxu0 0
        %2842 = vmatprep.subr.bf16.mxu0 0
        %2843 = vmatpush1.bf16.xpose.msra.mxu0 0
        %2844 = vmatprep.mubr.bf16.mxu0 0
        %2845 = vmatmul.mubr.bf16.gmra.mrb[0].mxu0 %v2807
        %v2846 = vpop.f32.mrb[0].mxu0
        %v2847 = vadd.f32 0.0, %v2846
        %v2848 = vpop.f32.mrb[0].mxu0
        %v2849 = vpop.f32.mrb[0].mxu0
        %v2850 = vadd.f32 0.0, %v2849
        %v2851 = vpop.f32.mrb[0].mxu0
        %2852 = vdwg.mxu0
        %v2853 = vsel %vm2154, %v2847, -inf
        %2854 = vmax.xlane.f32.xlu0 %v2853
        %v2855 = vpop.xlane.xlu0 %2854
        %v2856 = vsel %vm2154, %v2850, -inf
        %2857 = vmax.xlane.f32.xlu0 %v2856
        %v2858 = vpop.xlane.xlu0 %2857
        %v2859 = vsub.f32 %v2847, %v2855
        %v2860 = vsub.f32 %v2850, %v2858
        %v2861 = vmul.f32 %v2859, 1.442695
        %v2862 = vpow.pop %v2861
        %v2863 = vmul.f32 %v2860, 1.442695
        %v2864 = vpow.pop %v2863
        %v2865 = vsel %vm2154, %v2862, 0.0
        %2866 = vadd.xlane.f32.xlu0 %v2865
        %v2867 = vpop.xlane.xlu0 %2866
        %v2868 = vsel %vm2154, %v2864, 0.0
        %2869 = vadd.xlane.f32.xlu0 %v2868
        %v2870 = vpop.xlane.xlu0 %2869
        %v2871 = vrcp.pop %v2867
        %v2872 = vrcp.pop %v2870
        %v2873 = vmul.f32 %v2862, %v2871
        %v2874 = vmul.f32 %v2864, %v2872
        %v2875 = vpack.c.bf16 %v2874, %v2873
        %2876 = vrot.lane.b32.xlu0 %v2802, 64
        %v2877 = vpop.permute.xlu0 %2876
        %v2880 = vsel %vm2154, %v2875, 0
        %2882 = vmatprep.subr.bf16.mxu0 0
        %2883 = vmatpush1.bf16.msra.mxu0 %v2877
        %2884 = vmatprep.subr.bf16.mxu0 0
        %2885 = vmatpush1.bf16.msra.mxu0 0
        %2886 = vmatprep.subr.bf16.mxu0 0
        %2887 = vmatpush1.bf16.msra.mxu0 0
        %2888 = vmatprep.subr.bf16.mxu0 0
        %2889 = vmatpush1.bf16.msra.mxu0 0
        %2890 = vmatprep.subr.bf16.mxu0 0
        %2891 = vmatpush1.bf16.msra.mxu0 0
        %2892 = vmatprep.subr.bf16.mxu0 0
        %2893 = vmatpush1.bf16.msra.mxu0 0
        %2894 = vmatprep.subr.bf16.mxu0 0
        %2895 = vmatpush1.bf16.msra.mxu0 0
        %2896 = vmatprep.subr.bf16.mxu0 0
        %2897 = vmatpush1.bf16.msra.mxu0 0
        %2898 = vmatprep.subr.bf16.mxu0 0
        %2899 = vmatpush1.bf16.msra.mxu0 0
        %2900 = vmatprep.subr.bf16.mxu0 0
        %2901 = vmatpush1.bf16.msra.mxu0 0
        %2902 = vmatprep.subr.bf16.mxu0 0
        %2903 = vmatpush1.bf16.msra.mxu0 0
        %2904 = vmatprep.subr.bf16.mxu0 0
        %2905 = vmatpush1.bf16.msra.mxu0 0
        %2906 = vmatprep.subr.bf16.mxu0 0
        %2907 = vmatpush1.bf16.msra.mxu0 0
        %2908 = vmatprep.subr.bf16.mxu0 0
        %2909 = vmatpush1.bf16.msra.mxu0 0
        %2910 = vmatprep.subr.bf16.mxu0 0
        %2911 = vmatpush1.bf16.msra.mxu0 0
        %2912 = vmatprep.subr.bf16.mxu0 0
        %2913 = vmatpush1.bf16.msra.mxu0 0
        %2914 = vmatprep.mubr.bf16.mxu0 0
        %2915 = vmatmul.mubr.bf16.gmra.mrb[0].mxu0 %v2880
        %v2916 = vpop.f32.mrb[0].mxu0
        %v2917 = vadd.f32 0.0, %v2916
        %v2918 = vpop.f32.mrb[0].mxu0
        %v2919 = vpop.f32.mrb[0].mxu0
        %v2920 = vadd.f32 0.0, %v2919
        %v2921 = vpop.f32.mrb[0].mxu0
        %2922 = vdwg.mxu0
        %v2923 = vpack.c.bf16 %v2920, %v2917
        %2925 = vrot.lane.b32.xlu0 %v2801, 120
        %v2926 = vpop.permute.xlu0 %2925
        %2927 = vrot.lane.b32.xlu0 %v2802, 88
        %v2928 = vpop.permute.xlu0 %2927
        %v2930 = vsel %vm2106, %v2926, 0
        %v2933 = vsel %vm2106, %v2928, 0
        %2935 = vmatprep.subr.bf16.mxu0 0
        %2936 = vmatpush1.bf16.xpose.msra.mxu0 %v2933
        %2937 = vmatprep.subr.bf16.mxu0 0
        %2938 = vmatpush1.bf16.xpose.msra.mxu0 0
        %2939 = vmatprep.subr.bf16.mxu0 0
        %2940 = vmatpush1.bf16.xpose.msra.mxu0 0
        %2941 = vmatprep.subr.bf16.mxu0 0
        %2942 = vmatpush1.bf16.xpose.msra.mxu0 0
        %2943 = vmatprep.subr.bf16.mxu0 0
        %2944 = vmatpush1.bf16.xpose.msra.mxu0 0
        %2945 = vmatprep.subr.bf16.mxu0 0
        %2946 = vmatpush1.bf16.xpose.msra.mxu0 0
        %2947 = vmatprep.subr.bf16.mxu0 0
        %2948 = vmatpush1.bf16.xpose.msra.mxu0 0
        %2949 = vmatprep.subr.bf16.mxu0 0
        %2950 = vmatpush1.bf16.xpose.msra.mxu0 0
        %2951 = vmatprep.subr.bf16.mxu0 0
        %2952 = vmatpush1.bf16.xpose.msra.mxu0 0
        %2953 = vmatprep.subr.bf16.mxu0 0
        %2954 = vmatpush1.bf16.xpose.msra.mxu0 0
        %2955 = vmatprep.subr.bf16.mxu0 0
        %2956 = vmatpush1.bf16.xpose.msra.mxu0 0
        %2957 = vmatprep.subr.bf16.mxu0 0
        %2958 = vmatpush1.bf16.xpose.msra.mxu0 0
        %2959 = vmatprep.subr.bf16.mxu0 0
        %2960 = vmatpush1.bf16.xpose.msra.mxu0 0
        %2961 = vmatprep.subr.bf16.mxu0 0
        %2962 = vmatpush1.bf16.xpose.msra.mxu0 0
        %2963 = vmatprep.subr.bf16.mxu0 0
        %2964 = vmatpush1.bf16.xpose.msra.mxu0 0
        %2965 = vmatprep.subr.bf16.mxu0 0
        %2966 = vmatpush1.bf16.xpose.msra.mxu0 0
        %2967 = vmatprep.mubr.bf16.mxu0 0
        %2968 = vmatmul.mubr.bf16.gmra.mrb[0].mxu0 %v2930
        %v2969 = vpop.f32.mrb[0].mxu0
        %v2970 = vadd.f32 0.0, %v2969
        %v2971 = vpop.f32.mrb[0].mxu0
        %v2972 = vpop.f32.mrb[0].mxu0
        %v2973 = vadd.f32 0.0, %v2972
        %v2974 = vpop.f32.mrb[0].mxu0
        %2975 = vdwg.mxu0
        %v2976 = vsel %vm2154, %v2970, -inf
        %2977 = vmax.xlane.f32.xlu0 %v2976
        %v2978 = vpop.xlane.xlu0 %2977
        %v2979 = vsel %vm2154, %v2973, -inf
        %2980 = vmax.xlane.f32.xlu0 %v2979
        %v2981 = vpop.xlane.xlu0 %2980
        %v2982 = vsub.f32 %v2970, %v2978
        %v2983 = vsub.f32 %v2973, %v2981
        %v2984 = vmul.f32 %v2982, 1.442695
        %v2985 = vpow.pop %v2984
        %v2986 = vmul.f32 %v2983, 1.442695
        %v2987 = vpow.pop %v2986
        %v2988 = vsel %vm2154, %v2985, 0.0
        %2989 = vadd.xlane.f32.xlu0 %v2988
        %v2990 = vpop.xlane.xlu0 %2989
        %v2991 = vsel %vm2154, %v2987, 0.0
        %2992 = vadd.xlane.f32.xlu0 %v2991
        %v2993 = vpop.xlane.xlu0 %2992
        %v2994 = vrcp.pop %v2990
        %v2995 = vrcp.pop %v2993
        %v2996 = vmul.f32 %v2985, %v2994
        %v2997 = vmul.f32 %v2987, %v2995
        %v2998 = vpack.c.bf16 %v2997, %v2996
        %2999 = vrot.lane.b32.xlu0 %v2802, 56
        %v3000 = vpop.permute.xlu0 %2999
        %v3003 = vsel %vm2154, %v2998, 0
        %3005 = vmatprep.subr.bf16.mxu0 0
        %3006 = vmatpush1.bf16.msra.mxu0 %v3000
        %3007 = vmatprep.subr.bf16.mxu0 0
        %3008 = vmatpush1.bf16.msra.mxu0 0
        %3009 = vmatprep.subr.bf16.mxu0 0
        %3010 = vmatpush1.bf16.msra.mxu0 0
        %3011 = vmatprep.subr.bf16.mxu0 0
        %3012 = vmatpush1.bf16.msra.mxu0 0
        %3013 = vmatprep.subr.bf16.mxu0 0
        %3014 = vmatpush1.bf16.msra.mxu0 0
        %3015 = vmatprep.subr.bf16.mxu0 0
        %3016 = vmatpush1.bf16.msra.mxu0 0
        %3017 = vmatprep.subr.bf16.mxu0 0
        %3018 = vmatpush1.bf16.msra.mxu0 0
        %3019 = vmatprep.subr.bf16.mxu0 0
        %3020 = vmatpush1.bf16.msra.mxu0 0
        %3021 = vmatprep.subr.bf16.mxu0 0
        %3022 = vmatpush1.bf16.msra.mxu0 0
        %3023 = vmatprep.subr.bf16.mxu0 0
        %3024 = vmatpush1.bf16.msra.mxu0 0
        %3025 = vmatprep.subr.bf16.mxu0 0
        %3026 = vmatpush1.bf16.msra.mxu0 0
        %3027 = vmatprep.subr.bf16.mxu0 0
        %3028 = vmatpush1.bf16.msra.mxu0 0
        %3029 = vmatprep.subr.bf16.mxu0 0
        %3030 = vmatpush1.bf16.msra.mxu0 0
        %3031 = vmatprep.subr.bf16.mxu0 0
        %3032 = vmatpush1.bf16.msra.mxu0 0
        %3033 = vmatprep.subr.bf16.mxu0 0
        %3034 = vmatpush1.bf16.msra.mxu0 0
        %3035 = vmatprep.subr.bf16.mxu0 0
        %3036 = vmatpush1.bf16.msra.mxu0 0
        %3037 = vmatprep.mubr.bf16.mxu0 0
        %3038 = vmatmul.mubr.bf16.gmra.mrb[0].mxu0 %v3003
        %v3039 = vpop.f32.mrb[0].mxu0
        %v3040 = vadd.f32 0.0, %v3039
        %v3041 = vpop.f32.mrb[0].mxu0
        %v3042 = vpop.f32.mrb[0].mxu0
        %v3043 = vadd.f32 0.0, %v3042
        %v3044 = vpop.f32.mrb[0].mxu0
        %3045 = vdwg.mxu0
        %v3046 = vpack.c.bf16 %v3043, %v3040
        %v3048 = vsel %vm2106, %v3046, 0
        %3050 = vmatprep.subr.bf16.mxu0 0
        %3051 = vmatpush1.bf16.msra.mxu0 %v2354
        %3052 = vmatprep.subr.bf16.mxu0 0
        %3053 = vmatpush1.bf16.msra.mxu0 0
        %3054 = vmatprep.subr.bf16.mxu0 0
        %3055 = vmatpush1.bf16.msra.mxu0 0
        %3056 = vmatprep.subr.bf16.mxu0 0
        %3057 = vmatpush1.bf16.msra.mxu0 0
        %3058 = vmatprep.subr.bf16.mxu0 0
        %3059 = vmatpush1.bf16.msra.mxu0 0
        %3060 = vmatprep.subr.bf16.mxu0 0
        %3061 = vmatpush1.bf16.msra.mxu0 0
        %3062 = vmatprep.subr.bf16.mxu0 0
        %3063 = vmatpush1.bf16.msra.mxu0 0
        %3064 = vmatprep.subr.bf16.mxu0 0
        %3065 = vmatpush1.bf16.msra.mxu0 0
        %3066 = vmatprep.subr.bf16.mxu0 0
        %3067 = vmatpush1.bf16.msra.mxu0 0
        %3068 = vmatprep.subr.bf16.mxu0 0
        %3069 = vmatpush1.bf16.msra.mxu0 0
        %3070 = vmatprep.subr.bf16.mxu0 0
        %3071 = vmatpush1.bf16.msra.mxu0 0
        %3072 = vmatprep.subr.bf16.mxu0 0
        %3073 = vmatpush1.bf16.msra.mxu0 0
        %3074 = vmatprep.subr.bf16.mxu0 0
        %3075 = vmatpush1.bf16.msra.mxu0 0
        %3076 = vmatprep.subr.bf16.mxu0 0
        %3077 = vmatpush1.bf16.msra.mxu0 0
        %3078 = vmatprep.subr.bf16.mxu0 0
        %3079 = vmatpush1.bf16.msra.mxu0 0
        %3080 = vmatprep.subr.bf16.mxu0 0
        %3081 = vmatpush1.bf16.msra.mxu0 0
        %3082 = vmatprep.mubr.bf16.mxu0 0
        %3083 = vmatmul.mubr.bf16.gmra.mrb[0].mxu0 %v3048
        %v3084 = vpop.f32.mrb[0].mxu0
        %v3085 = vadd.f32 0.0, %v3084
        %v3086 = vpop.f32.mrb[0].mxu0
        %v3087 = vpop.f32.mrb[0].mxu0
        %v3088 = vadd.f32 0.0, %v3087
        %v3089 = vpop.f32.mrb[0].mxu0
        %3090 = vdwg.mxu0
        %v3092 = vsel %vm2106, %v2923, 0
        %3094 = vmatprep.subr.bf16.mxu0 0
        %3095 = vmatpush1.bf16.msra.mxu0 %v2401
        %3096 = vmatprep.subr.bf16.mxu0 0
        %3097 = vmatpush1.bf16.msra.mxu0 0
        %3098 = vmatprep.subr.bf16.mxu0 0
        %3099 = vmatpush1.bf16.msra.mxu0 0
        %3100 = vmatprep.subr.bf16.mxu0 0
        %3101 = vmatpush1.bf16.msra.mxu0 0
        %3102 = vmatprep.subr.bf16.mxu0 0
        %3103 = vmatpush1.bf16.msra.mxu0 0
        %3104 = vmatprep.subr.bf16.mxu0 0
        %3105 = vmatpush1.bf16.msra.mxu0 0
        %3106 = vmatprep.subr.bf16.mxu0 0
        %3107 = vmatpush1.bf16.msra.mxu0 0
        %3108 = vmatprep.subr.bf16.mxu0 0
        %3109 = vmatpush1.bf16.msra.mxu0 0
        %3110 = vmatprep.subr.bf16.mxu0 0
        %3111 = vmatpush1.bf16.msra.mxu0 0
        %3112 = vmatprep.subr.bf16.mxu0 0
        %3113 = vmatpush1.bf16.msra.mxu0 0
        %3114 = vmatprep.subr.bf16.mxu0 0
        %3115 = vmatpush1.bf16.msra.mxu0 0
        %3116 = vmatprep.subr.bf16.mxu0 0
        %3117 = vmatpush1.bf16.msra.mxu0 0
        %3118 = vmatprep.subr.bf16.mxu0 0
        %3119 = vmatpush1.bf16.msra.mxu0 0
        %3120 = vmatprep.subr.bf16.mxu0 0
        %3121 = vmatpush1.bf16.msra.mxu0 0
        %3122 = vmatprep.subr.bf16.mxu0 0
        %3123 = vmatpush1.bf16.msra.mxu0 0
        %3124 = vmatprep.subr.bf16.mxu0 0
        %3125 = vmatpush1.bf16.msra.mxu0 0
        %3126 = vmatprep.mubr.bf16.mxu0 0
        %3127 = vmatmul.mubr.bf16.gmra.mrb[0].mxu0 %v3092
        %v3128 = vpop.f32.mrb[0].mxu0
        %v3129 = vadd.f32 %v3085, %v3128
        %v3130 = vpop.f32.mrb[0].mxu0
        %v3131 = vpop.f32.mrb[0].mxu0
        %v3132 = vadd.f32 %v3088, %v3131
        %v3133 = vpop.f32.mrb[0].mxu0
        %3134 = vdwg.mxu0
        %3135 = vrot.lane.b32.xlu0 %v2801, 112
        %v3136 = vpop.permute.xlu0 %3135
        %3137 = vrot.lane.b32.xlu0 %v2802, 80
        %v3138 = vpop.permute.xlu0 %3137
        %v3140 = vsel %vm2106, %v3136, 0
        %v3143 = vsel %vm2106, %v3138, 0
        %3145 = vmatprep.subr.bf16.mxu0 0
        %3146 = vmatpush1.bf16.xpose.msra.mxu0 %v3143
        %3147 = vmatprep.subr.bf16.mxu0 0
        %3148 = vmatpush1.bf16.xpose.msra.mxu0 0
        %3149 = vmatprep.subr.bf16.mxu0 0
        %3150 = vmatpush1.bf16.xpose.msra.mxu0 0
        %3151 = vmatprep.subr.bf16.mxu0 0
        %3152 = vmatpush1.bf16.xpose.msra.mxu0 0
        %3153 = vmatprep.subr.bf16.mxu0 0
        %3154 = vmatpush1.bf16.xpose.msra.mxu0 0
        %3155 = vmatprep.subr.bf16.mxu0 0
        %3156 = vmatpush1.bf16.xpose.msra.mxu0 0
        %3157 = vmatprep.subr.bf16.mxu0 0
        %3158 = vmatpush1.bf16.xpose.msra.mxu0 0
        %3159 = vmatprep.subr.bf16.mxu0 0
        %3160 = vmatpush1.bf16.xpose.msra.mxu0 0
        %3161 = vmatprep.subr.bf16.mxu0 0
        %3162 = vmatpush1.bf16.xpose.msra.mxu0 0
        %3163 = vmatprep.subr.bf16.mxu0 0
        %3164 = vmatpush1.bf16.xpose.msra.mxu0 0
        %3165 = vmatprep.subr.bf16.mxu0 0
        %3166 = vmatpush1.bf16.xpose.msra.mxu0 0
        %3167 = vmatprep.subr.bf16.mxu0 0
        %3168 = vmatpush1.bf16.xpose.msra.mxu0 0
        %3169 = vmatprep.subr.bf16.mxu0 0
        %3170 = vmatpush1.bf16.xpose.msra.mxu0 0
        %3171 = vmatprep.subr.bf16.mxu0 0
        %3172 = vmatpush1.bf16.xpose.msra.mxu0 0
        %3173 = vmatprep.subr.bf16.mxu0 0
        %3174 = vmatpush1.bf16.xpose.msra.mxu0 0
        %3175 = vmatprep.subr.bf16.mxu0 0
        %3176 = vmatpush1.bf16.xpose.msra.mxu0 0
        %3177 = vmatprep.mubr.bf16.mxu0 0
        %3178 = vmatmul.mubr.bf16.gmra.mrb[0].mxu0 %v3140
        %v3179 = vpop.f32.mrb[0].mxu0
        %v3180 = vadd.f32 0.0, %v3179
        %v3181 = vpop.f32.mrb[0].mxu0
        %v3182 = vpop.f32.mrb[0].mxu0
        %v3183 = vadd.f32 0.0, %v3182
        %v3184 = vpop.f32.mrb[0].mxu0
        %3185 = vdwg.mxu0
        %v3186 = vsel %vm2154, %v3180, -inf
        %3187 = vmax.xlane.f32.xlu0 %v3186
        %v3188 = vpop.xlane.xlu0 %3187
        %v3189 = vsel %vm2154, %v3183, -inf
        %3190 = vmax.xlane.f32.xlu0 %v3189
        %v3191 = vpop.xlane.xlu0 %3190
        %v3192 = vsub.f32 %v3180, %v3188
        %v3193 = vsub.f32 %v3183, %v3191
        %v3194 = vmul.f32 %v3192, 1.442695
        %v3195 = vpow.pop %v3194
        %v3196 = vmul.f32 %v3193, 1.442695
        %v3197 = vpow.pop %v3196
        %v3198 = vsel %vm2154, %v3195, 0.0
        %3199 = vadd.xlane.f32.xlu0 %v3198
        %v3200 = vpop.xlane.xlu0 %3199
        %v3201 = vsel %vm2154, %v3197, 0.0
        %3202 = vadd.xlane.f32.xlu0 %v3201
        %v3203 = vpop.xlane.xlu0 %3202
        %v3204 = vrcp.pop %v3200
        %v3205 = vrcp.pop %v3203
        %v3206 = vmul.f32 %v3195, %v3204
        %v3207 = vmul.f32 %v3197, %v3205
        %v3208 = vpack.c.bf16 %v3207, %v3206
        %3209 = vrot.lane.b32.xlu0 %v2802, 48
        %v3210 = vpop.permute.xlu0 %3209
        %v3213 = vsel %vm2154, %v3208, 0
        %3215 = vmatprep.subr.bf16.mxu0 0
        %3216 = vmatpush1.bf16.msra.mxu0 %v3210
        %3217 = vmatprep.subr.bf16.mxu0 0
        %3218 = vmatpush1.bf16.msra.mxu0 0
        %3219 = vmatprep.subr.bf16.mxu0 0
        %3220 = vmatpush1.bf16.msra.mxu0 0
        %3221 = vmatprep.subr.bf16.mxu0 0
        %3222 = vmatpush1.bf16.msra.mxu0 0
        %3223 = vmatprep.subr.bf16.mxu0 0
        %3224 = vmatpush1.bf16.msra.mxu0 0
        %3225 = vmatprep.subr.bf16.mxu0 0
        %3226 = vmatpush1.bf16.msra.mxu0 0
        %3227 = vmatprep.subr.bf16.mxu0 0
        %3228 = vmatpush1.bf16.msra.mxu0 0
        %3229 = vmatprep.subr.bf16.mxu0 0
        %3230 = vmatpush1.bf16.msra.mxu0 0
        %3231 = vmatprep.subr.bf16.mxu0 0
        %3232 = vmatpush1.bf16.msra.mxu0 0
        %3233 = vmatprep.subr.bf16.mxu0 0
        %3234 = vmatpush1.bf16.msra.mxu0 0
        %3235 = vmatprep.subr.bf16.mxu0 0
        %3236 = vmatpush1.bf16.msra.mxu0 0
        %3237 = vmatprep.subr.bf16.mxu0 0
        %3238 = vmatpush1.bf16.msra.mxu0 0
        %3239 = vmatprep.subr.bf16.mxu0 0
        %3240 = vmatpush1.bf16.msra.mxu0 0
        %3241 = vmatprep.subr.bf16.mxu0 0
        %3242 = vmatpush1.bf16.msra.mxu0 0
        %3243 = vmatprep.subr.bf16.mxu0 0
        %3244 = vmatpush1.bf16.msra.mxu0 0
        %3245 = vmatprep.subr.bf16.mxu0 0
        %3246 = vmatpush1.bf16.msra.mxu0 0
        %3247 = vmatprep.mubr.bf16.mxu0 0
        %3248 = vmatmul.mubr.bf16.gmra.mrb[0].mxu0 %v3213
        %v3249 = vpop.f32.mrb[0].mxu0
        %v3250 = vadd.f32 0.0, %v3249
        %v3251 = vpop.f32.mrb[0].mxu0
        %v3252 = vpop.f32.mrb[0].mxu0
        %v3253 = vadd.f32 0.0, %v3252
        %v3254 = vpop.f32.mrb[0].mxu0
        %3255 = vdwg.mxu0
        %v3256 = vpack.c.bf16 %v3253, %v3250
        %v3258 = vsel %vm2106, %v3256, 0
        %3260 = vmatprep.subr.bf16.mxu0 0
        %3261 = vmatpush1.bf16.msra.mxu0 %v2570
        %3262 = vmatprep.subr.bf16.mxu0 0
        %3263 = vmatpush1.bf16.msra.mxu0 0
        %3264 = vmatprep.subr.bf16.mxu0 0
        %3265 = vmatpush1.bf16.msra.mxu0 0
        %3266 = vmatprep.subr.bf16.mxu0 0
        %3267 = vmatpush1.bf16.msra.mxu0 0
        %3268 = vmatprep.subr.bf16.mxu0 0
        %3269 = vmatpush1.bf16.msra.mxu0 0
        %3270 = vmatprep.subr.bf16.mxu0 0
        %3271 = vmatpush1.bf16.msra.mxu0 0
        %3272 = vmatprep.subr.bf16.mxu0 0
        %3273 = vmatpush1.bf16.msra.mxu0 0
        %3274 = vmatprep.subr.bf16.mxu0 0
        %3275 = vmatpush1.bf16.msra.mxu0 0
        %3276 = vmatprep.subr.bf16.mxu0 0
        %3277 = vmatpush1.bf16.msra.mxu0 0
        %3278 = vmatprep.subr.bf16.mxu0 0
        %3279 = vmatpush1.bf16.msra.mxu0 0
        %3280 = vmatprep.subr.bf16.mxu0 0
        %3281 = vmatpush1.bf16.msra.mxu0 0
        %3282 = vmatprep.subr.bf16.mxu0 0
        %3283 = vmatpush1.bf16.msra.mxu0 0
        %3284 = vmatprep.subr.bf16.mxu0 0
        %3285 = vmatpush1.bf16.msra.mxu0 0
        %3286 = vmatprep.subr.bf16.mxu0 0
        %3287 = vmatpush1.bf16.msra.mxu0 0
        %3288 = vmatprep.subr.bf16.mxu0 0
        %3289 = vmatpush1.bf16.msra.mxu0 0
        %3290 = vmatprep.subr.bf16.mxu0 0
        %3291 = vmatpush1.bf16.msra.mxu0 0
        %3292 = vmatprep.mubr.bf16.mxu0 0
        %3293 = vmatmul.mubr.bf16.gmra.mrb[0].mxu0 %v3258
        %v3294 = vpop.f32.mrb[0].mxu0
        %v3295 = vadd.f32 0.0, %v3294
        %v3296 = vpop.f32.mrb[0].mxu0
        %v3297 = vpop.f32.mrb[0].mxu0
        %v3298 = vadd.f32 0.0, %v3297
        %v3299 = vpop.f32.mrb[0].mxu0
        %3300 = vdwg.mxu0
        %v3301 = vadd.f32 %v3129, %v3295
        %v3302 = vadd.f32 %v3132, %v3298
        %3303 = vrot.lane.b32.xlu0 %v2801, 104
        %v3304 = vpop.permute.xlu0 %3303
        %3305 = vrot.lane.b32.xlu0 %v2802, 72
        %v3306 = vpop.permute.xlu0 %3305
        %v3308 = vsel %vm2106, %v3304, 0
        %v3311 = vsel %vm2106, %v3306, 0
        %3313 = vmatprep.subr.bf16.mxu0 0
        %3314 = vmatpush1.bf16.xpose.msra.mxu0 %v3311
        %3315 = vmatprep.subr.bf16.mxu0 0
        %3316 = vmatpush1.bf16.xpose.msra.mxu0 0
        %3317 = vmatprep.subr.bf16.mxu0 0
        %3318 = vmatpush1.bf16.xpose.msra.mxu0 0
        %3319 = vmatprep.subr.bf16.mxu0 0
        %3320 = vmatpush1.bf16.xpose.msra.mxu0 0
        %3321 = vmatprep.subr.bf16.mxu0 0
        %3322 = vmatpush1.bf16.xpose.msra.mxu0 0
        %3323 = vmatprep.subr.bf16.mxu0 0
        %3324 = vmatpush1.bf16.xpose.msra.mxu0 0
        %3325 = vmatprep.subr.bf16.mxu0 0
        %3326 = vmatpush1.bf16.xpose.msra.mxu0 0
        %3327 = vmatprep.subr.bf16.mxu0 0
        %3328 = vmatpush1.bf16.xpose.msra.mxu0 0
        %3329 = vmatprep.subr.bf16.mxu0 0
        %3330 = vmatpush1.bf16.xpose.msra.mxu0 0
        %3331 = vmatprep.subr.bf16.mxu0 0
        %3332 = vmatpush1.bf16.xpose.msra.mxu0 0
        %3333 = vmatprep.subr.bf16.mxu0 0
        %3334 = vmatpush1.bf16.xpose.msra.mxu0 0
        %3335 = vmatprep.subr.bf16.mxu0 0
        %3336 = vmatpush1.bf16.xpose.msra.mxu0 0
        %3337 = vmatprep.subr.bf16.mxu0 0
        %3338 = vmatpush1.bf16.xpose.msra.mxu0 0
        %3339 = vmatprep.subr.bf16.mxu0 0
        %3340 = vmatpush1.bf16.xpose.msra.mxu0 0
        %3341 = vmatprep.subr.bf16.mxu0 0
        %3342 = vmatpush1.bf16.xpose.msra.mxu0 0
        %3343 = vmatprep.subr.bf16.mxu0 0
        %3344 = vmatpush1.bf16.xpose.msra.mxu0 0
        %3345 = vmatprep.mubr.bf16.mxu0 0
        %3346 = vmatmul.mubr.bf16.gmra.mrb[0].mxu0 %v3308
        %v3347 = vpop.f32.mrb[0].mxu0
        %v3348 = vadd.f32 0.0, %v3347
        %v3349 = vpop.f32.mrb[0].mxu0
        %v3350 = vpop.f32.mrb[0].mxu0
        %v3351 = vadd.f32 0.0, %v3350
        %v3352 = vpop.f32.mrb[0].mxu0
        %3353 = vdwg.mxu0
        %v3354 = vsel %vm2154, %v3348, -inf
        %3355 = vmax.xlane.f32.xlu0 %v3354
        %v3356 = vpop.xlane.xlu0 %3355
        %v3357 = vsel %vm2154, %v3351, -inf
        %3358 = vmax.xlane.f32.xlu0 %v3357
        %v3359 = vpop.xlane.xlu0 %3358
        %v3360 = vsub.f32 %v3348, %v3356
        %v3361 = vsub.f32 %v3351, %v3359
        %v3362 = vmul.f32 %v3360, 1.442695
        %v3363 = vpow.pop %v3362
        %v3364 = vmul.f32 %v3361, 1.442695
        %v3365 = vpow.pop %v3364
        %v3366 = vsel %vm2154, %v3363, 0.0
        %3367 = vadd.xlane.f32.xlu0 %v3366
        %v3368 = vpop.xlane.xlu0 %3367
        %v3369 = vsel %vm2154, %v3365, 0.0
        %3370 = vadd.xlane.f32.xlu0 %v3369
        %v3371 = vpop.xlane.xlu0 %3370
        %v3372 = vrcp.pop %v3368
        %v3373 = vrcp.pop %v3371
        %v3374 = vmul.f32 %v3363, %v3372
        %v3375 = vmul.f32 %v3365, %v3373
        %v3376 = vpack.c.bf16 %v3375, %v3374
        %3377 = vrot.lane.b32.xlu0 %v2802, 40
        %v3378 = vpop.permute.xlu0 %3377
        %v3381 = vsel %vm2154, %v3376, 0
        %3383 = vmatprep.subr.bf16.mxu0 0
        %3384 = vmatpush1.bf16.msra.mxu0 %v3378
        %3385 = vmatprep.subr.bf16.mxu0 0
        %3386 = vmatpush1.bf16.msra.mxu0 0
        %3387 = vmatprep.subr.bf16.mxu0 0
        %3388 = vmatpush1.bf16.msra.mxu0 0
        %3389 = vmatprep.subr.bf16.mxu0 0
        %3390 = vmatpush1.bf16.msra.mxu0 0
        %3391 = vmatprep.subr.bf16.mxu0 0
        %3392 = vmatpush1.bf16.msra.mxu0 0
        %3393 = vmatprep.subr.bf16.mxu0 0
        %3394 = vmatpush1.bf16.msra.mxu0 0
        %3395 = vmatprep.subr.bf16.mxu0 0
        %3396 = vmatpush1.bf16.msra.mxu0 0
        %3397 = vmatprep.subr.bf16.mxu0 0
        %3398 = vmatpush1.bf16.msra.mxu0 0
        %3399 = vmatprep.subr.bf16.mxu0 0
        %3400 = vmatpush1.bf16.msra.mxu0 0
        %3401 = vmatprep.subr.bf16.mxu0 0
        %3402 = vmatpush1.bf16.msra.mxu0 0
        %3403 = vmatprep.subr.bf16.mxu0 0
        %3404 = vmatpush1.bf16.msra.mxu0 0
        %3405 = vmatprep.subr.bf16.mxu0 0
        %3406 = vmatpush1.bf16.msra.mxu0 0
        %3407 = vmatprep.subr.bf16.mxu0 0
        %3408 = vmatpush1.bf16.msra.mxu0 0
        %3409 = vmatprep.subr.bf16.mxu0 0
        %3410 = vmatpush1.bf16.msra.mxu0 0
        %3411 = vmatprep.subr.bf16.mxu0 0
        %3412 = vmatpush1.bf16.msra.mxu0 0
        %3413 = vmatprep.subr.bf16.mxu0 0
        %3414 = vmatpush1.bf16.msra.mxu0 0
        %3415 = vmatprep.mubr.bf16.mxu0 0
        %3416 = vmatmul.mubr.bf16.gmra.mrb[0].mxu0 %v3381
        %v3417 = vpop.f32.mrb[0].mxu0
        %v3418 = vadd.f32 0.0, %v3417
        %v3419 = vpop.f32.mrb[0].mxu0
        %v3420 = vpop.f32.mrb[0].mxu0
        %v3421 = vadd.f32 0.0, %v3420
        %v3422 = vpop.f32.mrb[0].mxu0
        %3423 = vdwg.mxu0
        %v3424 = vpack.c.bf16 %v3421, %v3418
        %v3426 = vsel %vm2106, %v3424, 0
        %3428 = vmatprep.subr.bf16.mxu0 0
        %3429 = vmatpush1.bf16.msra.mxu0 %v2741
        %3430 = vmatprep.subr.bf16.mxu0 0
        %3431 = vmatpush1.bf16.msra.mxu0 0
        %3432 = vmatprep.subr.bf16.mxu0 0
        %3433 = vmatpush1.bf16.msra.mxu0 0
        %3434 = vmatprep.subr.bf16.mxu0 0
        %3435 = vmatpush1.bf16.msra.mxu0 0
        %3436 = vmatprep.subr.bf16.mxu0 0
        %3437 = vmatpush1.bf16.msra.mxu0 0
        %3438 = vmatprep.subr.bf16.mxu0 0
        %3439 = vmatpush1.bf16.msra.mxu0 0
        %3440 = vmatprep.subr.bf16.mxu0 0
        %3441 = vmatpush1.bf16.msra.mxu0 0
        %3442 = vmatprep.subr.bf16.mxu0 0
        %3443 = vmatpush1.bf16.msra.mxu0 0
        %3444 = vmatprep.subr.bf16.mxu0 0
        %3445 = vmatpush1.bf16.msra.mxu0 0
        %3446 = vmatprep.subr.bf16.mxu0 0
        %3447 = vmatpush1.bf16.msra.mxu0 0
        %3448 = vmatprep.subr.bf16.mxu0 0
        %3449 = vmatpush1.bf16.msra.mxu0 0
        %3450 = vmatprep.subr.bf16.mxu0 0
        %3451 = vmatpush1.bf16.msra.mxu0 0
        %3452 = vmatprep.subr.bf16.mxu0 0
        %3453 = vmatpush1.bf16.msra.mxu0 0
        %3454 = vmatprep.subr.bf16.mxu0 0
        %3455 = vmatpush1.bf16.msra.mxu0 0
        %3456 = vmatprep.subr.bf16.mxu0 0
        %3457 = vmatpush1.bf16.msra.mxu0 0
        %3458 = vmatprep.subr.bf16.mxu0 0
        %3459 = vmatpush1.bf16.msra.mxu0 0
        %3460 = vmatprep.mubr.bf16.mxu0 0
        %3461 = vmatmul.mubr.bf16.gmra.mrb[0].mxu0 %v3426
        %v3462 = vpop.f32.mrb[0].mxu0
        %v3463 = vadd.f32 0.0, %v3462
        %v3464 = vpop.f32.mrb[0].mxu0
        %v3465 = vpop.f32.mrb[0].mxu0
        %v3466 = vadd.f32 0.0, %v3465
        %v3467 = vpop.f32.mrb[0].mxu0
        %3468 = vdwg.mxu0
        %v3469 = vadd.f32 %v3301, %v3463
        %v3470 = vadd.f32 %v3302, %v3466
        %v3471 = vadd.f32 %v1937, %v3469
        %v3472 = vadd.f32 %v1938, %v3470
        %v3473 = vld [vmem:[%s1216] sm:$0x1]
        %v3475 = vlaneseq
        %v3476 = vshrl.u32 %v3475, 7
        %v3477 = vsub.s32 0, %v3476
        %v3478 = vrot.slane %v3473, %v3477
        %v3480 = vadd.f32 %v3471, %v3478
        %v3481 = vadd.f32 %v3472, %v3478
        %3482 = vst.msk [vmem:[#allocation2 + $0x10] sm:$0xff] %vm1941, %v3480
        %3483 = vst.msk [vmem:[#allocation2 + $0x18] sm:$0xff] %vm1941, %v3481
        %v3484 = vld [vmem:[#allocation2] sm:$0xff]
        %v3485 = vld [vmem:[#allocation2 + $0x8] sm:$0xff]
        %v3486 = vld [vmem:[#allocation2 + $0x10] sm:$0xff]
        %v3487 = vld [vmem:[#allocation2 + $0x18] sm:$0xff]
        %v3488 = vld [vmem:[%s1224] sm:$0x1]
        %v3489 = vld [vmem:[%s1232] sm:$0x1]
        %v3490 = vsel %vm1941, %v3484, 0.0
        %3491 = vadd.xlane.f32.xlu0 %v3490
        %v3492 = vpop.xlane.xlu0 %3491
        %v3493 = vsel %vm1941, %v3485, 0.0
        %3494 = vadd.xlane.f32.xlu0 %v3493
        %v3495 = vpop.xlane.xlu0 %3494
        %v3496 = vsel %vm1941, %v3486, 0.0
        %3497 = vadd.xlane.f32.xlu0 %v3496
        %v3498 = vpop.xlane.xlu0 %3497
        %v3499 = vsel %vm1941, %v3487, 0.0
        %3500 = vadd.xlane.f32.xlu0 %v3499
        %v3501 = vpop.xlane.xlu0 %3500
        %v3502 = vmul.f32 %v3492, %v1954
        %v3503 = vmul.f32 %v3495, %v1954
        %v3504 = vmul.f32 %v3498, %v1954
        %v3505 = vmul.f32 %v3501, %v1954
        %v3506 = vsub.f32 %v3484, %v3502
        %v3507 = vsub.f32 %v3485, %v3503
        %v3508 = vsub.f32 %v3486, %v3504
        %v3509 = vsub.f32 %v3487, %v3505
        %v3510 = vmul.f32 %v3506, %v3506
        %v3511 = vmul.f32 %v3507, %v3507
        %v3512 = vmul.f32 %v3508, %v3508
        %v3513 = vmul.f32 %v3509, %v3509
        %v3514 = vsel %vm1941, %v3510, 0.0
        %3515 = vadd.xlane.f32.xlu0 %v3514
        %v3516 = vpop.xlane.xlu0 %3515
        %v3517 = vsel %vm1941, %v3511, 0.0
        %3518 = vadd.xlane.f32.xlu0 %v3517
        %v3519 = vpop.xlane.xlu0 %3518
        %v3520 = vsel %vm1941, %v3512, 0.0
        %3521 = vadd.xlane.f32.xlu0 %v3520
        %v3522 = vpop.xlane.xlu0 %3521
        %v3523 = vsel %vm1941, %v3513, 0.0
        %3524 = vadd.xlane.f32.xlu0 %v3523
        %v3525 = vpop.xlane.xlu0 %3524
        %v3526 = vmul.f32 %v3516, %v1954
        %v3527 = vmul.f32 %v3519, %v1954
        %v3528 = vmul.f32 %v3522, %v1954
        %v3529 = vmul.f32 %v3525, %v1954
        %v3530 = vadd.f32 %v3526, 1e-05
        %v3531 = vadd.f32 %v3527, 1e-05
        %v3532 = vadd.f32 %v3528, 1e-05
        %v3533 = vadd.f32 %v3529, 1e-05
        %v3534 = vrsqrt.pop %v3530
        %v3535 = vrsqrt.pop %v3531
        %v3536 = vrsqrt.pop %v3532
        %v3537 = vrsqrt.pop %v3533
        %v3538 = vmul.f32 %v3506, %v3534
        %v3539 = vmul.f32 %v3507, %v3535
        %v3540 = vmul.f32 %v3508, %v3536
        %v3541 = vmul.f32 %v3509, %v3537
        %v3543 = vlaneseq
        %v3544 = vshrl.u32 %v3543, 7
        %v3545 = vsub.s32 0, %v3544
        %v3546 = vrot.slane %v3488, %v3545
        %v3548 = vmul.f32 %v3538, %v3546
        %v3549 = vmul.f32 %v3539, %v3546
        %v3550 = vmul.f32 %v3540, %v3546
        %v3551 = vmul.f32 %v3541, %v3546
        %v3553 = vlaneseq
        %v3554 = vshrl.u32 %v3553, 7
        %v3555 = vsub.s32 0, %v3554
        %v3556 = vrot.slane %v3489, %v3555
        %v3558 = vadd.f32 %v3548, %v3556
        %v3559 = vadd.f32 %v3549, %v3556
        %v3560 = vadd.f32 %v3550, %v3556
        %v3561 = vadd.f32 %v3551, %v3556
        %v3562 = vpack.c.bf16 %v3559, %v3558
        %v3563 = vpack.c.bf16 %v3561, %v3560
        %v3564 = vld [vmem:[%s1241] sm:$0xf]
        %v3565 = vld [vmem:[%s1241 + $0x4] sm:$0xf]
        %v3566 = vld [vmem:[%s1241 + $0x8] sm:$0xf]
        %v3567 = vld [vmem:[%s1241 + $0xc] sm:$0xf]
        %v3568 = vld [vmem:[%s1249] sm:$0x1]
        %v3570 = vlaneseq
        %v3571 = vshrl.u32 %v3570, 7
        %v3572 = vsub.s32 0, %v3571
        %v3573 = vrot.slane %v3568, %v3572
        %v3579 = vunpack.c.l.b16 %v3564
        %v3580 = vunpack.c.l.b16 %v3565
        %v3581 = vunpack.c.l.b16 %v3566
        %v3582 = vunpack.c.l.b16 %v3567
        %v3583 = vpack.c.b16 %v3580, %v3579
        %v3584 = vpack.c.b16 %v3582, %v3581
        %v3588 = vsel %vm1941, %v3562, 0
        %v3591 = vsel %vm1941, %v3563, 0
        %3593 = vmatprep.subr.bf16.mxu0 0
        %3594 = vmatpush1.bf16.msra.mxu0 %v3583
        %3595 = vmatprep.subr.bf16.mxu0 0
        %3596 = vmatpush1.bf16.msra.mxu0 %v3584
        %3597 = vmatprep.subr.bf16.mxu0 0
        %3598 = vmatpush1.bf16.msra.mxu0 0
        %3599 = vmatprep.subr.bf16.mxu0 0
        %3600 = vmatpush1.bf16.msra.mxu0 0
        %3601 = vmatprep.subr.bf16.mxu0 0
        %3602 = vmatpush1.bf16.msra.mxu0 0
        %3603 = vmatprep.subr.bf16.mxu0 0
        %3604 = vmatpush1.bf16.msra.mxu0 0
        %3605 = vmatprep.subr.bf16.mxu0 0
        %3606 = vmatpush1.bf16.msra.mxu0 0
        %3607 = vmatprep.subr.bf16.mxu0 0
        %3608 = vmatpush1.bf16.msra.mxu0 0
        %3609 = vmatprep.subr.bf16.mxu0 0
        %3610 = vmatpush1.bf16.msra.mxu0 0
        %3611 = vmatprep.subr.bf16.mxu0 0
        %3612 = vmatpush1.bf16.msra.mxu0 0
        %3613 = vmatprep.subr.bf16.mxu0 0
        %3614 = vmatpush1.bf16.msra.mxu0 0
        %3615 = vmatprep.subr.bf16.mxu0 0
        %3616 = vmatpush1.bf16.msra.mxu0 0
        %3617 = vmatprep.subr.bf16.mxu0 0
        %3618 = vmatpush1.bf16.msra.mxu0 0
        %3619 = vmatprep.subr.bf16.mxu0 0
        %3620 = vmatpush1.bf16.msra.mxu0 0
        %3621 = vmatprep.subr.bf16.mxu0 0
        %3622 = vmatpush1.bf16.msra.mxu0 0
        %3623 = vmatprep.subr.bf16.mxu0 0
        %3624 = vmatpush1.bf16.msra.mxu0 0
        %3625 = vmatprep.mubr.bf16.mxu0 0
        %3626 = vmatmul.mubr.bf16.gmra.mrb[0].mxu0 %v3588
        %v3627 = vpop.f32.mrb[0].mxu0
        %v3628 = vadd.f32 %v3573, %v3627
        %v3629 = vpop.f32.mrb[0].mxu0
        %v3630 = vpop.f32.mrb[0].mxu0
        %v3631 = vadd.f32 %v3573, %v3630
        %v3632 = vpop.f32.mrb[0].mxu0
        %3633 = vmatprep.mubr.bf16.mxu0 0
        %3634 = vmatmul.mubr.bf16.gmra.mrb[0].mxu0 %v3591
        %v3635 = vpop.f32.mrb[0].mxu0
        %v3636 = vadd.f32 %v3573, %v3635
        %v3637 = vpop.f32.mrb[0].mxu0
        %v3638 = vpop.f32.mrb[0].mxu0
        %v3639 = vadd.f32 %v3573, %v3638
        %v3640 = vpop.f32.mrb[0].mxu0
        %3641 = vdwg.mxu0
        %v3642 = vmul.f32 %v3628, 0.5
        %v3643 = vmul.f32 %v3631, 0.5
        %v3644 = vmul.f32 %v3636, 0.5
        %v3645 = vmul.f32 %v3639, 0.5
        %v3646 = vmul.f32 %v3628, 0.044715
        %v3647 = vmul.f32 %v3631, 0.044715
        %v3648 = vmul.f32 %v3636, 0.044715
        %v3649 = vmul.f32 %v3639, 0.044715
        %v3650 = vmul.f32 %v3646, %v3628
        %v3651 = vmul.f32 %v3647, %v3631
        %v3652 = vmul.f32 %v3648, %v3636
        %v3653 = vmul.f32 %v3649, %v3639
        %v3654 = vmul.f32 %v3650, %v3628
        %v3655 = vmul.f32 %v3651, %v3631
        %v3656 = vmul.f32 %v3652, %v3636
        %v3657 = vmul.f32 %v3653, %v3639
        %v3658 = vadd.f32 %v3628, %v3654
        %v3659 = vadd.f32 %v3631, %v3655
        %v3660 = vadd.f32 %v3636, %v3656
        %v3661 = vadd.f32 %v3639, %v3657
        %v3662 = vmul.f32 %v3658, 0.7978846
        %v3663 = vmul.f32 %v3659, 0.7978846
        %v3664 = vmul.f32 %v3660, 0.7978846
        %v3665 = vmul.f32 %v3661, 0.7978846
        %v3666 = vtanh.pop %v3662
        %v3667 = vtanh.pop %v3663
        %v3668 = vtanh.pop %v3664
        %v3669 = vtanh.pop %v3665
        %v3670 = vadd.f32 %v3666, 1.0
        %v3671 = vadd.f32 %v3667, 1.0
        %v3672 = vadd.f32 %v3668, 1.0
        %v3673 = vadd.f32 %v3669, 1.0
        %v3674 = vmul.f32 %v3642, %v3670
        %v3675 = vmul.f32 %v3643, %v3671
        %v3676 = vmul.f32 %v3644, %v3672
        %v3677 = vmul.f32 %v3645, %v3673
        %v3678 = vpack.c.bf16 %v3675, %v3674
        %v3679 = vpack.c.bf16 %v3677, %v3676
        %v3680 = vld [vmem:[%s1258] sm:$0xf]
        %v3681 = vld [vmem:[%s1258 + $0x4] sm:$0xf]
        %v3682 = vld [vmem:[%s1258 + $0x8] sm:$0xf]
        %v3683 = vld [vmem:[%s1258 + $0xc] sm:$0xf]
        %v3684 = vld [vmem:[%s1258 + $0x10] sm:$0xf]
        %v3685 = vld [vmem:[%s1258 + $0x14] sm:$0xf]
        %v3686 = vld [vmem:[%s1258 + $0x18] sm:$0xf]
        %v3687 = vld [vmem:[%s1258 + $0x1c] sm:$0xf]
        %v3688 = vld [vmem:[%s1258 + $0x20] sm:$0xf]
        %v3689 = vld [vmem:[%s1258 + $0x24] sm:$0xf]
        %v3690 = vld [vmem:[%s1258 + $0x28] sm:$0xf]
        %v3691 = vld [vmem:[%s1258 + $0x2c] sm:$0xf]
        %v3692 = vld [vmem:[%s1258 + $0x30] sm:$0xf]
        %v3693 = vld [vmem:[%s1258 + $0x34] sm:$0xf]
        %v3694 = vld [vmem:[%s1258 + $0x38] sm:$0xf]
        %v3695 = vld [vmem:[%s1258 + $0x3c] sm:$0xf]
        %v3696 = vld [vmem:[%s1266] sm:$0x1]
        %v3698 = vlaneseq
        %v3699 = vshrl.u32 %v3698, 7
        %v3700 = vsub.s32 0, %v3699
        %v3701 = vrot.slane %v3696, %v3700
        %v3719 = vunpack.c.l.b16 %v3680
        %v3720 = vunpack.c.l.b16 %v3681
        %v3721 = vunpack.c.l.b16 %v3682
        %v3722 = vunpack.c.l.b16 %v3683
        %v3723 = vunpack.c.l.b16 %v3684
        %v3724 = vunpack.c.l.b16 %v3685
        %v3725 = vunpack.c.l.b16 %v3686
        %v3726 = vunpack.c.l.b16 %v3687
        %v3727 = vunpack.c.l.b16 %v3688
        %v3728 = vunpack.c.l.b16 %v3689
        %v3729 = vunpack.c.l.b16 %v3690
        %v3730 = vunpack.c.l.b16 %v3691
        %v3731 = vunpack.c.l.b16 %v3692
        %v3732 = vunpack.c.l.b16 %v3693
        %v3733 = vunpack.c.l.b16 %v3694
        %v3734 = vunpack.c.l.b16 %v3695
        %v3735 = vpack.c.b16 %v3720, %v3719
        %v3736 = vpack.c.b16 %v3722, %v3721
        %v3737 = vpack.c.b16 %v3724, %v3723
        %v3738 = vpack.c.b16 %v3726, %v3725
        %v3739 = vpack.c.b16 %v3728, %v3727
        %v3740 = vpack.c.b16 %v3730, %v3729
        %v3741 = vpack.c.b16 %v3732, %v3731
        %v3742 = vpack.c.b16 %v3734, %v3733
        %3751 = vmatprep.subr.bf16.mxu0 0
        %3752 = vmatpush1.bf16.msra.mxu0 %v3735
        %3753 = vmatprep.subr.bf16.mxu0 0
        %3754 = vmatpush1.bf16.msra.mxu0 %v3736
        %3755 = vmatprep.subr.bf16.mxu0 0
        %3756 = vmatpush1.bf16.msra.mxu0 %v3737
        %3757 = vmatprep.subr.bf16.mxu0 0
        %3758 = vmatpush1.bf16.msra.mxu0 %v3738
        %3759 = vmatprep.subr.bf16.mxu0 0
        %3760 = vmatpush1.bf16.msra.mxu0 %v3739
        %3761 = vmatprep.subr.bf16.mxu0 0
        %3762 = vmatpush1.bf16.msra.mxu0 %v3740
        %3763 = vmatprep.subr.bf16.mxu0 0
        %3764 = vmatpush1.bf16.msra.mxu0 %v3741
        %3765 = vmatprep.subr.bf16.mxu0 0
        %3766 = vmatpush1.bf16.msra.mxu0 %v3742
        %3767 = vmatprep.subr.bf16.mxu0 0
        %3768 = vmatpush1.bf16.msra.mxu0 0
        %3769 = vmatprep.subr.bf16.mxu0 0
        %3770 = vmatpush1.bf16.msra.mxu0 0
        %3771 = vmatprep.subr.bf16.mxu0 0
        %3772 = vmatpush1.bf16.msra.mxu0 0
        %3773 = vmatprep.subr.bf16.mxu0 0
        %3774 = vmatpush1.bf16.msra.mxu0 0
        %3775 = vmatprep.subr.bf16.mxu0 0
        %3776 = vmatpush1.bf16.msra.mxu0 0
        %3777 = vmatprep.subr.bf16.mxu0 0
        %3778 = vmatpush1.bf16.msra.mxu0 0
        %3779 = vmatprep.subr.bf16.mxu0 0
        %3780 = vmatpush1.bf16.msra.mxu0 0
        %3781 = vmatprep.subr.bf16.mxu0 0
        %3782 = vmatpush1.bf16.msra.mxu0 0
        %3783 = vmatprep.mubr.bf16.mxu0 0
        %3784 = vmatmul.mubr.bf16.gmra.mrb[0].mxu0 %v3678
        %v3785 = vpop.f32.mrb[0].mxu0
        %v3786 = vadd.f32 %v3701, %v3785
        %v3787 = vpop.f32.mrb[0].mxu0
        %v3788 = vpop.f32.mrb[0].mxu0
        %v3789 = vadd.f32 %v3701, %v3788
        %v3790 = vpop.f32.mrb[0].mxu0
        %3791 = vmatprep.mubr.bf16.mxu0 0
        %3792 = vmatmul.mubr.bf16.gmra.mrb[0].mxu0 %v3679
        %v3793 = vpop.f32.mrb[0].mxu0
        %v3794 = vadd.f32 %v3701, %v3793
        %v3795 = vpop.f32.mrb[0].mxu0
        %v3796 = vpop.f32.mrb[0].mxu0
        %v3797 = vadd.f32 %v3701, %v3796
        %v3798 = vpop.f32.mrb[0].mxu0
        %3799 = vdwg.mxu0
        %v3800 = vadd.f32 %v3484, %v3786
        %v3801 = vadd.f32 %v3485, %v3789
        %v3802 = vadd.f32 %v3486, %v3794
        %v3803 = vadd.f32 %v3487, %v3797
        %3804 = vst.msk [vmem:[#allocation2] sm:$0xff] %vm1941, %v3800
        %3805 = vst.msk [vmem:[#allocation2 + $0x8] sm:$0xff] %vm1941, %v3801
        %3806 = vst.msk [vmem:[#allocation2 + $0x10] sm:$0xff] %vm1941, %v3802
        %3807 = vst.msk [vmem:[#allocation2 + $0x18] sm:$0xff] %vm1941, %v3803
        %p3808 = scmp.eq.s32.totalorder %s57, 1
        // Predicated region
        $region229: #{tpu_custom_call.1} parent=123 // pred_check
          %p3809 = pneg %p3808
        $region230: #{tpu_custom_call.1} parent=123 // pred_check_branch
          %3811 = sbr.rel (%p3809) target = $region232
        $region231: #{tpu_custom_call.1} parent=123 // pred_region
          %v3812 = vld [vmem:[#allocation33] sm:$0x1]
          %v3813 = vld [vmem:[#allocation34] sm:$0x1]
          %v3814 = vsel %vm1941, %v3800, 0.0
          %3815 = vadd.xlane.f32.xlu0 %v3814
          %v3816 = vpop.xlane.xlu0 %3815
          %v3817 = vsel %vm1941, %v3801, 0.0
          %3818 = vadd.xlane.f32.xlu0 %v3817
          %v3819 = vpop.xlane.xlu0 %3818
          %v3820 = vsel %vm1941, %v3802, 0.0
          %3821 = vadd.xlane.f32.xlu0 %v3820
          %v3822 = vpop.xlane.xlu0 %3821
          %v3823 = vsel %vm1941, %v3803, 0.0
          %3824 = vadd.xlane.f32.xlu0 %v3823
          %v3825 = vpop.xlane.xlu0 %3824
          %v3826 = vmul.f32 %v3816, %v1954
          %v3827 = vmul.f32 %v3819, %v1954
          %v3828 = vmul.f32 %v3822, %v1954
          %v3829 = vmul.f32 %v3825, %v1954
          %v3830 = vsub.f32 %v3800, %v3826
          %v3831 = vsub.f32 %v3801, %v3827
          %v3832 = vsub.f32 %v3802, %v3828
          %v3833 = vsub.f32 %v3803, %v3829
          %v3834 = vmul.f32 %v3830, %v3830
          %v3835 = vmul.f32 %v3831, %v3831
          %v3836 = vmul.f32 %v3832, %v3832
          %v3837 = vmul.f32 %v3833, %v3833
          %v3838 = vsel %vm1941, %v3834, 0.0
          %3839 = vadd.xlane.f32.xlu0 %v3838
          %v3840 = vpop.xlane.xlu0 %3839
          %v3841 = vsel %vm1941, %v3835, 0.0
          %3842 = vadd.xlane.f32.xlu0 %v3841
          %v3843 = vpop.xlane.xlu0 %3842
          %v3844 = vsel %vm1941, %v3836, 0.0
          %3845 = vadd.xlane.f32.xlu0 %v3844
          %v3846 = vpop.xlane.xlu0 %3845
          %v3847 = vsel %vm1941, %v3837, 0.0
          %3848 = vadd.xlane.f32.xlu0 %v3847
          %v3849 = vpop.xlane.xlu0 %3848
          %v3850 = vmul.f32 %v3840, %v1954
          %v3851 = vmul.f32 %v3843, %v1954
          %v3852 = vmul.f32 %v3846, %v1954
          %v3853 = vmul.f32 %v3849, %v1954
          %v3854 = vadd.f32 %v3850, 1e-05
          %v3855 = vadd.f32 %v3851, 1e-05
          %v3856 = vadd.f32 %v3852, 1e-05
          %v3857 = vadd.f32 %v3853, 1e-05
          %v3858 = vrsqrt.pop %v3854
          %v3859 = vrsqrt.pop %v3855
          %v3860 = vrsqrt.pop %v3856
          %v3861 = vrsqrt.pop %v3857
          %v3862 = vmul.f32 %v3830, %v3858
          %v3863 = vmul.f32 %v3831, %v3859
          %v3864 = vmul.f32 %v3832, %v3860
          %v3865 = vmul.f32 %v3833, %v3861
          %v3867 = vlaneseq
          %v3868 = vshrl.u32 %v3867, 7
          %v3869 = vsub.s32 0, %v3868
          %v3870 = vrot.slane %v3812, %v3869
          %v3872 = vmul.f32 %v3862, %v3870
          %v3873 = vmul.f32 %v3863, %v3870
          %v3874 = vmul.f32 %v3864, %v3870
          %v3875 = vmul.f32 %v3865, %v3870
          %v3877 = vlaneseq
          %v3878 = vshrl.u32 %v3877, 7
          %v3879 = vsub.s32 0, %v3878
          %v3880 = vrot.slane %v3813, %v3879
          %v3882 = vadd.f32 %v3872, %v3880
          %v3883 = vadd.f32 %v3873, %v3880
          %v3884 = vadd.f32 %v3874, %v3880
          %v3885 = vadd.f32 %v3875, %v3880
          %v3886 = vld [vmem:[#allocation35] sm:$0x1]
          %v3887 = vpack.c.bf16 %v3886, %v3886
          %v3888 = vpack.c.bf16 %v3883, %v3882
          %v3889 = vld [vmem:[#allocation3] sm:$0x1]
          %3891 = vset.pattern.permute.xlu0 0
          %3892 = vperm.xlu0 %3891, %v3889
          %v3893 = vpop.permute.xlu0 %3892
          %v3895 = vlaneseq
          %v3896 = vshrl.u32 %v3895, 7
          %v3897 = vsub.s32 0, %v3896
          %v3898 = vrot.slane %v3893, %v3897
          %v3900 = vsel %vm1941, %v3887, 0
          %v3903 = vsel %vm1941, %v3888, 0
          %3905 = vmatprep.subr.bf16.mxu0 0
          %3906 = vmatpush1.bf16.xpose.msra.mxu0 %v3903
          %3907 = vmatprep.subr.bf16.mxu0 0
          %3908 = vmatpush1.bf16.xpose.msra.mxu0 0
          %3909 = vmatprep.subr.bf16.mxu0 0
          %3910 = vmatpush1.bf16.xpose.msra.mxu0 0
          %3911 = vmatprep.subr.bf16.mxu0 0
          %3912 = vmatpush1.bf16.xpose.msra.mxu0 0
          %3913 = vmatprep.subr.bf16.mxu0 0
          %3914 = vmatpush1.bf16.xpose.msra.mxu0 0
          %3915 = vmatprep.subr.bf16.mxu0 0
          %3916 = vmatpush1.bf16.xpose.msra.mxu0 0
          %3917 = vmatprep.subr.bf16.mxu0 0
          %3918 = vmatpush1.bf16.xpose.msra.mxu0 0
          %3919 = vmatprep.subr.bf16.mxu0 0
          %3920 = vmatpush1.bf16.xpose.msra.mxu0 0
          %3921 = vmatprep.subr.bf16.mxu0 0
          %3922 = vmatpush1.bf16.xpose.msra.mxu0 0
          %3923 = vmatprep.subr.bf16.mxu0 0
          %3924 = vmatpush1.bf16.xpose.msra.mxu0 0
          %3925 = vmatprep.subr.bf16.mxu0 0
          %3926 = vmatpush1.bf16.xpose.msra.mxu0 0
          %3927 = vmatprep.subr.bf16.mxu0 0
          %3928 = vmatpush1.bf16.xpose.msra.mxu0 0
          %3929 = vmatprep.subr.bf16.mxu0 0
          %3930 = vmatpush1.bf16.xpose.msra.mxu0 0
          %3931 = vmatprep.subr.bf16.mxu0 0
          %3932 = vmatpush1.bf16.xpose.msra.mxu0 0
          %3933 = vmatprep.subr.bf16.mxu0 0
          %3934 = vmatpush1.bf16.xpose.msra.mxu0 0
          %3935 = vmatprep.subr.bf16.mxu0 0
          %3936 = vmatpush1.bf16.xpose.msra.mxu0 0
          %3937 = vmatprep.mubr.bf16.mxu0 0
          %3938 = vmatmul.mubr.bf16.gmra.mrb[0].mxu0 %v3900
          %v3939 = vpop.f32.mrb[0].mxu0
          %v3940 = vadd.f32 %v3898, %v3939
          %v3941 = vpop.f32.mrb[0].mxu0
          %v3942 = vpop.f32.mrb[0].mxu0
          %v3943 = vpop.f32.mrb[0].mxu0
          %3944 = vdwg.mxu0
          %vm3945 = vcmask 122880
          %3946 = vst.msk [vmem:[%s1403] sm:$0x1] %vm3945, %v3940
          %v3947 = vpack.c.bf16 %v3885, %v3884
          %v3948 = vld [vmem:[#allocation3] sm:$0x1]
          %3950 = vset.pattern.permute.xlu0 0
          %3951 = vperm.xlu0 %3950, %v3948
          %v3952 = vpop.permute.xlu0 %3951
          %v3954 = vlaneseq
          %v3955 = vshrl.u32 %v3954, 7
          %v3956 = vsub.s32 0, %v3955
          %v3957 = vrot.slane %v3952, %v3956
          %v3959 = vsel %vm1941, %v3947, 0
          %3961 = vmatprep.subr.bf16.mxu0 0
          %3962 = vmatpush1.bf16.xpose.msra.mxu0 %v3959
          %3963 = vmatprep.subr.bf16.mxu0 0
          %3964 = vmatpush1.bf16.xpose.msra.mxu0 0
          %3965 = vmatprep.subr.bf16.mxu0 0
          %3966 = vmatpush1.bf16.xpose.msra.mxu0 0
          %3967 = vmatprep.subr.bf16.mxu0 0
          %3968 = vmatpush1.bf16.xpose.msra.mxu0 0
          %3969 = vmatprep.subr.bf16.mxu0 0
          %3970 = vmatpush1.bf16.xpose.msra.mxu0 0
          %3971 = vmatprep.subr.bf16.mxu0 0
          %3972 = vmatpush1.bf16.xpose.msra.mxu0 0
          %3973 = vmatprep.subr.bf16.mxu0 0
          %3974 = vmatpush1.bf16.xpose.msra.mxu0 0
          %3975 = vmatprep.subr.bf16.mxu0 0
          %3976 = vmatpush1.bf16.xpose.msra.mxu0 0
          %3977 = vmatprep.subr.bf16.mxu0 0
          %3978 = vmatpush1.bf16.xpose.msra.mxu0 0
          %3979 = vmatprep.subr.bf16.mxu0 0
          %3980 = vmatpush1.bf16.xpose.msra.mxu0 0
          %3981 = vmatprep.subr.bf16.mxu0 0
          %3982 = vmatpush1.bf16.xpose.msra.mxu0 0
          %3983 = vmatprep.subr.bf16.mxu0 0
          %3984 = vmatpush1.bf16.xpose.msra.mxu0 0
          %3985 = vmatprep.subr.bf16.mxu0 0
          %3986 = vmatpush1.bf16.xpose.msra.mxu0 0
          %3987 = vmatprep.subr.bf16.mxu0 0
          %3988 = vmatpush1.bf16.xpose.msra.mxu0 0
          %3989 = vmatprep.subr.bf16.mxu0 0
          %3990 = vmatpush1.bf16.xpose.msra.mxu0 0
          %3991 = vmatprep.subr.bf16.mxu0 0
          %3992 = vmatpush1.bf16.xpose.msra.mxu0 0
          %3993 = vmatprep.mubr.bf16.mxu0 0
          %3994 = vmatmul.mubr.bf16.gmra.mrb[0].mxu0 %v3900
          %v3995 = vpop.f32.mrb[0].mxu0
          %v3996 = vadd.f32 %v3957, %v3995
          %v3997 = vpop.f32.mrb[0].mxu0
          %v3998 = vpop.f32.mrb[0].mxu0
          %v3999 = vpop.f32.mrb[0].mxu0
          %4000 = vdwg.mxu0
          %s4001 = scalar_lea.vmem %s1403, 1 [#allocation36]
          %4002 = vst.msk [vmem:[%s4001] sm:$0x1] %vm3945, %v3996
        $region232: #{tpu_custom_call.1} parent=123 // pred_fallthru
          _
        %s4003 = sand.u32 %s688, 1
        %s4004 = scalar_lea.sflag [#allocation6], %s4003
        %s4005 = sand.u32 %s688, 1
        %s4006 = smul.addr %s4005, 2
        %s4007 = scalar_lea.vmem [#allocation36], %s4006
        // Predicated region
        $region233: #{tpu_custom_call.1} parent=123 // pred_check
          %p4008 = pneg %p698
        $region234: #{tpu_custom_call.1} parent=123 // pred_check_branch
          %4010 = sbr.rel (%p4008) target = $region236
        $region235: #{tpu_custom_call.1} parent=123 // pred_region
          %s4011 = smul.u32 2, %s56
          %s4013 = ssub.s32 32, 32
          %4014 = vsyncadd %s4004, %s4013
          %s4015 = smul.addr %s4011, 16
          %s4016 = scalar_lea.hbm %s26, %s4015
          %s4017 = sshll.u32 %s4007, 4
          %s4018 = int_to_ptr.vmem [resolvable:$true] %s4017
          %4023 = dma.vmem_to_hbm [thread:$0]  %s4018, 32, %s4016, %s4004, 16, 16, 1
        $region236: #{tpu_custom_call.1} parent=123 // pred_fallthru
          _
      $region124: #{tpu_custom_call.1} parent=5 // pred_fallthru
        _
      %p4024 = scmp.le.s32.totalorder 2, %s47
      // Predicated region
      $region237: #{tpu_custom_call.1} parent=5 // pred_check
        %p4025 = pneg %p4024
      $region238: #{tpu_custom_call.1} parent=5 // pred_check_branch
        %4027 = sbr.rel (%p4025) target = $region240
      $region239: #{tpu_custom_call.1} parent=5 // pred_region
        %s4028 = ssub.s32 %s47, 2
        // Predicated region
        $region241: #{tpu_custom_call.1} parent=239 // pred_check
          %p4029 = pneg %p704
        $region242: #{tpu_custom_call.1} parent=239 // pred_check_branch
          %4031 = sbr.rel (%p4029) target = $region244
        $region243: #{tpu_custom_call.1} parent=239 // pred_region
          %s4032 = sand.u32 %s689, 1
          %s4033 = scalar_lea.sflag [#allocation6], %s4032
          %s4034 = sand.u32 %s689, 1
          %s4035 = smul.addr %s4034, 2
          %s4036 = scalar_lea.vmem [#allocation36], %s4035
          %4037 = dma.done %s4033, 32
        $region244: #{tpu_custom_call.1} parent=239 // pred_fallthru
          _
      $region240: #{tpu_custom_call.1} parent=5 // pred_fallthru
        _
    $region6: #{tpu_custom_call.1} parent=1 // loop_footer
      %s51 = sadd.s32 1, %s47
    $region7: #{tpu_custom_call.1} parent=1 // loop_footer_branch
      %46 = sbr.rel target = $region3
    $region8: #{tpu_custom_call.1} parent=1 // loop_exit
      _
    %4038 = vsyncpa [#allocation5], 1
    %s4039 = scalar_lea.sflag [#allocation5], 1
    %4040 = vsyncpa %s4039, 1
    %4041 = vsyncpa [#allocation8], 1
    %s4042 = scalar_lea.sflag [#allocation8], 1
    %4043 = vsyncpa %s4042, 1
    %4044 = vsyncpa [#allocation11], 1
    %4045 = vsyncpa [#allocation14], 1
    %4046 = vsyncpa [#allocation17], 1
    %4047 = vsyncpa [#allocation20], 1
    %4048 = vsyncpa [#allocation6], 1
    %s4049 = scalar_lea.sflag [#allocation6], 1
    %4050 = vsyncpa %s4049, 1

</llo_original>
